<compile_context>
chip_gen: v6e
topology: v6e:2x2x1
jax: 0.10.0
libtpu: 0.0.40
codegen_flags: <defaults>
</compile_context>

<pallas_src>
import functools

import jax
import jax.numpy as jnp
from jax.experimental import pallas as pl
from jax.experimental.pallas import tpu as pltpu


# ----------------------------------------------------------------------------
# Pallas kernel: fused [concat] + 3x3 conv (padding=1) + affine + optional ReLU
# ----------------------------------------------------------------------------
def _fused_conv_kernel(up_ref, skip_ref, wu_ref, ws_ref, scale_ref, shift_ref,
                       o_ref, *, Wq, N, apply_relu):
    # up_ref:    (1, Cup,   Lp)   bf16  zero-padded (1 top, 2 bottom, 1 L, 1 R),
    #                                   spatially flattened upsampled tensor
    # skip_ref:  (1, Cskip, Lp)   bf16  same layout for the skip tensor
    # wu_ref:    (9, Cout, Cup)   bf16  per-tap transposed weights (up part)
    # ws_ref:    (9, Cout, Cskip) bf16  per-tap transposed weights (skip part)
    # scale_ref: (Cout, 1)        f32   folded BN scale (ones for plain conv)
    # shift_ref: (Cout, 1)        f32   folded BN shift (bias for plain conv)
    # o_ref:     (1, Cout, N)     f32   N = H * Wq  (padded-width flat spatial)
    cout = o_ref.shape[1]
    up = up_ref[0]        # (Cup,   Lp)
    sk = skip_ref[0]      # (Cskip, Lp)

    # Lane-dense accumulator: spatial is the lane / MXU-N dimension.
    acc = jnp.zeros((cout, N), jnp.float32)
    for dy in range(3):
        for dx in range(3):
            off = dy * Wq + dx
            t = dy * 3 + dx
            # fused concat: two accumulating bf16 matmuls per tap (up + skip)
            acc = acc + jnp.dot(wu_ref[t], up[:, off:off + N],
                                preferred_element_type=jnp.float32)
            acc = acc + jnp.dot(ws_ref[t], sk[:, off:off + N],
                                preferred_element_type=jnp.float32)

    out = acc * scale_ref[...] + shift_ref[...]
    if apply_relu:
        out = jnp.maximum(out, 0.0)
    o_ref[0] = out.astype(o_ref.dtype)


def _pad_flatten(x):
    """(B, C, H, W) f32 -> (B, C, (H+3)*(W+2)) bf16.

    Zero pad: 1 top, 2 bottom, 1 left, 1 right, then flatten spatial so that a
    3x3 tap (dy, dx) is a single static lane-offset slice (off = dy*(W+2)+dx).
    """
    xp = jnp.pad(x, ((0, 0), (0, 0), (1, 2), (1, 1)))
    B, C, Hp, Wq = xp.shape
    return xp.reshape(B, C, Hp * Wq).astype(jnp.bfloat16)


def _prep_tap_weights(w):
    """(Cout, Cin, 3, 3) OIHW -> (9, Cout, Cin) bf16, tap-major (dy*3+dx)."""
    cout, cin = w.shape[0], w.shape[1]
    return jnp.transpose(w, (2, 3, 0, 1)).reshape(9, cout, cin).astype(jnp.bfloat16)


def fused_upconcat_conv_bn_relu(x_up, x_skip, w, scale, shift, *, apply_relu):
    """conv3x3(concat([x_up, x_skip], C)) * scale + shift (+ ReLU).

    x_up:   (B, Cup, H, W) f32   (already resized to the skip resolution)
    x_skip: (B, Cskip, H, W) f32
    w:      (Cout, Cup+Cskip, 3, 3) f32  (PyTorch OIHW; first Cup in-channels
                                          correspond to x_up, rest to x_skip)
    scale/shift: (Cout,) f32
    returns (B, Cout, H, W) f32
    """
    B, Cup, H, W = x_up.shape
    Cskip = x_skip.shape[1]
    Cout = w.shape[0]
    Wq = W + 2
    N = H * Wq                 # flat spatial size of one output image (lanes)
    Lp = (H + 3) * Wq          # flat size of the padded input image

    up_f = _pad_flatten(x_up)
    sk_f = _pad_flatten(x_skip)
    wu = _prep_tap_weights(w[:, :Cup])
    ws = _prep_tap_weights(w[:, Cup:])
    scale2 = scale.reshape(Cout, 1).astype(jnp.float32)
    shift2 = shift.reshape(Cout, 1).astype(jnp.float32)

    kernel = functools.partial(_fused_conv_kernel, Wq=Wq, N=N,
                               apply_relu=apply_relu)
    out_flat = pl.pallas_call(
        kernel,
        out_shape=jax.ShapeDtypeStruct((B, Cout, N), jnp.float32),
        grid=(B,),
        in_specs=[
            pl.BlockSpec((1, Cup, Lp), lambda b: (b, 0, 0)),
            pl.BlockSpec((1, Cskip, Lp), lambda b: (b, 0, 0)),
            pl.BlockSpec((9, Cout, Cup), lambda b: (0, 0, 0)),
            pl.BlockSpec((9, Cout, Cskip), lambda b: (0, 0, 0)),
            pl.BlockSpec((Cout, 1), lambda b: (0, 0)),
            pl.BlockSpec((Cout, 1), lambda b: (0, 0)),
        ],
        out_specs=pl.BlockSpec((1, Cout, N), lambda b: (b, 0, 0)),
        compiler_params=pltpu.CompilerParams(
            dimension_semantics=("parallel",),
            vmem_limit_bytes=32 * 1024 * 1024,
        ),
    )(up_f, sk_f, wu, ws, scale2, shift2)

    # Drop the 2 garbage columns per row introduced by the padded-width layout.
    return out_flat.reshape(B, Cout, H, Wq)[:, :, :, :W]


# ----------------------------------------------------------------------------
# Glue: bilinear resize (matches F.interpolate mode='bilinear', align_corners=False)
# ----------------------------------------------------------------------------
def bilinear_resize_nchw(x, out_h, out_w):
    B, C, H, W = x.shape
    if (H, W) == (out_h, out_w):
        return x

    def coords(out_size, in_size):
        scale = in_size / out_size
        src = (jnp.arange(out_size, dtype=jnp.float32) + 0.5) * scale - 0.5
        src = jnp.clip(src, 0.0, float(in_size - 1))
        lo = jnp.floor(src).astype(jnp.int32)
        hi = jnp.minimum(lo + 1, in_size - 1)
        frac = src - lo.astype(jnp.float32)
        return lo, hi, frac

    y0, y1, fy = coords(out_h, H)
    x0, x1, fx = coords(out_w, W)
    top = (x[:, :, y0, :] * (1.0 - fy)[None, None, :, None]
           + x[:, :, y1, :] * fy[None, None, :, None])
    out = (top[:, :, :, x0] * (1.0 - fx)[None, None, None, :]
           + top[:, :, :, x1] * fx[None, None, None, :])
    return out


# ----------------------------------------------------------------------------
# Parameters (deterministic init; BN folded to scale/shift, eval semantics)
# ----------------------------------------------------------------------------
def _fold_bn(gamma, beta, mean, var, eps=1e-5):
    scale = gamma / jnp.sqrt(var + eps)
    shift = beta - mean * scale
    return scale, shift


def init_decoder_params(channels, feature_channels, key):
    fc, ch = feature_channels, channels
    cins = [fc[0] + ch[0], fc[1] + ch[1], fc[2] + ch[2], fc[3] + ch[3]]
    couts = [ch[1], ch[2], ch[3], ch[4]]

    keys = jax.random.split(key, 24)
    p = {}
    k = 0
    for i in range(4):
        p[f"w{i + 1}"] = 0.1 * jax.random.normal(
            keys[k], (couts[i], cins[i], 3, 3), jnp.float32); k += 1
        if i < 3:  # conv1..3 followed by BatchNorm (no conv bias)
            gamma = 0.5 + jax.random.uniform(keys[k], (couts[i],), jnp.float32); k += 1
            beta = 0.1 * jax.random.normal(keys[k], (couts[i],), jnp.float32); k += 1
            mean = 0.1 * jax.random.normal(keys[k], (couts[i],), jnp.float32); k += 1
            var = 0.5 + jax.random.uniform(keys[k], (couts[i],), jnp.float32); k += 1
            p[f"s{i + 1}"], p[f"b{i + 1}"] = _fold_bn(gamma, beta, mean, var)
        else:      # conv4 has a bias, no BN
            p["s4"] = jnp.ones((couts[i],), jnp.float32)
            p["b4"] = 0.1 * jax.random.normal(keys[k], (couts[i],), jnp.float32); k += 1
    return p


# ----------------------------------------------------------------------------
# Decoder forward (NCHW in / NCHW out, like the PyTorch module)
# ----------------------------------------------------------------------------
def decoder_forward(params, x4, x3, x2, x1, x0):
    x = bilinear_resize_nchw(x4, x3.shape[2], x3.shape[3])
    x = fused_upconcat_conv_bn_relu(x, x3, params["w1"], params["s1"],
                                    params["b1"], apply_relu=True)
    x = bilinear_resize_nchw(x, x2.shape[2], x2.shape[3])
    x = fused_upconcat_conv_bn_relu(x, x2, params["w2"], params["s2"],
                                    params["b2"], apply_relu=True)
    x = bilinear_resize_nchw(x, x1.shape[2], x1.shape[3])
    x = fused_upconcat_conv_bn_relu(x, x1, params["w3"], params["s3"],
                                    params["b3"], apply_relu=True)
    x = bilinear_resize_nchw(x, x0.shape[2], x0.shape[3])
    x = fused_upconcat_conv_bn_relu(x, x0, params["w4"], params["s4"],
                                    params["b4"], apply_relu=False)
    return x


# ----------------------------------------------------------------------------
if __name__ == "__main__":
    channels = (16, 12, 10, 8, 4)        # (in, then conv1..4 out channels)
    feature_channels = (8, 6, 6, 4)      # encoder skip channels at 1/8,1/4,1/2,1/1
    B, H, W = 2, 32, 32

    key = jax.random.PRNGKey(0)
    k_in, k_par = jax.random.split(key)
    ks = jax.random.split(k_in, 5)

    x4 = jax.random.normal(ks[0], (B, channels[0], H // 16, W // 16), jnp.float32)
    x3 = jax.random.normal(ks[1], (B, feature_channels[0], H // 8, W // 8), jnp.float32)
    x2 = jax.random.normal(ks[2], (B, feature_channels[1], H // 4, W // 4), jnp.float32)
    x1 = jax.random.normal(ks[3], (B, feature_channels[2], H // 2, W // 2), jnp.float32)
    x0 = jax.random.normal(ks[4], (B, feature_channels[3], H, W), jnp.float32)

    params = init_decoder_params(channels, feature_channels, k_par)

    out = jax.jit(decoder_forward)(params, x4, x3, x2, x1, x0)
    out = jax.block_until_ready(out)

    assert out.shape == (B, channels[4], H, W), out.shape
    assert jnp.all(jnp.isfinite(out))
    print("KERNEL_OK")
</pallas_src>

<mosaic_0001>
module attributes {stable_mosaic.version = 11 : i64} {
  func.func @_fused_conv_kernel(%arg0: i32, %arg1: memref<1x16x42xbf16, #tpu.memory_space<vmem>>, %arg2: memref<1x8x42xbf16, #tpu.memory_space<vmem>>, %arg3: memref<9x12x16xbf16, #tpu.memory_space<vmem>>, %arg4: memref<9x12x8xbf16, #tpu.memory_space<vmem>>, %arg5: memref<12x1xf32, #tpu.memory_space<vmem>>, %arg6: memref<12x1xf32, #tpu.memory_space<vmem>>, %arg7: memref<1x12x24xf32, #tpu.memory_space<vmem>>) attributes {dimension_semantics = [#tpu.dimension_semantics<parallel>], iteration_bounds = array<i64: 2>, scalar_prefetch = 0 : i64, scratch_operands = 0 : i64, tpu.core_type = #tpu.core_type<tc>, window_params = [{transform_indices = @transform_0, window_bounds = array<i64: 1, 16, 42>}, {transform_indices = @transform_1, window_bounds = array<i64: 1, 8, 42>}, {pipeline_mode = #tpu.pipeline_mode<synchronous>, transform_indices = @transform_2, window_bounds = array<i64: 9, 12, 16>}, {pipeline_mode = #tpu.pipeline_mode<synchronous>, transform_indices = @transform_3, window_bounds = array<i64: 9, 12, 8>}, {pipeline_mode = #tpu.pipeline_mode<synchronous>, transform_indices = @transform_4, window_bounds = array<i64: 12, 1>}, {pipeline_mode = #tpu.pipeline_mode<synchronous>, transform_indices = @transform_5, window_bounds = array<i64: 12, 1>}, {transform_indices = @transform_6, window_bounds = array<i64: 1, 12, 24>}]} {
    %c0 = arith.constant 0 : index
    %c0_0 = arith.constant 0 : index
    %c0_1 = arith.constant 0 : index
    %0 = vector.load %arg1[%c0, %c0_0, %c0_1] : memref<1x16x42xbf16, #tpu.memory_space<vmem>>, vector<1x16x42xbf16>
    %1 = vector.shape_cast %0 : vector<1x16x42xbf16> to vector<16x42xbf16>
    %c0_2 = arith.constant 0 : index
    %c0_3 = arith.constant 0 : index
    %c0_4 = arith.constant 0 : index
    %2 = vector.load %arg2[%c0_2, %c0_3, %c0_4] : memref<1x8x42xbf16, #tpu.memory_space<vmem>>, vector<1x8x42xbf16>
    %3 = vector.shape_cast %2 : vector<1x8x42xbf16> to vector<8x42xbf16>
    %cst = arith.constant 0.000000e+00 : f32
    %4 = vector.broadcast %cst : f32 to vector<12x24xf32>
    %c0_5 = arith.constant 0 : index
    %c0_6 = arith.constant 0 : index
    %c0_7 = arith.constant 0 : index
    %5 = vector.load %arg3[%c0_5, %c0_6, %c0_7] : memref<9x12x16xbf16, #tpu.memory_space<vmem>>, vector<1x12x16xbf16>
    %6 = vector.shape_cast %5 : vector<1x12x16xbf16> to vector<12x16xbf16>
    %7 = vector.extract_strided_slice %1 {offsets = [0, 0], sizes = [16, 24], strides = [1, 1]} : vector<16x42xbf16> to vector<16x24xbf16>
    %cst_8 = arith.constant dense<0.000000e+00> : vector<12x24xf32>
    %8 = tpu.matmul %6, %7, %cst_8 {dimension_numbers = #tpu.dot_dimension_numbers<[1], [0], [0], [1], [0, 0, 1, 1], [], []>} : vector<12x16xbf16>, vector<16x24xbf16>, vector<12x24xf32> -> vector<12x24xf32>
    %9 = arith.addf %4, %8 : vector<12x24xf32>
    %c0_9 = arith.constant 0 : index
    %c0_10 = arith.constant 0 : index
    %c0_11 = arith.constant 0 : index
    %10 = vector.load %arg4[%c0_9, %c0_10, %c0_11] : memref<9x12x8xbf16, #tpu.memory_space<vmem>>, vector<1x12x8xbf16>
    %11 = vector.shape_cast %10 : vector<1x12x8xbf16> to vector<12x8xbf16>
    %12 = vector.extract_strided_slice %3 {offsets = [0, 0], sizes = [8, 24], strides = [1, 1]} : vector<8x42xbf16> to vector<8x24xbf16>
    %cst_12 = arith.constant dense<0.000000e+00> : vector<12x24xf32>
    %13 = tpu.matmul %11, %12, %cst_12 {dimension_numbers = #tpu.dot_dimension_numbers<[1], [0], [0], [1], [0, 0, 1, 1], [], []>} : vector<12x8xbf16>, vector<8x24xbf16>, vector<12x24xf32> -> vector<12x24xf32>
    %14 = arith.addf %9, %13 : vector<12x24xf32>
    %c1 = arith.constant 1 : index
    %c0_13 = arith.constant 0 : index
    %c0_14 = arith.constant 0 : index
    %15 = vector.load %arg3[%c1, %c0_13, %c0_14] : memref<9x12x16xbf16, #tpu.memory_space<vmem>>, vector<1x12x16xbf16>
    %16 = vector.shape_cast %15 : vector<1x12x16xbf16> to vector<12x16xbf16>
    %17 = vector.extract_strided_slice %1 {offsets = [0, 1], sizes = [16, 24], strides = [1, 1]} : vector<16x42xbf16> to vector<16x24xbf16>
    %cst_15 = arith.constant dense<0.000000e+00> : vector<12x24xf32>
    %18 = tpu.matmul %16, %17, %cst_15 {dimension_numbers = #tpu.dot_dimension_numbers<[1], [0], [0], [1], [0, 0, 1, 1], [], []>} : vector<12x16xbf16>, vector<16x24xbf16>, vector<12x24xf32> -> vector<12x24xf32>
    %19 = arith.addf %14, %18 : vector<12x24xf32>
    %c1_16 = arith.constant 1 : index
    %c0_17 = arith.constant 0 : index
    %c0_18 = arith.constant 0 : index
    %20 = vector.load %arg4[%c1_16, %c0_17, %c0_18] : memref<9x12x8xbf16, #tpu.memory_space<vmem>>, vector<1x12x8xbf16>
    %21 = vector.shape_cast %20 : vector<1x12x8xbf16> to vector<12x8xbf16>
    %22 = vector.extract_strided_slice %3 {offsets = [0, 1], sizes = [8, 24], strides = [1, 1]} : vector<8x42xbf16> to vector<8x24xbf16>
    %cst_19 = arith.constant dense<0.000000e+00> : vector<12x24xf32>
    %23 = tpu.matmul %21, %22, %cst_19 {dimension_numbers = #tpu.dot_dimension_numbers<[1], [0], [0], [1], [0, 0, 1, 1], [], []>} : vector<12x8xbf16>, vector<8x24xbf16>, vector<12x24xf32> -> vector<12x24xf32>
    %24 = arith.addf %19, %23 : vector<12x24xf32>
    %c2 = arith.constant 2 : index
    %c0_20 = arith.constant 0 : index
    %c0_21 = arith.constant 0 : index
    %25 = vector.load %arg3[%c2, %c0_20, %c0_21] : memref<9x12x16xbf16, #tpu.memory_space<vmem>>, vector<1x12x16xbf16>
    %26 = vector.shape_cast %25 : vector<1x12x16xbf16> to vector<12x16xbf16>
    %27 = vector.extract_strided_slice %1 {offsets = [0, 2], sizes = [16, 24], strides = [1, 1]} : vector<16x42xbf16> to vector<16x24xbf16>
    %cst_22 = arith.constant dense<0.000000e+00> : vector<12x24xf32>
    %28 = tpu.matmul %26, %27, %cst_22 {dimension_numbers = #tpu.dot_dimension_numbers<[1], [0], [0], [1], [0, 0, 1, 1], [], []>} : vector<12x16xbf16>, vector<16x24xbf16>, vector<12x24xf32> -> vector<12x24xf32>
    %29 = arith.addf %24, %28 : vector<12x24xf32>
    %c2_23 = arith.constant 2 : index
    %c0_24 = arith.constant 0 : index
    %c0_25 = arith.constant 0 : index
    %30 = vector.load %arg4[%c2_23, %c0_24, %c0_25] : memref<9x12x8xbf16, #tpu.memory_space<vmem>>, vector<1x12x8xbf16>
    %31 = vector.shape_cast %30 : vector<1x12x8xbf16> to vector<12x8xbf16>
    %32 = vector.extract_strided_slice %3 {offsets = [0, 2], sizes = [8, 24], strides = [1, 1]} : vector<8x42xbf16> to vector<8x24xbf16>
    %cst_26 = arith.constant dense<0.000000e+00> : vector<12x24xf32>
    %33 = tpu.matmul %31, %32, %cst_26 {dimension_numbers = #tpu.dot_dimension_numbers<[1], [0], [0], [1], [0, 0, 1, 1], [], []>} : vector<12x8xbf16>, vector<8x24xbf16>, vector<12x24xf32> -> vector<12x24xf32>
    %34 = arith.addf %29, %33 : vector<12x24xf32>
    %c3 = arith.constant 3 : index
    %c0_27 = arith.constant 0 : index
    %c0_28 = arith.constant 0 : index
    %35 = vector.load %arg3[%c3, %c0_27, %c0_28] : memref<9x12x16xbf16, #tpu.memory_space<vmem>>, vector<1x12x16xbf16>
    %36 = vector.shape_cast %35 : vector<1x12x16xbf16> to vector<12x16xbf16>
    %37 = vector.extract_strided_slice %1 {offsets = [0, 6], sizes = [16, 24], strides = [1, 1]} : vector<16x42xbf16> to vector<16x24xbf16>
    %cst_29 = arith.constant dense<0.000000e+00> : vector<12x24xf32>
    %38 = tpu.matmul %36, %37, %cst_29 {dimension_numbers = #tpu.dot_dimension_numbers<[1], [0], [0], [1], [0, 0, 1, 1], [], []>} : vector<12x16xbf16>, vector<16x24xbf16>, vector<12x24xf32> -> vector<12x24xf32>
    %39 = arith.addf %34, %38 : vector<12x24xf32>
    %c3_30 = arith.constant 3 : index
    %c0_31 = arith.constant 0 : index
    %c0_32 = arith.constant 0 : index
    %40 = vector.load %arg4[%c3_30, %c0_31, %c0_32] : memref<9x12x8xbf16, #tpu.memory_space<vmem>>, vector<1x12x8xbf16>
    %41 = vector.shape_cast %40 : vector<1x12x8xbf16> to vector<12x8xbf16>
    %42 = vector.extract_strided_slice %3 {offsets = [0, 6], sizes = [8, 24], strides = [1, 1]} : vector<8x42xbf16> to vector<8x24xbf16>
    %cst_33 = arith.constant dense<0.000000e+00> : vector<12x24xf32>
    %43 = tpu.matmul %41, %42, %cst_33 {dimension_numbers = #tpu.dot_dimension_numbers<[1], [0], [0], [1], [0, 0, 1, 1], [], []>} : vector<12x8xbf16>, vector<8x24xbf16>, vector<12x24xf32> -> vector<12x24xf32>
    %44 = arith.addf %39, %43 : vector<12x24xf32>
    %c4 = arith.constant 4 : index
    %c0_34 = arith.constant 0 : index
    %c0_35 = arith.constant 0 : index
    %45 = vector.load %arg3[%c4, %c0_34, %c0_35] : memref<9x12x16xbf16, #tpu.memory_space<vmem>>, vector<1x12x16xbf16>
    %46 = vector.shape_cast %45 : vector<1x12x16xbf16> to vector<12x16xbf16>
    %47 = vector.extract_strided_slice %1 {offsets = [0, 7], sizes = [16, 24], strides = [1, 1]} : vector<16x42xbf16> to vector<16x24xbf16>
    %cst_36 = arith.constant dense<0.000000e+00> : vector<12x24xf32>
    %48 = tpu.matmul %46, %47, %cst_36 {dimension_numbers = #tpu.dot_dimension_numbers<[1], [0], [0], [1], [0, 0, 1, 1], [], []>} : vector<12x16xbf16>, vector<16x24xbf16>, vector<12x24xf32> -> vector<12x24xf32>
    %49 = arith.addf %44, %48 : vector<12x24xf32>
    %c4_37 = arith.constant 4 : index
    %c0_38 = arith.constant 0 : index
    %c0_39 = arith.constant 0 : index
    %50 = vector.load %arg4[%c4_37, %c0_38, %c0_39] : memref<9x12x8xbf16, #tpu.memory_space<vmem>>, vector<1x12x8xbf16>
    %51 = vector.shape_cast %50 : vector<1x12x8xbf16> to vector<12x8xbf16>
    %52 = vector.extract_strided_slice %3 {offsets = [0, 7], sizes = [8, 24], strides = [1, 1]} : vector<8x42xbf16> to vector<8x24xbf16>
    %cst_40 = arith.constant dense<0.000000e+00> : vector<12x24xf32>
    %53 = tpu.matmul %51, %52, %cst_40 {dimension_numbers = #tpu.dot_dimension_numbers<[1], [0], [0], [1], [0, 0, 1, 1], [], []>} : vector<12x8xbf16>, vector<8x24xbf16>, vector<12x24xf32> -> vector<12x24xf32>
    %54 = arith.addf %49, %53 : vector<12x24xf32>
    %c5 = arith.constant 5 : index
    %c0_41 = arith.constant 0 : index
    %c0_42 = arith.constant 0 : index
    %55 = vector.load %arg3[%c5, %c0_41, %c0_42] : memref<9x12x16xbf16, #tpu.memory_space<vmem>>, vector<1x12x16xbf16>
    %56 = vector.shape_cast %55 : vector<1x12x16xbf16> to vector<12x16xbf16>
    %57 = vector.extract_strided_slice %1 {offsets = [0, 8], sizes = [16, 24], strides = [1, 1]} : vector<16x42xbf16> to vector<16x24xbf16>
    %cst_43 = arith.constant dense<0.000000e+00> : vector<12x24xf32>
    %58 = tpu.matmul %56, %57, %cst_43 {dimension_numbers = #tpu.dot_dimension_numbers<[1], [0], [0], [1], [0, 0, 1, 1], [], []>} : vector<12x16xbf16>, vector<16x24xbf16>, vector<12x24xf32> -> vector<12x24xf32>
    %59 = arith.addf %54, %58 : vector<12x24xf32>
    %c5_44 = arith.constant 5 : index
    %c0_45 = arith.constant 0 : index
    %c0_46 = arith.constant 0 : index
    %60 = vector.load %arg4[%c5_44, %c0_45, %c0_46] : memref<9x12x8xbf16, #tpu.memory_space<vmem>>, vector<1x12x8xbf16>
    %61 = vector.shape_cast %60 : vector<1x12x8xbf16> to vector<12x8xbf16>
    %62 = vector.extract_strided_slice %3 {offsets = [0, 8], sizes = [8, 24], strides = [1, 1]} : vector<8x42xbf16> to vector<8x24xbf16>
    %cst_47 = arith.constant dense<0.000000e+00> : vector<12x24xf32>
    %63 = tpu.matmul %61, %62, %cst_47 {dimension_numbers = #tpu.dot_dimension_numbers<[1], [0], [0], [1], [0, 0, 1, 1], [], []>} : vector<12x8xbf16>, vector<8x24xbf16>, vector<12x24xf32> -> vector<12x24xf32>
    %64 = arith.addf %59, %63 : vector<12x24xf32>
    %c6 = arith.constant 6 : index
    %c0_48 = arith.constant 0 : index
    %c0_49 = arith.constant 0 : index
    %65 = vector.load %arg3[%c6, %c0_48, %c0_49] : memref<9x12x16xbf16, #tpu.memory_space<vmem>>, vector<1x12x16xbf16>
    %66 = vector.shape_cast %65 : vector<1x12x16xbf16> to vector<12x16xbf16>
    %67 = vector.extract_strided_slice %1 {offsets = [0, 12], sizes = [16, 24], strides = [1, 1]} : vector<16x42xbf16> to vector<16x24xbf16>
    %cst_50 = arith.constant dense<0.000000e+00> : vector<12x24xf32>
    %68 = tpu.matmul %66, %67, %cst_50 {dimension_numbers = #tpu.dot_dimension_numbers<[1], [0], [0], [1], [0, 0, 1, 1], [], []>} : vector<12x16xbf16>, vector<16x24xbf16>, vector<12x24xf32> -> vector<12x24xf32>
    %69 = arith.addf %64, %68 : vector<12x24xf32>
    %c6_51 = arith.constant 6 : index
    %c0_52 = arith.constant 0 : index
    %c0_53 = arith.constant 0 : index
    %70 = vector.load %arg4[%c6_51, %c0_52, %c0_53] : memref<9x12x8xbf16, #tpu.memory_space<vmem>>, vector<1x12x8xbf16>
    %71 = vector.shape_cast %70 : vector<1x12x8xbf16> to vector<12x8xbf16>
    %72 = vector.extract_strided_slice %3 {offsets = [0, 12], sizes = [8, 24], strides = [1, 1]} : vector<8x42xbf16> to vector<8x24xbf16>
    %cst_54 = arith.constant dense<0.000000e+00> : vector<12x24xf32>
    %73 = tpu.matmul %71, %72, %cst_54 {dimension_numbers = #tpu.dot_dimension_numbers<[1], [0], [0], [1], [0, 0, 1, 1], [], []>} : vector<12x8xbf16>, vector<8x24xbf16>, vector<12x24xf32> -> vector<12x24xf32>
    %74 = arith.addf %69, %73 : vector<12x24xf32>
    %c7 = arith.constant 7 : index
    %c0_55 = arith.constant 0 : index
    %c0_56 = arith.constant 0 : index
    %75 = vector.load %arg3[%c7, %c0_55, %c0_56] : memref<9x12x16xbf16, #tpu.memory_space<vmem>>, vector<1x12x16xbf16>
    %76 = vector.shape_cast %75 : vector<1x12x16xbf16> to vector<12x16xbf16>
    %77 = vector.extract_strided_slice %1 {offsets = [0, 13], sizes = [16, 24], strides = [1, 1]} : vector<16x42xbf16> to vector<16x24xbf16>
    %cst_57 = arith.constant dense<0.000000e+00> : vector<12x24xf32>
    %78 = tpu.matmul %76, %77, %cst_57 {dimension_numbers = #tpu.dot_dimension_numbers<[1], [0], [0], [1], [0, 0, 1, 1], [], []>} : vector<12x16xbf16>, vector<16x24xbf16>, vector<12x24xf32> -> vector<12x24xf32>
    %79 = arith.addf %74, %78 : vector<12x24xf32>
    %c7_58 = arith.constant 7 : index
    %c0_59 = arith.constant 0 : index
    %c0_60 = arith.constant 0 : index
    %80 = vector.load %arg4[%c7_58, %c0_59, %c0_60] : memref<9x12x8xbf16, #tpu.memory_space<vmem>>, vector<1x12x8xbf16>
    %81 = vector.shape_cast %80 : vector<1x12x8xbf16> to vector<12x8xbf16>
    %82 = vector.extract_strided_slice %3 {offsets = [0, 13], sizes = [8, 24], strides = [1, 1]} : vector<8x42xbf16> to vector<8x24xbf16>
    %cst_61 = arith.constant dense<0.000000e+00> : vector<12x24xf32>
    %83 = tpu.matmul %81, %82, %cst_61 {dimension_numbers = #tpu.dot_dimension_numbers<[1], [0], [0], [1], [0, 0, 1, 1], [], []>} : vector<12x8xbf16>, vector<8x24xbf16>, vector<12x24xf32> -> vector<12x24xf32>
    %84 = arith.addf %79, %83 : vector<12x24xf32>
    %c8 = arith.constant 8 : index
    %c0_62 = arith.constant 0 : index
    %c0_63 = arith.constant 0 : index
    %85 = vector.load %arg3[%c8, %c0_62, %c0_63] : memref<9x12x16xbf16, #tpu.memory_space<vmem>>, vector<1x12x16xbf16>
    %86 = vector.shape_cast %85 : vector<1x12x16xbf16> to vector<12x16xbf16>
    %87 = vector.extract_strided_slice %1 {offsets = [0, 14], sizes = [16, 24], strides = [1, 1]} : vector<16x42xbf16> to vector<16x24xbf16>
    %cst_64 = arith.constant dense<0.000000e+00> : vector<12x24xf32>
    %88 = tpu.matmul %86, %87, %cst_64 {dimension_numbers = #tpu.dot_dimension_numbers<[1], [0], [0], [1], [0, 0, 1, 1], [], []>} : vector<12x16xbf16>, vector<16x24xbf16>, vector<12x24xf32> -> vector<12x24xf32>
    %89 = arith.addf %84, %88 : vector<12x24xf32>
    %c8_65 = arith.constant 8 : index
    %c0_66 = arith.constant 0 : index
    %c0_67 = arith.constant 0 : index
    %90 = vector.load %arg4[%c8_65, %c0_66, %c0_67] : memref<9x12x8xbf16, #tpu.memory_space<vmem>>, vector<1x12x8xbf16>
    %91 = vector.shape_cast %90 : vector<1x12x8xbf16> to vector<12x8xbf16>
    %92 = vector.extract_strided_slice %3 {offsets = [0, 14], sizes = [8, 24], strides = [1, 1]} : vector<8x42xbf16> to vector<8x24xbf16>
    %cst_68 = arith.constant dense<0.000000e+00> : vector<12x24xf32>
    %93 = tpu.matmul %91, %92, %cst_68 {dimension_numbers = #tpu.dot_dimension_numbers<[1], [0], [0], [1], [0, 0, 1, 1], [], []>} : vector<12x8xbf16>, vector<8x24xbf16>, vector<12x24xf32> -> vector<12x24xf32>
    %94 = arith.addf %89, %93 : vector<12x24xf32>
    %c0_69 = arith.constant 0 : index
    %c0_70 = arith.constant 0 : index
    %95 = vector.load %arg5[%c0_69, %c0_70] : memref<12x1xf32, #tpu.memory_space<vmem>>, vector<12x1xf32>
    %96 = vector.broadcast %95 : vector<12x1xf32> to vector<12x24xf32>
    %97 = arith.mulf %94, %96 : vector<12x24xf32>
    %c0_71 = arith.constant 0 : index
    %c0_72 = arith.constant 0 : index
    %98 = vector.load %arg6[%c0_71, %c0_72] : memref<12x1xf32, #tpu.memory_space<vmem>>, vector<12x1xf32>
    %99 = vector.broadcast %98 : vector<12x1xf32> to vector<12x24xf32>
    %100 = arith.addf %97, %99 : vector<12x24xf32>
    %cst_73 = arith.constant 0.000000e+00 : f32
    %101 = vector.broadcast %cst_73 : f32 to vector<12x24xf32>
    %102 = arith.maximumf %100, %101 : vector<12x24xf32>
    %c0_74 = arith.constant 0 : index
    %c0_75 = arith.constant 0 : index
    %c0_76 = arith.constant 0 : index
    %103 = vector.load %arg7[%c0_74, %c0_75, %c0_76] : memref<1x12x24xf32, #tpu.memory_space<vmem>>, vector<1x12x24xf32>
    %104 = vector.shape_cast %103 : vector<1x12x24xf32> to vector<12x24xf32>
    %105 = vector.shape_cast %102 : vector<12x24xf32> to vector<1x12x24xf32>
    tpu.vector_store %arg7[%c0_74, %c0_75, %c0_76], %105 {strides = array<i32>} : memref<1x12x24xf32, #tpu.memory_space<vmem>>, vector<1x12x24xf32>,
    return
  }
  func.func @transform_0(%arg0: i32) -> (i32, i32, i32) {
    %c0_i32 = arith.constant 0 : i32
    %c0_i32_0 = arith.constant 0 : i32
    %c0_i32_1 = arith.constant 0 : i32
    return %arg0, %c0_i32, %c0_i32_0 : i32, i32, i32
  }
  func.func @transform_1(%arg0: i32) -> (i32, i32, i32) {
    %c0_i32 = arith.constant 0 : i32
    %c0_i32_0 = arith.constant 0 : i32
    %c0_i32_1 = arith.constant 0 : i32
    return %arg0, %c0_i32, %c0_i32_0 : i32, i32, i32
  }
  func.func @transform_2(%arg0: i32) -> (i32, i32, i32) {
    %c0_i32 = arith.constant 0 : i32
    %c0_i32_0 = arith.constant 0 : i32
    %c0_i32_1 = arith.constant 0 : i32
    %c0_i32_2 = arith.constant 0 : i32
    return %c0_i32, %c0_i32_0, %c0_i32_1 : i32, i32, i32
  }
  func.func @transform_3(%arg0: i32) -> (i32, i32, i32) {
    %c0_i32 = arith.constant 0 : i32
    %c0_i32_0 = arith.constant 0 : i32
    %c0_i32_1 = arith.constant 0 : i32
    %c0_i32_2 = arith.constant 0 : i32
    return %c0_i32, %c0_i32_0, %c0_i32_1 : i32, i32, i32
  }
  func.func @transform_4(%arg0: i32) -> (i32, i32) {
    %c0_i32 = arith.constant 0 : i32
    %c0_i32_0 = arith.constant 0 : i32
    %c0_i32_1 = arith.constant 0 : i32
    return %c0_i32, %c0_i32_0 : i32, i32
  }
  func.func @transform_5(%arg0: i32) -> (i32, i32) {
    %c0_i32 = arith.constant 0 : i32
    %c0_i32_0 = arith.constant 0 : i32
    %c0_i32_1 = arith.constant 0 : i32
    return %c0_i32, %c0_i32_0 : i32, i32
  }
  func.func @transform_6(%arg0: i32) -> (i32, i32, i32) {
    %c0_i32 = arith.constant 0 : i32
    %c0_i32_0 = arith.constant 0 : i32
    %c0_i32_1 = arith.constant 0 : i32
    return %arg0, %c0_i32, %c0_i32_0 : i32, i32, i32
  }
}

module attributes {stable_mosaic.version = 11 : i64} {
  func.func @_fused_conv_kernel(%arg0: i32, %arg1: memref<1x12x110xbf16, #tpu.memory_space<vmem>>, %arg2: memref<1x6x110xbf16, #tpu.memory_space<vmem>>, %arg3: memref<9x10x12xbf16, #tpu.memory_space<vmem>>, %arg4: memref<9x10x6xbf16, #tpu.memory_space<vmem>>, %arg5: memref<10x1xf32, #tpu.memory_space<vmem>>, %arg6: memref<10x1xf32, #tpu.memory_space<vmem>>, %arg7: memref<1x10x80xf32, #tpu.memory_space<vmem>>) attributes {dimension_semantics = [#tpu.dimension_semantics<parallel>], iteration_bounds = array<i64: 2>, scalar_prefetch = 0 : i64, scratch_operands = 0 : i64, tpu.core_type = #tpu.core_type<tc>, window_params = [{transform_indices = @transform_0, window_bounds = array<i64: 1, 12, 110>}, {transform_indices = @transform_1, window_bounds = array<i64: 1, 6, 110>}, {pipeline_mode = #tpu.pipeline_mode<synchronous>, transform_indices = @transform_2, window_bounds = array<i64: 9, 10, 12>}, {pipeline_mode = #tpu.pipeline_mode<synchronous>, transform_indices = @transform_3, window_bounds = array<i64: 9, 10, 6>}, {pipeline_mode = #tpu.pipeline_mode<synchronous>, transform_indices = @transform_4, window_bounds = array<i64: 10, 1>}, {pipeline_mode = #tpu.pipeline_mode<synchronous>, transform_indices = @transform_5, window_bounds = array<i64: 10, 1>}, {transform_indices = @transform_6, window_bounds = array<i64: 1, 10, 80>}]} {
    %c0 = arith.constant 0 : index
    %c0_0 = arith.constant 0 : index
    %c0_1 = arith.constant 0 : index
    %0 = vector.load %arg1[%c0, %c0_0, %c0_1] : memref<1x12x110xbf16, #tpu.memory_space<vmem>>, vector<1x12x110xbf16>
    %1 = vector.shape_cast %0 : vector<1x12x110xbf16> to vector<12x110xbf16>
    %c0_2 = arith.constant 0 : index
    %c0_3 = arith.constant 0 : index
    %c0_4 = arith.constant 0 : index
    %2 = vector.load %arg2[%c0_2, %c0_3, %c0_4] : memref<1x6x110xbf16, #tpu.memory_space<vmem>>, vector<1x6x110xbf16>
    %3 = vector.shape_cast %2 : vector<1x6x110xbf16> to vector<6x110xbf16>
    %cst = arith.constant 0.000000e+00 : f32
    %4 = vector.broadcast %cst : f32 to vector<10x80xf32>
    %c0_5 = arith.constant 0 : index
    %c0_6 = arith.constant 0 : index
    %c0_7 = arith.constant 0 : index
    %5 = vector.load %arg3[%c0_5, %c0_6, %c0_7] : memref<9x10x12xbf16, #tpu.memory_space<vmem>>, vector<1x10x12xbf16>
    %6 = vector.shape_cast %5 : vector<1x10x12xbf16> to vector<10x12xbf16>
    %7 = vector.extract_strided_slice %1 {offsets = [0, 0], sizes = [12, 80], strides = [1, 1]} : vector<12x110xbf16> to vector<12x80xbf16>
    %cst_8 = arith.constant dense<0.000000e+00> : vector<10x80xf32>
    %8 = tpu.matmul %6, %7, %cst_8 {dimension_numbers = #tpu.dot_dimension_numbers<[1], [0], [0], [1], [0, 0, 1, 1], [], []>} : vector<10x12xbf16>, vector<12x80xbf16>, vector<10x80xf32> -> vector<10x80xf32>
    %9 = arith.addf %4, %8 : vector<10x80xf32>
    %c0_9 = arith.constant 0 : index
    %c0_10 = arith.constant 0 : index
    %c0_11 = arith.constant 0 : index
    %10 = vector.load %arg4[%c0_9, %c0_10, %c0_11] : memref<9x10x6xbf16, #tpu.memory_space<vmem>>, vector<1x10x6xbf16>
    %11 = vector.shape_cast %10 : vector<1x10x6xbf16> to vector<10x6xbf16>
    %12 = vector.extract_strided_slice %3 {offsets = [0, 0], sizes = [6, 80], strides = [1, 1]} : vector<6x110xbf16> to vector<6x80xbf16>
    %cst_12 = arith.constant dense<0.000000e+00> : vector<10x80xf32>
    %13 = tpu.matmul %11, %12, %cst_12 {dimension_numbers = #tpu.dot_dimension_numbers<[1], [0], [0], [1], [0, 0, 1, 1], [], []>} : vector<10x6xbf16>, vector<6x80xbf16>, vector<10x80xf32> -> vector<10x80xf32>
    %14 = arith.addf %9, %13 : vector<10x80xf32>
    %c1 = arith.constant 1 : index
    %c0_13 = arith.constant 0 : index
    %c0_14 = arith.constant 0 : index
    %15 = vector.load %arg3[%c1, %c0_13, %c0_14] : memref<9x10x12xbf16, #tpu.memory_space<vmem>>, vector<1x10x12xbf16>
    %16 = vector.shape_cast %15 : vector<1x10x12xbf16> to vector<10x12xbf16>
    %17 = vector.extract_strided_slice %1 {offsets = [0, 1], sizes = [12, 80], strides = [1, 1]} : vector<12x110xbf16> to vector<12x80xbf16>
    %cst_15 = arith.constant dense<0.000000e+00> : vector<10x80xf32>
    %18 = tpu.matmul %16, %17, %cst_15 {dimension_numbers = #tpu.dot_dimension_numbers<[1], [0], [0], [1], [0, 0, 1, 1], [], []>} : vector<10x12xbf16>, vector<12x80xbf16>, vector<10x80xf32> -> vector<10x80xf32>
    %19 = arith.addf %14, %18 : vector<10x80xf32>
    %c1_16 = arith.constant 1 : index
    %c0_17 = arith.constant 0 : index
    %c0_18 = arith.constant 0 : index
    %20 = vector.load %arg4[%c1_16, %c0_17, %c0_18] : memref<9x10x6xbf16, #tpu.memory_space<vmem>>, vector<1x10x6xbf16>
    %21 = vector.shape_cast %20 : vector<1x10x6xbf16> to vector<10x6xbf16>
    %22 = vector.extract_strided_slice %3 {offsets = [0, 1], sizes = [6, 80], strides = [1, 1]} : vector<6x110xbf16> to vector<6x80xbf16>
    %cst_19 = arith.constant dense<0.000000e+00> : vector<10x80xf32>
    %23 = tpu.matmul %21, %22, %cst_19 {dimension_numbers = #tpu.dot_dimension_numbers<[1], [0], [0], [1], [0, 0, 1, 1], [], []>} : vector<10x6xbf16>, vector<6x80xbf16>, vector<10x80xf32> -> vector<10x80xf32>
    %24 = arith.addf %19, %23 : vector<10x80xf32>
    %c2 = arith.constant 2 : index
    %c0_20 = arith.constant 0 : index
    %c0_21 = arith.constant 0 : index
    %25 = vector.load %arg3[%c2, %c0_20, %c0_21] : memref<9x10x12xbf16, #tpu.memory_space<vmem>>, vector<1x10x12xbf16>
    %26 = vector.shape_cast %25 : vector<1x10x12xbf16> to vector<10x12xbf16>
    %27 = vector.extract_strided_slice %1 {offsets = [0, 2], sizes = [12, 80], strides = [1, 1]} : vector<12x110xbf16> to vector<12x80xbf16>
    %cst_22 = arith.constant dense<0.000000e+00> : vector<10x80xf32>
    %28 = tpu.matmul %26, %27, %cst_22 {dimension_numbers = #tpu.dot_dimension_numbers<[1], [0], [0], [1], [0, 0, 1, 1], [], []>} : vector<10x12xbf16>, vector<12x80xbf16>, vector<10x80xf32> -> vector<10x80xf32>
    %29 = arith.addf %24, %28 : vector<10x80xf32>
    %c2_23 = arith.constant 2 : index
    %c0_24 = arith.constant 0 : index
    %c0_25 = arith.constant 0 : index
    %30 = vector.load %arg4[%c2_23, %c0_24, %c0_25] : memref<9x10x6xbf16, #tpu.memory_space<vmem>>, vector<1x10x6xbf16>
    %31 = vector.shape_cast %30 : vector<1x10x6xbf16> to vector<10x6xbf16>
    %32 = vector.extract_strided_slice %3 {offsets = [0, 2], sizes = [6, 80], strides = [1, 1]} : vector<6x110xbf16> to vector<6x80xbf16>
    %cst_26 = arith.constant dense<0.000000e+00> : vector<10x80xf32>
    %33 = tpu.matmul %31, %32, %cst_26 {dimension_numbers = #tpu.dot_dimension_numbers<[1], [0], [0], [1], [0, 0, 1, 1], [], []>} : vector<10x6xbf16>, vector<6x80xbf16>, vector<10x80xf32> -> vector<10x80xf32>
    %34 = arith.addf %29, %33 : vector<10x80xf32>
    %c3 = arith.constant 3 : index
    %c0_27 = arith.constant 0 : index
    %c0_28 = arith.constant 0 : index
    %35 = vector.load %arg3[%c3, %c0_27, %c0_28] : memref<9x10x12xbf16, #tpu.memory_space<vmem>>, vector<1x10x12xbf16>
    %36 = vector.shape_cast %35 : vector<1x10x12xbf16> to vector<10x12xbf16>
    %37 = vector.extract_strided_slice %1 {offsets = [0, 10], sizes = [12, 80], strides = [1, 1]} : vector<12x110xbf16> to vector<12x80xbf16>
    %cst_29 = arith.constant dense<0.000000e+00> : vector<10x80xf32>
    %38 = tpu.matmul %36, %37, %cst_29 {dimension_numbers = #tpu.dot_dimension_numbers<[1], [0], [0], [1], [0, 0, 1, 1], [], []>} : vector<10x12xbf16>, vector<12x80xbf16>, vector<10x80xf32> -> vector<10x80xf32>
    %39 = arith.addf %34, %38 : vector<10x80xf32>
    %c3_30 = arith.constant 3 : index
    %c0_31 = arith.constant 0 : index
    %c0_32 = arith.constant 0 : index
    %40 = vector.load %arg4[%c3_30, %c0_31, %c0_32] : memref<9x10x6xbf16, #tpu.memory_space<vmem>>, vector<1x10x6xbf16>
    %41 = vector.shape_cast %40 : vector<1x10x6xbf16> to vector<10x6xbf16>
    %42 = vector.extract_strided_slice %3 {offsets = [0, 10], sizes = [6, 80], strides = [1, 1]} : vector<6x110xbf16> to vector<6x80xbf16>
    %cst_33 = arith.constant dense<0.000000e+00> : vector<10x80xf32>
    %43 = tpu.matmul %41, %42, %cst_33 {dimension_numbers = #tpu.dot_dimension_numbers<[1], [0], [0], [1], [0, 0, 1, 1], [], []>} : vector<10x6xbf16>, vector<6x80xbf16>, vector<10x80xf32> -> vector<10x80xf32>
    %44 = arith.addf %39, %43 : vector<10x80xf32>
    %c4 = arith.constant 4 : index
    %c0_34 = arith.constant 0 : index
    %c0_35 = arith.constant 0 : index
    %45 = vector.load %arg3[%c4, %c0_34, %c0_35] : memref<9x10x12xbf16, #tpu.memory_space<vmem>>, vector<1x10x12xbf16>
    %46 = vector.shape_cast %45 : vector<1x10x12xbf16> to vector<10x12xbf16>
    %47 = vector.extract_strided_slice %1 {offsets = [0, 11], sizes = [12, 80], strides = [1, 1]} : vector<12x110xbf16> to vector<12x80xbf16>
    %cst_36 = arith.constant dense<0.000000e+00> : vector<10x80xf32>
    %48 = tpu.matmul %46, %47, %cst_36 {dimension_numbers = #tpu.dot_dimension_numbers<[1], [0], [0], [1], [0, 0, 1, 1], [], []>} : vector<10x12xbf16>, vector<12x80xbf16>, vector<10x80xf32> -> vector<10x80xf32>
    %49 = arith.addf %44, %48 : vector<10x80xf32>
    %c4_37 = arith.constant 4 : index
    %c0_38 = arith.constant 0 : index
    %c0_39 = arith.constant 0 : index
    %50 = vector.load %arg4[%c4_37, %c0_38, %c0_39] : memref<9x10x6xbf16, #tpu.memory_space<vmem>>, vector<1x10x6xbf16>
    %51 = vector.shape_cast %50 : vector<1x10x6xbf16> to vector<10x6xbf16>
    %52 = vector.extract_strided_slice %3 {offsets = [0, 11], sizes = [6, 80], strides = [1, 1]} : vector<6x110xbf16> to vector<6x80xbf16>
    %cst_40 = arith.constant dense<0.000000e+00> : vector<10x80xf32>
    %53 = tpu.matmul %51, %52, %cst_40 {dimension_numbers = #tpu.dot_dimension_numbers<[1], [0], [0], [1], [0, 0, 1, 1], [], []>} : vector<10x6xbf16>, vector<6x80xbf16>, vector<10x80xf32> -> vector<10x80xf32>
    %54 = arith.addf %49, %53 : vector<10x80xf32>
    %c5 = arith.constant 5 : index
    %c0_41 = arith.constant 0 : index
    %c0_42 = arith.constant 0 : index
    %55 = vector.load %arg3[%c5, %c0_41, %c0_42] : memref<9x10x12xbf16, #tpu.memory_space<vmem>>, vector<1x10x12xbf16>
    %56 = vector.shape_cast %55 : vector<1x10x12xbf16> to vector<10x12xbf16>
    %57 = vector.extract_strided_slice %1 {offsets = [0, 12], sizes = [12, 80], strides = [1, 1]} : vector<12x110xbf16> to vector<12x80xbf16>
    %cst_43 = arith.constant dense<0.000000e+00> : vector<10x80xf32>
    %58 = tpu.matmul %56, %57, %cst_43 {dimension_numbers = #tpu.dot_dimension_numbers<[1], [0], [0], [1], [0, 0, 1, 1], [], []>} : vector<10x12xbf16>, vector<12x80xbf16>, vector<10x80xf32> -> vector<10x80xf32>
    %59 = arith.addf %54, %58 : vector<10x80xf32>
    %c5_44 = arith.constant 5 : index
    %c0_45 = arith.constant 0 : index
    %c0_46 = arith.constant 0 : index
    %60 = vector.load %arg4[%c5_44, %c0_45, %c0_46] : memref<9x10x6xbf16, #tpu.memory_space<vmem>>, vector<1x10x6xbf16>
    %61 = vector.shape_cast %60 : vector<1x10x6xbf16> to vector<10x6xbf16>
    %62 = vector.extract_strided_slice %3 {offsets = [0, 12], sizes = [6, 80], strides = [1, 1]} : vector<6x110xbf16> to vector<6x80xbf16>
    %cst_47 = arith.constant dense<0.000000e+00> : vector<10x80xf32>
    %63 = tpu.matmul %61, %62, %cst_47 {dimension_numbers = #tpu.dot_dimension_numbers<[1], [0], [0], [1], [0, 0, 1, 1], [], []>} : vector<10x6xbf16>, vector<6x80xbf16>, vector<10x80xf32> -> vector<10x80xf32>
    %64 = arith.addf %59, %63 : vector<10x80xf32>
    %c6 = arith.constant 6 : index
    %c0_48 = arith.constant 0 : index
    %c0_49 = arith.constant 0 : index
    %65 = vector.load %arg3[%c6, %c0_48, %c0_49] : memref<9x10x12xbf16, #tpu.memory_space<vmem>>, vector<1x10x12xbf16>
    %66 = vector.shape_cast %65 : vector<1x10x12xbf16> to vector<10x12xbf16>
    %67 = vector.extract_strided_slice %1 {offsets = [0, 20], sizes = [12, 80], strides = [1, 1]} : vector<12x110xbf16> to vector<12x80xbf16>
    %cst_50 = arith.constant dense<0.000000e+00> : vector<10x80xf32>
    %68 = tpu.matmul %66, %67, %cst_50 {dimension_numbers = #tpu.dot_dimension_numbers<[1], [0], [0], [1], [0, 0, 1, 1], [], []>} : vector<10x12xbf16>, vector<12x80xbf16>, vector<10x80xf32> -> vector<10x80xf32>
    %69 = arith.addf %64, %68 : vector<10x80xf32>
    %c6_51 = arith.constant 6 : index
    %c0_52 = arith.constant 0 : index
    %c0_53 = arith.constant 0 : index
    %70 = vector.load %arg4[%c6_51, %c0_52, %c0_53] : memref<9x10x6xbf16, #tpu.memory_space<vmem>>, vector<1x10x6xbf16>
    %71 = vector.shape_cast %70 : vector<1x10x6xbf16> to vector<10x6xbf16>
    %72 = vector.extract_strided_slice %3 {offsets = [0, 20], sizes = [6, 80], strides = [1, 1]} : vector<6x110xbf16> to vector<6x80xbf16>
    %cst_54 = arith.constant dense<0.000000e+00> : vector<10x80xf32>
    %73 = tpu.matmul %71, %72, %cst_54 {dimension_numbers = #tpu.dot_dimension_numbers<[1], [0], [0], [1], [0, 0, 1, 1], [], []>} : vector<10x6xbf16>, vector<6x80xbf16>, vector<10x80xf32> -> vector<10x80xf32>
    %74 = arith.addf %69, %73 : vector<10x80xf32>
    %c7 = arith.constant 7 : index
    %c0_55 = arith.constant 0 : index
    %c0_56 = arith.constant 0 : index
    %75 = vector.load %arg3[%c7, %c0_55, %c0_56] : memref<9x10x12xbf16, #tpu.memory_space<vmem>>, vector<1x10x12xbf16>
    %76 = vector.shape_cast %75 : vector<1x10x12xbf16> to vector<10x12xbf16>
    %77 = vector.extract_strided_slice %1 {offsets = [0, 21], sizes = [12, 80], strides = [1, 1]} : vector<12x110xbf16> to vector<12x80xbf16>
    %cst_57 = arith.constant dense<0.000000e+00> : vector<10x80xf32>
    %78 = tpu.matmul %76, %77, %cst_57 {dimension_numbers = #tpu.dot_dimension_numbers<[1], [0], [0], [1], [0, 0, 1, 1], [], []>} : vector<10x12xbf16>, vector<12x80xbf16>, vector<10x80xf32> -> vector<10x80xf32>
    %79 = arith.addf %74, %78 : vector<10x80xf32>
    %c7_58 = arith.constant 7 : index
    %c0_59 = arith.constant 0 : index
    %c0_60 = arith.constant 0 : index
    %80 = vector.load %arg4[%c7_58, %c0_59, %c0_60] : memref<9x10x6xbf16, #tpu.memory_space<vmem>>, vector<1x10x6xbf16>
    %81 = vector.shape_cast %80 : vector<1x10x6xbf16> to vector<10x6xbf16>
    %82 = vector.extract_strided_slice %3 {offsets = [0, 21], sizes = [6, 80], strides = [1, 1]} : vector<6x110xbf16> to vector<6x80xbf16>
    %cst_61 = arith.constant dense<0.000000e+00> : vector<10x80xf32>
    %83 = tpu.matmul %81, %82, %cst_61 {dimension_numbers = #tpu.dot_dimension_numbers<[1], [0], [0], [1], [0, 0, 1, 1], [], []>} : vector<10x6xbf16>, vector<6x80xbf16>, vector<10x80xf32> -> vector<10x80xf32>
    %84 = arith.addf %79, %83 : vector<10x80xf32>
    %c8 = arith.constant 8 : index
    %c0_62 = arith.constant 0 : index
    %c0_63 = arith.constant 0 : index
    %85 = vector.load %arg3[%c8, %c0_62, %c0_63] : memref<9x10x12xbf16, #tpu.memory_space<vmem>>, vector<1x10x12xbf16>
    %86 = vector.shape_cast %85 : vector<1x10x12xbf16> to vector<10x12xbf16>
    %87 = vector.extract_strided_slice %1 {offsets = [0, 22], sizes = [12, 80], strides = [1, 1]} : vector<12x110xbf16> to vector<12x80xbf16>
    %cst_64 = arith.constant dense<0.000000e+00> : vector<10x80xf32>
    %88 = tpu.matmul %86, %87, %cst_64 {dimension_numbers = #tpu.dot_dimension_numbers<[1], [0], [0], [1], [0, 0, 1, 1], [], []>} : vector<10x12xbf16>, vector<12x80xbf16>, vector<10x80xf32> -> vector<10x80xf32>
    %89 = arith.addf %84, %88 : vector<10x80xf32>
    %c8_65 = arith.constant 8 : index
    %c0_66 = arith.constant 0 : index
    %c0_67 = arith.constant 0 : index
    %90 = vector.load %arg4[%c8_65, %c0_66, %c0_67] : memref<9x10x6xbf16, #tpu.memory_space<vmem>>, vector<1x10x6xbf16>
    %91 = vector.shape_cast %90 : vector<1x10x6xbf16> to vector<10x6xbf16>
    %92 = vector.extract_strided_slice %3 {offsets = [0, 22], sizes = [6, 80], strides = [1, 1]} : vector<6x110xbf16> to vector<6x80xbf16>
    %cst_68 = arith.constant dense<0.000000e+00> : vector<10x80xf32>
    %93 = tpu.matmul %91, %92, %cst_68 {dimension_numbers = #tpu.dot_dimension_numbers<[1], [0], [0], [1], [0, 0, 1, 1], [], []>} : vector<10x6xbf16>, vector<6x80xbf16>, vector<10x80xf32> -> vector<10x80xf32>
    %94 = arith.addf %89, %93 : vector<10x80xf32>
    %c0_69 = arith.constant 0 : index
    %c0_70 = arith.constant 0 : index
    %95 = vector.load %arg5[%c0_69, %c0_70] : memref<10x1xf32, #tpu.memory_space<vmem>>, vector<10x1xf32>
    %96 = vector.broadcast %95 : vector<10x1xf32> to vector<10x80xf32>
    %97 = arith.mulf %94, %96 : vector<10x80xf32>
    %c0_71 = arith.constant 0 : index
    %c0_72 = arith.constant 0 : index
    %98 = vector.load %arg6[%c0_71, %c0_72] : memref<10x1xf32, #tpu.memory_space<vmem>>, vector<10x1xf32>
    %99 = vector.broadcast %98 : vector<10x1xf32> to vector<10x80xf32>
    %100 = arith.addf %97, %99 : vector<10x80xf32>
    %cst_73 = arith.constant 0.000000e+00 : f32
    %101 = vector.broadcast %cst_73 : f32 to vector<10x80xf32>
    %102 = arith.maximumf %100, %101 : vector<10x80xf32>
    %c0_74 = arith.constant 0 : index
    %c0_75 = arith.constant 0 : index
    %c0_76 = arith.constant 0 : index
    %103 = vector.load %arg7[%c0_74, %c0_75, %c0_76] : memref<1x10x80xf32, #tpu.memory_space<vmem>>, vector<1x10x80xf32>
    %104 = vector.shape_cast %103 : vector<1x10x80xf32> to vector<10x80xf32>
    %105 = vector.shape_cast %102 : vector<10x80xf32> to vector<1x10x80xf32>
    tpu.vector_store %arg7[%c0_74, %c0_75, %c0_76], %105 {strides = array<i32>} : memref<1x10x80xf32, #tpu.memory_space<vmem>>, vector<1x10x80xf32>,
    return
  }
  func.func @transform_0(%arg0: i32) -> (i32, i32, i32) {
    %c0_i32 = arith.constant 0 : i32
    %c0_i32_0 = arith.constant 0 : i32
    %c0_i32_1 = arith.constant 0 : i32
    return %arg0, %c0_i32, %c0_i32_0 : i32, i32, i32
  }
  func.func @transform_1(%arg0: i32) -> (i32, i32, i32) {
    %c0_i32 = arith.constant 0 : i32
    %c0_i32_0 = arith.constant 0 : i32
    %c0_i32_1 = arith.constant 0 : i32
    return %arg0, %c0_i32, %c0_i32_0 : i32, i32, i32
  }
  func.func @transform_2(%arg0: i32) -> (i32, i32, i32) {
    %c0_i32 = arith.constant 0 : i32
    %c0_i32_0 = arith.constant 0 : i32
    %c0_i32_1 = arith.constant 0 : i32
    %c0_i32_2 = arith.constant 0 : i32
    return %c0_i32, %c0_i32_0, %c0_i32_1 : i32, i32, i32
  }
  func.func @transform_3(%arg0: i32) -> (i32, i32, i32) {
    %c0_i32 = arith.constant 0 : i32
    %c0_i32_0 = arith.constant 0 : i32
    %c0_i32_1 = arith.constant 0 : i32
    %c0_i32_2 = arith.constant 0 : i32
    return %c0_i32, %c0_i32_0, %c0_i32_1 : i32, i32, i32
  }
  func.func @transform_4(%arg0: i32) -> (i32, i32) {
    %c0_i32 = arith.constant 0 : i32
    %c0_i32_0 = arith.constant 0 : i32
    %c0_i32_1 = arith.constant 0 : i32
    return %c0_i32, %c0_i32_0 : i32, i32
  }
  func.func @transform_5(%arg0: i32) -> (i32, i32) {
    %c0_i32 = arith.constant 0 : i32
    %c0_i32_0 = arith.constant 0 : i32
    %c0_i32_1 = arith.constant 0 : i32
    return %c0_i32, %c0_i32_0 : i32, i32
  }
  func.func @transform_6(%arg0: i32) -> (i32, i32, i32) {
    %c0_i32 = arith.constant 0 : i32
    %c0_i32_0 = arith.constant 0 : i32
    %c0_i32_1 = arith.constant 0 : i32
    return %arg0, %c0_i32, %c0_i32_0 : i32, i32, i32
  }
}

module attributes {stable_mosaic.version = 11 : i64} {
  func.func @_fused_conv_kernel(%arg0: i32, %arg1: memref<1x10x342xbf16, #tpu.memory_space<vmem>>, %arg2: memref<1x6x342xbf16, #tpu.memory_space<vmem>>, %arg3: memref<9x8x10xbf16, #tpu.memory_space<vmem>>, %arg4: memref<9x8x6xbf16, #tpu.memory_space<vmem>>, %arg5: memref<8x1xf32, #tpu.memory_space<vmem>>, %arg6: memref<8x1xf32, #tpu.memory_space<vmem>>, %arg7: memref<1x8x288xf32, #tpu.memory_space<vmem>>) attributes {dimension_semantics = [#tpu.dimension_semantics<parallel>], iteration_bounds = array<i64: 2>, scalar_prefetch = 0 : i64, scratch_operands = 0 : i64, tpu.core_type = #tpu.core_type<tc>, window_params = [{transform_indices = @transform_0, window_bounds = array<i64: 1, 10, 342>}, {transform_indices = @transform_1, window_bounds = array<i64: 1, 6, 342>}, {pipeline_mode = #tpu.pipeline_mode<synchronous>, transform_indices = @transform_2, window_bounds = array<i64: 9, 8, 10>}, {pipeline_mode = #tpu.pipeline_mode<synchronous>, transform_indices = @transform_3, window_bounds = array<i64: 9, 8, 6>}, {pipeline_mode = #tpu.pipeline_mode<synchronous>, transform_indices = @transform_4, window_bounds = array<i64: 8, 1>}, {pipeline_mode = #tpu.pipeline_mode<synchronous>, transform_indices = @transform_5, window_bounds = array<i64: 8, 1>}, {transform_indices = @transform_6, window_bounds = array<i64: 1, 8, 288>}]} {
    %c0 = arith.constant 0 : index
    %c0_0 = arith.constant 0 : index
    %c0_1 = arith.constant 0 : index
    %0 = vector.load %arg1[%c0, %c0_0, %c0_1] : memref<1x10x342xbf16, #tpu.memory_space<vmem>>, vector<1x10x342xbf16>
    %1 = vector.shape_cast %0 : vector<1x10x342xbf16> to vector<10x342xbf16>
    %c0_2 = arith.constant 0 : index
    %c0_3 = arith.constant 0 : index
    %c0_4 = arith.constant 0 : index
    %2 = vector.load %arg2[%c0_2, %c0_3, %c0_4] : memref<1x6x342xbf16, #tpu.memory_space<vmem>>, vector<1x6x342xbf16>
    %3 = vector.shape_cast %2 : vector<1x6x342xbf16> to vector<6x342xbf16>
    %cst = arith.constant 0.000000e+00 : f32
    %4 = vector.broadcast %cst : f32 to vector<8x288xf32>
    %c0_5 = arith.constant 0 : index
    %c0_6 = arith.constant 0 : index
    %c0_7 = arith.constant 0 : index
    %5 = vector.load %arg3[%c0_5, %c0_6, %c0_7] : memref<9x8x10xbf16, #tpu.memory_space<vmem>>, vector<1x8x10xbf16>
    %6 = vector.shape_cast %5 : vector<1x8x10xbf16> to vector<8x10xbf16>
    %7 = vector.extract_strided_slice %1 {offsets = [0, 0], sizes = [10, 288], strides = [1, 1]} : vector<10x342xbf16> to vector<10x288xbf16>
    %cst_8 = arith.constant dense<0.000000e+00> : vector<8x288xf32>
    %8 = tpu.matmul %6, %7, %cst_8 {dimension_numbers = #tpu.dot_dimension_numbers<[1], [0], [0], [1], [0, 0, 1, 1], [], []>} : vector<8x10xbf16>, vector<10x288xbf16>, vector<8x288xf32> -> vector<8x288xf32>
    %9 = arith.addf %4, %8 : vector<8x288xf32>
    %c0_9 = arith.constant 0 : index
    %c0_10 = arith.constant 0 : index
    %c0_11 = arith.constant 0 : index
    %10 = vector.load %arg4[%c0_9, %c0_10, %c0_11] : memref<9x8x6xbf16, #tpu.memory_space<vmem>>, vector<1x8x6xbf16>
    %11 = vector.shape_cast %10 : vector<1x8x6xbf16> to vector<8x6xbf16>
    %12 = vector.extract_strided_slice %3 {offsets = [0, 0], sizes = [6, 288], strides = [1, 1]} : vector<6x342xbf16> to vector<6x288xbf16>
    %cst_12 = arith.constant dense<0.000000e+00> : vector<8x288xf32>
    %13 = tpu.matmul %11, %12, %cst_12 {dimension_numbers = #tpu.dot_dimension_numbers<[1], [0], [0], [1], [0, 0, 1, 1], [], []>} : vector<8x6xbf16>, vector<6x288xbf16>, vector<8x288xf32> -> vector<8x288xf32>
    %14 = arith.addf %9, %13 : vector<8x288xf32>
    %c1 = arith.constant 1 : index
    %c0_13 = arith.constant 0 : index
    %c0_14 = arith.constant 0 : index
    %15 = vector.load %arg3[%c1, %c0_13, %c0_14] : memref<9x8x10xbf16, #tpu.memory_space<vmem>>, vector<1x8x10xbf16>
    %16 = vector.shape_cast %15 : vector<1x8x10xbf16> to vector<8x10xbf16>
    %17 = vector.extract_strided_slice %1 {offsets = [0, 1], sizes = [10, 288], strides = [1, 1]} : vector<10x342xbf16> to vector<10x288xbf16>
    %cst_15 = arith.constant dense<0.000000e+00> : vector<8x288xf32>
    %18 = tpu.matmul %16, %17, %cst_15 {dimension_numbers = #tpu.dot_dimension_numbers<[1], [0], [0], [1], [0, 0, 1, 1], [], []>} : vector<8x10xbf16>, vector<10x288xbf16>, vector<8x288xf32> -> vector<8x288xf32>
    %19 = arith.addf %14, %18 : vector<8x288xf32>
    %c1_16 = arith.constant 1 : index
    %c0_17 = arith.constant 0 : index
    %c0_18 = arith.constant 0 : index
    %20 = vector.load %arg4[%c1_16, %c0_17, %c0_18] : memref<9x8x6xbf16, #tpu.memory_space<vmem>>, vector<1x8x6xbf16>
    %21 = vector.shape_cast %20 : vector<1x8x6xbf16> to vector<8x6xbf16>
    %22 = vector.extract_strided_slice %3 {offsets = [0, 1], sizes = [6, 288], strides = [1, 1]} : vector<6x342xbf16> to vector<6x288xbf16>
    %cst_19 = arith.constant dense<0.000000e+00> : vector<8x288xf32>
    %23 = tpu.matmul %21, %22, %cst_19 {dimension_numbers = #tpu.dot_dimension_numbers<[1], [0], [0], [1], [0, 0, 1, 1], [], []>} : vector<8x6xbf16>, vector<6x288xbf16>, vector<8x288xf32> -> vector<8x288xf32>
    %24 = arith.addf %19, %23 : vector<8x288xf32>
    %c2 = arith.constant 2 : index
    %c0_20 = arith.constant 0 : index
    %c0_21 = arith.constant 0 : index
    %25 = vector.load %arg3[%c2, %c0_20, %c0_21] : memref<9x8x10xbf16, #tpu.memory_space<vmem>>, vector<1x8x10xbf16>
    %26 = vector.shape_cast %25 : vector<1x8x10xbf16> to vector<8x10xbf16>
    %27 = vector.extract_strided_slice %1 {offsets = [0, 2], sizes = [10, 288], strides = [1, 1]} : vector<10x342xbf16> to vector<10x288xbf16>
    %cst_22 = arith.constant dense<0.000000e+00> : vector<8x288xf32>
    %28 = tpu.matmul %26, %27, %cst_22 {dimension_numbers = #tpu.dot_dimension_numbers<[1], [0], [0], [1], [0, 0, 1, 1], [], []>} : vector<8x10xbf16>, vector<10x288xbf16>, vector<8x288xf32> -> vector<8x288xf32>
    %29 = arith.addf %24, %28 : vector<8x288xf32>
    %c2_23 = arith.constant 2 : index
    %c0_24 = arith.constant 0 : index
    %c0_25 = arith.constant 0 : index
    %30 = vector.load %arg4[%c2_23, %c0_24, %c0_25] : memref<9x8x6xbf16, #tpu.memory_space<vmem>>, vector<1x8x6xbf16>
    %31 = vector.shape_cast %30 : vector<1x8x6xbf16> to vector<8x6xbf16>
    %32 = vector.extract_strided_slice %3 {offsets = [0, 2], sizes = [6, 288], strides = [1, 1]} : vector<6x342xbf16> to vector<6x288xbf16>
    %cst_26 = arith.constant dense<0.000000e+00> : vector<8x288xf32>
    %33 = tpu.matmul %31, %32, %cst_26 {dimension_numbers = #tpu.dot_dimension_numbers<[1], [0], [0], [1], [0, 0, 1, 1], [], []>} : vector<8x6xbf16>, vector<6x288xbf16>, vector<8x288xf32> -> vector<8x288xf32>
    %34 = arith.addf %29, %33 : vector<8x288xf32>
    %c3 = arith.constant 3 : index
    %c0_27 = arith.constant 0 : index
    %c0_28 = arith.constant 0 : index
    %35 = vector.load %arg3[%c3, %c0_27, %c0_28] : memref<9x8x10xbf16, #tpu.memory_space<vmem>>, vector<1x8x10xbf16>
    %36 = vector.shape_cast %35 : vector<1x8x10xbf16> to vector<8x10xbf16>
    %37 = vector.extract_strided_slice %1 {offsets = [0, 18], sizes = [10, 288], strides = [1, 1]} : vector<10x342xbf16> to vector<10x288xbf16>
    %cst_29 = arith.constant dense<0.000000e+00> : vector<8x288xf32>
    %38 = tpu.matmul %36, %37, %cst_29 {dimension_numbers = #tpu.dot_dimension_numbers<[1], [0], [0], [1], [0, 0, 1, 1], [], []>} : vector<8x10xbf16>, vector<10x288xbf16>, vector<8x288xf32> -> vector<8x288xf32>
    %39 = arith.addf %34, %38 : vector<8x288xf32>
    %c3_30 = arith.constant 3 : index
    %c0_31 = arith.constant 0 : index
    %c0_32 = arith.constant 0 : index
    %40 = vector.load %arg4[%c3_30, %c0_31, %c0_32] : memref<9x8x6xbf16, #tpu.memory_space<vmem>>, vector<1x8x6xbf16>
    %41 = vector.shape_cast %40 : vector<1x8x6xbf16> to vector<8x6xbf16>
    %42 = vector.extract_strided_slice %3 {offsets = [0, 18], sizes = [6, 288], strides = [1, 1]} : vector<6x342xbf16> to vector<6x288xbf16>
    %cst_33 = arith.constant dense<0.000000e+00> : vector<8x288xf32>
    %43 = tpu.matmul %41, %42, %cst_33 {dimension_numbers = #tpu.dot_dimension_numbers<[1], [0], [0], [1], [0, 0, 1, 1], [], []>} : vector<8x6xbf16>, vector<6x288xbf16>, vector<8x288xf32> -> vector<8x288xf32>
    %44 = arith.addf %39, %43 : vector<8x288xf32>
    %c4 = arith.constant 4 : index
    %c0_34 = arith.constant 0 : index
    %c0_35 = arith.constant 0 : index
    %45 = vector.load %arg3[%c4, %c0_34, %c0_35] : memref<9x8x10xbf16, #tpu.memory_space<vmem>>, vector<1x8x10xbf16>
    %46 = vector.shape_cast %45 : vector<1x8x10xbf16> to vector<8x10xbf16>
    %47 = vector.extract_strided_slice %1 {offsets = [0, 19], sizes = [10, 288], strides = [1, 1]} : vector<10x342xbf16> to vector<10x288xbf16>
    %cst_36 = arith.constant dense<0.000000e+00> : vector<8x288xf32>
    %48 = tpu.matmul %46, %47, %cst_36 {dimension_numbers = #tpu.dot_dimension_numbers<[1], [0], [0], [1], [0, 0, 1, 1], [], []>} : vector<8x10xbf16>, vector<10x288xbf16>, vector<8x288xf32> -> vector<8x288xf32>
    %49 = arith.addf %44, %48 : vector<8x288xf32>
    %c4_37 = arith.constant 4 : index
    %c0_38 = arith.constant 0 : index
    %c0_39 = arith.constant 0 : index
    %50 = vector.load %arg4[%c4_37, %c0_38, %c0_39] : memref<9x8x6xbf16, #tpu.memory_space<vmem>>, vector<1x8x6xbf16>
    %51 = vector.shape_cast %50 : vector<1x8x6xbf16> to vector<8x6xbf16>
    %52 = vector.extract_strided_slice %3 {offsets = [0, 19], sizes = [6, 288], strides = [1, 1]} : vector<6x342xbf16> to vector<6x288xbf16>
    %cst_40 = arith.constant dense<0.000000e+00> : vector<8x288xf32>
    %53 = tpu.matmul %51, %52, %cst_40 {dimension_numbers = #tpu.dot_dimension_numbers<[1], [0], [0], [1], [0, 0, 1, 1], [], []>} : vector<8x6xbf16>, vector<6x288xbf16>, vector<8x288xf32> -> vector<8x288xf32>
    %54 = arith.addf %49, %53 : vector<8x288xf32>
    %c5 = arith.constant 5 : index
    %c0_41 = arith.constant 0 : index
    %c0_42 = arith.constant 0 : index
    %55 = vector.load %arg3[%c5, %c0_41, %c0_42] : memref<9x8x10xbf16, #tpu.memory_space<vmem>>, vector<1x8x10xbf16>
    %56 = vector.shape_cast %55 : vector<1x8x10xbf16> to vector<8x10xbf16>
    %57 = vector.extract_strided_slice %1 {offsets = [0, 20], sizes = [10, 288], strides = [1, 1]} : vector<10x342xbf16> to vector<10x288xbf16>
    %cst_43 = arith.constant dense<0.000000e+00> : vector<8x288xf32>
    %58 = tpu.matmul %56, %57, %cst_43 {dimension_numbers = #tpu.dot_dimension_numbers<[1], [0], [0], [1], [0, 0, 1, 1], [], []>} : vector<8x10xbf16>, vector<10x288xbf16>, vector<8x288xf32> -> vector<8x288xf32>
    %59 = arith.addf %54, %58 : vector<8x288xf32>
    %c5_44 = arith.constant 5 : index
    %c0_45 = arith.constant 0 : index
    %c0_46 = arith.constant 0 : index
    %60 = vector.load %arg4[%c5_44, %c0_45, %c0_46] : memref<9x8x6xbf16, #tpu.memory_space<vmem>>, vector<1x8x6xbf16>
    %61 = vector.shape_cast %60 : vector<1x8x6xbf16> to vector<8x6xbf16>
    %62 = vector.extract_strided_slice %3 {offsets = [0, 20], sizes = [6, 288], strides = [1, 1]} : vector<6x342xbf16> to vector<6x288xbf16>
    %cst_47 = arith.constant dense<0.000000e+00> : vector<8x288xf32>
    %63 = tpu.matmul %61, %62, %cst_47 {dimension_numbers = #tpu.dot_dimension_numbers<[1], [0], [0], [1], [0, 0, 1, 1], [], []>} : vector<8x6xbf16>, vector<6x288xbf16>, vector<8x288xf32> -> vector<8x288xf32>
    %64 = arith.addf %59, %63 : vector<8x288xf32>
    %c6 = arith.constant 6 : index
    %c0_48 = arith.constant 0 : index
    %c0_49 = arith.constant 0 : index
    %65 = vector.load %arg3[%c6, %c0_48, %c0_49] : memref<9x8x10xbf16, #tpu.memory_space<vmem>>, vector<1x8x10xbf16>
    %66 = vector.shape_cast %65 : vector<1x8x10xbf16> to vector<8x10xbf16>
    %67 = vector.extract_strided_slice %1 {offsets = [0, 36], sizes = [10, 288], strides = [1, 1]} : vector<10x342xbf16> to vector<10x288xbf16>
    %cst_50 = arith.constant dense<0.000000e+00> : vector<8x288xf32>
    %68 = tpu.matmul %66, %67, %cst_50 {dimension_numbers = #tpu.dot_dimension_numbers<[1], [0], [0], [1], [0, 0, 1, 1], [], []>} : vector<8x10xbf16>, vector<10x288xbf16>, vector<8x288xf32> -> vector<8x288xf32>
    %69 = arith.addf %64, %68 : vector<8x288xf32>
    %c6_51 = arith.constant 6 : index
    %c0_52 = arith.constant 0 : index
    %c0_53 = arith.constant 0 : index
    %70 = vector.load %arg4[%c6_51, %c0_52, %c0_53] : memref<9x8x6xbf16, #tpu.memory_space<vmem>>, vector<1x8x6xbf16>
    %71 = vector.shape_cast %70 : vector<1x8x6xbf16> to vector<8x6xbf16>
    %72 = vector.extract_strided_slice %3 {offsets = [0, 36], sizes = [6, 288], strides = [1, 1]} : vector<6x342xbf16> to vector<6x288xbf16>
    %cst_54 = arith.constant dense<0.000000e+00> : vector<8x288xf32>
    %73 = tpu.matmul %71, %72, %cst_54 {dimension_numbers = #tpu.dot_dimension_numbers<[1], [0], [0], [1], [0, 0, 1, 1], [], []>} : vector<8x6xbf16>, vector<6x288xbf16>, vector<8x288xf32> -> vector<8x288xf32>
    %74 = arith.addf %69, %73 : vector<8x288xf32>
    %c7 = arith.constant 7 : index
    %c0_55 = arith.constant 0 : index
    %c0_56 = arith.constant 0 : index
    %75 = vector.load %arg3[%c7, %c0_55, %c0_56] : memref<9x8x10xbf16, #tpu.memory_space<vmem>>, vector<1x8x10xbf16>
    %76 = vector.shape_cast %75 : vector<1x8x10xbf16> to vector<8x10xbf16>
    %77 = vector.extract_strided_slice %1 {offsets = [0, 37], sizes = [10, 288], strides = [1, 1]} : vector<10x342xbf16> to vector<10x288xbf16>
    %cst_57 = arith.constant dense<0.000000e+00> : vector<8x288xf32>
    %78 = tpu.matmul %76, %77, %cst_57 {dimension_numbers = #tpu.dot_dimension_numbers<[1], [0], [0], [1], [0, 0, 1, 1], [], []>} : vector<8x10xbf16>, vector<10x288xbf16>, vector<8x288xf32> -> vector<8x288xf32>
    %79 = arith.addf %74, %78 : vector<8x288xf32>
    %c7_58 = arith.constant 7 : index
    %c0_59 = arith.constant 0 : index
    %c0_60 = arith.constant 0 : index
    %80 = vector.load %arg4[%c7_58, %c0_59, %c0_60] : memref<9x8x6xbf16, #tpu.memory_space<vmem>>, vector<1x8x6xbf16>
    %81 = vector.shape_cast %80 : vector<1x8x6xbf16> to vector<8x6xbf16>
    %82 = vector.extract_strided_slice %3 {offsets = [0, 37], sizes = [6, 288], strides = [1, 1]} : vector<6x342xbf16> to vector<6x288xbf16>
    %cst_61 = arith.constant dense<0.000000e+00> : vector<8x288xf32>
    %83 = tpu.matmul %81, %82, %cst_61 {dimension_numbers = #tpu.dot_dimension_numbers<[1], [0], [0], [1], [0, 0, 1, 1], [], []>} : vector<8x6xbf16>, vector<6x288xbf16>, vector<8x288xf32> -> vector<8x288xf32>
    %84 = arith.addf %79, %83 : vector<8x288xf32>
    %c8 = arith.constant 8 : index
    %c0_62 = arith.constant 0 : index
    %c0_63 = arith.constant 0 : index
    %85 = vector.load %arg3[%c8, %c0_62, %c0_63] : memref<9x8x10xbf16, #tpu.memory_space<vmem>>, vector<1x8x10xbf16>
    %86 = vector.shape_cast %85 : vector<1x8x10xbf16> to vector<8x10xbf16>
    %87 = vector.extract_strided_slice %1 {offsets = [0, 38], sizes = [10, 288], strides = [1, 1]} : vector<10x342xbf16> to vector<10x288xbf16>
    %cst_64 = arith.constant dense<0.000000e+00> : vector<8x288xf32>
    %88 = tpu.matmul %86, %87, %cst_64 {dimension_numbers = #tpu.dot_dimension_numbers<[1], [0], [0], [1], [0, 0, 1, 1], [], []>} : vector<8x10xbf16>, vector<10x288xbf16>, vector<8x288xf32> -> vector<8x288xf32>
    %89 = arith.addf %84, %88 : vector<8x288xf32>
    %c8_65 = arith.constant 8 : index
    %c0_66 = arith.constant 0 : index
    %c0_67 = arith.constant 0 : index
    %90 = vector.load %arg4[%c8_65, %c0_66, %c0_67] : memref<9x8x6xbf16, #tpu.memory_space<vmem>>, vector<1x8x6xbf16>
    %91 = vector.shape_cast %90 : vector<1x8x6xbf16> to vector<8x6xbf16>
    %92 = vector.extract_strided_slice %3 {offsets = [0, 38], sizes = [6, 288], strides = [1, 1]} : vector<6x342xbf16> to vector<6x288xbf16>
    %cst_68 = arith.constant dense<0.000000e+00> : vector<8x288xf32>
    %93 = tpu.matmul %91, %92, %cst_68 {dimension_numbers = #tpu.dot_dimension_numbers<[1], [0], [0], [1], [0, 0, 1, 1], [], []>} : vector<8x6xbf16>, vector<6x288xbf16>, vector<8x288xf32> -> vector<8x288xf32>
    %94 = arith.addf %89, %93 : vector<8x288xf32>
    %c0_69 = arith.constant 0 : index
    %c0_70 = arith.constant 0 : index
    %95 = vector.load %arg5[%c0_69, %c0_70] : memref<8x1xf32, #tpu.memory_space<vmem>>, vector<8x1xf32>
    %96 = vector.broadcast %95 : vector<8x1xf32> to vector<8x288xf32>
    %97 = arith.mulf %94, %96 : vector<8x288xf32>
    %c0_71 = arith.constant 0 : index
    %c0_72 = arith.constant 0 : index
    %98 = vector.load %arg6[%c0_71, %c0_72] : memref<8x1xf32, #tpu.memory_space<vmem>>, vector<8x1xf32>
    %99 = vector.broadcast %98 : vector<8x1xf32> to vector<8x288xf32>
    %100 = arith.addf %97, %99 : vector<8x288xf32>
    %cst_73 = arith.constant 0.000000e+00 : f32
    %101 = vector.broadcast %cst_73 : f32 to vector<8x288xf32>
    %102 = arith.maximumf %100, %101 : vector<8x288xf32>
    %c0_74 = arith.constant 0 : index
    %c0_75 = arith.constant 0 : index
    %c0_76 = arith.constant 0 : index
    %103 = vector.load %arg7[%c0_74, %c0_75, %c0_76] : memref<1x8x288xf32, #tpu.memory_space<vmem>>, vector<1x8x288xf32>
    %104 = vector.shape_cast %103 : vector<1x8x288xf32> to vector<8x288xf32>
    %105 = vector.shape_cast %102 : vector<8x288xf32> to vector<1x8x288xf32>
    tpu.vector_store %arg7[%c0_74, %c0_75, %c0_76], %105 {strides = array<i32>} : memref<1x8x288xf32, #tpu.memory_space<vmem>>, vector<1x8x288xf32>,
    return
  }
  func.func @transform_0(%arg0: i32) -> (i32, i32, i32) {
    %c0_i32 = arith.constant 0 : i32
    %c0_i32_0 = arith.constant 0 : i32
    %c0_i32_1 = arith.constant 0 : i32
    return %arg0, %c0_i32, %c0_i32_0 : i32, i32, i32
  }
  func.func @transform_1(%arg0: i32) -> (i32, i32, i32) {
    %c0_i32 = arith.constant 0 : i32
    %c0_i32_0 = arith.constant 0 : i32
    %c0_i32_1 = arith.constant 0 : i32
    return %arg0, %c0_i32, %c0_i32_0 : i32, i32, i32
  }
  func.func @transform_2(%arg0: i32) -> (i32, i32, i32) {
    %c0_i32 = arith.constant 0 : i32
    %c0_i32_0 = arith.constant 0 : i32
    %c0_i32_1 = arith.constant 0 : i32
    %c0_i32_2 = arith.constant 0 : i32
    return %c0_i32, %c0_i32_0, %c0_i32_1 : i32, i32, i32
  }
  func.func @transform_3(%arg0: i32) -> (i32, i32, i32) {
    %c0_i32 = arith.constant 0 : i32
    %c0_i32_0 = arith.constant 0 : i32
    %c0_i32_1 = arith.constant 0 : i32
    %c0_i32_2 = arith.constant 0 : i32
    return %c0_i32, %c0_i32_0, %c0_i32_1 : i32, i32, i32
  }
  func.func @transform_4(%arg0: i32) -> (i32, i32) {
    %c0_i32 = arith.constant 0 : i32
    %c0_i32_0 = arith.constant 0 : i32
    %c0_i32_1 = arith.constant 0 : i32
    return %c0_i32, %c0_i32_0 : i32, i32
  }
  func.func @transform_5(%arg0: i32) -> (i32, i32) {
    %c0_i32 = arith.constant 0 : i32
    %c0_i32_0 = arith.constant 0 : i32
    %c0_i32_1 = arith.constant 0 : i32
    return %c0_i32, %c0_i32_0 : i32, i32
  }
  func.func @transform_6(%arg0: i32) -> (i32, i32, i32) {
    %c0_i32 = arith.constant 0 : i32
    %c0_i32_0 = arith.constant 0 : i32
    %c0_i32_1 = arith.constant 0 : i32
    return %arg0, %c0_i32, %c0_i32_0 : i32, i32, i32
  }
}

module attributes {stable_mosaic.version = 11 : i64} {
  func.func @_fused_conv_kernel(%arg0: i32, %arg1: memref<1x8x1190xbf16, #tpu.memory_space<vmem>>, %arg2: memref<1x4x1190xbf16, #tpu.memory_space<vmem>>, %arg3: memref<9x4x8xbf16, #tpu.memory_space<vmem>>, %arg4: memref<9x4x4xbf16, #tpu.memory_space<vmem>>, %arg5: memref<4x1xf32, #tpu.memory_space<vmem>>, %arg6: memref<4x1xf32, #tpu.memory_space<vmem>>, %arg7: memref<1x4x1088xf32, #tpu.memory_space<vmem>>) attributes {dimension_semantics = [#tpu.dimension_semantics<parallel>], iteration_bounds = array<i64: 2>, scalar_prefetch = 0 : i64, scratch_operands = 0 : i64, tpu.core_type = #tpu.core_type<tc>, window_params = [{transform_indices = @transform_0, window_bounds = array<i64: 1, 8, 1190>}, {transform_indices = @transform_1, window_bounds = array<i64: 1, 4, 1190>}, {pipeline_mode = #tpu.pipeline_mode<synchronous>, transform_indices = @transform_2, window_bounds = array<i64: 9, 4, 8>}, {pipeline_mode = #tpu.pipeline_mode<synchronous>, transform_indices = @transform_3, window_bounds = array<i64: 9, 4, 4>}, {pipeline_mode = #tpu.pipeline_mode<synchronous>, transform_indices = @transform_4, window_bounds = array<i64: 4, 1>}, {pipeline_mode = #tpu.pipeline_mode<synchronous>, transform_indices = @transform_5, window_bounds = array<i64: 4, 1>}, {transform_indices = @transform_6, window_bounds = array<i64: 1, 4, 1088>}]} {
    %c0 = arith.constant 0 : index
    %c0_0 = arith.constant 0 : index
    %c0_1 = arith.constant 0 : index
    %0 = vector.load %arg1[%c0, %c0_0, %c0_1] : memref<1x8x1190xbf16, #tpu.memory_space<vmem>>, vector<1x8x1190xbf16>
    %1 = vector.shape_cast %0 : vector<1x8x1190xbf16> to vector<8x1190xbf16>
    %c0_2 = arith.constant 0 : index
    %c0_3 = arith.constant 0 : index
    %c0_4 = arith.constant 0 : index
    %2 = vector.load %arg2[%c0_2, %c0_3, %c0_4] : memref<1x4x1190xbf16, #tpu.memory_space<vmem>>, vector<1x4x1190xbf16>
    %3 = vector.shape_cast %2 : vector<1x4x1190xbf16> to vector<4x1190xbf16>
    %cst = arith.constant 0.000000e+00 : f32
    %4 = vector.broadcast %cst : f32 to vector<4x1088xf32>
    %c0_5 = arith.constant 0 : index
    %c0_6 = arith.constant 0 : index
    %c0_7 = arith.constant 0 : index
    %5 = vector.load %arg3[%c0_5, %c0_6, %c0_7] : memref<9x4x8xbf16, #tpu.memory_space<vmem>>, vector<1x4x8xbf16>
    %6 = vector.shape_cast %5 : vector<1x4x8xbf16> to vector<4x8xbf16>
    %7 = vector.extract_strided_slice %1 {offsets = [0, 0], sizes = [8, 1088], strides = [1, 1]} : vector<8x1190xbf16> to vector<8x1088xbf16>
    %cst_8 = arith.constant dense<0.000000e+00> : vector<4x1088xf32>
    %8 = tpu.matmul %6, %7, %cst_8 {dimension_numbers = #tpu.dot_dimension_numbers<[1], [0], [0], [1], [0, 0, 1, 1], [], []>} : vector<4x8xbf16>, vector<8x1088xbf16>, vector<4x1088xf32> -> vector<4x1088xf32>
    %9 = arith.addf %4, %8 : vector<4x1088xf32>
    %c0_9 = arith.constant 0 : index
    %c0_10 = arith.constant 0 : index
    %c0_11 = arith.constant 0 : index
    %10 = vector.load %arg4[%c0_9, %c0_10, %c0_11] : memref<9x4x4xbf16, #tpu.memory_space<vmem>>, vector<1x4x4xbf16>
    %11 = vector.shape_cast %10 : vector<1x4x4xbf16> to vector<4x4xbf16>
    %12 = vector.extract_strided_slice %3 {offsets = [0, 0], sizes = [4, 1088], strides = [1, 1]} : vector<4x1190xbf16> to vector<4x1088xbf16>
    %cst_12 = arith.constant dense<0.000000e+00> : vector<4x1088xf32>
    %13 = tpu.matmul %11, %12, %cst_12 {dimension_numbers = #tpu.dot_dimension_numbers<[1], [0], [0], [1], [0, 0, 1, 1], [], []>} : vector<4x4xbf16>, vector<4x1088xbf16>, vector<4x1088xf32> -> vector<4x1088xf32>
    %14 = arith.addf %9, %13 : vector<4x1088xf32>
    %c1 = arith.constant 1 : index
    %c0_13 = arith.constant 0 : index
    %c0_14 = arith.constant 0 : index
    %15 = vector.load %arg3[%c1, %c0_13, %c0_14] : memref<9x4x8xbf16, #tpu.memory_space<vmem>>, vector<1x4x8xbf16>
    %16 = vector.shape_cast %15 : vector<1x4x8xbf16> to vector<4x8xbf16>
    %17 = vector.extract_strided_slice %1 {offsets = [0, 1], sizes = [8, 1088], strides = [1, 1]} : vector<8x1190xbf16> to vector<8x1088xbf16>
    %cst_15 = arith.constant dense<0.000000e+00> : vector<4x1088xf32>
    %18 = tpu.matmul %16, %17, %cst_15 {dimension_numbers = #tpu.dot_dimension_numbers<[1], [0], [0], [1], [0, 0, 1, 1], [], []>} : vector<4x8xbf16>, vector<8x1088xbf16>, vector<4x1088xf32> -> vector<4x1088xf32>
    %19 = arith.addf %14, %18 : vector<4x1088xf32>
    %c1_16 = arith.constant 1 : index
    %c0_17 = arith.constant 0 : index
    %c0_18 = arith.constant 0 : index
    %20 = vector.load %arg4[%c1_16, %c0_17, %c0_18] : memref<9x4x4xbf16, #tpu.memory_space<vmem>>, vector<1x4x4xbf16>
    %21 = vector.shape_cast %20 : vector<1x4x4xbf16> to vector<4x4xbf16>
    %22 = vector.extract_strided_slice %3 {offsets = [0, 1], sizes = [4, 1088], strides = [1, 1]} : vector<4x1190xbf16> to vector<4x1088xbf16>
    %cst_19 = arith.constant dense<0.000000e+00> : vector<4x1088xf32>
    %23 = tpu.matmul %21, %22, %cst_19 {dimension_numbers = #tpu.dot_dimension_numbers<[1], [0], [0], [1], [0, 0, 1, 1], [], []>} : vector<4x4xbf16>, vector<4x1088xbf16>, vector<4x1088xf32> -> vector<4x1088xf32>
    %24 = arith.addf %19, %23 : vector<4x1088xf32>
    %c2 = arith.constant 2 : index
    %c0_20 = arith.constant 0 : index
    %c0_21 = arith.constant 0 : index
    %25 = vector.load %arg3[%c2, %c0_20, %c0_21] : memref<9x4x8xbf16, #tpu.memory_space<vmem>>, vector<1x4x8xbf16>
    %26 = vector.shape_cast %25 : vector<1x4x8xbf16> to vector<4x8xbf16>
    %27 = vector.extract_strided_slice %1 {offsets = [0, 2], sizes = [8, 1088], strides = [1, 1]} : vector<8x1190xbf16> to vector<8x1088xbf16>
    %cst_22 = arith.constant dense<0.000000e+00> : vector<4x1088xf32>
    %28 = tpu.matmul %26, %27, %cst_22 {dimension_numbers = #tpu.dot_dimension_numbers<[1], [0], [0], [1], [0, 0, 1, 1], [], []>} : vector<4x8xbf16>, vector<8x1088xbf16>, vector<4x1088xf32> -> vector<4x1088xf32>
    %29 = arith.addf %24, %28 : vector<4x1088xf32>
    %c2_23 = arith.constant 2 : index
    %c0_24 = arith.constant 0 : index
    %c0_25 = arith.constant 0 : index
    %30 = vector.load %arg4[%c2_23, %c0_24, %c0_25] : memref<9x4x4xbf16, #tpu.memory_space<vmem>>, vector<1x4x4xbf16>
    %31 = vector.shape_cast %30 : vector<1x4x4xbf16> to vector<4x4xbf16>
    %32 = vector.extract_strided_slice %3 {offsets = [0, 2], sizes = [4, 1088], strides = [1, 1]} : vector<4x1190xbf16> to vector<4x1088xbf16>
    %cst_26 = arith.constant dense<0.000000e+00> : vector<4x1088xf32>
    %33 = tpu.matmul %31, %32, %cst_26 {dimension_numbers = #tpu.dot_dimension_numbers<[1], [0], [0], [1], [0, 0, 1, 1], [], []>} : vector<4x4xbf16>, vector<4x1088xbf16>, vector<4x1088xf32> -> vector<4x1088xf32>
    %34 = arith.addf %29, %33 : vector<4x1088xf32>
    %c3 = arith.constant 3 : index
    %c0_27 = arith.constant 0 : index
    %c0_28 = arith.constant 0 : index
    %35 = vector.load %arg3[%c3, %c0_27, %c0_28] : memref<9x4x8xbf16, #tpu.memory_space<vmem>>, vector<1x4x8xbf16>
    %36 = vector.shape_cast %35 : vector<1x4x8xbf16> to vector<4x8xbf16>
    %37 = vector.extract_strided_slice %1 {offsets = [0, 34], sizes = [8, 1088], strides = [1, 1]} : vector<8x1190xbf16> to vector<8x1088xbf16>
    %cst_29 = arith.constant dense<0.000000e+00> : vector<4x1088xf32>
    %38 = tpu.matmul %36, %37, %cst_29 {dimension_numbers = #tpu.dot_dimension_numbers<[1], [0], [0], [1], [0, 0, 1, 1], [], []>} : vector<4x8xbf16>, vector<8x1088xbf16>, vector<4x1088xf32> -> vector<4x1088xf32>
    %39 = arith.addf %34, %38 : vector<4x1088xf32>
    %c3_30 = arith.constant 3 : index
    %c0_31 = arith.constant 0 : index
    %c0_32 = arith.constant 0 : index
    %40 = vector.load %arg4[%c3_30, %c0_31, %c0_32] : memref<9x4x4xbf16, #tpu.memory_space<vmem>>, vector<1x4x4xbf16>
    %41 = vector.shape_cast %40 : vector<1x4x4xbf16> to vector<4x4xbf16>
    %42 = vector.extract_strided_slice %3 {offsets = [0, 34], sizes = [4, 1088], strides = [1, 1]} : vector<4x1190xbf16> to vector<4x1088xbf16>
    %cst_33 = arith.constant dense<0.000000e+00> : vector<4x1088xf32>
    %43 = tpu.matmul %41, %42, %cst_33 {dimension_numbers = #tpu.dot_dimension_numbers<[1], [0], [0], [1], [0, 0, 1, 1], [], []>} : vector<4x4xbf16>, vector<4x1088xbf16>, vector<4x1088xf32> -> vector<4x1088xf32>
    %44 = arith.addf %39, %43 : vector<4x1088xf32>
    %c4 = arith.constant 4 : index
    %c0_34 = arith.constant 0 : index
    %c0_35 = arith.constant 0 : index
    %45 = vector.load %arg3[%c4, %c0_34, %c0_35] : memref<9x4x8xbf16, #tpu.memory_space<vmem>>, vector<1x4x8xbf16>
    %46 = vector.shape_cast %45 : vector<1x4x8xbf16> to vector<4x8xbf16>
    %47 = vector.extract_strided_slice %1 {offsets = [0, 35], sizes = [8, 1088], strides = [1, 1]} : vector<8x1190xbf16> to vector<8x1088xbf16>
    %cst_36 = arith.constant dense<0.000000e+00> : vector<4x1088xf32>
    %48 = tpu.matmul %46, %47, %cst_36 {dimension_numbers = #tpu.dot_dimension_numbers<[1], [0], [0], [1], [0, 0, 1, 1], [], []>} : vector<4x8xbf16>, vector<8x1088xbf16>, vector<4x1088xf32> -> vector<4x1088xf32>
    %49 = arith.addf %44, %48 : vector<4x1088xf32>
    %c4_37 = arith.constant 4 : index
    %c0_38 = arith.constant 0 : index
    %c0_39 = arith.constant 0 : index
    %50 = vector.load %arg4[%c4_37, %c0_38, %c0_39] : memref<9x4x4xbf16, #tpu.memory_space<vmem>>, vector<1x4x4xbf16>
    %51 = vector.shape_cast %50 : vector<1x4x4xbf16> to vector<4x4xbf16>
    %52 = vector.extract_strided_slice %3 {offsets = [0, 35], sizes = [4, 1088], strides = [1, 1]} : vector<4x1190xbf16> to vector<4x1088xbf16>
    %cst_40 = arith.constant dense<0.000000e+00> : vector<4x1088xf32>
    %53 = tpu.matmul %51, %52, %cst_40 {dimension_numbers = #tpu.dot_dimension_numbers<[1], [0], [0], [1], [0, 0, 1, 1], [], []>} : vector<4x4xbf16>, vector<4x1088xbf16>, vector<4x1088xf32> -> vector<4x1088xf32>
    %54 = arith.addf %49, %53 : vector<4x1088xf32>
    %c5 = arith.constant 5 : index
    %c0_41 = arith.constant 0 : index
    %c0_42 = arith.constant 0 : index
    %55 = vector.load %arg3[%c5, %c0_41, %c0_42] : memref<9x4x8xbf16, #tpu.memory_space<vmem>>, vector<1x4x8xbf16>
    %56 = vector.shape_cast %55 : vector<1x4x8xbf16> to vector<4x8xbf16>
    %57 = vector.extract_strided_slice %1 {offsets = [0, 36], sizes = [8, 1088], strides = [1, 1]} : vector<8x1190xbf16> to vector<8x1088xbf16>
    %cst_43 = arith.constant dense<0.000000e+00> : vector<4x1088xf32>
    %58 = tpu.matmul %56, %57, %cst_43 {dimension_numbers = #tpu.dot_dimension_numbers<[1], [0], [0], [1], [0, 0, 1, 1], [], []>} : vector<4x8xbf16>, vector<8x1088xbf16>, vector<4x1088xf32> -> vector<4x1088xf32>
    %59 = arith.addf %54, %58 : vector<4x1088xf32>
    %c5_44 = arith.constant 5 : index
    %c0_45 = arith.constant 0 : index
    %c0_46 = arith.constant 0 : index
    %60 = vector.load %arg4[%c5_44, %c0_45, %c0_46] : memref<9x4x4xbf16, #tpu.memory_space<vmem>>, vector<1x4x4xbf16>
    %61 = vector.shape_cast %60 : vector<1x4x4xbf16> to vector<4x4xbf16>
    %62 = vector.extract_strided_slice %3 {offsets = [0, 36], sizes = [4, 1088], strides = [1, 1]} : vector<4x1190xbf16> to vector<4x1088xbf16>
    %cst_47 = arith.constant dense<0.000000e+00> : vector<4x1088xf32>
    %63 = tpu.matmul %61, %62, %cst_47 {dimension_numbers = #tpu.dot_dimension_numbers<[1], [0], [0], [1], [0, 0, 1, 1], [], []>} : vector<4x4xbf16>, vector<4x1088xbf16>, vector<4x1088xf32> -> vector<4x1088xf32>
    %64 = arith.addf %59, %63 : vector<4x1088xf32>
    %c6 = arith.constant 6 : index
    %c0_48 = arith.constant 0 : index
    %c0_49 = arith.constant 0 : index
    %65 = vector.load %arg3[%c6, %c0_48, %c0_49] : memref<9x4x8xbf16, #tpu.memory_space<vmem>>, vector<1x4x8xbf16>
    %66 = vector.shape_cast %65 : vector<1x4x8xbf16> to vector<4x8xbf16>
    %67 = vector.extract_strided_slice %1 {offsets = [0, 68], sizes = [8, 1088], strides = [1, 1]} : vector<8x1190xbf16> to vector<8x1088xbf16>
    %cst_50 = arith.constant dense<0.000000e+00> : vector<4x1088xf32>
    %68 = tpu.matmul %66, %67, %cst_50 {dimension_numbers = #tpu.dot_dimension_numbers<[1], [0], [0], [1], [0, 0, 1, 1], [], []>} : vector<4x8xbf16>, vector<8x1088xbf16>, vector<4x1088xf32> -> vector<4x1088xf32>
    %69 = arith.addf %64, %68 : vector<4x1088xf32>
    %c6_51 = arith.constant 6 : index
    %c0_52 = arith.constant 0 : index
    %c0_53 = arith.constant 0 : index
    %70 = vector.load %arg4[%c6_51, %c0_52, %c0_53] : memref<9x4x4xbf16, #tpu.memory_space<vmem>>, vector<1x4x4xbf16>
    %71 = vector.shape_cast %70 : vector<1x4x4xbf16> to vector<4x4xbf16>
    %72 = vector.extract_strided_slice %3 {offsets = [0, 68], sizes = [4, 1088], strides = [1, 1]} : vector<4x1190xbf16> to vector<4x1088xbf16>
    %cst_54 = arith.constant dense<0.000000e+00> : vector<4x1088xf32>
    %73 = tpu.matmul %71, %72, %cst_54 {dimension_numbers = #tpu.dot_dimension_numbers<[1], [0], [0], [1], [0, 0, 1, 1], [], []>} : vector<4x4xbf16>, vector<4x1088xbf16>, vector<4x1088xf32> -> vector<4x1088xf32>
    %74 = arith.addf %69, %73 : vector<4x1088xf32>
    %c7 = arith.constant 7 : index
    %c0_55 = arith.constant 0 : index
    %c0_56 = arith.constant 0 : index
    %75 = vector.load %arg3[%c7, %c0_55, %c0_56] : memref<9x4x8xbf16, #tpu.memory_space<vmem>>, vector<1x4x8xbf16>
    %76 = vector.shape_cast %75 : vector<1x4x8xbf16> to vector<4x8xbf16>
    %77 = vector.extract_strided_slice %1 {offsets = [0, 69], sizes = [8, 1088], strides = [1, 1]} : vector<8x1190xbf16> to vector<8x1088xbf16>
    %cst_57 = arith.constant dense<0.000000e+00> : vector<4x1088xf32>
    %78 = tpu.matmul %76, %77, %cst_57 {dimension_numbers = #tpu.dot_dimension_numbers<[1], [0], [0], [1], [0, 0, 1, 1], [], []>} : vector<4x8xbf16>, vector<8x1088xbf16>, vector<4x1088xf32> -> vector<4x1088xf32>
    %79 = arith.addf %74, %78 : vector<4x1088xf32>
    %c7_58 = arith.constant 7 : index
    %c0_59 = arith.constant 0 : index
    %c0_60 = arith.constant 0 : index
    %80 = vector.load %arg4[%c7_58, %c0_59, %c0_60] : memref<9x4x4xbf16, #tpu.memory_space<vmem>>, vector<1x4x4xbf16>
    %81 = vector.shape_cast %80 : vector<1x4x4xbf16> to vector<4x4xbf16>
    %82 = vector.extract_strided_slice %3 {offsets = [0, 69], sizes = [4, 1088], strides = [1, 1]} : vector<4x1190xbf16> to vector<4x1088xbf16>
    %cst_61 = arith.constant dense<0.000000e+00> : vector<4x1088xf32>
    %83 = tpu.matmul %81, %82, %cst_61 {dimension_numbers = #tpu.dot_dimension_numbers<[1], [0], [0], [1], [0, 0, 1, 1], [], []>} : vector<4x4xbf16>, vector<4x1088xbf16>, vector<4x1088xf32> -> vector<4x1088xf32>
    %84 = arith.addf %79, %83 : vector<4x1088xf32>
    %c8 = arith.constant 8 : index
    %c0_62 = arith.constant 0 : index
    %c0_63 = arith.constant 0 : index
    %85 = vector.load %arg3[%c8, %c0_62, %c0_63] : memref<9x4x8xbf16, #tpu.memory_space<vmem>>, vector<1x4x8xbf16>
    %86 = vector.shape_cast %85 : vector<1x4x8xbf16> to vector<4x8xbf16>
    %87 = vector.extract_strided_slice %1 {offsets = [0, 70], sizes = [8, 1088], strides = [1, 1]} : vector<8x1190xbf16> to vector<8x1088xbf16>
    %cst_64 = arith.constant dense<0.000000e+00> : vector<4x1088xf32>
    %88 = tpu.matmul %86, %87, %cst_64 {dimension_numbers = #tpu.dot_dimension_numbers<[1], [0], [0], [1], [0, 0, 1, 1], [], []>} : vector<4x8xbf16>, vector<8x1088xbf16>, vector<4x1088xf32> -> vector<4x1088xf32>
    %89 = arith.addf %84, %88 : vector<4x1088xf32>
    %c8_65 = arith.constant 8 : index
    %c0_66 = arith.constant 0 : index
    %c0_67 = arith.constant 0 : index
    %90 = vector.load %arg4[%c8_65, %c0_66, %c0_67] : memref<9x4x4xbf16, #tpu.memory_space<vmem>>, vector<1x4x4xbf16>
    %91 = vector.shape_cast %90 : vector<1x4x4xbf16> to vector<4x4xbf16>
    %92 = vector.extract_strided_slice %3 {offsets = [0, 70], sizes = [4, 1088], strides = [1, 1]} : vector<4x1190xbf16> to vector<4x1088xbf16>
    %cst_68 = arith.constant dense<0.000000e+00> : vector<4x1088xf32>
    %93 = tpu.matmul %91, %92, %cst_68 {dimension_numbers = #tpu.dot_dimension_numbers<[1], [0], [0], [1], [0, 0, 1, 1], [], []>} : vector<4x4xbf16>, vector<4x1088xbf16>, vector<4x1088xf32> -> vector<4x1088xf32>
    %94 = arith.addf %89, %93 : vector<4x1088xf32>
    %c0_69 = arith.constant 0 : index
    %c0_70 = arith.constant 0 : index
    %95 = vector.load %arg5[%c0_69, %c0_70] : memref<4x1xf32, #tpu.memory_space<vmem>>, vector<4x1xf32>
    %96 = vector.broadcast %95 : vector<4x1xf32> to vector<4x1088xf32>
    %97 = arith.mulf %94, %96 : vector<4x1088xf32>
    %c0_71 = arith.constant 0 : index
    %c0_72 = arith.constant 0 : index
    %98 = vector.load %arg6[%c0_71, %c0_72] : memref<4x1xf32, #tpu.memory_space<vmem>>, vector<4x1xf32>
    %99 = vector.broadcast %98 : vector<4x1xf32> to vector<4x1088xf32>
    %100 = arith.addf %97, %99 : vector<4x1088xf32>
    %c0_73 = arith.constant 0 : index
    %c0_74 = arith.constant 0 : index
    %c0_75 = arith.constant 0 : index
    %101 = vector.load %arg7[%c0_73, %c0_74, %c0_75] : memref<1x4x1088xf32, #tpu.memory_space<vmem>>, vector<1x4x1088xf32>
    %102 = vector.shape_cast %101 : vector<1x4x1088xf32> to vector<4x1088xf32>
    %103 = vector.shape_cast %100 : vector<4x1088xf32> to vector<1x4x1088xf32>
    tpu.vector_store %arg7[%c0_73, %c0_74, %c0_75], %103 {strides = array<i32>} : memref<1x4x1088xf32, #tpu.memory_space<vmem>>, vector<1x4x1088xf32>,
    return
  }
  func.func @transform_0(%arg0: i32) -> (i32, i32, i32) {
    %c0_i32 = arith.constant 0 : i32
    %c0_i32_0 = arith.constant 0 : i32
    %c0_i32_1 = arith.constant 0 : i32
    return %arg0, %c0_i32, %c0_i32_0 : i32, i32, i32
  }
  func.func @transform_1(%arg0: i32) -> (i32, i32, i32) {
    %c0_i32 = arith.constant 0 : i32
    %c0_i32_0 = arith.constant 0 : i32
    %c0_i32_1 = arith.constant 0 : i32
    return %arg0, %c0_i32, %c0_i32_0 : i32, i32, i32
  }
  func.func @transform_2(%arg0: i32) -> (i32, i32, i32) {
    %c0_i32 = arith.constant 0 : i32
    %c0_i32_0 = arith.constant 0 : i32
    %c0_i32_1 = arith.constant 0 : i32
    %c0_i32_2 = arith.constant 0 : i32
    return %c0_i32, %c0_i32_0, %c0_i32_1 : i32, i32, i32
  }
  func.func @transform_3(%arg0: i32) -> (i32, i32, i32) {
    %c0_i32 = arith.constant 0 : i32
    %c0_i32_0 = arith.constant 0 : i32
    %c0_i32_1 = arith.constant 0 : i32
    %c0_i32_2 = arith.constant 0 : i32
    return %c0_i32, %c0_i32_0, %c0_i32_1 : i32, i32, i32
  }
  func.func @transform_4(%arg0: i32) -> (i32, i32) {
    %c0_i32 = arith.constant 0 : i32
    %c0_i32_0 = arith.constant 0 : i32
    %c0_i32_1 = arith.constant 0 : i32
    return %c0_i32, %c0_i32_0 : i32, i32
  }
  func.func @transform_5(%arg0: i32) -> (i32, i32) {
    %c0_i32 = arith.constant 0 : i32
    %c0_i32_0 = arith.constant 0 : i32
    %c0_i32_1 = arith.constant 0 : i32
    return %c0_i32, %c0_i32_0 : i32, i32
  }
  func.func @transform_6(%arg0: i32) -> (i32, i32, i32) {
    %c0_i32 = arith.constant 0 : i32
    %c0_i32_0 = arith.constant 0 : i32
    %c0_i32_1 = arith.constant 0 : i32
    return %arg0, %c0_i32, %c0_i32_0 : i32, i32, i32
  }
}

</mosaic_0001>

<llo_original>
// kernel: decoder_forward.4
$region0: #{decoder_forward.4}
  #allocation0 [shape = 'u32[]', space=smem, size = 0x4, offset = 0x4, fixed_abs, tag = 'smem constant byte address 0x4 - core index']
  #allocation1 [shape = 'u32[144,128]{1,0:T(1,128)}', space=vmem, size = 0x12000, scoped, tag = 'internal scratch']
  %s0 = inlined_call_operand.vmem [shape: bf16[2,16,42], index: 0, kind: input, shape index: {}]
  %s1 = inlined_call_operand.vmem [shape: bf16[2,8,42], index: 1, kind: input, shape index: {}]
  %s2 = inlined_call_operand.vmem [shape: bf16[9,12,16], index: 2, kind: input, shape index: {}]
  %s3 = inlined_call_operand.vmem [shape: bf16[9,12,8], index: 3, kind: input, shape index: {}]
  %s4 = inlined_call_operand.vmem [shape: f32[12,1], index: 4, kind: input, shape index: {}]
  %s5 = inlined_call_operand.vmem [shape: f32[12,1], index: 5, kind: input, shape index: {}]
  %s6 = inlined_call_operand.vmem [shape: f32[2,12,24], index: 6, kind: output, shape index: {}]
  %s7 = sld [smem:[#allocation0]]
  $region57: #{decoder_forward.4} parent=0
    _
  %s9 = ssub.s32 1, %s7
  %s10 = scalar_select 0, %s9, %s7
  loop: start=0, step=1, limit=4
  $region2: #{decoder_forward.4} parent=0 // loop_pre_header
    _
  $region3: #{decoder_forward.4} parent=0 // loop_header
    %s12 = sphi 0, %s16
    %p13 = scmp.ge.s32.totalorder %s12, 4
    %s22 = sphi 0, %s24
    %s25 = sphi 0, %s22
    %s26 = sphi 0, %s25
    %s42 = sphi 0, %s26
    %s48 = sphi 0, %s50
    %s51 = sphi 0, %s48
    %s52 = sphi 0, %s51
    %s68 = sphi 0, %s52
    %s72 = sphi 0, %s72
    %s74 = sphi 0, %s72
    %s75 = sphi 0, %s74
    %s89 = sphi 0, %s75
    %s93 = sphi 0, %s93
    %s95 = sphi 0, %s93
    %s96 = sphi 0, %s95
    %s110 = sphi 0, %s96
    %s114 = sphi 0, %s114
    %s116 = sphi 0, %s114
    %s117 = sphi 0, %s116
    %s131 = sphi 0, %s117
    %s135 = sphi 0, %s135
    %s137 = sphi 0, %s135
    %s138 = sphi 0, %s137
    %s152 = sphi 0, %s138
    %s158 = sphi 0, %s160
    %s161 = sphi 0, %s158
    %s162 = sphi 0, %s161
    %s178 = sphi 0, %s162
  $region4: #{decoder_forward.4} parent=0 // loop_header_branch
    %15 = sbr.rel (%p13) target = $region8
  $region5: #{decoder_forward.4} parent=0 // loop_body
    %s17 = ssub.s32 %s12, 1
    %s18 = ssub.s32 %s12, 2
    %s19 = sadd.s32 %s12, 1
    %s20 = ssub.s32 %s12, %s19
    %p21 = scmp.eq.s32.totalorder %s20, 0
    %s23 = sadd.s32 %s22, 1
    %s24 = scalar_select %p21, %s22, %s23
    %p27 = pneg %p21
    %p28 = scmp.eq.s32.totalorder %s12, 1
    %p29 = por %p27, %p28
    %p30 = scmp.ne.s32.totalorder %s22, %s25
    %p31 = scmp.eq.s32.totalorder %s12, 0
    %p32 = por %p30, %p31
    %p33 = scmp.ne.s32.totalorder %s22, %s25
    %p34 = scmp.eq.s32.totalorder %s17, 1
    %p35 = por %p33, %p34
    %p36 = scmp.ne.s32.totalorder %s25, %s26
    %p37 = scmp.eq.s32.totalorder %s17, 0
    %p38 = por %p36, %p37
    %p39 = scmp.ne.s32.totalorder %s25, %s26
    %p40 = scmp.eq.s32.totalorder %s18, 1
    %p41 = por %p39, %p40
    %p43 = scmp.ne.s32.totalorder %s26, %s42
    %p44 = scmp.eq.s32.totalorder %s18, 0
    %p45 = por %p43, %p44
    %s46 = ssub.s32 %s12, %s19
    %p47 = scmp.eq.s32.totalorder %s46, 0
    %s49 = sadd.s32 %s48, 1
    %s50 = scalar_select %p47, %s48, %s49
    %p53 = pneg %p47
    %p54 = scmp.eq.s32.totalorder %s12, 1
    %p55 = por %p53, %p54
    %p56 = scmp.ne.s32.totalorder %s48, %s51
    %p57 = scmp.eq.s32.totalorder %s12, 0
    %p58 = por %p56, %p57
    %p59 = scmp.ne.s32.totalorder %s48, %s51
    %p60 = scmp.eq.s32.totalorder %s17, 1
    %p61 = por %p59, %p60
    %p62 = scmp.ne.s32.totalorder %s51, %s52
    %p63 = scmp.eq.s32.totalorder %s17, 0
    %p64 = por %p62, %p63
    %p65 = scmp.ne.s32.totalorder %s51, %s52
    %p66 = scmp.eq.s32.totalorder %s18, 1
    %p67 = por %p65, %p66
    %p69 = scmp.ne.s32.totalorder %s52, %s68
    %p70 = scmp.eq.s32.totalorder %s18, 0
    %p71 = por %p69, %p70
    %s73 = sadd.s32 %s72, 1
    %p76 = scmp.eq.s32.totalorder %s12, 1
    %p77 = scmp.ne.s32.totalorder %s72, %s74
    %p78 = scmp.eq.s32.totalorder %s12, 0
    %p79 = por %p77, %p78
    %p80 = scmp.ne.s32.totalorder %s72, %s74
    %p81 = scmp.eq.s32.totalorder %s17, 1
    %p82 = por %p80, %p81
    %p83 = scmp.ne.s32.totalorder %s74, %s75
    %p84 = scmp.eq.s32.totalorder %s17, 0
    %p85 = por %p83, %p84
    %p86 = scmp.ne.s32.totalorder %s74, %s75
    %p87 = scmp.eq.s32.totalorder %s18, 1
    %p88 = por %p86, %p87
    %p90 = scmp.ne.s32.totalorder %s75, %s89
    %p91 = scmp.eq.s32.totalorder %s18, 0
    %p92 = por %p90, %p91
    %s94 = sadd.s32 %s93, 1
    %p97 = scmp.eq.s32.totalorder %s12, 1
    %p98 = scmp.ne.s32.totalorder %s93, %s95
    %p99 = scmp.eq.s32.totalorder %s12, 0
    %p100 = por %p98, %p99
    %p101 = scmp.ne.s32.totalorder %s93, %s95
    %p102 = scmp.eq.s32.totalorder %s17, 1
    %p103 = por %p101, %p102
    %p104 = scmp.ne.s32.totalorder %s95, %s96
    %p105 = scmp.eq.s32.totalorder %s17, 0
    %p106 = por %p104, %p105
    %p107 = scmp.ne.s32.totalorder %s95, %s96
    %p108 = scmp.eq.s32.totalorder %s18, 1
    %p109 = por %p107, %p108
    %p111 = scmp.ne.s32.totalorder %s96, %s110
    %p112 = scmp.eq.s32.totalorder %s18, 0
    %p113 = por %p111, %p112
    %s115 = sadd.s32 %s114, 1
    %p118 = scmp.eq.s32.totalorder %s12, 1
    %p119 = scmp.ne.s32.totalorder %s114, %s116
    %p120 = scmp.eq.s32.totalorder %s12, 0
    %p121 = por %p119, %p120
    %p122 = scmp.ne.s32.totalorder %s114, %s116
    %p123 = scmp.eq.s32.totalorder %s17, 1
    %p124 = por %p122, %p123
    %p125 = scmp.ne.s32.totalorder %s116, %s117
    %p126 = scmp.eq.s32.totalorder %s17, 0
    %p127 = por %p125, %p126
    %p128 = scmp.ne.s32.totalorder %s116, %s117
    %p129 = scmp.eq.s32.totalorder %s18, 1
    %p130 = por %p128, %p129
    %p132 = scmp.ne.s32.totalorder %s117, %s131
    %p133 = scmp.eq.s32.totalorder %s18, 0
    %p134 = por %p132, %p133
    %s136 = sadd.s32 %s135, 1
    %p139 = scmp.eq.s32.totalorder %s12, 1
    %p140 = scmp.ne.s32.totalorder %s135, %s137
    %p141 = scmp.eq.s32.totalorder %s12, 0
    %p142 = por %p140, %p141
    %p143 = scmp.ne.s32.totalorder %s135, %s137
    %p144 = scmp.eq.s32.totalorder %s17, 1
    %p145 = por %p143, %p144
    %p146 = scmp.ne.s32.totalorder %s137, %s138
    %p147 = scmp.eq.s32.totalorder %s17, 0
    %p148 = por %p146, %p147
    %p149 = scmp.ne.s32.totalorder %s137, %s138
    %p150 = scmp.eq.s32.totalorder %s18, 1
    %p151 = por %p149, %p150
    %p153 = scmp.ne.s32.totalorder %s138, %s152
    %p154 = scmp.eq.s32.totalorder %s18, 0
    %p155 = por %p153, %p154
    %s156 = ssub.s32 %s12, %s19
    %p157 = scmp.eq.s32.totalorder %s156, 0
    %s159 = sadd.s32 %s158, 1
    %s160 = scalar_select %p157, %s158, %s159
    %p163 = pneg %p157
    %p164 = scmp.eq.s32.totalorder %s12, 1
    %p165 = por %p163, %p164
    %p166 = scmp.ne.s32.totalorder %s158, %s161
    %p167 = scmp.eq.s32.totalorder %s12, 0
    %p168 = por %p166, %p167
    %p169 = scmp.ne.s32.totalorder %s158, %s161
    %p170 = scmp.eq.s32.totalorder %s17, 1
    %p171 = por %p169, %p170
    %p172 = scmp.ne.s32.totalorder %s161, %s162
    %p173 = scmp.eq.s32.totalorder %s17, 0
    %p174 = por %p172, %p173
    %p175 = scmp.ne.s32.totalorder %s161, %s162
    %p176 = scmp.eq.s32.totalorder %s18, 1
    %p177 = por %p175, %p176
    %p179 = scmp.ne.s32.totalorder %s162, %s178
    %p180 = scmp.eq.s32.totalorder %s18, 0
    %p181 = por %p179, %p180
    %p182 = scmp.le.s32.totalorder 1, %s12
    %p183 = scmp.lt.s32.totalorder %s12, 3
    %p184 = pnand %p182, %p183
    %p185 = pneg %p184
    // Predicated region
    $region9: #{decoder_forward.4} parent=5 // pred_check
      _
    $region10: #{decoder_forward.4} parent=5 // pred_check_branch
      %187 = sbr.rel (%p184) target = $region12
    $region11: #{decoder_forward.4} parent=5 // pred_region
      %s188 = ssub.s32 %s12, 1
      // Predicated region
      $region13: #{decoder_forward.4} parent=11 // pred_check
        %p189 = pneg %p85
      $region14: #{decoder_forward.4} parent=11 // pred_check_branch
        %191 = sbr.rel (%p189) target = $region16
      $region15: #{decoder_forward.4} parent=11 // pred_region
        _
      $region16: #{decoder_forward.4} parent=11 // pred_fallthru
        _
      // Predicated region
      $region17: #{decoder_forward.4} parent=11 // pred_check
        %p192 = pneg %p106
      $region18: #{decoder_forward.4} parent=11 // pred_check_branch
        %194 = sbr.rel (%p192) target = $region20
      $region19: #{decoder_forward.4} parent=11 // pred_region
        _
      $region20: #{decoder_forward.4} parent=11 // pred_fallthru
        _
      // Predicated region
      $region21: #{decoder_forward.4} parent=11 // pred_check
        %p195 = pneg %p127
      $region22: #{decoder_forward.4} parent=11 // pred_check_branch
        %197 = sbr.rel (%p195) target = $region24
      $region23: #{decoder_forward.4} parent=11 // pred_region
        _
      $region24: #{decoder_forward.4} parent=11 // pred_fallthru
        _
      // Predicated region
      $region25: #{decoder_forward.4} parent=11 // pred_check
        %p198 = pneg %p148
      $region26: #{decoder_forward.4} parent=11 // pred_check_branch
        %200 = sbr.rel (%p198) target = $region28
      $region27: #{decoder_forward.4} parent=11 // pred_region
        _
      $region28: #{decoder_forward.4} parent=11 // pred_fallthru
        _
    $region12: #{decoder_forward.4} parent=5 // pred_fallthru
      _
    %p201 = scmp.lt.s32.totalorder %s12, 2
    // Predicated region
    $region29: #{decoder_forward.4} parent=5 // pred_check
      %p202 = pneg %p201
    $region30: #{decoder_forward.4} parent=5 // pred_check_branch
      %204 = sbr.rel (%p202) target = $region32
    $region31: #{decoder_forward.4} parent=5 // pred_region
      // Predicated region
      $region33: #{decoder_forward.4} parent=31 // pred_check
        %p205 = pneg %p32
      $region34: #{decoder_forward.4} parent=31 // pred_check_branch
        %207 = sbr.rel (%p205) target = $region36
      $region35: #{decoder_forward.4} parent=31 // pred_region
        %p208 = scmp.lt.s32.totalorder %s12, 1
        %s209 = scalar_select %p208, %s12, 1
        %s210 = smul.addr %s209, 2
        %s211 = smul.addr %s210, 4
        %s212 = scalar_lea.vmem %s0, %s211
      $region36: #{decoder_forward.4} parent=31 // pred_fallthru
        _
      // Predicated region
      $region37: #{decoder_forward.4} parent=31 // pred_check
        %p213 = pneg %p58
      $region38: #{decoder_forward.4} parent=31 // pred_check_branch
        %215 = sbr.rel (%p213) target = $region40
      $region39: #{decoder_forward.4} parent=31 // pred_region
        %p216 = scmp.lt.s32.totalorder %s12, 1
        %s217 = scalar_select %p216, %s12, 1
        %s218 = smul.addr %s217, 4
        %s219 = scalar_lea.vmem %s1, %s218
      $region40: #{decoder_forward.4} parent=31 // pred_fallthru
        _
    $region32: #{decoder_forward.4} parent=5 // pred_fallthru
      _
    %p220 = scmp.le.s32.totalorder 1, %s12
    %p221 = scmp.lt.s32.totalorder %s12, 3
    %p222 = pnand %p220, %p221
    %p223 = pneg %p222
    // Predicated region
    $region41: #{decoder_forward.4} parent=5 // pred_check
      _
    $region42: #{decoder_forward.4} parent=5 // pred_check_branch
      %225 = sbr.rel (%p222) target = $region44
    $region43: #{decoder_forward.4} parent=5 // pred_region
      %s226 = ssub.s32 %s12, 1
      %p227 = scmp.lt.s32.totalorder %s17, 1
      %s228 = scalar_select %p227, %s17, 1
      %s229 = smul.addr %s228, 2
      %s230 = smul.addr %s229, 4
      %s231 = scalar_lea.vmem %s0, %s230
      %p232 = pneg %p38
      %p233 = pneg %p35
      %p234 = scmp.lt.s32.totalorder %s17, 1
      %s235 = scalar_select %p234, %s17, 1
      %s236 = smul.addr %s235, 4
      %s237 = scalar_lea.vmem %s1, %s236
      %p238 = pneg %p64
      %p239 = pneg %p61
      %p240 = pneg %p85
      %p241 = pneg %p82
      %p242 = pneg %p106
      %p243 = pneg %p103
      %p244 = pneg %p127
      %p245 = pneg %p124
      %p246 = pneg %p148
      %p247 = pneg %p145
      %p248 = pneg %p174
      %p249 = pneg %p171
      %p250 = scmp.lt.s32.totalorder %s17, 1
      %s251 = scalar_select %p250, %s17, 1
      %s252 = smul.addr %s251, 2
      %s253 = smul.addr %s252, 8
      %s254 = scalar_lea.vmem %s6, %s253
      %p255 = scmp.lt.s32.totalorder %s17, 1
      %s256 = scalar_select %p255, %s17, 1
      %s257 = smul.addr %s256, 2
      %s258 = smul.addr %s257, 4
      %s259 = scalar_lea.vmem %s0, %s258
      %p260 = scmp.lt.s32.totalorder %s17, 1
      %s261 = scalar_select %p260, %s17, 1
      %s262 = smul.addr %s261, 4
      %s263 = scalar_lea.vmem %s1, %s262
      %p264 = scmp.lt.s32.totalorder %s17, 1
      %s265 = scalar_select %p264, %s17, 1
      %s266 = smul.addr %s265, 2
      %s267 = smul.addr %s266, 8
      %s268 = scalar_lea.vmem %s6, %s267
      %v270 = vld [vmem:[%s259] sm:$0xf]
      %v271 = vld [vmem:[%s259 + $0x4] sm:$0xf]
      %v272 = vld [vmem:[%s263] sm:$0xf]
      %v273 = vld [vmem:[%s2] sm:$0xf]
      %v274 = vld [vmem:[%s2 + $0x4] sm:$0x3]
      %v275 = vld [vmem:[%s3] sm:$0xf]
      %v276 = vld [vmem:[%s3 + $0x4] sm:$0x3]
      %v279 = vunpack.c.l.b16 %v275
      %v280 = vunpack.c.l.b16 %v276
      %v281 = vpack.c.b16 %v280, %v279
      %vm282 = vcmask 64512
      %v284 = vsel %vm282, %v281, 0
      %vm286 = vcmask 1043456
      %v288 = vsel %vm286, %v272, 0
      %290 = vmatprep.subr.bf16.mxu0 0
      %291 = vmatpush1.bf16.msra.mxu0 0
      %292 = vmatprep.subr.bf16.mxu0 0
      %293 = vmatpush1.bf16.msra.mxu0 0
      %294 = vmatprep.subr.bf16.mxu0 0
      %295 = vmatpush1.bf16.msra.mxu0 0
      %296 = vmatprep.subr.bf16.mxu0 0
      %297 = vmatpush1.bf16.msra.mxu0 0
      %298 = vmatprep.subr.bf16.mxu0 0
      %299 = vmatpush1.bf16.msra.mxu0 0
      %300 = vmatprep.subr.bf16.mxu0 0
      %301 = vmatpush1.bf16.msra.mxu0 0
      %302 = vmatprep.subr.bf16.mxu0 0
      %303 = vmatpush1.bf16.msra.mxu0 0
      %304 = vmatprep.subr.bf16.mxu0 0
      %305 = vmatpush1.bf16.msra.mxu0 %v288
      %306 = vmatprep.subr.bf16.mxu0 0
      %307 = vmatpush2.bf16.msra.mxu0 0
      %308 = vmatprep.subr.bf16.mxu0 0
      %309 = vmatpush2.bf16.msra.mxu0 0
      %310 = vmatprep.subr.bf16.mxu0 0
      %311 = vmatpush2.bf16.msra.mxu0 0
      %312 = vmatprep.subr.bf16.mxu0 0
      %313 = vmatpush2.bf16.msra.mxu0 0
      %314 = vmatprep.subr.bf16.mxu0 0
      %315 = vmatpush2.bf16.msra.mxu0 0
      %316 = vmatprep.subr.bf16.mxu0 0
      %317 = vmatpush2.bf16.msra.mxu0 0
      %318 = vmatprep.subr.bf16.mxu0 0
      %319 = vmatpush2.bf16.msra.mxu0 0
      %320 = vmatprep.subr.bf16.mxu0 0
      %321 = vmatpush2.bf16.msra.mxu0 0
      %322 = vmatprep.mubr.bf16.mxu0 0
      %323 = vmatmul.mubr.bf16.gmra.mxu0 %v284
      %v324 = vpop.f32.mrf.mxu0
      %v325 = vadd.f32 0.0, %v324
      %v326 = vpop.f32.mrf.mxu0
      %v327 = vpop.f32.mrf.mxu0
      %v328 = vadd.f32 0.0, %v327
      %v329 = vpop.f32.mrf.mxu0
      %330 = vdwg.mxu0
      %v333 = vunpack.c.l.b16 %v273
      %v334 = vunpack.c.l.b16 %v274
      %v335 = vpack.c.b16 %v334, %v333
      %v338 = vunpack.c.l.b16 %v270
      %v339 = vunpack.c.l.b16 %v271
      %v340 = vpack.c.b16 %v339, %v338
      %vm342 = vcmask 130048
      %v344 = vsel %vm342, %v335, 0
      %346 = vmatprep.subr.bf16.mxu0 0
      %347 = vmatpush1.bf16.msra.mxu0 0
      %348 = vmatprep.subr.bf16.mxu0 0
      %349 = vmatpush1.bf16.msra.mxu0 0
      %350 = vmatprep.subr.bf16.mxu0 0
      %351 = vmatpush1.bf16.msra.mxu0 0
      %352 = vmatprep.subr.bf16.mxu0 0
      %353 = vmatpush1.bf16.msra.mxu0 0
      %354 = vmatprep.subr.bf16.mxu0 0
      %355 = vmatpush1.bf16.msra.mxu0 0
      %356 = vmatprep.subr.bf16.mxu0 0
      %357 = vmatpush1.bf16.msra.mxu0 0
      %358 = vmatprep.subr.bf16.mxu0 0
      %359 = vmatpush1.bf16.msra.mxu0 0
      %360 = vmatprep.subr.bf16.mxu0 0
      %361 = vmatpush1.bf16.msra.mxu0 %v340
      %362 = vmatprep.subr.bf16.mxu0 0
      %363 = vmatpush2.bf16.msra.mxu0 0
      %364 = vmatprep.subr.bf16.mxu0 0
      %365 = vmatpush2.bf16.msra.mxu0 0
      %366 = vmatprep.subr.bf16.mxu0 0
      %367 = vmatpush2.bf16.msra.mxu0 0
      %368 = vmatprep.subr.bf16.mxu0 0
      %369 = vmatpush2.bf16.msra.mxu0 0
      %370 = vmatprep.subr.bf16.mxu0 0
      %371 = vmatpush2.bf16.msra.mxu0 0
      %372 = vmatprep.subr.bf16.mxu0 0
      %373 = vmatpush2.bf16.msra.mxu0 0
      %374 = vmatprep.subr.bf16.mxu0 0
      %375 = vmatpush2.bf16.msra.mxu0 0
      %376 = vmatprep.subr.bf16.mxu0 0
      %377 = vmatpush2.bf16.msra.mxu0 0
      %378 = vmatprep.mubr.bf16.mxu0 0
      %379 = vmatmul.mubr.bf16.gmra.mxu0 %v344
      %v380 = vpop.f32.mrf.mxu0
      %v381 = vadd.f32 %v325, %v380
      %v382 = vpop.f32.mrf.mxu0
      %v383 = vpop.f32.mrf.mxu0
      %v384 = vadd.f32 %v328, %v383
      %v385 = vpop.f32.mrf.mxu0
      %386 = vdwg.mxu0
      %s387 = scalar_lea.vmem %s2, 8
      %v388 = vld [vmem:[%s387] sm:$0xf]
      %v389 = vld [vmem:[%s387 + $0x4] sm:$0x3]
      %v392 = vunpack.c.l.b16 %v388
      %v393 = vunpack.c.l.b16 %v389
      %v394 = vpack.c.b16 %v393, %v392
      %395 = vrot.lane.b32.xlu0 %v340, 127
      %v396 = vpop.permute.xlu0 %395
      %v399 = vsel %vm342, %v394, 0
      %401 = vmatprep.subr.bf16.mxu0 0
      %402 = vmatpush1.bf16.msra.mxu0 0
      %403 = vmatprep.subr.bf16.mxu0 0
      %404 = vmatpush1.bf16.msra.mxu0 0
      %405 = vmatprep.subr.bf16.mxu0 0
      %406 = vmatpush1.bf16.msra.mxu0 0
      %407 = vmatprep.subr.bf16.mxu0 0
      %408 = vmatpush1.bf16.msra.mxu0 0
      %409 = vmatprep.subr.bf16.mxu0 0
      %410 = vmatpush1.bf16.msra.mxu0 0
      %411 = vmatprep.subr.bf16.mxu0 0
      %412 = vmatpush1.bf16.msra.mxu0 0
      %413 = vmatprep.subr.bf16.mxu0 0
      %414 = vmatpush1.bf16.msra.mxu0 0
      %415 = vmatprep.subr.bf16.mxu0 0
      %416 = vmatpush1.bf16.msra.mxu0 %v396
      %417 = vmatprep.subr.bf16.mxu0 0
      %418 = vmatpush2.bf16.msra.mxu0 0
      %419 = vmatprep.subr.bf16.mxu0 0
      %420 = vmatpush2.bf16.msra.mxu0 0
      %421 = vmatprep.subr.bf16.mxu0 0
      %422 = vmatpush2.bf16.msra.mxu0 0
      %423 = vmatprep.subr.bf16.mxu0 0
      %424 = vmatpush2.bf16.msra.mxu0 0
      %425 = vmatprep.subr.bf16.mxu0 0
      %426 = vmatpush2.bf16.msra.mxu0 0
      %427 = vmatprep.subr.bf16.mxu0 0
      %428 = vmatpush2.bf16.msra.mxu0 0
      %429 = vmatprep.subr.bf16.mxu0 0
      %430 = vmatpush2.bf16.msra.mxu0 0
      %431 = vmatprep.subr.bf16.mxu0 0
      %432 = vmatpush2.bf16.msra.mxu0 0
      %433 = vmatprep.mubr.bf16.mxu0 0
      %434 = vmatmul.mubr.bf16.gmra.mxu0 %v399
      %v435 = vpop.f32.mrf.mxu0
      %v436 = vadd.f32 0.0, %v435
      %v437 = vpop.f32.mrf.mxu0
      %v438 = vpop.f32.mrf.mxu0
      %v439 = vadd.f32 0.0, %v438
      %v440 = vpop.f32.mrf.mxu0
      %441 = vdwg.mxu0
      %v442 = vadd.f32 %v381, %v436
      %v443 = vadd.f32 %v384, %v439
      %s444 = scalar_lea.vmem %s3, 8
      %v445 = vld [vmem:[%s444] sm:$0xf]
      %v446 = vld [vmem:[%s444 + $0x4] sm:$0x3]
      %v449 = vunpack.c.l.b16 %v445
      %v450 = vunpack.c.l.b16 %v446
      %v451 = vpack.c.b16 %v450, %v449
      %v453 = vunpack.c.l.b16 %v272
      %v454 = vpack.c.b16 %v453, %v453
      %455 = vrot.lane.b32.xlu0 %v454, 127
      %v456 = vpop.permute.xlu0 %455
      %v458 = vsel %vm282, %v451, 0
      %v461 = vsel %vm286, %v456, 0
      %463 = vmatprep.subr.bf16.mxu0 0
      %464 = vmatpush1.bf16.msra.mxu0 0
      %465 = vmatprep.subr.bf16.mxu0 0
      %466 = vmatpush1.bf16.msra.mxu0 0
      %467 = vmatprep.subr.bf16.mxu0 0
      %468 = vmatpush1.bf16.msra.mxu0 0
      %469 = vmatprep.subr.bf16.mxu0 0
      %470 = vmatpush1.bf16.msra.mxu0 0
      %471 = vmatprep.subr.bf16.mxu0 0
      %472 = vmatpush1.bf16.msra.mxu0 0
      %473 = vmatprep.subr.bf16.mxu0 0
      %474 = vmatpush1.bf16.msra.mxu0 0
      %475 = vmatprep.subr.bf16.mxu0 0
      %476 = vmatpush1.bf16.msra.mxu0 0
      %477 = vmatprep.subr.bf16.mxu0 0
      %478 = vmatpush1.bf16.msra.mxu0 %v461
      %479 = vmatprep.subr.bf16.mxu0 0
      %480 = vmatpush2.bf16.msra.mxu0 0
      %481 = vmatprep.subr.bf16.mxu0 0
      %482 = vmatpush2.bf16.msra.mxu0 0
      %483 = vmatprep.subr.bf16.mxu0 0
      %484 = vmatpush2.bf16.msra.mxu0 0
      %485 = vmatprep.subr.bf16.mxu0 0
      %486 = vmatpush2.bf16.msra.mxu0 0
      %487 = vmatprep.subr.bf16.mxu0 0
      %488 = vmatpush2.bf16.msra.mxu0 0
      %489 = vmatprep.subr.bf16.mxu0 0
      %490 = vmatpush2.bf16.msra.mxu0 0
      %491 = vmatprep.subr.bf16.mxu0 0
      %492 = vmatpush2.bf16.msra.mxu0 0
      %493 = vmatprep.subr.bf16.mxu0 0
      %494 = vmatpush2.bf16.msra.mxu0 0
      %495 = vmatprep.mubr.bf16.mxu0 0
      %496 = vmatmul.mubr.bf16.gmra.mxu0 %v458
      %v497 = vpop.f32.mrf.mxu0
      %v498 = vadd.f32 0.0, %v497
      %v499 = vpop.f32.mrf.mxu0
      %v500 = vpop.f32.mrf.mxu0
      %v501 = vadd.f32 0.0, %v500
      %v502 = vpop.f32.mrf.mxu0
      %503 = vdwg.mxu0
      %v504 = vadd.f32 %v442, %v498
      %v505 = vadd.f32 %v443, %v501
      %s506 = scalar_lea.vmem %s2, 16
      %v507 = vld [vmem:[%s506] sm:$0xf]
      %v508 = vld [vmem:[%s506 + $0x4] sm:$0x3]
      %v511 = vunpack.c.l.b16 %v507
      %v512 = vunpack.c.l.b16 %v508
      %v513 = vpack.c.b16 %v512, %v511
      %514 = vrot.lane.b32.xlu0 %v340, 126
      %v515 = vpop.permute.xlu0 %514
      %v518 = vsel %vm342, %v513, 0
      %520 = vmatprep.subr.bf16.mxu0 0
      %521 = vmatpush1.bf16.msra.mxu0 0
      %522 = vmatprep.subr.bf16.mxu0 0
      %523 = vmatpush1.bf16.msra.mxu0 0
      %524 = vmatprep.subr.bf16.mxu0 0
      %525 = vmatpush1.bf16.msra.mxu0 0
      %526 = vmatprep.subr.bf16.mxu0 0
      %527 = vmatpush1.bf16.msra.mxu0 0
      %528 = vmatprep.subr.bf16.mxu0 0
      %529 = vmatpush1.bf16.msra.mxu0 0
      %530 = vmatprep.subr.bf16.mxu0 0
      %531 = vmatpush1.bf16.msra.mxu0 0
      %532 = vmatprep.subr.bf16.mxu0 0
      %533 = vmatpush1.bf16.msra.mxu0 0
      %534 = vmatprep.subr.bf16.mxu0 0
      %535 = vmatpush1.bf16.msra.mxu0 %v515
      %536 = vmatprep.subr.bf16.mxu0 0
      %537 = vmatpush2.bf16.msra.mxu0 0
      %538 = vmatprep.subr.bf16.mxu0 0
      %539 = vmatpush2.bf16.msra.mxu0 0
      %540 = vmatprep.subr.bf16.mxu0 0
      %541 = vmatpush2.bf16.msra.mxu0 0
      %542 = vmatprep.subr.bf16.mxu0 0
      %543 = vmatpush2.bf16.msra.mxu0 0
      %544 = vmatprep.subr.bf16.mxu0 0
      %545 = vmatpush2.bf16.msra.mxu0 0
      %546 = vmatprep.subr.bf16.mxu0 0
      %547 = vmatpush2.bf16.msra.mxu0 0
      %548 = vmatprep.subr.bf16.mxu0 0
      %549 = vmatpush2.bf16.msra.mxu0 0
      %550 = vmatprep.subr.bf16.mxu0 0
      %551 = vmatpush2.bf16.msra.mxu0 0
      %552 = vmatprep.mubr.bf16.mxu0 0
      %553 = vmatmul.mubr.bf16.gmra.mxu0 %v518
      %v554 = vpop.f32.mrf.mxu0
      %v555 = vadd.f32 0.0, %v554
      %v556 = vpop.f32.mrf.mxu0
      %v557 = vpop.f32.mrf.mxu0
      %v558 = vadd.f32 0.0, %v557
      %v559 = vpop.f32.mrf.mxu0
      %560 = vdwg.mxu0
      %v561 = vadd.f32 %v504, %v555
      %v562 = vadd.f32 %v505, %v558
      %s563 = scalar_lea.vmem %s3, 16
      %v564 = vld [vmem:[%s563] sm:$0xf]
      %v565 = vld [vmem:[%s563 + $0x4] sm:$0x3]
      %v568 = vunpack.c.l.b16 %v564
      %v569 = vunpack.c.l.b16 %v565
      %v570 = vpack.c.b16 %v569, %v568
      %571 = vrot.lane.b32.xlu0 %v454, 126
      %v572 = vpop.permute.xlu0 %571
      %v574 = vsel %vm282, %v570, 0
      %v577 = vsel %vm286, %v572, 0
      %579 = vmatprep.subr.bf16.mxu0 0
      %580 = vmatpush1.bf16.msra.mxu0 0
      %581 = vmatprep.subr.bf16.mxu0 0
      %582 = vmatpush1.bf16.msra.mxu0 0
      %583 = vmatprep.subr.bf16.mxu0 0
      %584 = vmatpush1.bf16.msra.mxu0 0
      %585 = vmatprep.subr.bf16.mxu0 0
      %586 = vmatpush1.bf16.msra.mxu0 0
      %587 = vmatprep.subr.bf16.mxu0 0
      %588 = vmatpush1.bf16.msra.mxu0 0
      %589 = vmatprep.subr.bf16.mxu0 0
      %590 = vmatpush1.bf16.msra.mxu0 0
      %591 = vmatprep.subr.bf16.mxu0 0
      %592 = vmatpush1.bf16.msra.mxu0 0
      %593 = vmatprep.subr.bf16.mxu0 0
      %594 = vmatpush1.bf16.msra.mxu0 %v577
      %595 = vmatprep.subr.bf16.mxu0 0
      %596 = vmatpush2.bf16.msra.mxu0 0
      %597 = vmatprep.subr.bf16.mxu0 0
      %598 = vmatpush2.bf16.msra.mxu0 0
      %599 = vmatprep.subr.bf16.mxu0 0
      %600 = vmatpush2.bf16.msra.mxu0 0
      %601 = vmatprep.subr.bf16.mxu0 0
      %602 = vmatpush2.bf16.msra.mxu0 0
      %603 = vmatprep.subr.bf16.mxu0 0
      %604 = vmatpush2.bf16.msra.mxu0 0
      %605 = vmatprep.subr.bf16.mxu0 0
      %606 = vmatpush2.bf16.msra.mxu0 0
      %607 = vmatprep.subr.bf16.mxu0 0
      %608 = vmatpush2.bf16.msra.mxu0 0
      %609 = vmatprep.subr.bf16.mxu0 0
      %610 = vmatpush2.bf16.msra.mxu0 0
      %611 = vmatprep.mubr.bf16.mxu0 0
      %612 = vmatmul.mubr.bf16.gmra.mxu0 %v574
      %v613 = vpop.f32.mrf.mxu0
      %v614 = vadd.f32 0.0, %v613
      %v615 = vpop.f32.mrf.mxu0
      %v616 = vpop.f32.mrf.mxu0
      %v617 = vadd.f32 0.0, %v616
      %v618 = vpop.f32.mrf.mxu0
      %619 = vdwg.mxu0
      %v620 = vadd.f32 %v561, %v614
      %v621 = vadd.f32 %v562, %v617
      %s622 = scalar_lea.vmem %s2, 24
      %v623 = vld [vmem:[%s622] sm:$0xf]
      %v624 = vld [vmem:[%s622 + $0x4] sm:$0x3]
      %v627 = vunpack.c.l.b16 %v623
      %v628 = vunpack.c.l.b16 %v624
      %v629 = vpack.c.b16 %v628, %v627
      %630 = vrot.lane.b32.xlu0 %v340, 122
      %v631 = vpop.permute.xlu0 %630
      %v634 = vsel %vm342, %v629, 0
      %636 = vmatprep.subr.bf16.mxu0 0
      %637 = vmatpush1.bf16.msra.mxu0 0
      %638 = vmatprep.subr.bf16.mxu0 0
      %639 = vmatpush1.bf16.msra.mxu0 0
      %640 = vmatprep.subr.bf16.mxu0 0
      %641 = vmatpush1.bf16.msra.mxu0 0
      %642 = vmatprep.subr.bf16.mxu0 0
      %643 = vmatpush1.bf16.msra.mxu0 0
      %644 = vmatprep.subr.bf16.mxu0 0
      %645 = vmatpush1.bf16.msra.mxu0 0
      %646 = vmatprep.subr.bf16.mxu0 0
      %647 = vmatpush1.bf16.msra.mxu0 0
      %648 = vmatprep.subr.bf16.mxu0 0
      %649 = vmatpush1.bf16.msra.mxu0 0
      %650 = vmatprep.subr.bf16.mxu0 0
      %651 = vmatpush1.bf16.msra.mxu0 %v631
      %652 = vmatprep.subr.bf16.mxu0 0
      %653 = vmatpush2.bf16.msra.mxu0 0
      %654 = vmatprep.subr.bf16.mxu0 0
      %655 = vmatpush2.bf16.msra.mxu0 0
      %656 = vmatprep.subr.bf16.mxu0 0
      %657 = vmatpush2.bf16.msra.mxu0 0
      %658 = vmatprep.subr.bf16.mxu0 0
      %659 = vmatpush2.bf16.msra.mxu0 0
      %660 = vmatprep.subr.bf16.mxu0 0
      %661 = vmatpush2.bf16.msra.mxu0 0
      %662 = vmatprep.subr.bf16.mxu0 0
      %663 = vmatpush2.bf16.msra.mxu0 0
      %664 = vmatprep.subr.bf16.mxu0 0
      %665 = vmatpush2.bf16.msra.mxu0 0
      %666 = vmatprep.subr.bf16.mxu0 0
      %667 = vmatpush2.bf16.msra.mxu0 0
      %668 = vmatprep.mubr.bf16.mxu0 0
      %669 = vmatmul.mubr.bf16.gmra.mxu0 %v634
      %v670 = vpop.f32.mrf.mxu0
      %v671 = vadd.f32 0.0, %v670
      %v672 = vpop.f32.mrf.mxu0
      %v673 = vpop.f32.mrf.mxu0
      %v674 = vadd.f32 0.0, %v673
      %v675 = vpop.f32.mrf.mxu0
      %676 = vdwg.mxu0
      %v677 = vadd.f32 %v620, %v671
      %v678 = vadd.f32 %v621, %v674
      %s679 = scalar_lea.vmem %s3, 24
      %v680 = vld [vmem:[%s679] sm:$0xf]
      %v681 = vld [vmem:[%s679 + $0x4] sm:$0x3]
      %v684 = vunpack.c.l.b16 %v680
      %v685 = vunpack.c.l.b16 %v681
      %v686 = vpack.c.b16 %v685, %v684
      %687 = vrot.lane.b32.xlu0 %v454, 122
      %v688 = vpop.permute.xlu0 %687
      %v690 = vsel %vm282, %v686, 0
      %v693 = vsel %vm286, %v688, 0
      %695 = vmatprep.subr.bf16.mxu0 0
      %696 = vmatpush1.bf16.msra.mxu0 0
      %697 = vmatprep.subr.bf16.mxu0 0
      %698 = vmatpush1.bf16.msra.mxu0 0
      %699 = vmatprep.subr.bf16.mxu0 0
      %700 = vmatpush1.bf16.msra.mxu0 0
      %701 = vmatprep.subr.bf16.mxu0 0
      %702 = vmatpush1.bf16.msra.mxu0 0
      %703 = vmatprep.subr.bf16.mxu0 0
      %704 = vmatpush1.bf16.msra.mxu0 0
      %705 = vmatprep.subr.bf16.mxu0 0
      %706 = vmatpush1.bf16.msra.mxu0 0
      %707 = vmatprep.subr.bf16.mxu0 0
      %708 = vmatpush1.bf16.msra.mxu0 0
      %709 = vmatprep.subr.bf16.mxu0 0
      %710 = vmatpush1.bf16.msra.mxu0 %v693
      %711 = vmatprep.subr.bf16.mxu0 0
      %712 = vmatpush2.bf16.msra.mxu0 0
      %713 = vmatprep.subr.bf16.mxu0 0
      %714 = vmatpush2.bf16.msra.mxu0 0
      %715 = vmatprep.subr.bf16.mxu0 0
      %716 = vmatpush2.bf16.msra.mxu0 0
      %717 = vmatprep.subr.bf16.mxu0 0
      %718 = vmatpush2.bf16.msra.mxu0 0
      %719 = vmatprep.subr.bf16.mxu0 0
      %720 = vmatpush2.bf16.msra.mxu0 0
      %721 = vmatprep.subr.bf16.mxu0 0
      %722 = vmatpush2.bf16.msra.mxu0 0
      %723 = vmatprep.subr.bf16.mxu0 0
      %724 = vmatpush2.bf16.msra.mxu0 0
      %725 = vmatprep.subr.bf16.mxu0 0
      %726 = vmatpush2.bf16.msra.mxu0 0
      %727 = vmatprep.mubr.bf16.mxu0 0
      %728 = vmatmul.mubr.bf16.gmra.mxu0 %v690
      %v729 = vpop.f32.mrf.mxu0
      %v730 = vadd.f32 0.0, %v729
      %v731 = vpop.f32.mrf.mxu0
      %v732 = vpop.f32.mrf.mxu0
      %v733 = vadd.f32 0.0, %v732
      %v734 = vpop.f32.mrf.mxu0
      %735 = vdwg.mxu0
      %v736 = vadd.f32 %v677, %v730
      %v737 = vadd.f32 %v678, %v733
      %s738 = scalar_lea.vmem %s2, 32
      %v739 = vld [vmem:[%s738] sm:$0xf]
      %v740 = vld [vmem:[%s738 + $0x4] sm:$0x3]
      %v743 = vunpack.c.l.b16 %v739
      %v744 = vunpack.c.l.b16 %v740
      %v745 = vpack.c.b16 %v744, %v743
      %746 = vrot.lane.b32.xlu0 %v340, 121
      %v747 = vpop.permute.xlu0 %746
      %v750 = vsel %vm342, %v745, 0
      %752 = vmatprep.subr.bf16.mxu0 0
      %753 = vmatpush1.bf16.msra.mxu0 0
      %754 = vmatprep.subr.bf16.mxu0 0
      %755 = vmatpush1.bf16.msra.mxu0 0
      %756 = vmatprep.subr.bf16.mxu0 0
      %757 = vmatpush1.bf16.msra.mxu0 0
      %758 = vmatprep.subr.bf16.mxu0 0
      %759 = vmatpush1.bf16.msra.mxu0 0
      %760 = vmatprep.subr.bf16.mxu0 0
      %761 = vmatpush1.bf16.msra.mxu0 0
      %762 = vmatprep.subr.bf16.mxu0 0
      %763 = vmatpush1.bf16.msra.mxu0 0
      %764 = vmatprep.subr.bf16.mxu0 0
      %765 = vmatpush1.bf16.msra.mxu0 0
      %766 = vmatprep.subr.bf16.mxu0 0
      %767 = vmatpush1.bf16.msra.mxu0 %v747
      %768 = vmatprep.subr.bf16.mxu0 0
      %769 = vmatpush2.bf16.msra.mxu0 0
      %770 = vmatprep.subr.bf16.mxu0 0
      %771 = vmatpush2.bf16.msra.mxu0 0
      %772 = vmatprep.subr.bf16.mxu0 0
      %773 = vmatpush2.bf16.msra.mxu0 0
      %774 = vmatprep.subr.bf16.mxu0 0
      %775 = vmatpush2.bf16.msra.mxu0 0
      %776 = vmatprep.subr.bf16.mxu0 0
      %777 = vmatpush2.bf16.msra.mxu0 0
      %778 = vmatprep.subr.bf16.mxu0 0
      %779 = vmatpush2.bf16.msra.mxu0 0
      %780 = vmatprep.subr.bf16.mxu0 0
      %781 = vmatpush2.bf16.msra.mxu0 0
      %782 = vmatprep.subr.bf16.mxu0 0
      %783 = vmatpush2.bf16.msra.mxu0 0
      %784 = vmatprep.mubr.bf16.mxu0 0
      %785 = vmatmul.mubr.bf16.gmra.mxu0 %v750
      %v786 = vpop.f32.mrf.mxu0
      %v787 = vadd.f32 0.0, %v786
      %v788 = vpop.f32.mrf.mxu0
      %v789 = vpop.f32.mrf.mxu0
      %v790 = vadd.f32 0.0, %v789
      %v791 = vpop.f32.mrf.mxu0
      %792 = vdwg.mxu0
      %v793 = vadd.f32 %v736, %v787
      %v794 = vadd.f32 %v737, %v790
      %s795 = scalar_lea.vmem %s3, 32
      %v796 = vld [vmem:[%s795] sm:$0xf]
      %v797 = vld [vmem:[%s795 + $0x4] sm:$0x3]
      %v800 = vunpack.c.l.b16 %v796
      %v801 = vunpack.c.l.b16 %v797
      %v802 = vpack.c.b16 %v801, %v800
      %803 = vrot.lane.b32.xlu0 %v454, 121
      %v804 = vpop.permute.xlu0 %803
      %v806 = vsel %vm282, %v802, 0
      %v809 = vsel %vm286, %v804, 0
      %811 = vmatprep.subr.bf16.mxu0 0
      %812 = vmatpush1.bf16.msra.mxu0 0
      %813 = vmatprep.subr.bf16.mxu0 0
      %814 = vmatpush1.bf16.msra.mxu0 0
      %815 = vmatprep.subr.bf16.mxu0 0
      %816 = vmatpush1.bf16.msra.mxu0 0
      %817 = vmatprep.subr.bf16.mxu0 0
      %818 = vmatpush1.bf16.msra.mxu0 0
      %819 = vmatprep.subr.bf16.mxu0 0
      %820 = vmatpush1.bf16.msra.mxu0 0
      %821 = vmatprep.subr.bf16.mxu0 0
      %822 = vmatpush1.bf16.msra.mxu0 0
      %823 = vmatprep.subr.bf16.mxu0 0
      %824 = vmatpush1.bf16.msra.mxu0 0
      %825 = vmatprep.subr.bf16.mxu0 0
      %826 = vmatpush1.bf16.msra.mxu0 %v809
      %827 = vmatprep.subr.bf16.mxu0 0
      %828 = vmatpush2.bf16.msra.mxu0 0
      %829 = vmatprep.subr.bf16.mxu0 0
      %830 = vmatpush2.bf16.msra.mxu0 0
      %831 = vmatprep.subr.bf16.mxu0 0
      %832 = vmatpush2.bf16.msra.mxu0 0
      %833 = vmatprep.subr.bf16.mxu0 0
      %834 = vmatpush2.bf16.msra.mxu0 0
      %835 = vmatprep.subr.bf16.mxu0 0
      %836 = vmatpush2.bf16.msra.mxu0 0
      %837 = vmatprep.subr.bf16.mxu0 0
      %838 = vmatpush2.bf16.msra.mxu0 0
      %839 = vmatprep.subr.bf16.mxu0 0
      %840 = vmatpush2.bf16.msra.mxu0 0
      %841 = vmatprep.subr.bf16.mxu0 0
      %842 = vmatpush2.bf16.msra.mxu0 0
      %843 = vmatprep.mubr.bf16.mxu0 0
      %844 = vmatmul.mubr.bf16.gmra.mxu0 %v806
      %v845 = vpop.f32.mrf.mxu0
      %v846 = vadd.f32 0.0, %v845
      %v847 = vpop.f32.mrf.mxu0
      %v848 = vpop.f32.mrf.mxu0
      %v849 = vadd.f32 0.0, %v848
      %v850 = vpop.f32.mrf.mxu0
      %851 = vdwg.mxu0
      %v852 = vadd.f32 %v793, %v846
      %v853 = vadd.f32 %v794, %v849
      %s854 = scalar_lea.vmem %s2, 40
      %v855 = vld [vmem:[%s854] sm:$0xf]
      %v856 = vld [vmem:[%s854 + $0x4] sm:$0x3]
      %v859 = vunpack.c.l.b16 %v855
      %v860 = vunpack.c.l.b16 %v856
      %v861 = vpack.c.b16 %v860, %v859
      %862 = vrot.lane.b32.xlu0 %v340, 120
      %v863 = vpop.permute.xlu0 %862
      %v866 = vsel %vm342, %v861, 0
      %868 = vmatprep.subr.bf16.mxu0 0
      %869 = vmatpush1.bf16.msra.mxu0 0
      %870 = vmatprep.subr.bf16.mxu0 0
      %871 = vmatpush1.bf16.msra.mxu0 0
      %872 = vmatprep.subr.bf16.mxu0 0
      %873 = vmatpush1.bf16.msra.mxu0 0
      %874 = vmatprep.subr.bf16.mxu0 0
      %875 = vmatpush1.bf16.msra.mxu0 0
      %876 = vmatprep.subr.bf16.mxu0 0
      %877 = vmatpush1.bf16.msra.mxu0 0
      %878 = vmatprep.subr.bf16.mxu0 0
      %879 = vmatpush1.bf16.msra.mxu0 0
      %880 = vmatprep.subr.bf16.mxu0 0
      %881 = vmatpush1.bf16.msra.mxu0 0
      %882 = vmatprep.subr.bf16.mxu0 0
      %883 = vmatpush1.bf16.msra.mxu0 %v863
      %884 = vmatprep.subr.bf16.mxu0 0
      %885 = vmatpush2.bf16.msra.mxu0 0
      %886 = vmatprep.subr.bf16.mxu0 0
      %887 = vmatpush2.bf16.msra.mxu0 0
      %888 = vmatprep.subr.bf16.mxu0 0
      %889 = vmatpush2.bf16.msra.mxu0 0
      %890 = vmatprep.subr.bf16.mxu0 0
      %891 = vmatpush2.bf16.msra.mxu0 0
      %892 = vmatprep.subr.bf16.mxu0 0
      %893 = vmatpush2.bf16.msra.mxu0 0
      %894 = vmatprep.subr.bf16.mxu0 0
      %895 = vmatpush2.bf16.msra.mxu0 0
      %896 = vmatprep.subr.bf16.mxu0 0
      %897 = vmatpush2.bf16.msra.mxu0 0
      %898 = vmatprep.subr.bf16.mxu0 0
      %899 = vmatpush2.bf16.msra.mxu0 0
      %900 = vmatprep.mubr.bf16.mxu0 0
      %901 = vmatmul.mubr.bf16.gmra.mxu0 %v866
      %v902 = vpop.f32.mrf.mxu0
      %v903 = vadd.f32 0.0, %v902
      %v904 = vpop.f32.mrf.mxu0
      %v905 = vpop.f32.mrf.mxu0
      %v906 = vadd.f32 0.0, %v905
      %v907 = vpop.f32.mrf.mxu0
      %908 = vdwg.mxu0
      %v909 = vadd.f32 %v852, %v903
      %v910 = vadd.f32 %v853, %v906
      %s911 = scalar_lea.vmem %s3, 40
      %v912 = vld [vmem:[%s911] sm:$0xf]
      %v913 = vld [vmem:[%s911 + $0x4] sm:$0x3]
      %v916 = vunpack.c.l.b16 %v912
      %v917 = vunpack.c.l.b16 %v913
      %v918 = vpack.c.b16 %v917, %v916
      %919 = vrot.lane.b32.xlu0 %v454, 120
      %v920 = vpop.permute.xlu0 %919
      %v922 = vsel %vm282, %v918, 0
      %v925 = vsel %vm286, %v920, 0
      %927 = vmatprep.subr.bf16.mxu0 0
      %928 = vmatpush1.bf16.msra.mxu0 0
      %929 = vmatprep.subr.bf16.mxu0 0
      %930 = vmatpush1.bf16.msra.mxu0 0
      %931 = vmatprep.subr.bf16.mxu0 0
      %932 = vmatpush1.bf16.msra.mxu0 0
      %933 = vmatprep.subr.bf16.mxu0 0
      %934 = vmatpush1.bf16.msra.mxu0 0
      %935 = vmatprep.subr.bf16.mxu0 0
      %936 = vmatpush1.bf16.msra.mxu0 0
      %937 = vmatprep.subr.bf16.mxu0 0
      %938 = vmatpush1.bf16.msra.mxu0 0
      %939 = vmatprep.subr.bf16.mxu0 0
      %940 = vmatpush1.bf16.msra.mxu0 0
      %941 = vmatprep.subr.bf16.mxu0 0
      %942 = vmatpush1.bf16.msra.mxu0 %v925
      %943 = vmatprep.subr.bf16.mxu0 0
      %944 = vmatpush2.bf16.msra.mxu0 0
      %945 = vmatprep.subr.bf16.mxu0 0
      %946 = vmatpush2.bf16.msra.mxu0 0
      %947 = vmatprep.subr.bf16.mxu0 0
      %948 = vmatpush2.bf16.msra.mxu0 0
      %949 = vmatprep.subr.bf16.mxu0 0
      %950 = vmatpush2.bf16.msra.mxu0 0
      %951 = vmatprep.subr.bf16.mxu0 0
      %952 = vmatpush2.bf16.msra.mxu0 0
      %953 = vmatprep.subr.bf16.mxu0 0
      %954 = vmatpush2.bf16.msra.mxu0 0
      %955 = vmatprep.subr.bf16.mxu0 0
      %956 = vmatpush2.bf16.msra.mxu0 0
      %957 = vmatprep.subr.bf16.mxu0 0
      %958 = vmatpush2.bf16.msra.mxu0 0
      %959 = vmatprep.mubr.bf16.mxu0 0
      %960 = vmatmul.mubr.bf16.gmra.mxu0 %v922
      %v961 = vpop.f32.mrf.mxu0
      %v962 = vadd.f32 0.0, %v961
      %v963 = vpop.f32.mrf.mxu0
      %v964 = vpop.f32.mrf.mxu0
      %v965 = vadd.f32 0.0, %v964
      %v966 = vpop.f32.mrf.mxu0
      %967 = vdwg.mxu0
      %v968 = vadd.f32 %v909, %v962
      %v969 = vadd.f32 %v910, %v965
      %s970 = scalar_lea.vmem %s2, 48
      %v971 = vld [vmem:[%s970] sm:$0xf]
      %v972 = vld [vmem:[%s970 + $0x4] sm:$0x3]
      %v975 = vunpack.c.l.b16 %v971
      %v976 = vunpack.c.l.b16 %v972
      %v977 = vpack.c.b16 %v976, %v975
      %978 = vrot.lane.b32.xlu0 %v340, 116
      %v979 = vpop.permute.xlu0 %978
      %v982 = vsel %vm342, %v977, 0
      %984 = vmatprep.subr.bf16.mxu0 0
      %985 = vmatpush1.bf16.msra.mxu0 0
      %986 = vmatprep.subr.bf16.mxu0 0
      %987 = vmatpush1.bf16.msra.mxu0 0
      %988 = vmatprep.subr.bf16.mxu0 0
      %989 = vmatpush1.bf16.msra.mxu0 0
      %990 = vmatprep.subr.bf16.mxu0 0
      %991 = vmatpush1.bf16.msra.mxu0 0
      %992 = vmatprep.subr.bf16.mxu0 0
      %993 = vmatpush1.bf16.msra.mxu0 0
      %994 = vmatprep.subr.bf16.mxu0 0
      %995 = vmatpush1.bf16.msra.mxu0 0
      %996 = vmatprep.subr.bf16.mxu0 0
      %997 = vmatpush1.bf16.msra.mxu0 0
      %998 = vmatprep.subr.bf16.mxu0 0
      %999 = vmatpush1.bf16.msra.mxu0 %v979
      %1000 = vmatprep.subr.bf16.mxu0 0
      %1001 = vmatpush2.bf16.msra.mxu0 0
      %1002 = vmatprep.subr.bf16.mxu0 0
      %1003 = vmatpush2.bf16.msra.mxu0 0
      %1004 = vmatprep.subr.bf16.mxu0 0
      %1005 = vmatpush2.bf16.msra.mxu0 0
      %1006 = vmatprep.subr.bf16.mxu0 0
      %1007 = vmatpush2.bf16.msra.mxu0 0
      %1008 = vmatprep.subr.bf16.mxu0 0
      %1009 = vmatpush2.bf16.msra.mxu0 0
      %1010 = vmatprep.subr.bf16.mxu0 0
      %1011 = vmatpush2.bf16.msra.mxu0 0
      %1012 = vmatprep.subr.bf16.mxu0 0
      %1013 = vmatpush2.bf16.msra.mxu0 0
      %1014 = vmatprep.subr.bf16.mxu0 0
      %1015 = vmatpush2.bf16.msra.mxu0 0
      %1016 = vmatprep.mubr.bf16.mxu0 0
      %1017 = vmatmul.mubr.bf16.gmra.mxu0 %v982
      %v1018 = vpop.f32.mrf.mxu0
      %v1019 = vadd.f32 0.0, %v1018
      %v1020 = vpop.f32.mrf.mxu0
      %v1021 = vpop.f32.mrf.mxu0
      %v1022 = vadd.f32 0.0, %v1021
      %v1023 = vpop.f32.mrf.mxu0
      %1024 = vdwg.mxu0
      %v1025 = vadd.f32 %v968, %v1019
      %v1026 = vadd.f32 %v969, %v1022
      %s1027 = scalar_lea.vmem %s3, 48
      %v1028 = vld [vmem:[%s1027] sm:$0xf]
      %v1029 = vld [vmem:[%s1027 + $0x4] sm:$0x3]
      %v1032 = vunpack.c.l.b16 %v1028
      %v1033 = vunpack.c.l.b16 %v1029
      %v1034 = vpack.c.b16 %v1033, %v1032
      %1035 = vrot.lane.b32.xlu0 %v454, 116
      %v1036 = vpop.permute.xlu0 %1035
      %v1038 = vsel %vm282, %v1034, 0
      %v1041 = vsel %vm286, %v1036, 0
      %1043 = vmatprep.subr.bf16.mxu0 0
      %1044 = vmatpush1.bf16.msra.mxu0 0
      %1045 = vmatprep.subr.bf16.mxu0 0
      %1046 = vmatpush1.bf16.msra.mxu0 0
      %1047 = vmatprep.subr.bf16.mxu0 0
      %1048 = vmatpush1.bf16.msra.mxu0 0
      %1049 = vmatprep.subr.bf16.mxu0 0
      %1050 = vmatpush1.bf16.msra.mxu0 0
      %1051 = vmatprep.subr.bf16.mxu0 0
      %1052 = vmatpush1.bf16.msra.mxu0 0
      %1053 = vmatprep.subr.bf16.mxu0 0
      %1054 = vmatpush1.bf16.msra.mxu0 0
      %1055 = vmatprep.subr.bf16.mxu0 0
      %1056 = vmatpush1.bf16.msra.mxu0 0
      %1057 = vmatprep.subr.bf16.mxu0 0
      %1058 = vmatpush1.bf16.msra.mxu0 %v1041
      %1059 = vmatprep.subr.bf16.mxu0 0
      %1060 = vmatpush2.bf16.msra.mxu0 0
      %1061 = vmatprep.subr.bf16.mxu0 0
      %1062 = vmatpush2.bf16.msra.mxu0 0
      %1063 = vmatprep.subr.bf16.mxu0 0
      %1064 = vmatpush2.bf16.msra.mxu0 0
      %1065 = vmatprep.subr.bf16.mxu0 0
      %1066 = vmatpush2.bf16.msra.mxu0 0
      %1067 = vmatprep.subr.bf16.mxu0 0
      %1068 = vmatpush2.bf16.msra.mxu0 0
      %1069 = vmatprep.subr.bf16.mxu0 0
      %1070 = vmatpush2.bf16.msra.mxu0 0
      %1071 = vmatprep.subr.bf16.mxu0 0
      %1072 = vmatpush2.bf16.msra.mxu0 0
      %1073 = vmatprep.subr.bf16.mxu0 0
      %1074 = vmatpush2.bf16.msra.mxu0 0
      %1075 = vmatprep.mubr.bf16.mxu0 0
      %1076 = vmatmul.mubr.bf16.gmra.mxu0 %v1038
      %v1077 = vpop.f32.mrf.mxu0
      %v1078 = vadd.f32 0.0, %v1077
      %v1079 = vpop.f32.mrf.mxu0
      %v1080 = vpop.f32.mrf.mxu0
      %v1081 = vadd.f32 0.0, %v1080
      %v1082 = vpop.f32.mrf.mxu0
      %1083 = vdwg.mxu0
      %v1084 = vadd.f32 %v1025, %v1078
      %v1085 = vadd.f32 %v1026, %v1081
      %s1086 = scalar_lea.vmem %s2, 56
      %v1087 = vld [vmem:[%s1086] sm:$0xf]
      %v1088 = vld [vmem:[%s1086 + $0x4] sm:$0x3]
      %v1091 = vunpack.c.l.b16 %v1087
      %v1092 = vunpack.c.l.b16 %v1088
      %v1093 = vpack.c.b16 %v1092, %v1091
      %1094 = vrot.lane.b32.xlu0 %v340, 115
      %v1095 = vpop.permute.xlu0 %1094
      %v1098 = vsel %vm342, %v1093, 0
      %1100 = vmatprep.subr.bf16.mxu0 0
      %1101 = vmatpush1.bf16.msra.mxu0 0
      %1102 = vmatprep.subr.bf16.mxu0 0
      %1103 = vmatpush1.bf16.msra.mxu0 0
      %1104 = vmatprep.subr.bf16.mxu0 0
      %1105 = vmatpush1.bf16.msra.mxu0 0
      %1106 = vmatprep.subr.bf16.mxu0 0
      %1107 = vmatpush1.bf16.msra.mxu0 0
      %1108 = vmatprep.subr.bf16.mxu0 0
      %1109 = vmatpush1.bf16.msra.mxu0 0
      %1110 = vmatprep.subr.bf16.mxu0 0
      %1111 = vmatpush1.bf16.msra.mxu0 0
      %1112 = vmatprep.subr.bf16.mxu0 0
      %1113 = vmatpush1.bf16.msra.mxu0 0
      %1114 = vmatprep.subr.bf16.mxu0 0
      %1115 = vmatpush1.bf16.msra.mxu0 %v1095
      %1116 = vmatprep.subr.bf16.mxu0 0
      %1117 = vmatpush2.bf16.msra.mxu0 0
      %1118 = vmatprep.subr.bf16.mxu0 0
      %1119 = vmatpush2.bf16.msra.mxu0 0
      %1120 = vmatprep.subr.bf16.mxu0 0
      %1121 = vmatpush2.bf16.msra.mxu0 0
      %1122 = vmatprep.subr.bf16.mxu0 0
      %1123 = vmatpush2.bf16.msra.mxu0 0
      %1124 = vmatprep.subr.bf16.mxu0 0
      %1125 = vmatpush2.bf16.msra.mxu0 0
      %1126 = vmatprep.subr.bf16.mxu0 0
      %1127 = vmatpush2.bf16.msra.mxu0 0
      %1128 = vmatprep.subr.bf16.mxu0 0
      %1129 = vmatpush2.bf16.msra.mxu0 0
      %1130 = vmatprep.subr.bf16.mxu0 0
      %1131 = vmatpush2.bf16.msra.mxu0 0
      %1132 = vmatprep.mubr.bf16.mxu0 0
      %1133 = vmatmul.mubr.bf16.gmra.mxu0 %v1098
      %v1134 = vpop.f32.mrf.mxu0
      %v1135 = vadd.f32 0.0, %v1134
      %v1136 = vpop.f32.mrf.mxu0
      %v1137 = vpop.f32.mrf.mxu0
      %v1138 = vadd.f32 0.0, %v1137
      %v1139 = vpop.f32.mrf.mxu0
      %1140 = vdwg.mxu0
      %v1141 = vadd.f32 %v1084, %v1135
      %v1142 = vadd.f32 %v1085, %v1138
      %s1143 = scalar_lea.vmem %s3, 56
      %v1144 = vld [vmem:[%s1143] sm:$0xf]
      %v1145 = vld [vmem:[%s1143 + $0x4] sm:$0x3]
      %v1148 = vunpack.c.l.b16 %v1144
      %v1149 = vunpack.c.l.b16 %v1145
      %v1150 = vpack.c.b16 %v1149, %v1148
      %1151 = vrot.lane.b32.xlu0 %v454, 115
      %v1152 = vpop.permute.xlu0 %1151
      %v1154 = vsel %vm282, %v1150, 0
      %v1157 = vsel %vm286, %v1152, 0
      %1159 = vmatprep.subr.bf16.mxu0 0
      %1160 = vmatpush1.bf16.msra.mxu0 0
      %1161 = vmatprep.subr.bf16.mxu0 0
      %1162 = vmatpush1.bf16.msra.mxu0 0
      %1163 = vmatprep.subr.bf16.mxu0 0
      %1164 = vmatpush1.bf16.msra.mxu0 0
      %1165 = vmatprep.subr.bf16.mxu0 0
      %1166 = vmatpush1.bf16.msra.mxu0 0
      %1167 = vmatprep.subr.bf16.mxu0 0
      %1168 = vmatpush1.bf16.msra.mxu0 0
      %1169 = vmatprep.subr.bf16.mxu0 0
      %1170 = vmatpush1.bf16.msra.mxu0 0
      %1171 = vmatprep.subr.bf16.mxu0 0
      %1172 = vmatpush1.bf16.msra.mxu0 0
      %1173 = vmatprep.subr.bf16.mxu0 0
      %1174 = vmatpush1.bf16.msra.mxu0 %v1157
      %1175 = vmatprep.subr.bf16.mxu0 0
      %1176 = vmatpush2.bf16.msra.mxu0 0
      %1177 = vmatprep.subr.bf16.mxu0 0
      %1178 = vmatpush2.bf16.msra.mxu0 0
      %1179 = vmatprep.subr.bf16.mxu0 0
      %1180 = vmatpush2.bf16.msra.mxu0 0
      %1181 = vmatprep.subr.bf16.mxu0 0
      %1182 = vmatpush2.bf16.msra.mxu0 0
      %1183 = vmatprep.subr.bf16.mxu0 0
      %1184 = vmatpush2.bf16.msra.mxu0 0
      %1185 = vmatprep.subr.bf16.mxu0 0
      %1186 = vmatpush2.bf16.msra.mxu0 0
      %1187 = vmatprep.subr.bf16.mxu0 0
      %1188 = vmatpush2.bf16.msra.mxu0 0
      %1189 = vmatprep.subr.bf16.mxu0 0
      %1190 = vmatpush2.bf16.msra.mxu0 0
      %1191 = vmatprep.mubr.bf16.mxu0 0
      %1192 = vmatmul.mubr.bf16.gmra.mxu0 %v1154
      %v1193 = vpop.f32.mrf.mxu0
      %v1194 = vadd.f32 0.0, %v1193
      %v1195 = vpop.f32.mrf.mxu0
      %v1196 = vpop.f32.mrf.mxu0
      %v1197 = vadd.f32 0.0, %v1196
      %v1198 = vpop.f32.mrf.mxu0
      %1199 = vdwg.mxu0
      %v1200 = vadd.f32 %v1141, %v1194
      %v1201 = vadd.f32 %v1142, %v1197
      %s1202 = scalar_lea.vmem %s2, 64
      %v1203 = vld [vmem:[%s1202] sm:$0xf]
      %v1204 = vld [vmem:[%s1202 + $0x4] sm:$0x3]
      %v1207 = vunpack.c.l.b16 %v1203
      %v1208 = vunpack.c.l.b16 %v1204
      %v1209 = vpack.c.b16 %v1208, %v1207
      %1210 = vrot.lane.b32.xlu0 %v340, 114
      %v1211 = vpop.permute.xlu0 %1210
      %v1214 = vsel %vm342, %v1209, 0
      %1216 = vmatprep.subr.bf16.mxu0 0
      %1217 = vmatpush1.bf16.msra.mxu0 0
      %1218 = vmatprep.subr.bf16.mxu0 0
      %1219 = vmatpush1.bf16.msra.mxu0 0
      %1220 = vmatprep.subr.bf16.mxu0 0
      %1221 = vmatpush1.bf16.msra.mxu0 0
      %1222 = vmatprep.subr.bf16.mxu0 0
      %1223 = vmatpush1.bf16.msra.mxu0 0
      %1224 = vmatprep.subr.bf16.mxu0 0
      %1225 = vmatpush1.bf16.msra.mxu0 0
      %1226 = vmatprep.subr.bf16.mxu0 0
      %1227 = vmatpush1.bf16.msra.mxu0 0
      %1228 = vmatprep.subr.bf16.mxu0 0
      %1229 = vmatpush1.bf16.msra.mxu0 0
      %1230 = vmatprep.subr.bf16.mxu0 0
      %1231 = vmatpush1.bf16.msra.mxu0 %v1211
      %1232 = vmatprep.subr.bf16.mxu0 0
      %1233 = vmatpush2.bf16.msra.mxu0 0
      %1234 = vmatprep.subr.bf16.mxu0 0
      %1235 = vmatpush2.bf16.msra.mxu0 0
      %1236 = vmatprep.subr.bf16.mxu0 0
      %1237 = vmatpush2.bf16.msra.mxu0 0
      %1238 = vmatprep.subr.bf16.mxu0 0
      %1239 = vmatpush2.bf16.msra.mxu0 0
      %1240 = vmatprep.subr.bf16.mxu0 0
      %1241 = vmatpush2.bf16.msra.mxu0 0
      %1242 = vmatprep.subr.bf16.mxu0 0
      %1243 = vmatpush2.bf16.msra.mxu0 0
      %1244 = vmatprep.subr.bf16.mxu0 0
      %1245 = vmatpush2.bf16.msra.mxu0 0
      %1246 = vmatprep.subr.bf16.mxu0 0
      %1247 = vmatpush2.bf16.msra.mxu0 0
      %1248 = vmatprep.mubr.bf16.mxu0 0
      %1249 = vmatmul.mubr.bf16.gmra.mxu0 %v1214
      %v1250 = vpop.f32.mrf.mxu0
      %v1251 = vadd.f32 0.0, %v1250
      %v1252 = vpop.f32.mrf.mxu0
      %v1253 = vpop.f32.mrf.mxu0
      %v1254 = vadd.f32 0.0, %v1253
      %v1255 = vpop.f32.mrf.mxu0
      %1256 = vdwg.mxu0
      %v1257 = vadd.f32 %v1200, %v1251
      %v1258 = vadd.f32 %v1201, %v1254
      %s1259 = scalar_lea.vmem %s3, 64
      %v1260 = vld [vmem:[%s1259] sm:$0xf]
      %v1261 = vld [vmem:[%s1259 + $0x4] sm:$0x3]
      %v1264 = vunpack.c.l.b16 %v1260
      %v1265 = vunpack.c.l.b16 %v1261
      %v1266 = vpack.c.b16 %v1265, %v1264
      %1267 = vrot.lane.b32.xlu0 %v454, 114
      %v1268 = vpop.permute.xlu0 %1267
      %v1270 = vsel %vm282, %v1266, 0
      %v1273 = vsel %vm286, %v1268, 0
      %1275 = vmatprep.subr.bf16.mxu0 0
      %1276 = vmatpush1.bf16.msra.mxu0 0
      %1277 = vmatprep.subr.bf16.mxu0 0
      %1278 = vmatpush1.bf16.msra.mxu0 0
      %1279 = vmatprep.subr.bf16.mxu0 0
      %1280 = vmatpush1.bf16.msra.mxu0 0
      %1281 = vmatprep.subr.bf16.mxu0 0
      %1282 = vmatpush1.bf16.msra.mxu0 0
      %1283 = vmatprep.subr.bf16.mxu0 0
      %1284 = vmatpush1.bf16.msra.mxu0 0
      %1285 = vmatprep.subr.bf16.mxu0 0
      %1286 = vmatpush1.bf16.msra.mxu0 0
      %1287 = vmatprep.subr.bf16.mxu0 0
      %1288 = vmatpush1.bf16.msra.mxu0 0
      %1289 = vmatprep.subr.bf16.mxu0 0
      %1290 = vmatpush1.bf16.msra.mxu0 %v1273
      %1291 = vmatprep.subr.bf16.mxu0 0
      %1292 = vmatpush2.bf16.msra.mxu0 0
      %1293 = vmatprep.subr.bf16.mxu0 0
      %1294 = vmatpush2.bf16.msra.mxu0 0
      %1295 = vmatprep.subr.bf16.mxu0 0
      %1296 = vmatpush2.bf16.msra.mxu0 0
      %1297 = vmatprep.subr.bf16.mxu0 0
      %1298 = vmatpush2.bf16.msra.mxu0 0
      %1299 = vmatprep.subr.bf16.mxu0 0
      %1300 = vmatpush2.bf16.msra.mxu0 0
      %1301 = vmatprep.subr.bf16.mxu0 0
      %1302 = vmatpush2.bf16.msra.mxu0 0
      %1303 = vmatprep.subr.bf16.mxu0 0
      %1304 = vmatpush2.bf16.msra.mxu0 0
      %1305 = vmatprep.subr.bf16.mxu0 0
      %1306 = vmatpush2.bf16.msra.mxu0 0
      %1307 = vmatprep.mubr.bf16.mxu0 0
      %1308 = vmatmul.mubr.bf16.gmra.mxu0 %v1270
      %v1309 = vpop.f32.mrf.mxu0
      %v1310 = vadd.f32 0.0, %v1309
      %v1311 = vpop.f32.mrf.mxu0
      %v1312 = vpop.f32.mrf.mxu0
      %v1313 = vadd.f32 0.0, %v1312
      %v1314 = vpop.f32.mrf.mxu0
      %1315 = vdwg.mxu0
      %v1316 = vadd.f32 %v1257, %v1310
      %v1317 = vadd.f32 %v1258, %v1313
      %v1318 = vld [vmem:[%s4] sm:$0xff]
      %v1319 = vld [vmem:[%s4 + $0x8] sm:$0xf]
      %1321 = vset.pattern.permute.xlu0 0
      %1322 = vperm.xlu0 %1321, %v1318
      %v1323 = vpop.permute.xlu0 %1322
      %1326 = vset.pattern.permute.xlu0 0
      %1327 = vperm.xlu0 %1326, %v1319
      %v1328 = vpop.permute.xlu0 %1327
      %v1330 = vmul.f32 %v1316, %v1323
      %v1331 = vmul.f32 %v1317, %v1328
      %v1332 = vld [vmem:[%s5] sm:$0xff]
      %v1333 = vld [vmem:[%s5 + $0x8] sm:$0xf]
      %1335 = vset.pattern.permute.xlu0 0
      %1336 = vperm.xlu0 %1335, %v1332
      %v1337 = vpop.permute.xlu0 %1336
      %1340 = vset.pattern.permute.xlu0 0
      %1341 = vperm.xlu0 %1340, %v1333
      %v1342 = vpop.permute.xlu0 %1341
      %v1344 = vadd.f32 %v1330, %v1337
      %v1345 = vadd.f32 %v1331, %v1342
      %v1346 = vmax.f32 %v1344, 0.0
      %v1347 = vmax.f32 %v1345, 0.0
      %vm1348 = vcmask 195584
      %1349 = vst.msk [vmem:[%s268] sm:$0xff] %vm1348, %v1346
      %vm1350 = vcmask 191488
      %1351 = vst.msk [vmem:[%s268 + $0x8] sm:$0xf] %vm1350, %v1347
      %p1352 = scmp.lt.s32.totalorder %s17, 1
      %s1353 = scalar_select %p1352, %s17, 1
      %s1354 = smul.addr %s1353, 2
      %s1355 = smul.addr %s1354, 8
      %s1356 = scalar_lea.vmem %s6, %s1355
      // Predicated region
      $region45: #{decoder_forward.4} parent=43 // pred_check
        %p1357 = pneg %p171
      $region46: #{decoder_forward.4} parent=43 // pred_check_branch
        %1359 = sbr.rel (%p1357) target = $region48
      $region47: #{decoder_forward.4} parent=43 // pred_region
        _
      $region48: #{decoder_forward.4} parent=43 // pred_fallthru
        _
    $region44: #{decoder_forward.4} parent=5 // pred_fallthru
      _
    %p1360 = scmp.le.s32.totalorder 2, %s12
    // Predicated region
    $region49: #{decoder_forward.4} parent=5 // pred_check
      %p1361 = pneg %p1360
    $region50: #{decoder_forward.4} parent=5 // pred_check_branch
      %1363 = sbr.rel (%p1361) target = $region52
    $region51: #{decoder_forward.4} parent=5 // pred_region
      %s1364 = ssub.s32 %s12, 2
      // Predicated region
      $region53: #{decoder_forward.4} parent=51 // pred_check
        %p1365 = pneg %p177
      $region54: #{decoder_forward.4} parent=51 // pred_check_branch
        %1367 = sbr.rel (%p1365) target = $region56
      $region55: #{decoder_forward.4} parent=51 // pred_region
        %p1368 = scmp.lt.s32.totalorder %s18, 1
        %s1369 = scalar_select %p1368, %s18, 1
        %s1370 = smul.addr %s1369, 2
        %s1371 = smul.addr %s1370, 8
        %s1372 = scalar_lea.vmem %s6, %s1371
      $region56: #{decoder_forward.4} parent=51 // pred_fallthru
        _
    $region52: #{decoder_forward.4} parent=5 // pred_fallthru
      _
  $region6: #{decoder_forward.4} parent=0 // loop_footer
    %s16 = sadd.s32 1, %s12
  $region7: #{decoder_forward.4} parent=0 // loop_footer_branch
    %11 = sbr.rel target = $region3
  $region8: #{decoder_forward.4} parent=0 // loop_exit
    _

// kernel: decoder_forward.5
$region0: #{decoder_forward.5}
  #allocation0 [shape = 'u32[]', space=smem, size = 0x4, offset = 0x4, fixed_abs, tag = 'smem constant byte address 0x4 - core index']
  #allocation1 [shape = 'u32[144,128]{1,0:T(1,128)}', space=vmem, size = 0x12000, scoped, tag = 'internal scratch']
  %s0 = inlined_call_operand.vmem [shape: bf16[2,12,110], index: 0, kind: input, shape index: {}]
  %s1 = inlined_call_operand.vmem [shape: bf16[2,6,110], index: 1, kind: input, shape index: {}]
  %s2 = inlined_call_operand.vmem [shape: bf16[9,10,12], index: 2, kind: input, shape index: {}]
  %s3 = inlined_call_operand.vmem [shape: bf16[9,10,6], index: 3, kind: input, shape index: {}]
  %s4 = inlined_call_operand.vmem [shape: f32[10,1], index: 4, kind: input, shape index: {}]
  %s5 = inlined_call_operand.vmem [shape: f32[10,1], index: 5, kind: input, shape index: {}]
  %s6 = inlined_call_operand.vmem [shape: f32[2,10,80], index: 6, kind: output, shape index: {}]
  %s7 = sld [smem:[#allocation0]]
  $region57: #{decoder_forward.5} parent=0
    _
  %s9 = ssub.s32 1, %s7
  %s10 = scalar_select 0, %s9, %s7
  loop: start=0, step=1, limit=4
  $region2: #{decoder_forward.5} parent=0 // loop_pre_header
    _
  $region3: #{decoder_forward.5} parent=0 // loop_header
    %s12 = sphi 0, %s16
    %p13 = scmp.ge.s32.totalorder %s12, 4
    %s22 = sphi 0, %s24
    %s25 = sphi 0, %s22
    %s26 = sphi 0, %s25
    %s42 = sphi 0, %s26
    %s48 = sphi 0, %s50
    %s51 = sphi 0, %s48
    %s52 = sphi 0, %s51
    %s68 = sphi 0, %s52
    %s72 = sphi 0, %s72
    %s74 = sphi 0, %s72
    %s75 = sphi 0, %s74
    %s89 = sphi 0, %s75
    %s93 = sphi 0, %s93
    %s95 = sphi 0, %s93
    %s96 = sphi 0, %s95
    %s110 = sphi 0, %s96
    %s114 = sphi 0, %s114
    %s116 = sphi 0, %s114
    %s117 = sphi 0, %s116
    %s131 = sphi 0, %s117
    %s135 = sphi 0, %s135
    %s137 = sphi 0, %s135
    %s138 = sphi 0, %s137
    %s152 = sphi 0, %s138
    %s158 = sphi 0, %s160
    %s161 = sphi 0, %s158
    %s162 = sphi 0, %s161
    %s178 = sphi 0, %s162
  $region4: #{decoder_forward.5} parent=0 // loop_header_branch
    %15 = sbr.rel (%p13) target = $region8
  $region5: #{decoder_forward.5} parent=0 // loop_body
    %s17 = ssub.s32 %s12, 1
    %s18 = ssub.s32 %s12, 2
    %s19 = sadd.s32 %s12, 1
    %s20 = ssub.s32 %s12, %s19
    %p21 = scmp.eq.s32.totalorder %s20, 0
    %s23 = sadd.s32 %s22, 1
    %s24 = scalar_select %p21, %s22, %s23
    %p27 = pneg %p21
    %p28 = scmp.eq.s32.totalorder %s12, 1
    %p29 = por %p27, %p28
    %p30 = scmp.ne.s32.totalorder %s22, %s25
    %p31 = scmp.eq.s32.totalorder %s12, 0
    %p32 = por %p30, %p31
    %p33 = scmp.ne.s32.totalorder %s22, %s25
    %p34 = scmp.eq.s32.totalorder %s17, 1
    %p35 = por %p33, %p34
    %p36 = scmp.ne.s32.totalorder %s25, %s26
    %p37 = scmp.eq.s32.totalorder %s17, 0
    %p38 = por %p36, %p37
    %p39 = scmp.ne.s32.totalorder %s25, %s26
    %p40 = scmp.eq.s32.totalorder %s18, 1
    %p41 = por %p39, %p40
    %p43 = scmp.ne.s32.totalorder %s26, %s42
    %p44 = scmp.eq.s32.totalorder %s18, 0
    %p45 = por %p43, %p44
    %s46 = ssub.s32 %s12, %s19
    %p47 = scmp.eq.s32.totalorder %s46, 0
    %s49 = sadd.s32 %s48, 1
    %s50 = scalar_select %p47, %s48, %s49
    %p53 = pneg %p47
    %p54 = scmp.eq.s32.totalorder %s12, 1
    %p55 = por %p53, %p54
    %p56 = scmp.ne.s32.totalorder %s48, %s51
    %p57 = scmp.eq.s32.totalorder %s12, 0
    %p58 = por %p56, %p57
    %p59 = scmp.ne.s32.totalorder %s48, %s51
    %p60 = scmp.eq.s32.totalorder %s17, 1
    %p61 = por %p59, %p60
    %p62 = scmp.ne.s32.totalorder %s51, %s52
    %p63 = scmp.eq.s32.totalorder %s17, 0
    %p64 = por %p62, %p63
    %p65 = scmp.ne.s32.totalorder %s51, %s52
    %p66 = scmp.eq.s32.totalorder %s18, 1
    %p67 = por %p65, %p66
    %p69 = scmp.ne.s32.totalorder %s52, %s68
    %p70 = scmp.eq.s32.totalorder %s18, 0
    %p71 = por %p69, %p70
    %s73 = sadd.s32 %s72, 1
    %p76 = scmp.eq.s32.totalorder %s12, 1
    %p77 = scmp.ne.s32.totalorder %s72, %s74
    %p78 = scmp.eq.s32.totalorder %s12, 0
    %p79 = por %p77, %p78
    %p80 = scmp.ne.s32.totalorder %s72, %s74
    %p81 = scmp.eq.s32.totalorder %s17, 1
    %p82 = por %p80, %p81
    %p83 = scmp.ne.s32.totalorder %s74, %s75
    %p84 = scmp.eq.s32.totalorder %s17, 0
    %p85 = por %p83, %p84
    %p86 = scmp.ne.s32.totalorder %s74, %s75
    %p87 = scmp.eq.s32.totalorder %s18, 1
    %p88 = por %p86, %p87
    %p90 = scmp.ne.s32.totalorder %s75, %s89
    %p91 = scmp.eq.s32.totalorder %s18, 0
    %p92 = por %p90, %p91
    %s94 = sadd.s32 %s93, 1
    %p97 = scmp.eq.s32.totalorder %s12, 1
    %p98 = scmp.ne.s32.totalorder %s93, %s95
    %p99 = scmp.eq.s32.totalorder %s12, 0
    %p100 = por %p98, %p99
    %p101 = scmp.ne.s32.totalorder %s93, %s95
    %p102 = scmp.eq.s32.totalorder %s17, 1
    %p103 = por %p101, %p102
    %p104 = scmp.ne.s32.totalorder %s95, %s96
    %p105 = scmp.eq.s32.totalorder %s17, 0
    %p106 = por %p104, %p105
    %p107 = scmp.ne.s32.totalorder %s95, %s96
    %p108 = scmp.eq.s32.totalorder %s18, 1
    %p109 = por %p107, %p108
    %p111 = scmp.ne.s32.totalorder %s96, %s110
    %p112 = scmp.eq.s32.totalorder %s18, 0
    %p113 = por %p111, %p112
    %s115 = sadd.s32 %s114, 1
    %p118 = scmp.eq.s32.totalorder %s12, 1
    %p119 = scmp.ne.s32.totalorder %s114, %s116
    %p120 = scmp.eq.s32.totalorder %s12, 0
    %p121 = por %p119, %p120
    %p122 = scmp.ne.s32.totalorder %s114, %s116
    %p123 = scmp.eq.s32.totalorder %s17, 1
    %p124 = por %p122, %p123
    %p125 = scmp.ne.s32.totalorder %s116, %s117
    %p126 = scmp.eq.s32.totalorder %s17, 0
    %p127 = por %p125, %p126
    %p128 = scmp.ne.s32.totalorder %s116, %s117
    %p129 = scmp.eq.s32.totalorder %s18, 1
    %p130 = por %p128, %p129
    %p132 = scmp.ne.s32.totalorder %s117, %s131
    %p133 = scmp.eq.s32.totalorder %s18, 0
    %p134 = por %p132, %p133
    %s136 = sadd.s32 %s135, 1
    %p139 = scmp.eq.s32.totalorder %s12, 1
    %p140 = scmp.ne.s32.totalorder %s135, %s137
    %p141 = scmp.eq.s32.totalorder %s12, 0
    %p142 = por %p140, %p141
    %p143 = scmp.ne.s32.totalorder %s135, %s137
    %p144 = scmp.eq.s32.totalorder %s17, 1
    %p145 = por %p143, %p144
    %p146 = scmp.ne.s32.totalorder %s137, %s138
    %p147 = scmp.eq.s32.totalorder %s17, 0
    %p148 = por %p146, %p147
    %p149 = scmp.ne.s32.totalorder %s137, %s138
    %p150 = scmp.eq.s32.totalorder %s18, 1
    %p151 = por %p149, %p150
    %p153 = scmp.ne.s32.totalorder %s138, %s152
    %p154 = scmp.eq.s32.totalorder %s18, 0
    %p155 = por %p153, %p154
    %s156 = ssub.s32 %s12, %s19
    %p157 = scmp.eq.s32.totalorder %s156, 0
    %s159 = sadd.s32 %s158, 1
    %s160 = scalar_select %p157, %s158, %s159
    %p163 = pneg %p157
    %p164 = scmp.eq.s32.totalorder %s12, 1
    %p165 = por %p163, %p164
    %p166 = scmp.ne.s32.totalorder %s158, %s161
    %p167 = scmp.eq.s32.totalorder %s12, 0
    %p168 = por %p166, %p167
    %p169 = scmp.ne.s32.totalorder %s158, %s161
    %p170 = scmp.eq.s32.totalorder %s17, 1
    %p171 = por %p169, %p170
    %p172 = scmp.ne.s32.totalorder %s161, %s162
    %p173 = scmp.eq.s32.totalorder %s17, 0
    %p174 = por %p172, %p173
    %p175 = scmp.ne.s32.totalorder %s161, %s162
    %p176 = scmp.eq.s32.totalorder %s18, 1
    %p177 = por %p175, %p176
    %p179 = scmp.ne.s32.totalorder %s162, %s178
    %p180 = scmp.eq.s32.totalorder %s18, 0
    %p181 = por %p179, %p180
    %p182 = scmp.le.s32.totalorder 1, %s12
    %p183 = scmp.lt.s32.totalorder %s12, 3
    %p184 = pnand %p182, %p183
    %p185 = pneg %p184
    // Predicated region
    $region9: #{decoder_forward.5} parent=5 // pred_check
      _
    $region10: #{decoder_forward.5} parent=5 // pred_check_branch
      %187 = sbr.rel (%p184) target = $region12
    $region11: #{decoder_forward.5} parent=5 // pred_region
      %s188 = ssub.s32 %s12, 1
      // Predicated region
      $region13: #{decoder_forward.5} parent=11 // pred_check
        %p189 = pneg %p85
      $region14: #{decoder_forward.5} parent=11 // pred_check_branch
        %191 = sbr.rel (%p189) target = $region16
      $region15: #{decoder_forward.5} parent=11 // pred_region
        _
      $region16: #{decoder_forward.5} parent=11 // pred_fallthru
        _
      // Predicated region
      $region17: #{decoder_forward.5} parent=11 // pred_check
        %p192 = pneg %p106
      $region18: #{decoder_forward.5} parent=11 // pred_check_branch
        %194 = sbr.rel (%p192) target = $region20
      $region19: #{decoder_forward.5} parent=11 // pred_region
        _
      $region20: #{decoder_forward.5} parent=11 // pred_fallthru
        _
      // Predicated region
      $region21: #{decoder_forward.5} parent=11 // pred_check
        %p195 = pneg %p127
      $region22: #{decoder_forward.5} parent=11 // pred_check_branch
        %197 = sbr.rel (%p195) target = $region24
      $region23: #{decoder_forward.5} parent=11 // pred_region
        _
      $region24: #{decoder_forward.5} parent=11 // pred_fallthru
        _
      // Predicated region
      $region25: #{decoder_forward.5} parent=11 // pred_check
        %p198 = pneg %p148
      $region26: #{decoder_forward.5} parent=11 // pred_check_branch
        %200 = sbr.rel (%p198) target = $region28
      $region27: #{decoder_forward.5} parent=11 // pred_region
        _
      $region28: #{decoder_forward.5} parent=11 // pred_fallthru
        _
    $region12: #{decoder_forward.5} parent=5 // pred_fallthru
      _
    %p201 = scmp.lt.s32.totalorder %s12, 2
    // Predicated region
    $region29: #{decoder_forward.5} parent=5 // pred_check
      %p202 = pneg %p201
    $region30: #{decoder_forward.5} parent=5 // pred_check_branch
      %204 = sbr.rel (%p202) target = $region32
    $region31: #{decoder_forward.5} parent=5 // pred_region
      // Predicated region
      $region33: #{decoder_forward.5} parent=31 // pred_check
        %p205 = pneg %p32
      $region34: #{decoder_forward.5} parent=31 // pred_check_branch
        %207 = sbr.rel (%p205) target = $region36
      $region35: #{decoder_forward.5} parent=31 // pred_region
        %p208 = scmp.lt.s32.totalorder %s12, 1
        %s209 = scalar_select %p208, %s12, 1
        %s210 = smul.addr %s209, 2
        %s211 = smul.addr %s210, 4
        %s212 = scalar_lea.vmem %s0, %s211
      $region36: #{decoder_forward.5} parent=31 // pred_fallthru
        _
      // Predicated region
      $region37: #{decoder_forward.5} parent=31 // pred_check
        %p213 = pneg %p58
      $region38: #{decoder_forward.5} parent=31 // pred_check_branch
        %215 = sbr.rel (%p213) target = $region40
      $region39: #{decoder_forward.5} parent=31 // pred_region
        %p216 = scmp.lt.s32.totalorder %s12, 1
        %s217 = scalar_select %p216, %s12, 1
        %s218 = smul.addr %s217, 4
        %s219 = scalar_lea.vmem %s1, %s218
      $region40: #{decoder_forward.5} parent=31 // pred_fallthru
        _
    $region32: #{decoder_forward.5} parent=5 // pred_fallthru
      _
    %p220 = scmp.le.s32.totalorder 1, %s12
    %p221 = scmp.lt.s32.totalorder %s12, 3
    %p222 = pnand %p220, %p221
    %p223 = pneg %p222
    // Predicated region
    $region41: #{decoder_forward.5} parent=5 // pred_check
      _
    $region42: #{decoder_forward.5} parent=5 // pred_check_branch
      %225 = sbr.rel (%p222) target = $region44
    $region43: #{decoder_forward.5} parent=5 // pred_region
      %s226 = ssub.s32 %s12, 1
      %p227 = scmp.lt.s32.totalorder %s17, 1
      %s228 = scalar_select %p227, %s17, 1
      %s229 = smul.addr %s228, 2
      %s230 = smul.addr %s229, 4
      %s231 = scalar_lea.vmem %s0, %s230
      %p232 = pneg %p38
      %p233 = pneg %p35
      %p234 = scmp.lt.s32.totalorder %s17, 1
      %s235 = scalar_select %p234, %s17, 1
      %s236 = smul.addr %s235, 4
      %s237 = scalar_lea.vmem %s1, %s236
      %p238 = pneg %p64
      %p239 = pneg %p61
      %p240 = pneg %p85
      %p241 = pneg %p82
      %p242 = pneg %p106
      %p243 = pneg %p103
      %p244 = pneg %p127
      %p245 = pneg %p124
      %p246 = pneg %p148
      %p247 = pneg %p145
      %p248 = pneg %p174
      %p249 = pneg %p171
      %p250 = scmp.lt.s32.totalorder %s17, 1
      %s251 = scalar_select %p250, %s17, 1
      %s252 = smul.addr %s251, 2
      %s253 = smul.addr %s252, 8
      %s254 = scalar_lea.vmem %s6, %s253
      %p255 = scmp.lt.s32.totalorder %s17, 1
      %s256 = scalar_select %p255, %s17, 1
      %s257 = smul.addr %s256, 2
      %s258 = smul.addr %s257, 4
      %s259 = scalar_lea.vmem %s0, %s258
      %p260 = scmp.lt.s32.totalorder %s17, 1
      %s261 = scalar_select %p260, %s17, 1
      %s262 = smul.addr %s261, 4
      %s263 = scalar_lea.vmem %s1, %s262
      %p264 = scmp.lt.s32.totalorder %s17, 1
      %s265 = scalar_select %p264, %s17, 1
      %s266 = smul.addr %s265, 2
      %s267 = smul.addr %s266, 8
      %s268 = scalar_lea.vmem %s6, %s267
      %v270 = vld [vmem:[%s259] sm:$0xf]
      %v271 = vld [vmem:[%s259 + $0x4] sm:$0x3]
      %v272 = vld [vmem:[%s263] sm:$0x7]
      %v273 = vld [vmem:[%s2] sm:$0xf]
      %v274 = vld [vmem:[%s2 + $0x4] sm:$0x1]
      %v275 = vld [vmem:[%s3] sm:$0xf]
      %v276 = vld [vmem:[%s3 + $0x4] sm:$0x1]
      %v279 = vunpack.c.l.b16 %v275
      %v280 = vunpack.c.l.b16 %v276
      %v281 = vpack.c.b16 %v280, %v279
      %vm282 = vcmask 48128
      %v284 = vsel %vm282, %v281, 0
      %vm286 = vcmask 1042432
      %v288 = vsel %vm286, %v272, 0
      %290 = vmatprep.subr.bf16.mxu0 0
      %291 = vmatpush1.bf16.msra.mxu0 0
      %292 = vmatprep.subr.bf16.mxu0 0
      %293 = vmatpush1.bf16.msra.mxu0 0
      %294 = vmatprep.subr.bf16.mxu0 0
      %295 = vmatpush1.bf16.msra.mxu0 0
      %296 = vmatprep.subr.bf16.mxu0 0
      %297 = vmatpush1.bf16.msra.mxu0 0
      %298 = vmatprep.subr.bf16.mxu0 0
      %299 = vmatpush1.bf16.msra.mxu0 0
      %300 = vmatprep.subr.bf16.mxu0 0
      %301 = vmatpush1.bf16.msra.mxu0 0
      %302 = vmatprep.subr.bf16.mxu0 0
      %303 = vmatpush1.bf16.msra.mxu0 0
      %304 = vmatprep.subr.bf16.mxu0 0
      %305 = vmatpush1.bf16.msra.mxu0 %v288
      %306 = vmatprep.subr.bf16.mxu0 0
      %307 = vmatpush2.bf16.msra.mxu0 0
      %308 = vmatprep.subr.bf16.mxu0 0
      %309 = vmatpush2.bf16.msra.mxu0 0
      %310 = vmatprep.subr.bf16.mxu0 0
      %311 = vmatpush2.bf16.msra.mxu0 0
      %312 = vmatprep.subr.bf16.mxu0 0
      %313 = vmatpush2.bf16.msra.mxu0 0
      %314 = vmatprep.subr.bf16.mxu0 0
      %315 = vmatpush2.bf16.msra.mxu0 0
      %316 = vmatprep.subr.bf16.mxu0 0
      %317 = vmatpush2.bf16.msra.mxu0 0
      %318 = vmatprep.subr.bf16.mxu0 0
      %319 = vmatpush2.bf16.msra.mxu0 0
      %320 = vmatprep.subr.bf16.mxu0 0
      %321 = vmatpush2.bf16.msra.mxu0 0
      %322 = vmatprep.mubr.bf16.mxu0 0
      %323 = vmatmul.mubr.bf16.gmra.mxu0 %v284
      %v324 = vpop.f32.mrf.mxu0
      %v325 = vadd.f32 0.0, %v324
      %v326 = vpop.f32.mrf.mxu0
      %v327 = vpop.f32.mrf.mxu0
      %v328 = vadd.f32 0.0, %v327
      %v329 = vpop.f32.mrf.mxu0
      %330 = vdwg.mxu0
      %v333 = vunpack.c.l.b16 %v273
      %v334 = vunpack.c.l.b16 %v274
      %v335 = vpack.c.b16 %v334, %v333
      %v338 = vunpack.c.l.b16 %v270
      %v339 = vunpack.c.l.b16 %v271
      %v340 = vpack.c.b16 %v339, %v338
      %vm341 = vcmask 97280
      %v343 = vsel %vm341, %v335, 0
      %vm345 = vcmask 1045504
      %v347 = vsel %vm345, %v340, 0
      %349 = vmatprep.subr.bf16.mxu0 0
      %350 = vmatpush1.bf16.msra.mxu0 0
      %351 = vmatprep.subr.bf16.mxu0 0
      %352 = vmatpush1.bf16.msra.mxu0 0
      %353 = vmatprep.subr.bf16.mxu0 0
      %354 = vmatpush1.bf16.msra.mxu0 0
      %355 = vmatprep.subr.bf16.mxu0 0
      %356 = vmatpush1.bf16.msra.mxu0 0
      %357 = vmatprep.subr.bf16.mxu0 0
      %358 = vmatpush1.bf16.msra.mxu0 0
      %359 = vmatprep.subr.bf16.mxu0 0
      %360 = vmatpush1.bf16.msra.mxu0 0
      %361 = vmatprep.subr.bf16.mxu0 0
      %362 = vmatpush1.bf16.msra.mxu0 0
      %363 = vmatprep.subr.bf16.mxu0 0
      %364 = vmatpush1.bf16.msra.mxu0 %v347
      %365 = vmatprep.subr.bf16.mxu0 0
      %366 = vmatpush2.bf16.msra.mxu0 0
      %367 = vmatprep.subr.bf16.mxu0 0
      %368 = vmatpush2.bf16.msra.mxu0 0
      %369 = vmatprep.subr.bf16.mxu0 0
      %370 = vmatpush2.bf16.msra.mxu0 0
      %371 = vmatprep.subr.bf16.mxu0 0
      %372 = vmatpush2.bf16.msra.mxu0 0
      %373 = vmatprep.subr.bf16.mxu0 0
      %374 = vmatpush2.bf16.msra.mxu0 0
      %375 = vmatprep.subr.bf16.mxu0 0
      %376 = vmatpush2.bf16.msra.mxu0 0
      %377 = vmatprep.subr.bf16.mxu0 0
      %378 = vmatpush2.bf16.msra.mxu0 0
      %379 = vmatprep.subr.bf16.mxu0 0
      %380 = vmatpush2.bf16.msra.mxu0 0
      %381 = vmatprep.mubr.bf16.mxu0 0
      %382 = vmatmul.mubr.bf16.gmra.mxu0 %v343
      %v383 = vpop.f32.mrf.mxu0
      %v384 = vadd.f32 %v325, %v383
      %v385 = vpop.f32.mrf.mxu0
      %v386 = vpop.f32.mrf.mxu0
      %v387 = vadd.f32 %v328, %v386
      %v388 = vpop.f32.mrf.mxu0
      %389 = vdwg.mxu0
      %s390 = scalar_lea.vmem %s2, 8
      %v391 = vld [vmem:[%s390] sm:$0xf]
      %v392 = vld [vmem:[%s390 + $0x4] sm:$0x1]
      %v395 = vunpack.c.l.b16 %v391
      %v396 = vunpack.c.l.b16 %v392
      %v397 = vpack.c.b16 %v396, %v395
      %398 = vrot.lane.b32.xlu0 %v340, 127
      %v399 = vpop.permute.xlu0 %398
      %v401 = vsel %vm341, %v397, 0
      %v404 = vsel %vm345, %v399, 0
      %406 = vmatprep.subr.bf16.mxu0 0
      %407 = vmatpush1.bf16.msra.mxu0 0
      %408 = vmatprep.subr.bf16.mxu0 0
      %409 = vmatpush1.bf16.msra.mxu0 0
      %410 = vmatprep.subr.bf16.mxu0 0
      %411 = vmatpush1.bf16.msra.mxu0 0
      %412 = vmatprep.subr.bf16.mxu0 0
      %413 = vmatpush1.bf16.msra.mxu0 0
      %414 = vmatprep.subr.bf16.mxu0 0
      %415 = vmatpush1.bf16.msra.mxu0 0
      %416 = vmatprep.subr.bf16.mxu0 0
      %417 = vmatpush1.bf16.msra.mxu0 0
      %418 = vmatprep.subr.bf16.mxu0 0
      %419 = vmatpush1.bf16.msra.mxu0 0
      %420 = vmatprep.subr.bf16.mxu0 0
      %421 = vmatpush1.bf16.msra.mxu0 %v404
      %422 = vmatprep.subr.bf16.mxu0 0
      %423 = vmatpush2.bf16.msra.mxu0 0
      %424 = vmatprep.subr.bf16.mxu0 0
      %425 = vmatpush2.bf16.msra.mxu0 0
      %426 = vmatprep.subr.bf16.mxu0 0
      %427 = vmatpush2.bf16.msra.mxu0 0
      %428 = vmatprep.subr.bf16.mxu0 0
      %429 = vmatpush2.bf16.msra.mxu0 0
      %430 = vmatprep.subr.bf16.mxu0 0
      %431 = vmatpush2.bf16.msra.mxu0 0
      %432 = vmatprep.subr.bf16.mxu0 0
      %433 = vmatpush2.bf16.msra.mxu0 0
      %434 = vmatprep.subr.bf16.mxu0 0
      %435 = vmatpush2.bf16.msra.mxu0 0
      %436 = vmatprep.subr.bf16.mxu0 0
      %437 = vmatpush2.bf16.msra.mxu0 0
      %438 = vmatprep.mubr.bf16.mxu0 0
      %439 = vmatmul.mubr.bf16.gmra.mxu0 %v401
      %v440 = vpop.f32.mrf.mxu0
      %v441 = vadd.f32 0.0, %v440
      %v442 = vpop.f32.mrf.mxu0
      %v443 = vpop.f32.mrf.mxu0
      %v444 = vadd.f32 0.0, %v443
      %v445 = vpop.f32.mrf.mxu0
      %446 = vdwg.mxu0
      %v447 = vadd.f32 %v384, %v441
      %v448 = vadd.f32 %v387, %v444
      %s449 = scalar_lea.vmem %s3, 8
      %v450 = vld [vmem:[%s449] sm:$0xf]
      %v451 = vld [vmem:[%s449 + $0x4] sm:$0x1]
      %v454 = vunpack.c.l.b16 %v450
      %v455 = vunpack.c.l.b16 %v451
      %v456 = vpack.c.b16 %v455, %v454
      %v458 = vunpack.c.l.b16 %v272
      %v459 = vpack.c.b16 %v458, %v458
      %460 = vrot.lane.b32.xlu0 %v459, 127
      %v461 = vpop.permute.xlu0 %460
      %v463 = vsel %vm282, %v456, 0
      %v466 = vsel %vm286, %v461, 0
      %468 = vmatprep.subr.bf16.mxu0 0
      %469 = vmatpush1.bf16.msra.mxu0 0
      %470 = vmatprep.subr.bf16.mxu0 0
      %471 = vmatpush1.bf16.msra.mxu0 0
      %472 = vmatprep.subr.bf16.mxu0 0
      %473 = vmatpush1.bf16.msra.mxu0 0
      %474 = vmatprep.subr.bf16.mxu0 0
      %475 = vmatpush1.bf16.msra.mxu0 0
      %476 = vmatprep.subr.bf16.mxu0 0
      %477 = vmatpush1.bf16.msra.mxu0 0
      %478 = vmatprep.subr.bf16.mxu0 0
      %479 = vmatpush1.bf16.msra.mxu0 0
      %480 = vmatprep.subr.bf16.mxu0 0
      %481 = vmatpush1.bf16.msra.mxu0 0
      %482 = vmatprep.subr.bf16.mxu0 0
      %483 = vmatpush1.bf16.msra.mxu0 %v466
      %484 = vmatprep.subr.bf16.mxu0 0
      %485 = vmatpush2.bf16.msra.mxu0 0
      %486 = vmatprep.subr.bf16.mxu0 0
      %487 = vmatpush2.bf16.msra.mxu0 0
      %488 = vmatprep.subr.bf16.mxu0 0
      %489 = vmatpush2.bf16.msra.mxu0 0
      %490 = vmatprep.subr.bf16.mxu0 0
      %491 = vmatpush2.bf16.msra.mxu0 0
      %492 = vmatprep.subr.bf16.mxu0 0
      %493 = vmatpush2.bf16.msra.mxu0 0
      %494 = vmatprep.subr.bf16.mxu0 0
      %495 = vmatpush2.bf16.msra.mxu0 0
      %496 = vmatprep.subr.bf16.mxu0 0
      %497 = vmatpush2.bf16.msra.mxu0 0
      %498 = vmatprep.subr.bf16.mxu0 0
      %499 = vmatpush2.bf16.msra.mxu0 0
      %500 = vmatprep.mubr.bf16.mxu0 0
      %501 = vmatmul.mubr.bf16.gmra.mxu0 %v463
      %v502 = vpop.f32.mrf.mxu0
      %v503 = vadd.f32 0.0, %v502
      %v504 = vpop.f32.mrf.mxu0
      %v505 = vpop.f32.mrf.mxu0
      %v506 = vadd.f32 0.0, %v505
      %v507 = vpop.f32.mrf.mxu0
      %508 = vdwg.mxu0
      %v509 = vadd.f32 %v447, %v503
      %v510 = vadd.f32 %v448, %v506
      %s511 = scalar_lea.vmem %s2, 16
      %v512 = vld [vmem:[%s511] sm:$0xf]
      %v513 = vld [vmem:[%s511 + $0x4] sm:$0x1]
      %v516 = vunpack.c.l.b16 %v512
      %v517 = vunpack.c.l.b16 %v513
      %v518 = vpack.c.b16 %v517, %v516
      %519 = vrot.lane.b32.xlu0 %v340, 126
      %v520 = vpop.permute.xlu0 %519
      %v522 = vsel %vm341, %v518, 0
      %v525 = vsel %vm345, %v520, 0
      %527 = vmatprep.subr.bf16.mxu0 0
      %528 = vmatpush1.bf16.msra.mxu0 0
      %529 = vmatprep.subr.bf16.mxu0 0
      %530 = vmatpush1.bf16.msra.mxu0 0
      %531 = vmatprep.subr.bf16.mxu0 0
      %532 = vmatpush1.bf16.msra.mxu0 0
      %533 = vmatprep.subr.bf16.mxu0 0
      %534 = vmatpush1.bf16.msra.mxu0 0
      %535 = vmatprep.subr.bf16.mxu0 0
      %536 = vmatpush1.bf16.msra.mxu0 0
      %537 = vmatprep.subr.bf16.mxu0 0
      %538 = vmatpush1.bf16.msra.mxu0 0
      %539 = vmatprep.subr.bf16.mxu0 0
      %540 = vmatpush1.bf16.msra.mxu0 0
      %541 = vmatprep.subr.bf16.mxu0 0
      %542 = vmatpush1.bf16.msra.mxu0 %v525
      %543 = vmatprep.subr.bf16.mxu0 0
      %544 = vmatpush2.bf16.msra.mxu0 0
      %545 = vmatprep.subr.bf16.mxu0 0
      %546 = vmatpush2.bf16.msra.mxu0 0
      %547 = vmatprep.subr.bf16.mxu0 0
      %548 = vmatpush2.bf16.msra.mxu0 0
      %549 = vmatprep.subr.bf16.mxu0 0
      %550 = vmatpush2.bf16.msra.mxu0 0
      %551 = vmatprep.subr.bf16.mxu0 0
      %552 = vmatpush2.bf16.msra.mxu0 0
      %553 = vmatprep.subr.bf16.mxu0 0
      %554 = vmatpush2.bf16.msra.mxu0 0
      %555 = vmatprep.subr.bf16.mxu0 0
      %556 = vmatpush2.bf16.msra.mxu0 0
      %557 = vmatprep.subr.bf16.mxu0 0
      %558 = vmatpush2.bf16.msra.mxu0 0
      %559 = vmatprep.mubr.bf16.mxu0 0
      %560 = vmatmul.mubr.bf16.gmra.mxu0 %v522
      %v561 = vpop.f32.mrf.mxu0
      %v562 = vadd.f32 0.0, %v561
      %v563 = vpop.f32.mrf.mxu0
      %v564 = vpop.f32.mrf.mxu0
      %v565 = vadd.f32 0.0, %v564
      %v566 = vpop.f32.mrf.mxu0
      %567 = vdwg.mxu0
      %v568 = vadd.f32 %v509, %v562
      %v569 = vadd.f32 %v510, %v565
      %s570 = scalar_lea.vmem %s3, 16
      %v571 = vld [vmem:[%s570] sm:$0xf]
      %v572 = vld [vmem:[%s570 + $0x4] sm:$0x1]
      %v575 = vunpack.c.l.b16 %v571
      %v576 = vunpack.c.l.b16 %v572
      %v577 = vpack.c.b16 %v576, %v575
      %578 = vrot.lane.b32.xlu0 %v459, 126
      %v579 = vpop.permute.xlu0 %578
      %v581 = vsel %vm282, %v577, 0
      %v584 = vsel %vm286, %v579, 0
      %586 = vmatprep.subr.bf16.mxu0 0
      %587 = vmatpush1.bf16.msra.mxu0 0
      %588 = vmatprep.subr.bf16.mxu0 0
      %589 = vmatpush1.bf16.msra.mxu0 0
      %590 = vmatprep.subr.bf16.mxu0 0
      %591 = vmatpush1.bf16.msra.mxu0 0
      %592 = vmatprep.subr.bf16.mxu0 0
      %593 = vmatpush1.bf16.msra.mxu0 0
      %594 = vmatprep.subr.bf16.mxu0 0
      %595 = vmatpush1.bf16.msra.mxu0 0
      %596 = vmatprep.subr.bf16.mxu0 0
      %597 = vmatpush1.bf16.msra.mxu0 0
      %598 = vmatprep.subr.bf16.mxu0 0
      %599 = vmatpush1.bf16.msra.mxu0 0
      %600 = vmatprep.subr.bf16.mxu0 0
      %601 = vmatpush1.bf16.msra.mxu0 %v584
      %602 = vmatprep.subr.bf16.mxu0 0
      %603 = vmatpush2.bf16.msra.mxu0 0
      %604 = vmatprep.subr.bf16.mxu0 0
      %605 = vmatpush2.bf16.msra.mxu0 0
      %606 = vmatprep.subr.bf16.mxu0 0
      %607 = vmatpush2.bf16.msra.mxu0 0
      %608 = vmatprep.subr.bf16.mxu0 0
      %609 = vmatpush2.bf16.msra.mxu0 0
      %610 = vmatprep.subr.bf16.mxu0 0
      %611 = vmatpush2.bf16.msra.mxu0 0
      %612 = vmatprep.subr.bf16.mxu0 0
      %613 = vmatpush2.bf16.msra.mxu0 0
      %614 = vmatprep.subr.bf16.mxu0 0
      %615 = vmatpush2.bf16.msra.mxu0 0
      %616 = vmatprep.subr.bf16.mxu0 0
      %617 = vmatpush2.bf16.msra.mxu0 0
      %618 = vmatprep.mubr.bf16.mxu0 0
      %619 = vmatmul.mubr.bf16.gmra.mxu0 %v581
      %v620 = vpop.f32.mrf.mxu0
      %v621 = vadd.f32 0.0, %v620
      %v622 = vpop.f32.mrf.mxu0
      %v623 = vpop.f32.mrf.mxu0
      %v624 = vadd.f32 0.0, %v623
      %v625 = vpop.f32.mrf.mxu0
      %626 = vdwg.mxu0
      %v627 = vadd.f32 %v568, %v621
      %v628 = vadd.f32 %v569, %v624
      %s629 = scalar_lea.vmem %s2, 24
      %v630 = vld [vmem:[%s629] sm:$0xf]
      %v631 = vld [vmem:[%s629 + $0x4] sm:$0x1]
      %v634 = vunpack.c.l.b16 %v630
      %v635 = vunpack.c.l.b16 %v631
      %v636 = vpack.c.b16 %v635, %v634
      %637 = vrot.lane.b32.xlu0 %v340, 118
      %v638 = vpop.permute.xlu0 %637
      %v640 = vsel %vm341, %v636, 0
      %v643 = vsel %vm345, %v638, 0
      %645 = vmatprep.subr.bf16.mxu0 0
      %646 = vmatpush1.bf16.msra.mxu0 0
      %647 = vmatprep.subr.bf16.mxu0 0
      %648 = vmatpush1.bf16.msra.mxu0 0
      %649 = vmatprep.subr.bf16.mxu0 0
      %650 = vmatpush1.bf16.msra.mxu0 0
      %651 = vmatprep.subr.bf16.mxu0 0
      %652 = vmatpush1.bf16.msra.mxu0 0
      %653 = vmatprep.subr.bf16.mxu0 0
      %654 = vmatpush1.bf16.msra.mxu0 0
      %655 = vmatprep.subr.bf16.mxu0 0
      %656 = vmatpush1.bf16.msra.mxu0 0
      %657 = vmatprep.subr.bf16.mxu0 0
      %658 = vmatpush1.bf16.msra.mxu0 0
      %659 = vmatprep.subr.bf16.mxu0 0
      %660 = vmatpush1.bf16.msra.mxu0 %v643
      %661 = vmatprep.subr.bf16.mxu0 0
      %662 = vmatpush2.bf16.msra.mxu0 0
      %663 = vmatprep.subr.bf16.mxu0 0
      %664 = vmatpush2.bf16.msra.mxu0 0
      %665 = vmatprep.subr.bf16.mxu0 0
      %666 = vmatpush2.bf16.msra.mxu0 0
      %667 = vmatprep.subr.bf16.mxu0 0
      %668 = vmatpush2.bf16.msra.mxu0 0
      %669 = vmatprep.subr.bf16.mxu0 0
      %670 = vmatpush2.bf16.msra.mxu0 0
      %671 = vmatprep.subr.bf16.mxu0 0
      %672 = vmatpush2.bf16.msra.mxu0 0
      %673 = vmatprep.subr.bf16.mxu0 0
      %674 = vmatpush2.bf16.msra.mxu0 0
      %675 = vmatprep.subr.bf16.mxu0 0
      %676 = vmatpush2.bf16.msra.mxu0 0
      %677 = vmatprep.mubr.bf16.mxu0 0
      %678 = vmatmul.mubr.bf16.gmra.mxu0 %v640
      %v679 = vpop.f32.mrf.mxu0
      %v680 = vadd.f32 0.0, %v679
      %v681 = vpop.f32.mrf.mxu0
      %v682 = vpop.f32.mrf.mxu0
      %v683 = vadd.f32 0.0, %v682
      %v684 = vpop.f32.mrf.mxu0
      %685 = vdwg.mxu0
      %v686 = vadd.f32 %v627, %v680
      %v687 = vadd.f32 %v628, %v683
      %s688 = scalar_lea.vmem %s3, 24
      %v689 = vld [vmem:[%s688] sm:$0xf]
      %v690 = vld [vmem:[%s688 + $0x4] sm:$0x1]
      %v693 = vunpack.c.l.b16 %v689
      %v694 = vunpack.c.l.b16 %v690
      %v695 = vpack.c.b16 %v694, %v693
      %696 = vrot.lane.b32.xlu0 %v459, 118
      %v697 = vpop.permute.xlu0 %696
      %v699 = vsel %vm282, %v695, 0
      %v702 = vsel %vm286, %v697, 0
      %704 = vmatprep.subr.bf16.mxu0 0
      %705 = vmatpush1.bf16.msra.mxu0 0
      %706 = vmatprep.subr.bf16.mxu0 0
      %707 = vmatpush1.bf16.msra.mxu0 0
      %708 = vmatprep.subr.bf16.mxu0 0
      %709 = vmatpush1.bf16.msra.mxu0 0
      %710 = vmatprep.subr.bf16.mxu0 0
      %711 = vmatpush1.bf16.msra.mxu0 0
      %712 = vmatprep.subr.bf16.mxu0 0
      %713 = vmatpush1.bf16.msra.mxu0 0
      %714 = vmatprep.subr.bf16.mxu0 0
      %715 = vmatpush1.bf16.msra.mxu0 0
      %716 = vmatprep.subr.bf16.mxu0 0
      %717 = vmatpush1.bf16.msra.mxu0 0
      %718 = vmatprep.subr.bf16.mxu0 0
      %719 = vmatpush1.bf16.msra.mxu0 %v702
      %720 = vmatprep.subr.bf16.mxu0 0
      %721 = vmatpush2.bf16.msra.mxu0 0
      %722 = vmatprep.subr.bf16.mxu0 0
      %723 = vmatpush2.bf16.msra.mxu0 0
      %724 = vmatprep.subr.bf16.mxu0 0
      %725 = vmatpush2.bf16.msra.mxu0 0
      %726 = vmatprep.subr.bf16.mxu0 0
      %727 = vmatpush2.bf16.msra.mxu0 0
      %728 = vmatprep.subr.bf16.mxu0 0
      %729 = vmatpush2.bf16.msra.mxu0 0
      %730 = vmatprep.subr.bf16.mxu0 0
      %731 = vmatpush2.bf16.msra.mxu0 0
      %732 = vmatprep.subr.bf16.mxu0 0
      %733 = vmatpush2.bf16.msra.mxu0 0
      %734 = vmatprep.subr.bf16.mxu0 0
      %735 = vmatpush2.bf16.msra.mxu0 0
      %736 = vmatprep.mubr.bf16.mxu0 0
      %737 = vmatmul.mubr.bf16.gmra.mxu0 %v699
      %v738 = vpop.f32.mrf.mxu0
      %v739 = vadd.f32 0.0, %v738
      %v740 = vpop.f32.mrf.mxu0
      %v741 = vpop.f32.mrf.mxu0
      %v742 = vadd.f32 0.0, %v741
      %v743 = vpop.f32.mrf.mxu0
      %744 = vdwg.mxu0
      %v745 = vadd.f32 %v686, %v739
      %v746 = vadd.f32 %v687, %v742
      %s747 = scalar_lea.vmem %s2, 32
      %v748 = vld [vmem:[%s747] sm:$0xf]
      %v749 = vld [vmem:[%s747 + $0x4] sm:$0x1]
      %v752 = vunpack.c.l.b16 %v748
      %v753 = vunpack.c.l.b16 %v749
      %v754 = vpack.c.b16 %v753, %v752
      %755 = vrot.lane.b32.xlu0 %v340, 117
      %v756 = vpop.permute.xlu0 %755
      %v758 = vsel %vm341, %v754, 0
      %v761 = vsel %vm345, %v756, 0
      %763 = vmatprep.subr.bf16.mxu0 0
      %764 = vmatpush1.bf16.msra.mxu0 0
      %765 = vmatprep.subr.bf16.mxu0 0
      %766 = vmatpush1.bf16.msra.mxu0 0
      %767 = vmatprep.subr.bf16.mxu0 0
      %768 = vmatpush1.bf16.msra.mxu0 0
      %769 = vmatprep.subr.bf16.mxu0 0
      %770 = vmatpush1.bf16.msra.mxu0 0
      %771 = vmatprep.subr.bf16.mxu0 0
      %772 = vmatpush1.bf16.msra.mxu0 0
      %773 = vmatprep.subr.bf16.mxu0 0
      %774 = vmatpush1.bf16.msra.mxu0 0
      %775 = vmatprep.subr.bf16.mxu0 0
      %776 = vmatpush1.bf16.msra.mxu0 0
      %777 = vmatprep.subr.bf16.mxu0 0
      %778 = vmatpush1.bf16.msra.mxu0 %v761
      %779 = vmatprep.subr.bf16.mxu0 0
      %780 = vmatpush2.bf16.msra.mxu0 0
      %781 = vmatprep.subr.bf16.mxu0 0
      %782 = vmatpush2.bf16.msra.mxu0 0
      %783 = vmatprep.subr.bf16.mxu0 0
      %784 = vmatpush2.bf16.msra.mxu0 0
      %785 = vmatprep.subr.bf16.mxu0 0
      %786 = vmatpush2.bf16.msra.mxu0 0
      %787 = vmatprep.subr.bf16.mxu0 0
      %788 = vmatpush2.bf16.msra.mxu0 0
      %789 = vmatprep.subr.bf16.mxu0 0
      %790 = vmatpush2.bf16.msra.mxu0 0
      %791 = vmatprep.subr.bf16.mxu0 0
      %792 = vmatpush2.bf16.msra.mxu0 0
      %793 = vmatprep.subr.bf16.mxu0 0
      %794 = vmatpush2.bf16.msra.mxu0 0
      %795 = vmatprep.mubr.bf16.mxu0 0
      %796 = vmatmul.mubr.bf16.gmra.mxu0 %v758
      %v797 = vpop.f32.mrf.mxu0
      %v798 = vadd.f32 0.0, %v797
      %v799 = vpop.f32.mrf.mxu0
      %v800 = vpop.f32.mrf.mxu0
      %v801 = vadd.f32 0.0, %v800
      %v802 = vpop.f32.mrf.mxu0
      %803 = vdwg.mxu0
      %v804 = vadd.f32 %v745, %v798
      %v805 = vadd.f32 %v746, %v801
      %s806 = scalar_lea.vmem %s3, 32
      %v807 = vld [vmem:[%s806] sm:$0xf]
      %v808 = vld [vmem:[%s806 + $0x4] sm:$0x1]
      %v811 = vunpack.c.l.b16 %v807
      %v812 = vunpack.c.l.b16 %v808
      %v813 = vpack.c.b16 %v812, %v811
      %814 = vrot.lane.b32.xlu0 %v459, 117
      %v815 = vpop.permute.xlu0 %814
      %v817 = vsel %vm282, %v813, 0
      %v820 = vsel %vm286, %v815, 0
      %822 = vmatprep.subr.bf16.mxu0 0
      %823 = vmatpush1.bf16.msra.mxu0 0
      %824 = vmatprep.subr.bf16.mxu0 0
      %825 = vmatpush1.bf16.msra.mxu0 0
      %826 = vmatprep.subr.bf16.mxu0 0
      %827 = vmatpush1.bf16.msra.mxu0 0
      %828 = vmatprep.subr.bf16.mxu0 0
      %829 = vmatpush1.bf16.msra.mxu0 0
      %830 = vmatprep.subr.bf16.mxu0 0
      %831 = vmatpush1.bf16.msra.mxu0 0
      %832 = vmatprep.subr.bf16.mxu0 0
      %833 = vmatpush1.bf16.msra.mxu0 0
      %834 = vmatprep.subr.bf16.mxu0 0
      %835 = vmatpush1.bf16.msra.mxu0 0
      %836 = vmatprep.subr.bf16.mxu0 0
      %837 = vmatpush1.bf16.msra.mxu0 %v820
      %838 = vmatprep.subr.bf16.mxu0 0
      %839 = vmatpush2.bf16.msra.mxu0 0
      %840 = vmatprep.subr.bf16.mxu0 0
      %841 = vmatpush2.bf16.msra.mxu0 0
      %842 = vmatprep.subr.bf16.mxu0 0
      %843 = vmatpush2.bf16.msra.mxu0 0
      %844 = vmatprep.subr.bf16.mxu0 0
      %845 = vmatpush2.bf16.msra.mxu0 0
      %846 = vmatprep.subr.bf16.mxu0 0
      %847 = vmatpush2.bf16.msra.mxu0 0
      %848 = vmatprep.subr.bf16.mxu0 0
      %849 = vmatpush2.bf16.msra.mxu0 0
      %850 = vmatprep.subr.bf16.mxu0 0
      %851 = vmatpush2.bf16.msra.mxu0 0
      %852 = vmatprep.subr.bf16.mxu0 0
      %853 = vmatpush2.bf16.msra.mxu0 0
      %854 = vmatprep.mubr.bf16.mxu0 0
      %855 = vmatmul.mubr.bf16.gmra.mxu0 %v817
      %v856 = vpop.f32.mrf.mxu0
      %v857 = vadd.f32 0.0, %v856
      %v858 = vpop.f32.mrf.mxu0
      %v859 = vpop.f32.mrf.mxu0
      %v860 = vadd.f32 0.0, %v859
      %v861 = vpop.f32.mrf.mxu0
      %862 = vdwg.mxu0
      %v863 = vadd.f32 %v804, %v857
      %v864 = vadd.f32 %v805, %v860
      %s865 = scalar_lea.vmem %s2, 40
      %v866 = vld [vmem:[%s865] sm:$0xf]
      %v867 = vld [vmem:[%s865 + $0x4] sm:$0x1]
      %v870 = vunpack.c.l.b16 %v866
      %v871 = vunpack.c.l.b16 %v867
      %v872 = vpack.c.b16 %v871, %v870
      %873 = vrot.lane.b32.xlu0 %v340, 116
      %v874 = vpop.permute.xlu0 %873
      %v876 = vsel %vm341, %v872, 0
      %v879 = vsel %vm345, %v874, 0
      %881 = vmatprep.subr.bf16.mxu0 0
      %882 = vmatpush1.bf16.msra.mxu0 0
      %883 = vmatprep.subr.bf16.mxu0 0
      %884 = vmatpush1.bf16.msra.mxu0 0
      %885 = vmatprep.subr.bf16.mxu0 0
      %886 = vmatpush1.bf16.msra.mxu0 0
      %887 = vmatprep.subr.bf16.mxu0 0
      %888 = vmatpush1.bf16.msra.mxu0 0
      %889 = vmatprep.subr.bf16.mxu0 0
      %890 = vmatpush1.bf16.msra.mxu0 0
      %891 = vmatprep.subr.bf16.mxu0 0
      %892 = vmatpush1.bf16.msra.mxu0 0
      %893 = vmatprep.subr.bf16.mxu0 0
      %894 = vmatpush1.bf16.msra.mxu0 0
      %895 = vmatprep.subr.bf16.mxu0 0
      %896 = vmatpush1.bf16.msra.mxu0 %v879
      %897 = vmatprep.subr.bf16.mxu0 0
      %898 = vmatpush2.bf16.msra.mxu0 0
      %899 = vmatprep.subr.bf16.mxu0 0
      %900 = vmatpush2.bf16.msra.mxu0 0
      %901 = vmatprep.subr.bf16.mxu0 0
      %902 = vmatpush2.bf16.msra.mxu0 0
      %903 = vmatprep.subr.bf16.mxu0 0
      %904 = vmatpush2.bf16.msra.mxu0 0
      %905 = vmatprep.subr.bf16.mxu0 0
      %906 = vmatpush2.bf16.msra.mxu0 0
      %907 = vmatprep.subr.bf16.mxu0 0
      %908 = vmatpush2.bf16.msra.mxu0 0
      %909 = vmatprep.subr.bf16.mxu0 0
      %910 = vmatpush2.bf16.msra.mxu0 0
      %911 = vmatprep.subr.bf16.mxu0 0
      %912 = vmatpush2.bf16.msra.mxu0 0
      %913 = vmatprep.mubr.bf16.mxu0 0
      %914 = vmatmul.mubr.bf16.gmra.mxu0 %v876
      %v915 = vpop.f32.mrf.mxu0
      %v916 = vadd.f32 0.0, %v915
      %v917 = vpop.f32.mrf.mxu0
      %v918 = vpop.f32.mrf.mxu0
      %v919 = vadd.f32 0.0, %v918
      %v920 = vpop.f32.mrf.mxu0
      %921 = vdwg.mxu0
      %v922 = vadd.f32 %v863, %v916
      %v923 = vadd.f32 %v864, %v919
      %s924 = scalar_lea.vmem %s3, 40
      %v925 = vld [vmem:[%s924] sm:$0xf]
      %v926 = vld [vmem:[%s924 + $0x4] sm:$0x1]
      %v929 = vunpack.c.l.b16 %v925
      %v930 = vunpack.c.l.b16 %v926
      %v931 = vpack.c.b16 %v930, %v929
      %932 = vrot.lane.b32.xlu0 %v459, 116
      %v933 = vpop.permute.xlu0 %932
      %v935 = vsel %vm282, %v931, 0
      %v938 = vsel %vm286, %v933, 0
      %940 = vmatprep.subr.bf16.mxu0 0
      %941 = vmatpush1.bf16.msra.mxu0 0
      %942 = vmatprep.subr.bf16.mxu0 0
      %943 = vmatpush1.bf16.msra.mxu0 0
      %944 = vmatprep.subr.bf16.mxu0 0
      %945 = vmatpush1.bf16.msra.mxu0 0
      %946 = vmatprep.subr.bf16.mxu0 0
      %947 = vmatpush1.bf16.msra.mxu0 0
      %948 = vmatprep.subr.bf16.mxu0 0
      %949 = vmatpush1.bf16.msra.mxu0 0
      %950 = vmatprep.subr.bf16.mxu0 0
      %951 = vmatpush1.bf16.msra.mxu0 0
      %952 = vmatprep.subr.bf16.mxu0 0
      %953 = vmatpush1.bf16.msra.mxu0 0
      %954 = vmatprep.subr.bf16.mxu0 0
      %955 = vmatpush1.bf16.msra.mxu0 %v938
      %956 = vmatprep.subr.bf16.mxu0 0
      %957 = vmatpush2.bf16.msra.mxu0 0
      %958 = vmatprep.subr.bf16.mxu0 0
      %959 = vmatpush2.bf16.msra.mxu0 0
      %960 = vmatprep.subr.bf16.mxu0 0
      %961 = vmatpush2.bf16.msra.mxu0 0
      %962 = vmatprep.subr.bf16.mxu0 0
      %963 = vmatpush2.bf16.msra.mxu0 0
      %964 = vmatprep.subr.bf16.mxu0 0
      %965 = vmatpush2.bf16.msra.mxu0 0
      %966 = vmatprep.subr.bf16.mxu0 0
      %967 = vmatpush2.bf16.msra.mxu0 0
      %968 = vmatprep.subr.bf16.mxu0 0
      %969 = vmatpush2.bf16.msra.mxu0 0
      %970 = vmatprep.subr.bf16.mxu0 0
      %971 = vmatpush2.bf16.msra.mxu0 0
      %972 = vmatprep.mubr.bf16.mxu0 0
      %973 = vmatmul.mubr.bf16.gmra.mxu0 %v935
      %v974 = vpop.f32.mrf.mxu0
      %v975 = vadd.f32 0.0, %v974
      %v976 = vpop.f32.mrf.mxu0
      %v977 = vpop.f32.mrf.mxu0
      %v978 = vadd.f32 0.0, %v977
      %v979 = vpop.f32.mrf.mxu0
      %980 = vdwg.mxu0
      %v981 = vadd.f32 %v922, %v975
      %v982 = vadd.f32 %v923, %v978
      %s983 = scalar_lea.vmem %s2, 48
      %v984 = vld [vmem:[%s983] sm:$0xf]
      %v985 = vld [vmem:[%s983 + $0x4] sm:$0x1]
      %v988 = vunpack.c.l.b16 %v984
      %v989 = vunpack.c.l.b16 %v985
      %v990 = vpack.c.b16 %v989, %v988
      %991 = vrot.lane.b32.xlu0 %v340, 108
      %v992 = vpop.permute.xlu0 %991
      %v994 = vsel %vm341, %v990, 0
      %v997 = vsel %vm345, %v992, 0
      %999 = vmatprep.subr.bf16.mxu0 0
      %1000 = vmatpush1.bf16.msra.mxu0 0
      %1001 = vmatprep.subr.bf16.mxu0 0
      %1002 = vmatpush1.bf16.msra.mxu0 0
      %1003 = vmatprep.subr.bf16.mxu0 0
      %1004 = vmatpush1.bf16.msra.mxu0 0
      %1005 = vmatprep.subr.bf16.mxu0 0
      %1006 = vmatpush1.bf16.msra.mxu0 0
      %1007 = vmatprep.subr.bf16.mxu0 0
      %1008 = vmatpush1.bf16.msra.mxu0 0
      %1009 = vmatprep.subr.bf16.mxu0 0
      %1010 = vmatpush1.bf16.msra.mxu0 0
      %1011 = vmatprep.subr.bf16.mxu0 0
      %1012 = vmatpush1.bf16.msra.mxu0 0
      %1013 = vmatprep.subr.bf16.mxu0 0
      %1014 = vmatpush1.bf16.msra.mxu0 %v997
      %1015 = vmatprep.subr.bf16.mxu0 0
      %1016 = vmatpush2.bf16.msra.mxu0 0
      %1017 = vmatprep.subr.bf16.mxu0 0
      %1018 = vmatpush2.bf16.msra.mxu0 0
      %1019 = vmatprep.subr.bf16.mxu0 0
      %1020 = vmatpush2.bf16.msra.mxu0 0
      %1021 = vmatprep.subr.bf16.mxu0 0
      %1022 = vmatpush2.bf16.msra.mxu0 0
      %1023 = vmatprep.subr.bf16.mxu0 0
      %1024 = vmatpush2.bf16.msra.mxu0 0
      %1025 = vmatprep.subr.bf16.mxu0 0
      %1026 = vmatpush2.bf16.msra.mxu0 0
      %1027 = vmatprep.subr.bf16.mxu0 0
      %1028 = vmatpush2.bf16.msra.mxu0 0
      %1029 = vmatprep.subr.bf16.mxu0 0
      %1030 = vmatpush2.bf16.msra.mxu0 0
      %1031 = vmatprep.mubr.bf16.mxu0 0
      %1032 = vmatmul.mubr.bf16.gmra.mxu0 %v994
      %v1033 = vpop.f32.mrf.mxu0
      %v1034 = vadd.f32 0.0, %v1033
      %v1035 = vpop.f32.mrf.mxu0
      %v1036 = vpop.f32.mrf.mxu0
      %v1037 = vadd.f32 0.0, %v1036
      %v1038 = vpop.f32.mrf.mxu0
      %1039 = vdwg.mxu0
      %v1040 = vadd.f32 %v981, %v1034
      %v1041 = vadd.f32 %v982, %v1037
      %s1042 = scalar_lea.vmem %s3, 48
      %v1043 = vld [vmem:[%s1042] sm:$0xf]
      %v1044 = vld [vmem:[%s1042 + $0x4] sm:$0x1]
      %v1047 = vunpack.c.l.b16 %v1043
      %v1048 = vunpack.c.l.b16 %v1044
      %v1049 = vpack.c.b16 %v1048, %v1047
      %1050 = vrot.lane.b32.xlu0 %v459, 108
      %v1051 = vpop.permute.xlu0 %1050
      %v1053 = vsel %vm282, %v1049, 0
      %v1056 = vsel %vm286, %v1051, 0
      %1058 = vmatprep.subr.bf16.mxu0 0
      %1059 = vmatpush1.bf16.msra.mxu0 0
      %1060 = vmatprep.subr.bf16.mxu0 0
      %1061 = vmatpush1.bf16.msra.mxu0 0
      %1062 = vmatprep.subr.bf16.mxu0 0
      %1063 = vmatpush1.bf16.msra.mxu0 0
      %1064 = vmatprep.subr.bf16.mxu0 0
      %1065 = vmatpush1.bf16.msra.mxu0 0
      %1066 = vmatprep.subr.bf16.mxu0 0
      %1067 = vmatpush1.bf16.msra.mxu0 0
      %1068 = vmatprep.subr.bf16.mxu0 0
      %1069 = vmatpush1.bf16.msra.mxu0 0
      %1070 = vmatprep.subr.bf16.mxu0 0
      %1071 = vmatpush1.bf16.msra.mxu0 0
      %1072 = vmatprep.subr.bf16.mxu0 0
      %1073 = vmatpush1.bf16.msra.mxu0 %v1056
      %1074 = vmatprep.subr.bf16.mxu0 0
      %1075 = vmatpush2.bf16.msra.mxu0 0
      %1076 = vmatprep.subr.bf16.mxu0 0
      %1077 = vmatpush2.bf16.msra.mxu0 0
      %1078 = vmatprep.subr.bf16.mxu0 0
      %1079 = vmatpush2.bf16.msra.mxu0 0
      %1080 = vmatprep.subr.bf16.mxu0 0
      %1081 = vmatpush2.bf16.msra.mxu0 0
      %1082 = vmatprep.subr.bf16.mxu0 0
      %1083 = vmatpush2.bf16.msra.mxu0 0
      %1084 = vmatprep.subr.bf16.mxu0 0
      %1085 = vmatpush2.bf16.msra.mxu0 0
      %1086 = vmatprep.subr.bf16.mxu0 0
      %1087 = vmatpush2.bf16.msra.mxu0 0
      %1088 = vmatprep.subr.bf16.mxu0 0
      %1089 = vmatpush2.bf16.msra.mxu0 0
      %1090 = vmatprep.mubr.bf16.mxu0 0
      %1091 = vmatmul.mubr.bf16.gmra.mxu0 %v1053
      %v1092 = vpop.f32.mrf.mxu0
      %v1093 = vadd.f32 0.0, %v1092
      %v1094 = vpop.f32.mrf.mxu0
      %v1095 = vpop.f32.mrf.mxu0
      %v1096 = vadd.f32 0.0, %v1095
      %v1097 = vpop.f32.mrf.mxu0
      %1098 = vdwg.mxu0
      %v1099 = vadd.f32 %v1040, %v1093
      %v1100 = vadd.f32 %v1041, %v1096
      %s1101 = scalar_lea.vmem %s2, 56
      %v1102 = vld [vmem:[%s1101] sm:$0xf]
      %v1103 = vld [vmem:[%s1101 + $0x4] sm:$0x1]
      %v1106 = vunpack.c.l.b16 %v1102
      %v1107 = vunpack.c.l.b16 %v1103
      %v1108 = vpack.c.b16 %v1107, %v1106
      %1109 = vrot.lane.b32.xlu0 %v340, 107
      %v1110 = vpop.permute.xlu0 %1109
      %v1112 = vsel %vm341, %v1108, 0
      %v1115 = vsel %vm345, %v1110, 0
      %1117 = vmatprep.subr.bf16.mxu0 0
      %1118 = vmatpush1.bf16.msra.mxu0 0
      %1119 = vmatprep.subr.bf16.mxu0 0
      %1120 = vmatpush1.bf16.msra.mxu0 0
      %1121 = vmatprep.subr.bf16.mxu0 0
      %1122 = vmatpush1.bf16.msra.mxu0 0
      %1123 = vmatprep.subr.bf16.mxu0 0
      %1124 = vmatpush1.bf16.msra.mxu0 0
      %1125 = vmatprep.subr.bf16.mxu0 0
      %1126 = vmatpush1.bf16.msra.mxu0 0
      %1127 = vmatprep.subr.bf16.mxu0 0
      %1128 = vmatpush1.bf16.msra.mxu0 0
      %1129 = vmatprep.subr.bf16.mxu0 0
      %1130 = vmatpush1.bf16.msra.mxu0 0
      %1131 = vmatprep.subr.bf16.mxu0 0
      %1132 = vmatpush1.bf16.msra.mxu0 %v1115
      %1133 = vmatprep.subr.bf16.mxu0 0
      %1134 = vmatpush2.bf16.msra.mxu0 0
      %1135 = vmatprep.subr.bf16.mxu0 0
      %1136 = vmatpush2.bf16.msra.mxu0 0
      %1137 = vmatprep.subr.bf16.mxu0 0
      %1138 = vmatpush2.bf16.msra.mxu0 0
      %1139 = vmatprep.subr.bf16.mxu0 0
      %1140 = vmatpush2.bf16.msra.mxu0 0
      %1141 = vmatprep.subr.bf16.mxu0 0
      %1142 = vmatpush2.bf16.msra.mxu0 0
      %1143 = vmatprep.subr.bf16.mxu0 0
      %1144 = vmatpush2.bf16.msra.mxu0 0
      %1145 = vmatprep.subr.bf16.mxu0 0
      %1146 = vmatpush2.bf16.msra.mxu0 0
      %1147 = vmatprep.subr.bf16.mxu0 0
      %1148 = vmatpush2.bf16.msra.mxu0 0
      %1149 = vmatprep.mubr.bf16.mxu0 0
      %1150 = vmatmul.mubr.bf16.gmra.mxu0 %v1112
      %v1151 = vpop.f32.mrf.mxu0
      %v1152 = vadd.f32 0.0, %v1151
      %v1153 = vpop.f32.mrf.mxu0
      %v1154 = vpop.f32.mrf.mxu0
      %v1155 = vadd.f32 0.0, %v1154
      %v1156 = vpop.f32.mrf.mxu0
      %1157 = vdwg.mxu0
      %v1158 = vadd.f32 %v1099, %v1152
      %v1159 = vadd.f32 %v1100, %v1155
      %s1160 = scalar_lea.vmem %s3, 56
      %v1161 = vld [vmem:[%s1160] sm:$0xf]
      %v1162 = vld [vmem:[%s1160 + $0x4] sm:$0x1]
      %v1165 = vunpack.c.l.b16 %v1161
      %v1166 = vunpack.c.l.b16 %v1162
      %v1167 = vpack.c.b16 %v1166, %v1165
      %1168 = vrot.lane.b32.xlu0 %v459, 107
      %v1169 = vpop.permute.xlu0 %1168
      %v1171 = vsel %vm282, %v1167, 0
      %v1174 = vsel %vm286, %v1169, 0
      %1176 = vmatprep.subr.bf16.mxu0 0
      %1177 = vmatpush1.bf16.msra.mxu0 0
      %1178 = vmatprep.subr.bf16.mxu0 0
      %1179 = vmatpush1.bf16.msra.mxu0 0
      %1180 = vmatprep.subr.bf16.mxu0 0
      %1181 = vmatpush1.bf16.msra.mxu0 0
      %1182 = vmatprep.subr.bf16.mxu0 0
      %1183 = vmatpush1.bf16.msra.mxu0 0
      %1184 = vmatprep.subr.bf16.mxu0 0
      %1185 = vmatpush1.bf16.msra.mxu0 0
      %1186 = vmatprep.subr.bf16.mxu0 0
      %1187 = vmatpush1.bf16.msra.mxu0 0
      %1188 = vmatprep.subr.bf16.mxu0 0
      %1189 = vmatpush1.bf16.msra.mxu0 0
      %1190 = vmatprep.subr.bf16.mxu0 0
      %1191 = vmatpush1.bf16.msra.mxu0 %v1174
      %1192 = vmatprep.subr.bf16.mxu0 0
      %1193 = vmatpush2.bf16.msra.mxu0 0
      %1194 = vmatprep.subr.bf16.mxu0 0
      %1195 = vmatpush2.bf16.msra.mxu0 0
      %1196 = vmatprep.subr.bf16.mxu0 0
      %1197 = vmatpush2.bf16.msra.mxu0 0
      %1198 = vmatprep.subr.bf16.mxu0 0
      %1199 = vmatpush2.bf16.msra.mxu0 0
      %1200 = vmatprep.subr.bf16.mxu0 0
      %1201 = vmatpush2.bf16.msra.mxu0 0
      %1202 = vmatprep.subr.bf16.mxu0 0
      %1203 = vmatpush2.bf16.msra.mxu0 0
      %1204 = vmatprep.subr.bf16.mxu0 0
      %1205 = vmatpush2.bf16.msra.mxu0 0
      %1206 = vmatprep.subr.bf16.mxu0 0
      %1207 = vmatpush2.bf16.msra.mxu0 0
      %1208 = vmatprep.mubr.bf16.mxu0 0
      %1209 = vmatmul.mubr.bf16.gmra.mxu0 %v1171
      %v1210 = vpop.f32.mrf.mxu0
      %v1211 = vadd.f32 0.0, %v1210
      %v1212 = vpop.f32.mrf.mxu0
      %v1213 = vpop.f32.mrf.mxu0
      %v1214 = vadd.f32 0.0, %v1213
      %v1215 = vpop.f32.mrf.mxu0
      %1216 = vdwg.mxu0
      %v1217 = vadd.f32 %v1158, %v1211
      %v1218 = vadd.f32 %v1159, %v1214
      %s1219 = scalar_lea.vmem %s2, 64
      %v1220 = vld [vmem:[%s1219] sm:$0xf]
      %v1221 = vld [vmem:[%s1219 + $0x4] sm:$0x1]
      %v1224 = vunpack.c.l.b16 %v1220
      %v1225 = vunpack.c.l.b16 %v1221
      %v1226 = vpack.c.b16 %v1225, %v1224
      %1227 = vrot.lane.b32.xlu0 %v340, 106
      %v1228 = vpop.permute.xlu0 %1227
      %v1230 = vsel %vm341, %v1226, 0
      %v1233 = vsel %vm345, %v1228, 0
      %1235 = vmatprep.subr.bf16.mxu0 0
      %1236 = vmatpush1.bf16.msra.mxu0 0
      %1237 = vmatprep.subr.bf16.mxu0 0
      %1238 = vmatpush1.bf16.msra.mxu0 0
      %1239 = vmatprep.subr.bf16.mxu0 0
      %1240 = vmatpush1.bf16.msra.mxu0 0
      %1241 = vmatprep.subr.bf16.mxu0 0
      %1242 = vmatpush1.bf16.msra.mxu0 0
      %1243 = vmatprep.subr.bf16.mxu0 0
      %1244 = vmatpush1.bf16.msra.mxu0 0
      %1245 = vmatprep.subr.bf16.mxu0 0
      %1246 = vmatpush1.bf16.msra.mxu0 0
      %1247 = vmatprep.subr.bf16.mxu0 0
      %1248 = vmatpush1.bf16.msra.mxu0 0
      %1249 = vmatprep.subr.bf16.mxu0 0
      %1250 = vmatpush1.bf16.msra.mxu0 %v1233
      %1251 = vmatprep.subr.bf16.mxu0 0
      %1252 = vmatpush2.bf16.msra.mxu0 0
      %1253 = vmatprep.subr.bf16.mxu0 0
      %1254 = vmatpush2.bf16.msra.mxu0 0
      %1255 = vmatprep.subr.bf16.mxu0 0
      %1256 = vmatpush2.bf16.msra.mxu0 0
      %1257 = vmatprep.subr.bf16.mxu0 0
      %1258 = vmatpush2.bf16.msra.mxu0 0
      %1259 = vmatprep.subr.bf16.mxu0 0
      %1260 = vmatpush2.bf16.msra.mxu0 0
      %1261 = vmatprep.subr.bf16.mxu0 0
      %1262 = vmatpush2.bf16.msra.mxu0 0
      %1263 = vmatprep.subr.bf16.mxu0 0
      %1264 = vmatpush2.bf16.msra.mxu0 0
      %1265 = vmatprep.subr.bf16.mxu0 0
      %1266 = vmatpush2.bf16.msra.mxu0 0
      %1267 = vmatprep.mubr.bf16.mxu0 0
      %1268 = vmatmul.mubr.bf16.gmra.mxu0 %v1230
      %v1269 = vpop.f32.mrf.mxu0
      %v1270 = vadd.f32 0.0, %v1269
      %v1271 = vpop.f32.mrf.mxu0
      %v1272 = vpop.f32.mrf.mxu0
      %v1273 = vadd.f32 0.0, %v1272
      %v1274 = vpop.f32.mrf.mxu0
      %1275 = vdwg.mxu0
      %v1276 = vadd.f32 %v1217, %v1270
      %v1277 = vadd.f32 %v1218, %v1273
      %s1278 = scalar_lea.vmem %s3, 64
      %v1279 = vld [vmem:[%s1278] sm:$0xf]
      %v1280 = vld [vmem:[%s1278 + $0x4] sm:$0x1]
      %v1283 = vunpack.c.l.b16 %v1279
      %v1284 = vunpack.c.l.b16 %v1280
      %v1285 = vpack.c.b16 %v1284, %v1283
      %1286 = vrot.lane.b32.xlu0 %v459, 106
      %v1287 = vpop.permute.xlu0 %1286
      %v1289 = vsel %vm282, %v1285, 0
      %v1292 = vsel %vm286, %v1287, 0
      %1294 = vmatprep.subr.bf16.mxu0 0
      %1295 = vmatpush1.bf16.msra.mxu0 0
      %1296 = vmatprep.subr.bf16.mxu0 0
      %1297 = vmatpush1.bf16.msra.mxu0 0
      %1298 = vmatprep.subr.bf16.mxu0 0
      %1299 = vmatpush1.bf16.msra.mxu0 0
      %1300 = vmatprep.subr.bf16.mxu0 0
      %1301 = vmatpush1.bf16.msra.mxu0 0
      %1302 = vmatprep.subr.bf16.mxu0 0
      %1303 = vmatpush1.bf16.msra.mxu0 0
      %1304 = vmatprep.subr.bf16.mxu0 0
      %1305 = vmatpush1.bf16.msra.mxu0 0
      %1306 = vmatprep.subr.bf16.mxu0 0
      %1307 = vmatpush1.bf16.msra.mxu0 0
      %1308 = vmatprep.subr.bf16.mxu0 0
      %1309 = vmatpush1.bf16.msra.mxu0 %v1292
      %1310 = vmatprep.subr.bf16.mxu0 0
      %1311 = vmatpush2.bf16.msra.mxu0 0
      %1312 = vmatprep.subr.bf16.mxu0 0
      %1313 = vmatpush2.bf16.msra.mxu0 0
      %1314 = vmatprep.subr.bf16.mxu0 0
      %1315 = vmatpush2.bf16.msra.mxu0 0
      %1316 = vmatprep.subr.bf16.mxu0 0
      %1317 = vmatpush2.bf16.msra.mxu0 0
      %1318 = vmatprep.subr.bf16.mxu0 0
      %1319 = vmatpush2.bf16.msra.mxu0 0
      %1320 = vmatprep.subr.bf16.mxu0 0
      %1321 = vmatpush2.bf16.msra.mxu0 0
      %1322 = vmatprep.subr.bf16.mxu0 0
      %1323 = vmatpush2.bf16.msra.mxu0 0
      %1324 = vmatprep.subr.bf16.mxu0 0
      %1325 = vmatpush2.bf16.msra.mxu0 0
      %1326 = vmatprep.mubr.bf16.mxu0 0
      %1327 = vmatmul.mubr.bf16.gmra.mxu0 %v1289
      %v1328 = vpop.f32.mrf.mxu0
      %v1329 = vadd.f32 0.0, %v1328
      %v1330 = vpop.f32.mrf.mxu0
      %v1331 = vpop.f32.mrf.mxu0
      %v1332 = vadd.f32 0.0, %v1331
      %v1333 = vpop.f32.mrf.mxu0
      %1334 = vdwg.mxu0
      %v1335 = vadd.f32 %v1276, %v1329
      %v1336 = vadd.f32 %v1277, %v1332
      %v1337 = vld [vmem:[%s4] sm:$0xff]
      %v1338 = vld [vmem:[%s4 + $0x8] sm:$0x3]
      %1340 = vset.pattern.permute.xlu0 0
      %1341 = vperm.xlu0 %1340, %v1337
      %v1342 = vpop.permute.xlu0 %1341
      %1345 = vset.pattern.permute.xlu0 0
      %1346 = vperm.xlu0 %1345, %v1338
      %v1347 = vpop.permute.xlu0 %1346
      %v1349 = vmul.f32 %v1335, %v1342
      %v1350 = vmul.f32 %v1336, %v1347
      %v1351 = vld [vmem:[%s5] sm:$0xff]
      %v1352 = vld [vmem:[%s5 + $0x8] sm:$0x3]
      %1354 = vset.pattern.permute.xlu0 0
      %1355 = vperm.xlu0 %1354, %v1351
      %v1356 = vpop.permute.xlu0 %1355
      %1359 = vset.pattern.permute.xlu0 0
      %1360 = vperm.xlu0 %1359, %v1352
      %v1361 = vpop.permute.xlu0 %1360
      %v1363 = vadd.f32 %v1349, %v1356
      %v1364 = vadd.f32 %v1350, %v1361
      %v1365 = vmax.f32 %v1363, 0.0
      %v1366 = vmax.f32 %v1364, 0.0
      %vm1367 = vcmask 654336
      %1368 = vst.msk [vmem:[%s268] sm:$0xff] %vm1367, %v1365
      %vm1369 = vcmask 648192
      %1370 = vst.msk [vmem:[%s268 + $0x8] sm:$0x3] %vm1369, %v1366
      %p1371 = scmp.lt.s32.totalorder %s17, 1
      %s1372 = scalar_select %p1371, %s17, 1
      %s1373 = smul.addr %s1372, 2
      %s1374 = smul.addr %s1373, 8
      %s1375 = scalar_lea.vmem %s6, %s1374
      // Predicated region
      $region45: #{decoder_forward.5} parent=43 // pred_check
        %p1376 = pneg %p171
      $region46: #{decoder_forward.5} parent=43 // pred_check_branch
        %1378 = sbr.rel (%p1376) target = $region48
      $region47: #{decoder_forward.5} parent=43 // pred_region
        _
      $region48: #{decoder_forward.5} parent=43 // pred_fallthru
        _
    $region44: #{decoder_forward.5} parent=5 // pred_fallthru
      _
    %p1379 = scmp.le.s32.totalorder 2, %s12
    // Predicated region
    $region49: #{decoder_forward.5} parent=5 // pred_check
      %p1380 = pneg %p1379
    $region50: #{decoder_forward.5} parent=5 // pred_check_branch
      %1382 = sbr.rel (%p1380) target = $region52
    $region51: #{decoder_forward.5} parent=5 // pred_region
      %s1383 = ssub.s32 %s12, 2
      // Predicated region
      $region53: #{decoder_forward.5} parent=51 // pred_check
        %p1384 = pneg %p177
      $region54: #{decoder_forward.5} parent=51 // pred_check_branch
        %1386 = sbr.rel (%p1384) target = $region56
      $region55: #{decoder_forward.5} parent=51 // pred_region
        %p1387 = scmp.lt.s32.totalorder %s18, 1
        %s1388 = scalar_select %p1387, %s18, 1
        %s1389 = smul.addr %s1388, 2
        %s1390 = smul.addr %s1389, 8
        %s1391 = scalar_lea.vmem %s6, %s1390
      $region56: #{decoder_forward.5} parent=51 // pred_fallthru
        _
    $region52: #{decoder_forward.5} parent=5 // pred_fallthru
      _
  $region6: #{decoder_forward.5} parent=0 // loop_footer
    %s16 = sadd.s32 1, %s12
  $region7: #{decoder_forward.5} parent=0 // loop_footer_branch
    %11 = sbr.rel target = $region3
  $region8: #{decoder_forward.5} parent=0 // loop_exit
    _

// kernel: decoder_forward.6
$region0: #{decoder_forward.6}
  #allocation0 [shape = 'u32[]', space=smem, size = 0x4, offset = 0x4, fixed_abs, tag = 'smem constant byte address 0x4 - core index']
  #allocation1 [shape = 'u32[144,128]{1,0:T(1,128)}', space=vmem, size = 0x12000, scoped, tag = 'internal scratch']
  %s0 = inlined_call_operand.vmem [shape: bf16[2,10,342], index: 0, kind: input, shape index: {}]
  %s1 = inlined_call_operand.vmem [shape: bf16[2,6,342], index: 1, kind: input, shape index: {}]
  %s2 = inlined_call_operand.vmem [shape: bf16[9,8,10], index: 2, kind: input, shape index: {}]
  %s3 = inlined_call_operand.vmem [shape: bf16[9,8,6], index: 3, kind: input, shape index: {}]
  %s4 = inlined_call_operand.vmem [shape: f32[8,1], index: 4, kind: input, shape index: {}]
  %s5 = inlined_call_operand.vmem [shape: f32[8,1], index: 5, kind: input, shape index: {}]
  %s6 = inlined_call_operand.vmem [shape: f32[2,8,288], index: 6, kind: output, shape index: {}]
  %s7 = sld [smem:[#allocation0]]
  $region57: #{decoder_forward.6} parent=0
    _
  %s9 = ssub.s32 1, %s7
  %s10 = scalar_select 0, %s9, %s7
  loop: start=0, step=1, limit=4
  $region2: #{decoder_forward.6} parent=0 // loop_pre_header
    _
  $region3: #{decoder_forward.6} parent=0 // loop_header
    %s12 = sphi 0, %s16
    %p13 = scmp.ge.s32.totalorder %s12, 4
    %s22 = sphi 0, %s24
    %s25 = sphi 0, %s22
    %s26 = sphi 0, %s25
    %s42 = sphi 0, %s26
    %s48 = sphi 0, %s50
    %s51 = sphi 0, %s48
    %s52 = sphi 0, %s51
    %s68 = sphi 0, %s52
    %s72 = sphi 0, %s72
    %s74 = sphi 0, %s72
    %s75 = sphi 0, %s74
    %s89 = sphi 0, %s75
    %s93 = sphi 0, %s93
    %s95 = sphi 0, %s93
    %s96 = sphi 0, %s95
    %s110 = sphi 0, %s96
    %s114 = sphi 0, %s114
    %s116 = sphi 0, %s114
    %s117 = sphi 0, %s116
    %s131 = sphi 0, %s117
    %s135 = sphi 0, %s135
    %s137 = sphi 0, %s135
    %s138 = sphi 0, %s137
    %s152 = sphi 0, %s138
    %s158 = sphi 0, %s160
    %s161 = sphi 0, %s158
    %s162 = sphi 0, %s161
    %s178 = sphi 0, %s162
  $region4: #{decoder_forward.6} parent=0 // loop_header_branch
    %15 = sbr.rel (%p13) target = $region8
  $region5: #{decoder_forward.6} parent=0 // loop_body
    %s17 = ssub.s32 %s12, 1
    %s18 = ssub.s32 %s12, 2
    %s19 = sadd.s32 %s12, 1
    %s20 = ssub.s32 %s12, %s19
    %p21 = scmp.eq.s32.totalorder %s20, 0
    %s23 = sadd.s32 %s22, 1
    %s24 = scalar_select %p21, %s22, %s23
    %p27 = pneg %p21
    %p28 = scmp.eq.s32.totalorder %s12, 1
    %p29 = por %p27, %p28
    %p30 = scmp.ne.s32.totalorder %s22, %s25
    %p31 = scmp.eq.s32.totalorder %s12, 0
    %p32 = por %p30, %p31
    %p33 = scmp.ne.s32.totalorder %s22, %s25
    %p34 = scmp.eq.s32.totalorder %s17, 1
    %p35 = por %p33, %p34
    %p36 = scmp.ne.s32.totalorder %s25, %s26
    %p37 = scmp.eq.s32.totalorder %s17, 0
    %p38 = por %p36, %p37
    %p39 = scmp.ne.s32.totalorder %s25, %s26
    %p40 = scmp.eq.s32.totalorder %s18, 1
    %p41 = por %p39, %p40
    %p43 = scmp.ne.s32.totalorder %s26, %s42
    %p44 = scmp.eq.s32.totalorder %s18, 0
    %p45 = por %p43, %p44
    %s46 = ssub.s32 %s12, %s19
    %p47 = scmp.eq.s32.totalorder %s46, 0
    %s49 = sadd.s32 %s48, 1
    %s50 = scalar_select %p47, %s48, %s49
    %p53 = pneg %p47
    %p54 = scmp.eq.s32.totalorder %s12, 1
    %p55 = por %p53, %p54
    %p56 = scmp.ne.s32.totalorder %s48, %s51
    %p57 = scmp.eq.s32.totalorder %s12, 0
    %p58 = por %p56, %p57
    %p59 = scmp.ne.s32.totalorder %s48, %s51
    %p60 = scmp.eq.s32.totalorder %s17, 1
    %p61 = por %p59, %p60
    %p62 = scmp.ne.s32.totalorder %s51, %s52
    %p63 = scmp.eq.s32.totalorder %s17, 0
    %p64 = por %p62, %p63
    %p65 = scmp.ne.s32.totalorder %s51, %s52
    %p66 = scmp.eq.s32.totalorder %s18, 1
    %p67 = por %p65, %p66
    %p69 = scmp.ne.s32.totalorder %s52, %s68
    %p70 = scmp.eq.s32.totalorder %s18, 0
    %p71 = por %p69, %p70
    %s73 = sadd.s32 %s72, 1
    %p76 = scmp.eq.s32.totalorder %s12, 1
    %p77 = scmp.ne.s32.totalorder %s72, %s74
    %p78 = scmp.eq.s32.totalorder %s12, 0
    %p79 = por %p77, %p78
    %p80 = scmp.ne.s32.totalorder %s72, %s74
    %p81 = scmp.eq.s32.totalorder %s17, 1
    %p82 = por %p80, %p81
    %p83 = scmp.ne.s32.totalorder %s74, %s75
    %p84 = scmp.eq.s32.totalorder %s17, 0
    %p85 = por %p83, %p84
    %p86 = scmp.ne.s32.totalorder %s74, %s75
    %p87 = scmp.eq.s32.totalorder %s18, 1
    %p88 = por %p86, %p87
    %p90 = scmp.ne.s32.totalorder %s75, %s89
    %p91 = scmp.eq.s32.totalorder %s18, 0
    %p92 = por %p90, %p91
    %s94 = sadd.s32 %s93, 1
    %p97 = scmp.eq.s32.totalorder %s12, 1
    %p98 = scmp.ne.s32.totalorder %s93, %s95
    %p99 = scmp.eq.s32.totalorder %s12, 0
    %p100 = por %p98, %p99
    %p101 = scmp.ne.s32.totalorder %s93, %s95
    %p102 = scmp.eq.s32.totalorder %s17, 1
    %p103 = por %p101, %p102
    %p104 = scmp.ne.s32.totalorder %s95, %s96
    %p105 = scmp.eq.s32.totalorder %s17, 0
    %p106 = por %p104, %p105
    %p107 = scmp.ne.s32.totalorder %s95, %s96
    %p108 = scmp.eq.s32.totalorder %s18, 1
    %p109 = por %p107, %p108
    %p111 = scmp.ne.s32.totalorder %s96, %s110
    %p112 = scmp.eq.s32.totalorder %s18, 0
    %p113 = por %p111, %p112
    %s115 = sadd.s32 %s114, 1
    %p118 = scmp.eq.s32.totalorder %s12, 1
    %p119 = scmp.ne.s32.totalorder %s114, %s116
    %p120 = scmp.eq.s32.totalorder %s12, 0
    %p121 = por %p119, %p120
    %p122 = scmp.ne.s32.totalorder %s114, %s116
    %p123 = scmp.eq.s32.totalorder %s17, 1
    %p124 = por %p122, %p123
    %p125 = scmp.ne.s32.totalorder %s116, %s117
    %p126 = scmp.eq.s32.totalorder %s17, 0
    %p127 = por %p125, %p126
    %p128 = scmp.ne.s32.totalorder %s116, %s117
    %p129 = scmp.eq.s32.totalorder %s18, 1
    %p130 = por %p128, %p129
    %p132 = scmp.ne.s32.totalorder %s117, %s131
    %p133 = scmp.eq.s32.totalorder %s18, 0
    %p134 = por %p132, %p133
    %s136 = sadd.s32 %s135, 1
    %p139 = scmp.eq.s32.totalorder %s12, 1
    %p140 = scmp.ne.s32.totalorder %s135, %s137
    %p141 = scmp.eq.s32.totalorder %s12, 0
    %p142 = por %p140, %p141
    %p143 = scmp.ne.s32.totalorder %s135, %s137
    %p144 = scmp.eq.s32.totalorder %s17, 1
    %p145 = por %p143, %p144
    %p146 = scmp.ne.s32.totalorder %s137, %s138
    %p147 = scmp.eq.s32.totalorder %s17, 0
    %p148 = por %p146, %p147
    %p149 = scmp.ne.s32.totalorder %s137, %s138
    %p150 = scmp.eq.s32.totalorder %s18, 1
    %p151 = por %p149, %p150
    %p153 = scmp.ne.s32.totalorder %s138, %s152
    %p154 = scmp.eq.s32.totalorder %s18, 0
    %p155 = por %p153, %p154
    %s156 = ssub.s32 %s12, %s19
    %p157 = scmp.eq.s32.totalorder %s156, 0
    %s159 = sadd.s32 %s158, 1
    %s160 = scalar_select %p157, %s158, %s159
    %p163 = pneg %p157
    %p164 = scmp.eq.s32.totalorder %s12, 1
    %p165 = por %p163, %p164
    %p166 = scmp.ne.s32.totalorder %s158, %s161
    %p167 = scmp.eq.s32.totalorder %s12, 0
    %p168 = por %p166, %p167
    %p169 = scmp.ne.s32.totalorder %s158, %s161
    %p170 = scmp.eq.s32.totalorder %s17, 1
    %p171 = por %p169, %p170
    %p172 = scmp.ne.s32.totalorder %s161, %s162
    %p173 = scmp.eq.s32.totalorder %s17, 0
    %p174 = por %p172, %p173
    %p175 = scmp.ne.s32.totalorder %s161, %s162
    %p176 = scmp.eq.s32.totalorder %s18, 1
    %p177 = por %p175, %p176
    %p179 = scmp.ne.s32.totalorder %s162, %s178
    %p180 = scmp.eq.s32.totalorder %s18, 0
    %p181 = por %p179, %p180
    %p182 = scmp.le.s32.totalorder 1, %s12
    %p183 = scmp.lt.s32.totalorder %s12, 3
    %p184 = pnand %p182, %p183
    %p185 = pneg %p184
    // Predicated region
    $region9: #{decoder_forward.6} parent=5 // pred_check
      _
    $region10: #{decoder_forward.6} parent=5 // pred_check_branch
      %187 = sbr.rel (%p184) target = $region12
    $region11: #{decoder_forward.6} parent=5 // pred_region
      %s188 = ssub.s32 %s12, 1
      // Predicated region
      $region13: #{decoder_forward.6} parent=11 // pred_check
        %p189 = pneg %p85
      $region14: #{decoder_forward.6} parent=11 // pred_check_branch
        %191 = sbr.rel (%p189) target = $region16
      $region15: #{decoder_forward.6} parent=11 // pred_region
        _
      $region16: #{decoder_forward.6} parent=11 // pred_fallthru
        _
      // Predicated region
      $region17: #{decoder_forward.6} parent=11 // pred_check
        %p192 = pneg %p106
      $region18: #{decoder_forward.6} parent=11 // pred_check_branch
        %194 = sbr.rel (%p192) target = $region20
      $region19: #{decoder_forward.6} parent=11 // pred_region
        _
      $region20: #{decoder_forward.6} parent=11 // pred_fallthru
        _
      // Predicated region
      $region21: #{decoder_forward.6} parent=11 // pred_check
        %p195 = pneg %p127
      $region22: #{decoder_forward.6} parent=11 // pred_check_branch
        %197 = sbr.rel (%p195) target = $region24
      $region23: #{decoder_forward.6} parent=11 // pred_region
        _
      $region24: #{decoder_forward.6} parent=11 // pred_fallthru
        _
      // Predicated region
      $region25: #{decoder_forward.6} parent=11 // pred_check
        %p198 = pneg %p148
      $region26: #{decoder_forward.6} parent=11 // pred_check_branch
        %200 = sbr.rel (%p198) target = $region28
      $region27: #{decoder_forward.6} parent=11 // pred_region
        _
      $region28: #{decoder_forward.6} parent=11 // pred_fallthru
        _
    $region12: #{decoder_forward.6} parent=5 // pred_fallthru
      _
    %p201 = scmp.lt.s32.totalorder %s12, 2
    // Predicated region
    $region29: #{decoder_forward.6} parent=5 // pred_check
      %p202 = pneg %p201
    $region30: #{decoder_forward.6} parent=5 // pred_check_branch
      %204 = sbr.rel (%p202) target = $region32
    $region31: #{decoder_forward.6} parent=5 // pred_region
      // Predicated region
      $region33: #{decoder_forward.6} parent=31 // pred_check
        %p205 = pneg %p32
      $region34: #{decoder_forward.6} parent=31 // pred_check_branch
        %207 = sbr.rel (%p205) target = $region36
      $region35: #{decoder_forward.6} parent=31 // pred_region
        %p208 = scmp.lt.s32.totalorder %s12, 1
        %s209 = scalar_select %p208, %s12, 1
        %s210 = smul.addr %s209, 6
        %s211 = smul.addr %s210, 4
        %s212 = scalar_lea.vmem %s0, %s211
      $region36: #{decoder_forward.6} parent=31 // pred_fallthru
        _
      // Predicated region
      $region37: #{decoder_forward.6} parent=31 // pred_check
        %p213 = pneg %p58
      $region38: #{decoder_forward.6} parent=31 // pred_check_branch
        %215 = sbr.rel (%p213) target = $region40
      $region39: #{decoder_forward.6} parent=31 // pred_region
        %p216 = scmp.lt.s32.totalorder %s12, 1
        %s217 = scalar_select %p216, %s12, 1
        %s218 = smul.addr %s217, 3
        %s219 = smul.addr %s218, 4
        %s220 = scalar_lea.vmem %s1, %s219
      $region40: #{decoder_forward.6} parent=31 // pred_fallthru
        _
    $region32: #{decoder_forward.6} parent=5 // pred_fallthru
      _
    %p221 = scmp.le.s32.totalorder 1, %s12
    %p222 = scmp.lt.s32.totalorder %s12, 3
    %p223 = pnand %p221, %p222
    %p224 = pneg %p223
    // Predicated region
    $region41: #{decoder_forward.6} parent=5 // pred_check
      _
    $region42: #{decoder_forward.6} parent=5 // pred_check_branch
      %226 = sbr.rel (%p223) target = $region44
    $region43: #{decoder_forward.6} parent=5 // pred_region
      %s227 = ssub.s32 %s12, 1
      %p228 = scmp.lt.s32.totalorder %s17, 1
      %s229 = scalar_select %p228, %s17, 1
      %s230 = smul.addr %s229, 6
      %s231 = smul.addr %s230, 4
      %s232 = scalar_lea.vmem %s0, %s231
      %p233 = pneg %p38
      %p234 = pneg %p35
      %p235 = scmp.lt.s32.totalorder %s17, 1
      %s236 = scalar_select %p235, %s17, 1
      %s237 = smul.addr %s236, 3
      %s238 = smul.addr %s237, 4
      %s239 = scalar_lea.vmem %s1, %s238
      %p240 = pneg %p64
      %p241 = pneg %p61
      %p242 = pneg %p85
      %p243 = pneg %p82
      %p244 = pneg %p106
      %p245 = pneg %p103
      %p246 = pneg %p127
      %p247 = pneg %p124
      %p248 = pneg %p148
      %p249 = pneg %p145
      %p250 = pneg %p174
      %p251 = pneg %p171
      %p252 = scmp.lt.s32.totalorder %s17, 1
      %s253 = scalar_select %p252, %s17, 1
      %s254 = smul.addr %s253, 3
      %s255 = smul.addr %s254, 8
      %s256 = scalar_lea.vmem %s6, %s255
      %p257 = scmp.lt.s32.totalorder %s17, 1
      %s258 = scalar_select %p257, %s17, 1
      %s259 = smul.addr %s258, 6
      %s260 = smul.addr %s259, 4
      %s261 = scalar_lea.vmem %s0, %s260
      %p262 = scmp.lt.s32.totalorder %s17, 1
      %s263 = scalar_select %p262, %s17, 1
      %s264 = smul.addr %s263, 3
      %s265 = smul.addr %s264, 4
      %s266 = scalar_lea.vmem %s1, %s265
      %p267 = scmp.lt.s32.totalorder %s17, 1
      %s268 = scalar_select %p267, %s17, 1
      %s269 = smul.addr %s268, 3
      %s270 = smul.addr %s269, 8
      %s271 = scalar_lea.vmem %s6, %s270
      %v273 = vld [vmem:[%s261] sm:$0xff]
      %v274 = vld [vmem:[%s261 + $0x8] sm:$0xf]
      %v275 = vld [vmem:[%s261 + $0xc] sm:$0x11]
      %v276 = vld [vmem:[%s261 + $0x14] sm:$0x1]
      %v277 = vld [vmem:[%s266] sm:$0x77]
      %v278 = vld [vmem:[%s266 + $0x8] sm:$0x7]
      %v279 = vld [vmem:[%s2] sm:$0xf]
      %v280 = vld [vmem:[%s3] sm:$0xf]
      %v283 = vunpack.c.l.b16 %v277
      %v284 = vunpack.c.h.b16 %v277
      %v285 = vunpack.c.l.b16 %v278
      %v286 = vpack.c.b16 %v283, %v283
      %v287 = vpack.c.b16 %v284, %v284
      %v288 = vpack.c.b16 %v285, %v285
      %vm289 = vcmask 48128
      %v291 = vsel %vm289, %v280, 0
      %vm293 = vcmask 1042432
      %v295 = vsel %vm293, %v286, 0
      %v298 = vsel %vm293, %v287, 0
      %v301 = vsel %vm293, %v288, 0
      %303 = vmatprep.subr.bf16.mxu0 0
      %304 = vmatpush1.bf16.msra.mxu0 0
      %305 = vmatprep.subr.bf16.mxu0 0
      %306 = vmatpush1.bf16.msra.mxu0 0
      %307 = vmatprep.subr.bf16.mxu0 0
      %308 = vmatpush1.bf16.msra.mxu0 0
      %309 = vmatprep.subr.bf16.mxu0 0
      %310 = vmatpush1.bf16.msra.mxu0 0
      %311 = vmatprep.subr.bf16.mxu0 0
      %312 = vmatpush1.bf16.msra.mxu0 0
      %313 = vmatprep.subr.bf16.mxu0 0
      %314 = vmatpush1.bf16.msra.mxu0 0
      %315 = vmatprep.subr.bf16.mxu0 0
      %316 = vmatpush1.bf16.msra.mxu0 0
      %317 = vmatprep.subr.bf16.mxu0 %v298
      %318 = vmatpush1.bf16.msra.mxu0 %v295
      %319 = vmatprep.subr.bf16.mxu0 0
      %320 = vmatpush2.bf16.msra.mxu0 0
      %321 = vmatprep.subr.bf16.mxu0 0
      %322 = vmatpush2.bf16.msra.mxu0 0
      %323 = vmatprep.subr.bf16.mxu0 0
      %324 = vmatpush2.bf16.msra.mxu0 0
      %325 = vmatprep.subr.bf16.mxu0 0
      %326 = vmatpush2.bf16.msra.mxu0 0
      %327 = vmatprep.subr.bf16.mxu0 0
      %328 = vmatpush2.bf16.msra.mxu0 0
      %329 = vmatprep.subr.bf16.mxu0 0
      %330 = vmatpush2.bf16.msra.mxu0 0
      %331 = vmatprep.subr.bf16.mxu0 0
      %332 = vmatpush2.bf16.msra.mxu0 0
      %333 = vmatprep.subr.bf16.mxu0 0
      %334 = vmatpush2.bf16.msra.mxu0 0
      %335 = vmatprep.mubr.bf16.mxu0 0
      %336 = vmatmul.mubr.bf16.gmra.mxu0 %v291
      %v337 = vpop.f32.mrf.mxu0
      %v338 = vadd.f32 0.0, %v337
      %v339 = vpop.f32.mrf.mxu0
      %v340 = vadd.f32 0.0, %v339
      %v341 = vpop.f32.mrf.mxu0
      %v342 = vpop.f32.mrf.mxu0
      %343 = vdwg.mxu0
      %344 = vmatprep.subr.bf16.mxu0 0
      %345 = vmatpush1.bf16.msra.mxu0 0
      %346 = vmatprep.subr.bf16.mxu0 0
      %347 = vmatpush1.bf16.msra.mxu0 0
      %348 = vmatprep.subr.bf16.mxu0 0
      %349 = vmatpush1.bf16.msra.mxu0 0
      %350 = vmatprep.subr.bf16.mxu0 0
      %351 = vmatpush1.bf16.msra.mxu0 0
      %352 = vmatprep.subr.bf16.mxu0 0
      %353 = vmatpush1.bf16.msra.mxu0 0
      %354 = vmatprep.subr.bf16.mxu0 0
      %355 = vmatpush1.bf16.msra.mxu0 0
      %356 = vmatprep.subr.bf16.mxu0 0
      %357 = vmatpush1.bf16.msra.mxu0 0
      %358 = vmatprep.subr.bf16.mxu0 0
      %359 = vmatpush1.bf16.msra.mxu0 %v301
      %360 = vmatprep.subr.bf16.mxu0 0
      %361 = vmatpush2.bf16.msra.mxu0 0
      %362 = vmatprep.subr.bf16.mxu0 0
      %363 = vmatpush2.bf16.msra.mxu0 0
      %364 = vmatprep.subr.bf16.mxu0 0
      %365 = vmatpush2.bf16.msra.mxu0 0
      %366 = vmatprep.subr.bf16.mxu0 0
      %367 = vmatpush2.bf16.msra.mxu0 0
      %368 = vmatprep.subr.bf16.mxu0 0
      %369 = vmatpush2.bf16.msra.mxu0 0
      %370 = vmatprep.subr.bf16.mxu0 0
      %371 = vmatpush2.bf16.msra.mxu0 0
      %372 = vmatprep.subr.bf16.mxu0 0
      %373 = vmatpush2.bf16.msra.mxu0 0
      %374 = vmatprep.subr.bf16.mxu0 0
      %375 = vmatpush2.bf16.msra.mxu0 0
      %376 = vmatprep.mubr.bf16.mxu0 0
      %377 = vmatmul.mubr.bf16.gmra.mxu0 %v291
      %v378 = vpop.f32.mrf.mxu0
      %v379 = vadd.f32 0.0, %v378
      %v380 = vpop.f32.mrf.mxu0
      %v381 = vpop.f32.mrf.mxu0
      %v382 = vpop.f32.mrf.mxu0
      %383 = vdwg.mxu0
      %v388 = vunpack.c.l.b16 %v273
      %v389 = vunpack.c.h.b16 %v273
      %v390 = vunpack.c.l.b16 %v274
      %v391 = vunpack.c.l.b16 %v275
      %v392 = vunpack.c.h.b16 %v275
      %v393 = vunpack.c.l.b16 %v276
      %v394 = vpack.c.b16 %v391, %v388
      %v395 = vpack.c.b16 %v392, %v389
      %v396 = vpack.c.b16 %v393, %v390
      %vm397 = vcmask 80896
      %v399 = vsel %vm397, %v279, 0
      %vm401 = vcmask 1044480
      %v403 = vsel %vm401, %v394, 0
      %v406 = vsel %vm401, %v395, 0
      %v409 = vsel %vm401, %v396, 0
      %411 = vmatprep.subr.bf16.mxu0 0
      %412 = vmatpush1.bf16.msra.mxu0 0
      %413 = vmatprep.subr.bf16.mxu0 0
      %414 = vmatpush1.bf16.msra.mxu0 0
      %415 = vmatprep.subr.bf16.mxu0 0
      %416 = vmatpush1.bf16.msra.mxu0 0
      %417 = vmatprep.subr.bf16.mxu0 0
      %418 = vmatpush1.bf16.msra.mxu0 0
      %419 = vmatprep.subr.bf16.mxu0 0
      %420 = vmatpush1.bf16.msra.mxu0 0
      %421 = vmatprep.subr.bf16.mxu0 0
      %422 = vmatpush1.bf16.msra.mxu0 0
      %423 = vmatprep.subr.bf16.mxu0 0
      %424 = vmatpush1.bf16.msra.mxu0 0
      %425 = vmatprep.subr.bf16.mxu0 %v406
      %426 = vmatpush1.bf16.msra.mxu0 %v403
      %427 = vmatprep.subr.bf16.mxu0 0
      %428 = vmatpush2.bf16.msra.mxu0 0
      %429 = vmatprep.subr.bf16.mxu0 0
      %430 = vmatpush2.bf16.msra.mxu0 0
      %431 = vmatprep.subr.bf16.mxu0 0
      %432 = vmatpush2.bf16.msra.mxu0 0
      %433 = vmatprep.subr.bf16.mxu0 0
      %434 = vmatpush2.bf16.msra.mxu0 0
      %435 = vmatprep.subr.bf16.mxu0 0
      %436 = vmatpush2.bf16.msra.mxu0 0
      %437 = vmatprep.subr.bf16.mxu0 0
      %438 = vmatpush2.bf16.msra.mxu0 0
      %439 = vmatprep.subr.bf16.mxu0 0
      %440 = vmatpush2.bf16.msra.mxu0 0
      %441 = vmatprep.subr.bf16.mxu0 0
      %442 = vmatpush2.bf16.msra.mxu0 0
      %443 = vmatprep.mubr.bf16.mxu0 0
      %444 = vmatmul.mubr.bf16.gmra.mxu0 %v399
      %v445 = vpop.f32.mrf.mxu0
      %v446 = vadd.f32 %v338, %v445
      %v447 = vpop.f32.mrf.mxu0
      %v448 = vadd.f32 %v340, %v447
      %v449 = vpop.f32.mrf.mxu0
      %v450 = vpop.f32.mrf.mxu0
      %451 = vdwg.mxu0
      %452 = vmatprep.subr.bf16.mxu0 0
      %453 = vmatpush1.bf16.msra.mxu0 0
      %454 = vmatprep.subr.bf16.mxu0 0
      %455 = vmatpush1.bf16.msra.mxu0 0
      %456 = vmatprep.subr.bf16.mxu0 0
      %457 = vmatpush1.bf16.msra.mxu0 0
      %458 = vmatprep.subr.bf16.mxu0 0
      %459 = vmatpush1.bf16.msra.mxu0 0
      %460 = vmatprep.subr.bf16.mxu0 0
      %461 = vmatpush1.bf16.msra.mxu0 0
      %462 = vmatprep.subr.bf16.mxu0 0
      %463 = vmatpush1.bf16.msra.mxu0 0
      %464 = vmatprep.subr.bf16.mxu0 0
      %465 = vmatpush1.bf16.msra.mxu0 0
      %466 = vmatprep.subr.bf16.mxu0 0
      %467 = vmatpush1.bf16.msra.mxu0 %v409
      %468 = vmatprep.subr.bf16.mxu0 0
      %469 = vmatpush2.bf16.msra.mxu0 0
      %470 = vmatprep.subr.bf16.mxu0 0
      %471 = vmatpush2.bf16.msra.mxu0 0
      %472 = vmatprep.subr.bf16.mxu0 0
      %473 = vmatpush2.bf16.msra.mxu0 0
      %474 = vmatprep.subr.bf16.mxu0 0
      %475 = vmatpush2.bf16.msra.mxu0 0
      %476 = vmatprep.subr.bf16.mxu0 0
      %477 = vmatpush2.bf16.msra.mxu0 0
      %478 = vmatprep.subr.bf16.mxu0 0
      %479 = vmatpush2.bf16.msra.mxu0 0
      %480 = vmatprep.subr.bf16.mxu0 0
      %481 = vmatpush2.bf16.msra.mxu0 0
      %482 = vmatprep.subr.bf16.mxu0 0
      %483 = vmatpush2.bf16.msra.mxu0 0
      %484 = vmatprep.mubr.bf16.mxu0 0
      %485 = vmatmul.mubr.bf16.gmra.mxu0 %v399
      %v486 = vpop.f32.mrf.mxu0
      %v487 = vadd.f32 %v379, %v486
      %v488 = vpop.f32.mrf.mxu0
      %v489 = vpop.f32.mrf.mxu0
      %v490 = vpop.f32.mrf.mxu0
      %491 = vdwg.mxu0
      %s492 = scalar_lea.vmem %s2, 4
      %v493 = vld [vmem:[%s492] sm:$0xf]
      %494 = vrot.lane.b32.xlu0 %v394, 127
      %v495 = vpop.permute.xlu0 %494
      %496 = vrot.lane.b32.xlu0 %v395, 127
      %v497 = vpop.permute.xlu0 %496
      %498 = vrot.lane.b32.xlu0 %v396, 127
      %v499 = vpop.permute.xlu0 %498
      %vm500 = vcmask 1039360
      %v501 = vsel %vm500, %v495, %v497
      %v502 = vsel %vm500, %v497, %v499
      %v504 = vsel %vm397, %v493, 0
      %v507 = vsel %vm401, %v501, 0
      %v510 = vsel %vm401, %v502, 0
      %v513 = vsel %vm401, %v499, 0
      %515 = vmatprep.subr.bf16.mxu0 0
      %516 = vmatpush1.bf16.msra.mxu0 0
      %517 = vmatprep.subr.bf16.mxu0 0
      %518 = vmatpush1.bf16.msra.mxu0 0
      %519 = vmatprep.subr.bf16.mxu0 0
      %520 = vmatpush1.bf16.msra.mxu0 0
      %521 = vmatprep.subr.bf16.mxu0 0
      %522 = vmatpush1.bf16.msra.mxu0 0
      %523 = vmatprep.subr.bf16.mxu0 0
      %524 = vmatpush1.bf16.msra.mxu0 0
      %525 = vmatprep.subr.bf16.mxu0 0
      %526 = vmatpush1.bf16.msra.mxu0 0
      %527 = vmatprep.subr.bf16.mxu0 0
      %528 = vmatpush1.bf16.msra.mxu0 0
      %529 = vmatprep.subr.bf16.mxu0 %v510
      %530 = vmatpush1.bf16.msra.mxu0 %v507
      %531 = vmatprep.subr.bf16.mxu0 0
      %532 = vmatpush2.bf16.msra.mxu0 0
      %533 = vmatprep.subr.bf16.mxu0 0
      %534 = vmatpush2.bf16.msra.mxu0 0
      %535 = vmatprep.subr.bf16.mxu0 0
      %536 = vmatpush2.bf16.msra.mxu0 0
      %537 = vmatprep.subr.bf16.mxu0 0
      %538 = vmatpush2.bf16.msra.mxu0 0
      %539 = vmatprep.subr.bf16.mxu0 0
      %540 = vmatpush2.bf16.msra.mxu0 0
      %541 = vmatprep.subr.bf16.mxu0 0
      %542 = vmatpush2.bf16.msra.mxu0 0
      %543 = vmatprep.subr.bf16.mxu0 0
      %544 = vmatpush2.bf16.msra.mxu0 0
      %545 = vmatprep.subr.bf16.mxu0 0
      %546 = vmatpush2.bf16.msra.mxu0 0
      %547 = vmatprep.mubr.bf16.mxu0 0
      %548 = vmatmul.mubr.bf16.gmra.mxu0 %v504
      %v549 = vpop.f32.mrf.mxu0
      %v550 = vadd.f32 0.0, %v549
      %v551 = vpop.f32.mrf.mxu0
      %v552 = vadd.f32 0.0, %v551
      %v553 = vpop.f32.mrf.mxu0
      %v554 = vpop.f32.mrf.mxu0
      %555 = vdwg.mxu0
      %556 = vmatprep.subr.bf16.mxu0 0
      %557 = vmatpush1.bf16.msra.mxu0 0
      %558 = vmatprep.subr.bf16.mxu0 0
      %559 = vmatpush1.bf16.msra.mxu0 0
      %560 = vmatprep.subr.bf16.mxu0 0
      %561 = vmatpush1.bf16.msra.mxu0 0
      %562 = vmatprep.subr.bf16.mxu0 0
      %563 = vmatpush1.bf16.msra.mxu0 0
      %564 = vmatprep.subr.bf16.mxu0 0
      %565 = vmatpush1.bf16.msra.mxu0 0
      %566 = vmatprep.subr.bf16.mxu0 0
      %567 = vmatpush1.bf16.msra.mxu0 0
      %568 = vmatprep.subr.bf16.mxu0 0
      %569 = vmatpush1.bf16.msra.mxu0 0
      %570 = vmatprep.subr.bf16.mxu0 0
      %571 = vmatpush1.bf16.msra.mxu0 %v513
      %572 = vmatprep.subr.bf16.mxu0 0
      %573 = vmatpush2.bf16.msra.mxu0 0
      %574 = vmatprep.subr.bf16.mxu0 0
      %575 = vmatpush2.bf16.msra.mxu0 0
      %576 = vmatprep.subr.bf16.mxu0 0
      %577 = vmatpush2.bf16.msra.mxu0 0
      %578 = vmatprep.subr.bf16.mxu0 0
      %579 = vmatpush2.bf16.msra.mxu0 0
      %580 = vmatprep.subr.bf16.mxu0 0
      %581 = vmatpush2.bf16.msra.mxu0 0
      %582 = vmatprep.subr.bf16.mxu0 0
      %583 = vmatpush2.bf16.msra.mxu0 0
      %584 = vmatprep.subr.bf16.mxu0 0
      %585 = vmatpush2.bf16.msra.mxu0 0
      %586 = vmatprep.subr.bf16.mxu0 0
      %587 = vmatpush2.bf16.msra.mxu0 0
      %588 = vmatprep.mubr.bf16.mxu0 0
      %589 = vmatmul.mubr.bf16.gmra.mxu0 %v504
      %v590 = vpop.f32.mrf.mxu0
      %v591 = vadd.f32 0.0, %v590
      %v592 = vpop.f32.mrf.mxu0
      %v593 = vpop.f32.mrf.mxu0
      %v594 = vpop.f32.mrf.mxu0
      %595 = vdwg.mxu0
      %v596 = vadd.f32 %v446, %v550
      %v597 = vadd.f32 %v448, %v552
      %v598 = vadd.f32 %v487, %v591
      %s599 = scalar_lea.vmem %s3, 4
      %v600 = vld [vmem:[%s599] sm:$0xf]
      %601 = vrot.lane.b32.xlu0 %v286, 127
      %v602 = vpop.permute.xlu0 %601
      %603 = vrot.lane.b32.xlu0 %v287, 127
      %v604 = vpop.permute.xlu0 %603
      %605 = vrot.lane.b32.xlu0 %v288, 127
      %v606 = vpop.permute.xlu0 %605
      %v607 = vsel %vm500, %v602, %v604
      %v608 = vsel %vm500, %v604, %v606
      %v610 = vsel %vm289, %v600, 0
      %v613 = vsel %vm293, %v607, 0
      %v616 = vsel %vm293, %v608, 0
      %v619 = vsel %vm293, %v606, 0
      %621 = vmatprep.subr.bf16.mxu0 0
      %622 = vmatpush1.bf16.msra.mxu0 0
      %623 = vmatprep.subr.bf16.mxu0 0
      %624 = vmatpush1.bf16.msra.mxu0 0
      %625 = vmatprep.subr.bf16.mxu0 0
      %626 = vmatpush1.bf16.msra.mxu0 0
      %627 = vmatprep.subr.bf16.mxu0 0
      %628 = vmatpush1.bf16.msra.mxu0 0
      %629 = vmatprep.subr.bf16.mxu0 0
      %630 = vmatpush1.bf16.msra.mxu0 0
      %631 = vmatprep.subr.bf16.mxu0 0
      %632 = vmatpush1.bf16.msra.mxu0 0
      %633 = vmatprep.subr.bf16.mxu0 0
      %634 = vmatpush1.bf16.msra.mxu0 0
      %635 = vmatprep.subr.bf16.mxu0 %v616
      %636 = vmatpush1.bf16.msra.mxu0 %v613
      %637 = vmatprep.subr.bf16.mxu0 0
      %638 = vmatpush2.bf16.msra.mxu0 0
      %639 = vmatprep.subr.bf16.mxu0 0
      %640 = vmatpush2.bf16.msra.mxu0 0
      %641 = vmatprep.subr.bf16.mxu0 0
      %642 = vmatpush2.bf16.msra.mxu0 0
      %643 = vmatprep.subr.bf16.mxu0 0
      %644 = vmatpush2.bf16.msra.mxu0 0
      %645 = vmatprep.subr.bf16.mxu0 0
      %646 = vmatpush2.bf16.msra.mxu0 0
      %647 = vmatprep.subr.bf16.mxu0 0
      %648 = vmatpush2.bf16.msra.mxu0 0
      %649 = vmatprep.subr.bf16.mxu0 0
      %650 = vmatpush2.bf16.msra.mxu0 0
      %651 = vmatprep.subr.bf16.mxu0 0
      %652 = vmatpush2.bf16.msra.mxu0 0
      %653 = vmatprep.mubr.bf16.mxu0 0
      %654 = vmatmul.mubr.bf16.gmra.mxu0 %v610
      %v655 = vpop.f32.mrf.mxu0
      %v656 = vadd.f32 0.0, %v655
      %v657 = vpop.f32.mrf.mxu0
      %v658 = vadd.f32 0.0, %v657
      %v659 = vpop.f32.mrf.mxu0
      %v660 = vpop.f32.mrf.mxu0
      %661 = vdwg.mxu0
      %662 = vmatprep.subr.bf16.mxu0 0
      %663 = vmatpush1.bf16.msra.mxu0 0
      %664 = vmatprep.subr.bf16.mxu0 0
      %665 = vmatpush1.bf16.msra.mxu0 0
      %666 = vmatprep.subr.bf16.mxu0 0
      %667 = vmatpush1.bf16.msra.mxu0 0
      %668 = vmatprep.subr.bf16.mxu0 0
      %669 = vmatpush1.bf16.msra.mxu0 0
      %670 = vmatprep.subr.bf16.mxu0 0
      %671 = vmatpush1.bf16.msra.mxu0 0
      %672 = vmatprep.subr.bf16.mxu0 0
      %673 = vmatpush1.bf16.msra.mxu0 0
      %674 = vmatprep.subr.bf16.mxu0 0
      %675 = vmatpush1.bf16.msra.mxu0 0
      %676 = vmatprep.subr.bf16.mxu0 0
      %677 = vmatpush1.bf16.msra.mxu0 %v619
      %678 = vmatprep.subr.bf16.mxu0 0
      %679 = vmatpush2.bf16.msra.mxu0 0
      %680 = vmatprep.subr.bf16.mxu0 0
      %681 = vmatpush2.bf16.msra.mxu0 0
      %682 = vmatprep.subr.bf16.mxu0 0
      %683 = vmatpush2.bf16.msra.mxu0 0
      %684 = vmatprep.subr.bf16.mxu0 0
      %685 = vmatpush2.bf16.msra.mxu0 0
      %686 = vmatprep.subr.bf16.mxu0 0
      %687 = vmatpush2.bf16.msra.mxu0 0
      %688 = vmatprep.subr.bf16.mxu0 0
      %689 = vmatpush2.bf16.msra.mxu0 0
      %690 = vmatprep.subr.bf16.mxu0 0
      %691 = vmatpush2.bf16.msra.mxu0 0
      %692 = vmatprep.subr.bf16.mxu0 0
      %693 = vmatpush2.bf16.msra.mxu0 0
      %694 = vmatprep.mubr.bf16.mxu0 0
      %695 = vmatmul.mubr.bf16.gmra.mxu0 %v610
      %v696 = vpop.f32.mrf.mxu0
      %v697 = vadd.f32 0.0, %v696
      %v698 = vpop.f32.mrf.mxu0
      %v699 = vpop.f32.mrf.mxu0
      %v700 = vpop.f32.mrf.mxu0
      %701 = vdwg.mxu0
      %v702 = vadd.f32 %v596, %v656
      %v703 = vadd.f32 %v597, %v658
      %v704 = vadd.f32 %v598, %v697
      %s705 = scalar_lea.vmem %s2, 8
      %v706 = vld [vmem:[%s705] sm:$0xf]
      %707 = vrot.lane.b32.xlu0 %v394, 126
      %v708 = vpop.permute.xlu0 %707
      %709 = vrot.lane.b32.xlu0 %v395, 126
      %v710 = vpop.permute.xlu0 %709
      %711 = vrot.lane.b32.xlu0 %v396, 126
      %v712 = vpop.permute.xlu0 %711
      %vm713 = vcmask 1031168
      %v714 = vsel %vm713, %v708, %v710
      %v715 = vsel %vm713, %v710, %v712
      %v717 = vsel %vm397, %v706, 0
      %v720 = vsel %vm401, %v714, 0
      %v723 = vsel %vm401, %v715, 0
      %v726 = vsel %vm401, %v712, 0
      %728 = vmatprep.subr.bf16.mxu0 0
      %729 = vmatpush1.bf16.msra.mxu0 0
      %730 = vmatprep.subr.bf16.mxu0 0
      %731 = vmatpush1.bf16.msra.mxu0 0
      %732 = vmatprep.subr.bf16.mxu0 0
      %733 = vmatpush1.bf16.msra.mxu0 0
      %734 = vmatprep.subr.bf16.mxu0 0
      %735 = vmatpush1.bf16.msra.mxu0 0
      %736 = vmatprep.subr.bf16.mxu0 0
      %737 = vmatpush1.bf16.msra.mxu0 0
      %738 = vmatprep.subr.bf16.mxu0 0
      %739 = vmatpush1.bf16.msra.mxu0 0
      %740 = vmatprep.subr.bf16.mxu0 0
      %741 = vmatpush1.bf16.msra.mxu0 0
      %742 = vmatprep.subr.bf16.mxu0 %v723
      %743 = vmatpush1.bf16.msra.mxu0 %v720
      %744 = vmatprep.subr.bf16.mxu0 0
      %745 = vmatpush2.bf16.msra.mxu0 0
      %746 = vmatprep.subr.bf16.mxu0 0
      %747 = vmatpush2.bf16.msra.mxu0 0
      %748 = vmatprep.subr.bf16.mxu0 0
      %749 = vmatpush2.bf16.msra.mxu0 0
      %750 = vmatprep.subr.bf16.mxu0 0
      %751 = vmatpush2.bf16.msra.mxu0 0
      %752 = vmatprep.subr.bf16.mxu0 0
      %753 = vmatpush2.bf16.msra.mxu0 0
      %754 = vmatprep.subr.bf16.mxu0 0
      %755 = vmatpush2.bf16.msra.mxu0 0
      %756 = vmatprep.subr.bf16.mxu0 0
      %757 = vmatpush2.bf16.msra.mxu0 0
      %758 = vmatprep.subr.bf16.mxu0 0
      %759 = vmatpush2.bf16.msra.mxu0 0
      %760 = vmatprep.mubr.bf16.mxu0 0
      %761 = vmatmul.mubr.bf16.gmra.mxu0 %v717
      %v762 = vpop.f32.mrf.mxu0
      %v763 = vadd.f32 0.0, %v762
      %v764 = vpop.f32.mrf.mxu0
      %v765 = vadd.f32 0.0, %v764
      %v766 = vpop.f32.mrf.mxu0
      %v767 = vpop.f32.mrf.mxu0
      %768 = vdwg.mxu0
      %769 = vmatprep.subr.bf16.mxu0 0
      %770 = vmatpush1.bf16.msra.mxu0 0
      %771 = vmatprep.subr.bf16.mxu0 0
      %772 = vmatpush1.bf16.msra.mxu0 0
      %773 = vmatprep.subr.bf16.mxu0 0
      %774 = vmatpush1.bf16.msra.mxu0 0
      %775 = vmatprep.subr.bf16.mxu0 0
      %776 = vmatpush1.bf16.msra.mxu0 0
      %777 = vmatprep.subr.bf16.mxu0 0
      %778 = vmatpush1.bf16.msra.mxu0 0
      %779 = vmatprep.subr.bf16.mxu0 0
      %780 = vmatpush1.bf16.msra.mxu0 0
      %781 = vmatprep.subr.bf16.mxu0 0
      %782 = vmatpush1.bf16.msra.mxu0 0
      %783 = vmatprep.subr.bf16.mxu0 0
      %784 = vmatpush1.bf16.msra.mxu0 %v726
      %785 = vmatprep.subr.bf16.mxu0 0
      %786 = vmatpush2.bf16.msra.mxu0 0
      %787 = vmatprep.subr.bf16.mxu0 0
      %788 = vmatpush2.bf16.msra.mxu0 0
      %789 = vmatprep.subr.bf16.mxu0 0
      %790 = vmatpush2.bf16.msra.mxu0 0
      %791 = vmatprep.subr.bf16.mxu0 0
      %792 = vmatpush2.bf16.msra.mxu0 0
      %793 = vmatprep.subr.bf16.mxu0 0
      %794 = vmatpush2.bf16.msra.mxu0 0
      %795 = vmatprep.subr.bf16.mxu0 0
      %796 = vmatpush2.bf16.msra.mxu0 0
      %797 = vmatprep.subr.bf16.mxu0 0
      %798 = vmatpush2.bf16.msra.mxu0 0
      %799 = vmatprep.subr.bf16.mxu0 0
      %800 = vmatpush2.bf16.msra.mxu0 0
      %801 = vmatprep.mubr.bf16.mxu0 0
      %802 = vmatmul.mubr.bf16.gmra.mxu0 %v717
      %v803 = vpop.f32.mrf.mxu0
      %v804 = vadd.f32 0.0, %v803
      %v805 = vpop.f32.mrf.mxu0
      %v806 = vpop.f32.mrf.mxu0
      %v807 = vpop.f32.mrf.mxu0
      %808 = vdwg.mxu0
      %v809 = vadd.f32 %v702, %v763
      %v810 = vadd.f32 %v703, %v765
      %v811 = vadd.f32 %v704, %v804
      %s812 = scalar_lea.vmem %s3, 8
      %v813 = vld [vmem:[%s812] sm:$0xf]
      %814 = vrot.lane.b32.xlu0 %v286, 126
      %v815 = vpop.permute.xlu0 %814
      %816 = vrot.lane.b32.xlu0 %v287, 126
      %v817 = vpop.permute.xlu0 %816
      %818 = vrot.lane.b32.xlu0 %v288, 126
      %v819 = vpop.permute.xlu0 %818
      %v820 = vsel %vm713, %v815, %v817
      %v821 = vsel %vm713, %v817, %v819
      %v823 = vsel %vm289, %v813, 0
      %v826 = vsel %vm293, %v820, 0
      %v829 = vsel %vm293, %v821, 0
      %v832 = vsel %vm293, %v819, 0
      %834 = vmatprep.subr.bf16.mxu0 0
      %835 = vmatpush1.bf16.msra.mxu0 0
      %836 = vmatprep.subr.bf16.mxu0 0
      %837 = vmatpush1.bf16.msra.mxu0 0
      %838 = vmatprep.subr.bf16.mxu0 0
      %839 = vmatpush1.bf16.msra.mxu0 0
      %840 = vmatprep.subr.bf16.mxu0 0
      %841 = vmatpush1.bf16.msra.mxu0 0
      %842 = vmatprep.subr.bf16.mxu0 0
      %843 = vmatpush1.bf16.msra.mxu0 0
      %844 = vmatprep.subr.bf16.mxu0 0
      %845 = vmatpush1.bf16.msra.mxu0 0
      %846 = vmatprep.subr.bf16.mxu0 0
      %847 = vmatpush1.bf16.msra.mxu0 0
      %848 = vmatprep.subr.bf16.mxu0 %v829
      %849 = vmatpush1.bf16.msra.mxu0 %v826
      %850 = vmatprep.subr.bf16.mxu0 0
      %851 = vmatpush2.bf16.msra.mxu0 0
      %852 = vmatprep.subr.bf16.mxu0 0
      %853 = vmatpush2.bf16.msra.mxu0 0
      %854 = vmatprep.subr.bf16.mxu0 0
      %855 = vmatpush2.bf16.msra.mxu0 0
      %856 = vmatprep.subr.bf16.mxu0 0
      %857 = vmatpush2.bf16.msra.mxu0 0
      %858 = vmatprep.subr.bf16.mxu0 0
      %859 = vmatpush2.bf16.msra.mxu0 0
      %860 = vmatprep.subr.bf16.mxu0 0
      %861 = vmatpush2.bf16.msra.mxu0 0
      %862 = vmatprep.subr.bf16.mxu0 0
      %863 = vmatpush2.bf16.msra.mxu0 0
      %864 = vmatprep.subr.bf16.mxu0 0
      %865 = vmatpush2.bf16.msra.mxu0 0
      %866 = vmatprep.mubr.bf16.mxu0 0
      %867 = vmatmul.mubr.bf16.gmra.mxu0 %v823
      %v868 = vpop.f32.mrf.mxu0
      %v869 = vadd.f32 0.0, %v868
      %v870 = vpop.f32.mrf.mxu0
      %v871 = vadd.f32 0.0, %v870
      %v872 = vpop.f32.mrf.mxu0
      %v873 = vpop.f32.mrf.mxu0
      %874 = vdwg.mxu0
      %875 = vmatprep.subr.bf16.mxu0 0
      %876 = vmatpush1.bf16.msra.mxu0 0
      %877 = vmatprep.subr.bf16.mxu0 0
      %878 = vmatpush1.bf16.msra.mxu0 0
      %879 = vmatprep.subr.bf16.mxu0 0
      %880 = vmatpush1.bf16.msra.mxu0 0
      %881 = vmatprep.subr.bf16.mxu0 0
      %882 = vmatpush1.bf16.msra.mxu0 0
      %883 = vmatprep.subr.bf16.mxu0 0
      %884 = vmatpush1.bf16.msra.mxu0 0
      %885 = vmatprep.subr.bf16.mxu0 0
      %886 = vmatpush1.bf16.msra.mxu0 0
      %887 = vmatprep.subr.bf16.mxu0 0
      %888 = vmatpush1.bf16.msra.mxu0 0
      %889 = vmatprep.subr.bf16.mxu0 0
      %890 = vmatpush1.bf16.msra.mxu0 %v832
      %891 = vmatprep.subr.bf16.mxu0 0
      %892 = vmatpush2.bf16.msra.mxu0 0
      %893 = vmatprep.subr.bf16.mxu0 0
      %894 = vmatpush2.bf16.msra.mxu0 0
      %895 = vmatprep.subr.bf16.mxu0 0
      %896 = vmatpush2.bf16.msra.mxu0 0
      %897 = vmatprep.subr.bf16.mxu0 0
      %898 = vmatpush2.bf16.msra.mxu0 0
      %899 = vmatprep.subr.bf16.mxu0 0
      %900 = vmatpush2.bf16.msra.mxu0 0
      %901 = vmatprep.subr.bf16.mxu0 0
      %902 = vmatpush2.bf16.msra.mxu0 0
      %903 = vmatprep.subr.bf16.mxu0 0
      %904 = vmatpush2.bf16.msra.mxu0 0
      %905 = vmatprep.subr.bf16.mxu0 0
      %906 = vmatpush2.bf16.msra.mxu0 0
      %907 = vmatprep.mubr.bf16.mxu0 0
      %908 = vmatmul.mubr.bf16.gmra.mxu0 %v823
      %v909 = vpop.f32.mrf.mxu0
      %v910 = vadd.f32 0.0, %v909
      %v911 = vpop.f32.mrf.mxu0
      %v912 = vpop.f32.mrf.mxu0
      %v913 = vpop.f32.mrf.mxu0
      %914 = vdwg.mxu0
      %v915 = vadd.f32 %v809, %v869
      %v916 = vadd.f32 %v810, %v871
      %v917 = vadd.f32 %v811, %v910
      %s918 = scalar_lea.vmem %s2, 12
      %v919 = vld [vmem:[%s918] sm:$0xf]
      %920 = vrot.lane.b32.xlu0 %v394, 110
      %v921 = vpop.permute.xlu0 %920
      %922 = vrot.lane.b32.xlu0 %v395, 110
      %v923 = vpop.permute.xlu0 %922
      %924 = vrot.lane.b32.xlu0 %v396, 110
      %v925 = vpop.permute.xlu0 %924
      %vm926 = vcmask 900096
      %v927 = vsel %vm926, %v921, %v923
      %v928 = vsel %vm926, %v923, %v925
      %v930 = vsel %vm397, %v919, 0
      %v933 = vsel %vm401, %v927, 0
      %v936 = vsel %vm401, %v928, 0
      %v939 = vsel %vm401, %v925, 0
      %941 = vmatprep.subr.bf16.mxu0 0
      %942 = vmatpush1.bf16.msra.mxu0 0
      %943 = vmatprep.subr.bf16.mxu0 0
      %944 = vmatpush1.bf16.msra.mxu0 0
      %945 = vmatprep.subr.bf16.mxu0 0
      %946 = vmatpush1.bf16.msra.mxu0 0
      %947 = vmatprep.subr.bf16.mxu0 0
      %948 = vmatpush1.bf16.msra.mxu0 0
      %949 = vmatprep.subr.bf16.mxu0 0
      %950 = vmatpush1.bf16.msra.mxu0 0
      %951 = vmatprep.subr.bf16.mxu0 0
      %952 = vmatpush1.bf16.msra.mxu0 0
      %953 = vmatprep.subr.bf16.mxu0 0
      %954 = vmatpush1.bf16.msra.mxu0 0
      %955 = vmatprep.subr.bf16.mxu0 %v936
      %956 = vmatpush1.bf16.msra.mxu0 %v933
      %957 = vmatprep.subr.bf16.mxu0 0
      %958 = vmatpush2.bf16.msra.mxu0 0
      %959 = vmatprep.subr.bf16.mxu0 0
      %960 = vmatpush2.bf16.msra.mxu0 0
      %961 = vmatprep.subr.bf16.mxu0 0
      %962 = vmatpush2.bf16.msra.mxu0 0
      %963 = vmatprep.subr.bf16.mxu0 0
      %964 = vmatpush2.bf16.msra.mxu0 0
      %965 = vmatprep.subr.bf16.mxu0 0
      %966 = vmatpush2.bf16.msra.mxu0 0
      %967 = vmatprep.subr.bf16.mxu0 0
      %968 = vmatpush2.bf16.msra.mxu0 0
      %969 = vmatprep.subr.bf16.mxu0 0
      %970 = vmatpush2.bf16.msra.mxu0 0
      %971 = vmatprep.subr.bf16.mxu0 0
      %972 = vmatpush2.bf16.msra.mxu0 0
      %973 = vmatprep.mubr.bf16.mxu0 0
      %974 = vmatmul.mubr.bf16.gmra.mxu0 %v930
      %v975 = vpop.f32.mrf.mxu0
      %v976 = vadd.f32 0.0, %v975
      %v977 = vpop.f32.mrf.mxu0
      %v978 = vadd.f32 0.0, %v977
      %v979 = vpop.f32.mrf.mxu0
      %v980 = vpop.f32.mrf.mxu0
      %981 = vdwg.mxu0
      %982 = vmatprep.subr.bf16.mxu0 0
      %983 = vmatpush1.bf16.msra.mxu0 0
      %984 = vmatprep.subr.bf16.mxu0 0
      %985 = vmatpush1.bf16.msra.mxu0 0
      %986 = vmatprep.subr.bf16.mxu0 0
      %987 = vmatpush1.bf16.msra.mxu0 0
      %988 = vmatprep.subr.bf16.mxu0 0
      %989 = vmatpush1.bf16.msra.mxu0 0
      %990 = vmatprep.subr.bf16.mxu0 0
      %991 = vmatpush1.bf16.msra.mxu0 0
      %992 = vmatprep.subr.bf16.mxu0 0
      %993 = vmatpush1.bf16.msra.mxu0 0
      %994 = vmatprep.subr.bf16.mxu0 0
      %995 = vmatpush1.bf16.msra.mxu0 0
      %996 = vmatprep.subr.bf16.mxu0 0
      %997 = vmatpush1.bf16.msra.mxu0 %v939
      %998 = vmatprep.subr.bf16.mxu0 0
      %999 = vmatpush2.bf16.msra.mxu0 0
      %1000 = vmatprep.subr.bf16.mxu0 0
      %1001 = vmatpush2.bf16.msra.mxu0 0
      %1002 = vmatprep.subr.bf16.mxu0 0
      %1003 = vmatpush2.bf16.msra.mxu0 0
      %1004 = vmatprep.subr.bf16.mxu0 0
      %1005 = vmatpush2.bf16.msra.mxu0 0
      %1006 = vmatprep.subr.bf16.mxu0 0
      %1007 = vmatpush2.bf16.msra.mxu0 0
      %1008 = vmatprep.subr.bf16.mxu0 0
      %1009 = vmatpush2.bf16.msra.mxu0 0
      %1010 = vmatprep.subr.bf16.mxu0 0
      %1011 = vmatpush2.bf16.msra.mxu0 0
      %1012 = vmatprep.subr.bf16.mxu0 0
      %1013 = vmatpush2.bf16.msra.mxu0 0
      %1014 = vmatprep.mubr.bf16.mxu0 0
      %1015 = vmatmul.mubr.bf16.gmra.mxu0 %v930
      %v1016 = vpop.f32.mrf.mxu0
      %v1017 = vadd.f32 0.0, %v1016
      %v1018 = vpop.f32.mrf.mxu0
      %v1019 = vpop.f32.mrf.mxu0
      %v1020 = vpop.f32.mrf.mxu0
      %1021 = vdwg.mxu0
      %v1022 = vadd.f32 %v915, %v976
      %v1023 = vadd.f32 %v916, %v978
      %v1024 = vadd.f32 %v917, %v1017
      %s1025 = scalar_lea.vmem %s3, 12
      %v1026 = vld [vmem:[%s1025] sm:$0xf]
      %1027 = vrot.lane.b32.xlu0 %v286, 110
      %v1028 = vpop.permute.xlu0 %1027
      %1029 = vrot.lane.b32.xlu0 %v287, 110
      %v1030 = vpop.permute.xlu0 %1029
      %1031 = vrot.lane.b32.xlu0 %v288, 110
      %v1032 = vpop.permute.xlu0 %1031
      %v1033 = vsel %vm926, %v1028, %v1030
      %v1034 = vsel %vm926, %v1030, %v1032
      %v1036 = vsel %vm289, %v1026, 0
      %v1039 = vsel %vm293, %v1033, 0
      %v1042 = vsel %vm293, %v1034, 0
      %v1045 = vsel %vm293, %v1032, 0
      %1047 = vmatprep.subr.bf16.mxu0 0
      %1048 = vmatpush1.bf16.msra.mxu0 0
      %1049 = vmatprep.subr.bf16.mxu0 0
      %1050 = vmatpush1.bf16.msra.mxu0 0
      %1051 = vmatprep.subr.bf16.mxu0 0
      %1052 = vmatpush1.bf16.msra.mxu0 0
      %1053 = vmatprep.subr.bf16.mxu0 0
      %1054 = vmatpush1.bf16.msra.mxu0 0
      %1055 = vmatprep.subr.bf16.mxu0 0
      %1056 = vmatpush1.bf16.msra.mxu0 0
      %1057 = vmatprep.subr.bf16.mxu0 0
      %1058 = vmatpush1.bf16.msra.mxu0 0
      %1059 = vmatprep.subr.bf16.mxu0 0
      %1060 = vmatpush1.bf16.msra.mxu0 0
      %1061 = vmatprep.subr.bf16.mxu0 %v1042
      %1062 = vmatpush1.bf16.msra.mxu0 %v1039
      %1063 = vmatprep.subr.bf16.mxu0 0
      %1064 = vmatpush2.bf16.msra.mxu0 0
      %1065 = vmatprep.subr.bf16.mxu0 0
      %1066 = vmatpush2.bf16.msra.mxu0 0
      %1067 = vmatprep.subr.bf16.mxu0 0
      %1068 = vmatpush2.bf16.msra.mxu0 0
      %1069 = vmatprep.subr.bf16.mxu0 0
      %1070 = vmatpush2.bf16.msra.mxu0 0
      %1071 = vmatprep.subr.bf16.mxu0 0
      %1072 = vmatpush2.bf16.msra.mxu0 0
      %1073 = vmatprep.subr.bf16.mxu0 0
      %1074 = vmatpush2.bf16.msra.mxu0 0
      %1075 = vmatprep.subr.bf16.mxu0 0
      %1076 = vmatpush2.bf16.msra.mxu0 0
      %1077 = vmatprep.subr.bf16.mxu0 0
      %1078 = vmatpush2.bf16.msra.mxu0 0
      %1079 = vmatprep.mubr.bf16.mxu0 0
      %1080 = vmatmul.mubr.bf16.gmra.mxu0 %v1036
      %v1081 = vpop.f32.mrf.mxu0
      %v1082 = vadd.f32 0.0, %v1081
      %v1083 = vpop.f32.mrf.mxu0
      %v1084 = vadd.f32 0.0, %v1083
      %v1085 = vpop.f32.mrf.mxu0
      %v1086 = vpop.f32.mrf.mxu0
      %1087 = vdwg.mxu0
      %1088 = vmatprep.subr.bf16.mxu0 0
      %1089 = vmatpush1.bf16.msra.mxu0 0
      %1090 = vmatprep.subr.bf16.mxu0 0
      %1091 = vmatpush1.bf16.msra.mxu0 0
      %1092 = vmatprep.subr.bf16.mxu0 0
      %1093 = vmatpush1.bf16.msra.mxu0 0
      %1094 = vmatprep.subr.bf16.mxu0 0
      %1095 = vmatpush1.bf16.msra.mxu0 0
      %1096 = vmatprep.subr.bf16.mxu0 0
      %1097 = vmatpush1.bf16.msra.mxu0 0
      %1098 = vmatprep.subr.bf16.mxu0 0
      %1099 = vmatpush1.bf16.msra.mxu0 0
      %1100 = vmatprep.subr.bf16.mxu0 0
      %1101 = vmatpush1.bf16.msra.mxu0 0
      %1102 = vmatprep.subr.bf16.mxu0 0
      %1103 = vmatpush1.bf16.msra.mxu0 %v1045
      %1104 = vmatprep.subr.bf16.mxu0 0
      %1105 = vmatpush2.bf16.msra.mxu0 0
      %1106 = vmatprep.subr.bf16.mxu0 0
      %1107 = vmatpush2.bf16.msra.mxu0 0
      %1108 = vmatprep.subr.bf16.mxu0 0
      %1109 = vmatpush2.bf16.msra.mxu0 0
      %1110 = vmatprep.subr.bf16.mxu0 0
      %1111 = vmatpush2.bf16.msra.mxu0 0
      %1112 = vmatprep.subr.bf16.mxu0 0
      %1113 = vmatpush2.bf16.msra.mxu0 0
      %1114 = vmatprep.subr.bf16.mxu0 0
      %1115 = vmatpush2.bf16.msra.mxu0 0
      %1116 = vmatprep.subr.bf16.mxu0 0
      %1117 = vmatpush2.bf16.msra.mxu0 0
      %1118 = vmatprep.subr.bf16.mxu0 0
      %1119 = vmatpush2.bf16.msra.mxu0 0
      %1120 = vmatprep.mubr.bf16.mxu0 0
      %1121 = vmatmul.mubr.bf16.gmra.mxu0 %v1036
      %v1122 = vpop.f32.mrf.mxu0
      %v1123 = vadd.f32 0.0, %v1122
      %v1124 = vpop.f32.mrf.mxu0
      %v1125 = vpop.f32.mrf.mxu0
      %v1126 = vpop.f32.mrf.mxu0
      %1127 = vdwg.mxu0
      %v1128 = vadd.f32 %v1022, %v1082
      %v1129 = vadd.f32 %v1023, %v1084
      %v1130 = vadd.f32 %v1024, %v1123
      %s1131 = scalar_lea.vmem %s2, 16
      %v1132 = vld [vmem:[%s1131] sm:$0xf]
      %1133 = vrot.lane.b32.xlu0 %v394, 109
      %v1134 = vpop.permute.xlu0 %1133
      %1135 = vrot.lane.b32.xlu0 %v395, 109
      %v1136 = vpop.permute.xlu0 %1135
      %1137 = vrot.lane.b32.xlu0 %v396, 109
      %v1138 = vpop.permute.xlu0 %1137
      %vm1139 = vcmask 891904
      %v1140 = vsel %vm1139, %v1134, %v1136
      %v1141 = vsel %vm1139, %v1136, %v1138
      %v1143 = vsel %vm397, %v1132, 0
      %v1146 = vsel %vm401, %v1140, 0
      %v1149 = vsel %vm401, %v1141, 0
      %v1152 = vsel %vm401, %v1138, 0
      %1154 = vmatprep.subr.bf16.mxu0 0
      %1155 = vmatpush1.bf16.msra.mxu0 0
      %1156 = vmatprep.subr.bf16.mxu0 0
      %1157 = vmatpush1.bf16.msra.mxu0 0
      %1158 = vmatprep.subr.bf16.mxu0 0
      %1159 = vmatpush1.bf16.msra.mxu0 0
      %1160 = vmatprep.subr.bf16.mxu0 0
      %1161 = vmatpush1.bf16.msra.mxu0 0
      %1162 = vmatprep.subr.bf16.mxu0 0
      %1163 = vmatpush1.bf16.msra.mxu0 0
      %1164 = vmatprep.subr.bf16.mxu0 0
      %1165 = vmatpush1.bf16.msra.mxu0 0
      %1166 = vmatprep.subr.bf16.mxu0 0
      %1167 = vmatpush1.bf16.msra.mxu0 0
      %1168 = vmatprep.subr.bf16.mxu0 %v1149
      %1169 = vmatpush1.bf16.msra.mxu0 %v1146
      %1170 = vmatprep.subr.bf16.mxu0 0
      %1171 = vmatpush2.bf16.msra.mxu0 0
      %1172 = vmatprep.subr.bf16.mxu0 0
      %1173 = vmatpush2.bf16.msra.mxu0 0
      %1174 = vmatprep.subr.bf16.mxu0 0
      %1175 = vmatpush2.bf16.msra.mxu0 0
      %1176 = vmatprep.subr.bf16.mxu0 0
      %1177 = vmatpush2.bf16.msra.mxu0 0
      %1178 = vmatprep.subr.bf16.mxu0 0
      %1179 = vmatpush2.bf16.msra.mxu0 0
      %1180 = vmatprep.subr.bf16.mxu0 0
      %1181 = vmatpush2.bf16.msra.mxu0 0
      %1182 = vmatprep.subr.bf16.mxu0 0
      %1183 = vmatpush2.bf16.msra.mxu0 0
      %1184 = vmatprep.subr.bf16.mxu0 0
      %1185 = vmatpush2.bf16.msra.mxu0 0
      %1186 = vmatprep.mubr.bf16.mxu0 0
      %1187 = vmatmul.mubr.bf16.gmra.mxu0 %v1143
      %v1188 = vpop.f32.mrf.mxu0
      %v1189 = vadd.f32 0.0, %v1188
      %v1190 = vpop.f32.mrf.mxu0
      %v1191 = vadd.f32 0.0, %v1190
      %v1192 = vpop.f32.mrf.mxu0
      %v1193 = vpop.f32.mrf.mxu0
      %1194 = vdwg.mxu0
      %1195 = vmatprep.subr.bf16.mxu0 0
      %1196 = vmatpush1.bf16.msra.mxu0 0
      %1197 = vmatprep.subr.bf16.mxu0 0
      %1198 = vmatpush1.bf16.msra.mxu0 0
      %1199 = vmatprep.subr.bf16.mxu0 0
      %1200 = vmatpush1.bf16.msra.mxu0 0
      %1201 = vmatprep.subr.bf16.mxu0 0
      %1202 = vmatpush1.bf16.msra.mxu0 0
      %1203 = vmatprep.subr.bf16.mxu0 0
      %1204 = vmatpush1.bf16.msra.mxu0 0
      %1205 = vmatprep.subr.bf16.mxu0 0
      %1206 = vmatpush1.bf16.msra.mxu0 0
      %1207 = vmatprep.subr.bf16.mxu0 0
      %1208 = vmatpush1.bf16.msra.mxu0 0
      %1209 = vmatprep.subr.bf16.mxu0 0
      %1210 = vmatpush1.bf16.msra.mxu0 %v1152
      %1211 = vmatprep.subr.bf16.mxu0 0
      %1212 = vmatpush2.bf16.msra.mxu0 0
      %1213 = vmatprep.subr.bf16.mxu0 0
      %1214 = vmatpush2.bf16.msra.mxu0 0
      %1215 = vmatprep.subr.bf16.mxu0 0
      %1216 = vmatpush2.bf16.msra.mxu0 0
      %1217 = vmatprep.subr.bf16.mxu0 0
      %1218 = vmatpush2.bf16.msra.mxu0 0
      %1219 = vmatprep.subr.bf16.mxu0 0
      %1220 = vmatpush2.bf16.msra.mxu0 0
      %1221 = vmatprep.subr.bf16.mxu0 0
      %1222 = vmatpush2.bf16.msra.mxu0 0
      %1223 = vmatprep.subr.bf16.mxu0 0
      %1224 = vmatpush2.bf16.msra.mxu0 0
      %1225 = vmatprep.subr.bf16.mxu0 0
      %1226 = vmatpush2.bf16.msra.mxu0 0
      %1227 = vmatprep.mubr.bf16.mxu0 0
      %1228 = vmatmul.mubr.bf16.gmra.mxu0 %v1143
      %v1229 = vpop.f32.mrf.mxu0
      %v1230 = vadd.f32 0.0, %v1229
      %v1231 = vpop.f32.mrf.mxu0
      %v1232 = vpop.f32.mrf.mxu0
      %v1233 = vpop.f32.mrf.mxu0
      %1234 = vdwg.mxu0
      %v1235 = vadd.f32 %v1128, %v1189
      %v1236 = vadd.f32 %v1129, %v1191
      %v1237 = vadd.f32 %v1130, %v1230
      %s1238 = scalar_lea.vmem %s3, 16
      %v1239 = vld [vmem:[%s1238] sm:$0xf]
      %1240 = vrot.lane.b32.xlu0 %v286, 109
      %v1241 = vpop.permute.xlu0 %1240
      %1242 = vrot.lane.b32.xlu0 %v287, 109
      %v1243 = vpop.permute.xlu0 %1242
      %1244 = vrot.lane.b32.xlu0 %v288, 109
      %v1245 = vpop.permute.xlu0 %1244
      %v1246 = vsel %vm1139, %v1241, %v1243
      %v1247 = vsel %vm1139, %v1243, %v1245
      %v1249 = vsel %vm289, %v1239, 0
      %v1252 = vsel %vm293, %v1246, 0
      %v1255 = vsel %vm293, %v1247, 0
      %v1258 = vsel %vm293, %v1245, 0
      %1260 = vmatprep.subr.bf16.mxu0 0
      %1261 = vmatpush1.bf16.msra.mxu0 0
      %1262 = vmatprep.subr.bf16.mxu0 0
      %1263 = vmatpush1.bf16.msra.mxu0 0
      %1264 = vmatprep.subr.bf16.mxu0 0
      %1265 = vmatpush1.bf16.msra.mxu0 0
      %1266 = vmatprep.subr.bf16.mxu0 0
      %1267 = vmatpush1.bf16.msra.mxu0 0
      %1268 = vmatprep.subr.bf16.mxu0 0
      %1269 = vmatpush1.bf16.msra.mxu0 0
      %1270 = vmatprep.subr.bf16.mxu0 0
      %1271 = vmatpush1.bf16.msra.mxu0 0
      %1272 = vmatprep.subr.bf16.mxu0 0
      %1273 = vmatpush1.bf16.msra.mxu0 0
      %1274 = vmatprep.subr.bf16.mxu0 %v1255
      %1275 = vmatpush1.bf16.msra.mxu0 %v1252
      %1276 = vmatprep.subr.bf16.mxu0 0
      %1277 = vmatpush2.bf16.msra.mxu0 0
      %1278 = vmatprep.subr.bf16.mxu0 0
      %1279 = vmatpush2.bf16.msra.mxu0 0
      %1280 = vmatprep.subr.bf16.mxu0 0
      %1281 = vmatpush2.bf16.msra.mxu0 0
      %1282 = vmatprep.subr.bf16.mxu0 0
      %1283 = vmatpush2.bf16.msra.mxu0 0
      %1284 = vmatprep.subr.bf16.mxu0 0
      %1285 = vmatpush2.bf16.msra.mxu0 0
      %1286 = vmatprep.subr.bf16.mxu0 0
      %1287 = vmatpush2.bf16.msra.mxu0 0
      %1288 = vmatprep.subr.bf16.mxu0 0
      %1289 = vmatpush2.bf16.msra.mxu0 0
      %1290 = vmatprep.subr.bf16.mxu0 0
      %1291 = vmatpush2.bf16.msra.mxu0 0
      %1292 = vmatprep.mubr.bf16.mxu0 0
      %1293 = vmatmul.mubr.bf16.gmra.mxu0 %v1249
      %v1294 = vpop.f32.mrf.mxu0
      %v1295 = vadd.f32 0.0, %v1294
      %v1296 = vpop.f32.mrf.mxu0
      %v1297 = vadd.f32 0.0, %v1296
      %v1298 = vpop.f32.mrf.mxu0
      %v1299 = vpop.f32.mrf.mxu0
      %1300 = vdwg.mxu0
      %1301 = vmatprep.subr.bf16.mxu0 0
      %1302 = vmatpush1.bf16.msra.mxu0 0
      %1303 = vmatprep.subr.bf16.mxu0 0
      %1304 = vmatpush1.bf16.msra.mxu0 0
      %1305 = vmatprep.subr.bf16.mxu0 0
      %1306 = vmatpush1.bf16.msra.mxu0 0
      %1307 = vmatprep.subr.bf16.mxu0 0
      %1308 = vmatpush1.bf16.msra.mxu0 0
      %1309 = vmatprep.subr.bf16.mxu0 0
      %1310 = vmatpush1.bf16.msra.mxu0 0
      %1311 = vmatprep.subr.bf16.mxu0 0
      %1312 = vmatpush1.bf16.msra.mxu0 0
      %1313 = vmatprep.subr.bf16.mxu0 0
      %1314 = vmatpush1.bf16.msra.mxu0 0
      %1315 = vmatprep.subr.bf16.mxu0 0
      %1316 = vmatpush1.bf16.msra.mxu0 %v1258
      %1317 = vmatprep.subr.bf16.mxu0 0
      %1318 = vmatpush2.bf16.msra.mxu0 0
      %1319 = vmatprep.subr.bf16.mxu0 0
      %1320 = vmatpush2.bf16.msra.mxu0 0
      %1321 = vmatprep.subr.bf16.mxu0 0
      %1322 = vmatpush2.bf16.msra.mxu0 0
      %1323 = vmatprep.subr.bf16.mxu0 0
      %1324 = vmatpush2.bf16.msra.mxu0 0
      %1325 = vmatprep.subr.bf16.mxu0 0
      %1326 = vmatpush2.bf16.msra.mxu0 0
      %1327 = vmatprep.subr.bf16.mxu0 0
      %1328 = vmatpush2.bf16.msra.mxu0 0
      %1329 = vmatprep.subr.bf16.mxu0 0
      %1330 = vmatpush2.bf16.msra.mxu0 0
      %1331 = vmatprep.subr.bf16.mxu0 0
      %1332 = vmatpush2.bf16.msra.mxu0 0
      %1333 = vmatprep.mubr.bf16.mxu0 0
      %1334 = vmatmul.mubr.bf16.gmra.mxu0 %v1249
      %v1335 = vpop.f32.mrf.mxu0
      %v1336 = vadd.f32 0.0, %v1335
      %v1337 = vpop.f32.mrf.mxu0
      %v1338 = vpop.f32.mrf.mxu0
      %v1339 = vpop.f32.mrf.mxu0
      %1340 = vdwg.mxu0
      %v1341 = vadd.f32 %v1235, %v1295
      %v1342 = vadd.f32 %v1236, %v1297
      %v1343 = vadd.f32 %v1237, %v1336
      %s1344 = scalar_lea.vmem %s2, 20
      %v1345 = vld [vmem:[%s1344] sm:$0xf]
      %1346 = vrot.lane.b32.xlu0 %v394, 108
      %v1347 = vpop.permute.xlu0 %1346
      %1348 = vrot.lane.b32.xlu0 %v395, 108
      %v1349 = vpop.permute.xlu0 %1348
      %1350 = vrot.lane.b32.xlu0 %v396, 108
      %v1351 = vpop.permute.xlu0 %1350
      %vm1352 = vcmask 883712
      %v1353 = vsel %vm1352, %v1347, %v1349
      %v1354 = vsel %vm1352, %v1349, %v1351
      %v1356 = vsel %vm397, %v1345, 0
      %v1359 = vsel %vm401, %v1353, 0
      %v1362 = vsel %vm401, %v1354, 0
      %v1365 = vsel %vm401, %v1351, 0
      %1367 = vmatprep.subr.bf16.mxu0 0
      %1368 = vmatpush1.bf16.msra.mxu0 0
      %1369 = vmatprep.subr.bf16.mxu0 0
      %1370 = vmatpush1.bf16.msra.mxu0 0
      %1371 = vmatprep.subr.bf16.mxu0 0
      %1372 = vmatpush1.bf16.msra.mxu0 0
      %1373 = vmatprep.subr.bf16.mxu0 0
      %1374 = vmatpush1.bf16.msra.mxu0 0
      %1375 = vmatprep.subr.bf16.mxu0 0
      %1376 = vmatpush1.bf16.msra.mxu0 0
      %1377 = vmatprep.subr.bf16.mxu0 0
      %1378 = vmatpush1.bf16.msra.mxu0 0
      %1379 = vmatprep.subr.bf16.mxu0 0
      %1380 = vmatpush1.bf16.msra.mxu0 0
      %1381 = vmatprep.subr.bf16.mxu0 %v1362
      %1382 = vmatpush1.bf16.msra.mxu0 %v1359
      %1383 = vmatprep.subr.bf16.mxu0 0
      %1384 = vmatpush2.bf16.msra.mxu0 0
      %1385 = vmatprep.subr.bf16.mxu0 0
      %1386 = vmatpush2.bf16.msra.mxu0 0
      %1387 = vmatprep.subr.bf16.mxu0 0
      %1388 = vmatpush2.bf16.msra.mxu0 0
      %1389 = vmatprep.subr.bf16.mxu0 0
      %1390 = vmatpush2.bf16.msra.mxu0 0
      %1391 = vmatprep.subr.bf16.mxu0 0
      %1392 = vmatpush2.bf16.msra.mxu0 0
      %1393 = vmatprep.subr.bf16.mxu0 0
      %1394 = vmatpush2.bf16.msra.mxu0 0
      %1395 = vmatprep.subr.bf16.mxu0 0
      %1396 = vmatpush2.bf16.msra.mxu0 0
      %1397 = vmatprep.subr.bf16.mxu0 0
      %1398 = vmatpush2.bf16.msra.mxu0 0
      %1399 = vmatprep.mubr.bf16.mxu0 0
      %1400 = vmatmul.mubr.bf16.gmra.mxu0 %v1356
      %v1401 = vpop.f32.mrf.mxu0
      %v1402 = vadd.f32 0.0, %v1401
      %v1403 = vpop.f32.mrf.mxu0
      %v1404 = vadd.f32 0.0, %v1403
      %v1405 = vpop.f32.mrf.mxu0
      %v1406 = vpop.f32.mrf.mxu0
      %1407 = vdwg.mxu0
      %1408 = vmatprep.subr.bf16.mxu0 0
      %1409 = vmatpush1.bf16.msra.mxu0 0
      %1410 = vmatprep.subr.bf16.mxu0 0
      %1411 = vmatpush1.bf16.msra.mxu0 0
      %1412 = vmatprep.subr.bf16.mxu0 0
      %1413 = vmatpush1.bf16.msra.mxu0 0
      %1414 = vmatprep.subr.bf16.mxu0 0
      %1415 = vmatpush1.bf16.msra.mxu0 0
      %1416 = vmatprep.subr.bf16.mxu0 0
      %1417 = vmatpush1.bf16.msra.mxu0 0
      %1418 = vmatprep.subr.bf16.mxu0 0
      %1419 = vmatpush1.bf16.msra.mxu0 0
      %1420 = vmatprep.subr.bf16.mxu0 0
      %1421 = vmatpush1.bf16.msra.mxu0 0
      %1422 = vmatprep.subr.bf16.mxu0 0
      %1423 = vmatpush1.bf16.msra.mxu0 %v1365
      %1424 = vmatprep.subr.bf16.mxu0 0
      %1425 = vmatpush2.bf16.msra.mxu0 0
      %1426 = vmatprep.subr.bf16.mxu0 0
      %1427 = vmatpush2.bf16.msra.mxu0 0
      %1428 = vmatprep.subr.bf16.mxu0 0
      %1429 = vmatpush2.bf16.msra.mxu0 0
      %1430 = vmatprep.subr.bf16.mxu0 0
      %1431 = vmatpush2.bf16.msra.mxu0 0
      %1432 = vmatprep.subr.bf16.mxu0 0
      %1433 = vmatpush2.bf16.msra.mxu0 0
      %1434 = vmatprep.subr.bf16.mxu0 0
      %1435 = vmatpush2.bf16.msra.mxu0 0
      %1436 = vmatprep.subr.bf16.mxu0 0
      %1437 = vmatpush2.bf16.msra.mxu0 0
      %1438 = vmatprep.subr.bf16.mxu0 0
      %1439 = vmatpush2.bf16.msra.mxu0 0
      %1440 = vmatprep.mubr.bf16.mxu0 0
      %1441 = vmatmul.mubr.bf16.gmra.mxu0 %v1356
      %v1442 = vpop.f32.mrf.mxu0
      %v1443 = vadd.f32 0.0, %v1442
      %v1444 = vpop.f32.mrf.mxu0
      %v1445 = vpop.f32.mrf.mxu0
      %v1446 = vpop.f32.mrf.mxu0
      %1447 = vdwg.mxu0
      %v1448 = vadd.f32 %v1341, %v1402
      %v1449 = vadd.f32 %v1342, %v1404
      %v1450 = vadd.f32 %v1343, %v1443
      %s1451 = scalar_lea.vmem %s3, 20
      %v1452 = vld [vmem:[%s1451] sm:$0xf]
      %1453 = vrot.lane.b32.xlu0 %v286, 108
      %v1454 = vpop.permute.xlu0 %1453
      %1455 = vrot.lane.b32.xlu0 %v287, 108
      %v1456 = vpop.permute.xlu0 %1455
      %1457 = vrot.lane.b32.xlu0 %v288, 108
      %v1458 = vpop.permute.xlu0 %1457
      %v1459 = vsel %vm1352, %v1454, %v1456
      %v1460 = vsel %vm1352, %v1456, %v1458
      %v1462 = vsel %vm289, %v1452, 0
      %v1465 = vsel %vm293, %v1459, 0
      %v1468 = vsel %vm293, %v1460, 0
      %v1471 = vsel %vm293, %v1458, 0
      %1473 = vmatprep.subr.bf16.mxu0 0
      %1474 = vmatpush1.bf16.msra.mxu0 0
      %1475 = vmatprep.subr.bf16.mxu0 0
      %1476 = vmatpush1.bf16.msra.mxu0 0
      %1477 = vmatprep.subr.bf16.mxu0 0
      %1478 = vmatpush1.bf16.msra.mxu0 0
      %1479 = vmatprep.subr.bf16.mxu0 0
      %1480 = vmatpush1.bf16.msra.mxu0 0
      %1481 = vmatprep.subr.bf16.mxu0 0
      %1482 = vmatpush1.bf16.msra.mxu0 0
      %1483 = vmatprep.subr.bf16.mxu0 0
      %1484 = vmatpush1.bf16.msra.mxu0 0
      %1485 = vmatprep.subr.bf16.mxu0 0
      %1486 = vmatpush1.bf16.msra.mxu0 0
      %1487 = vmatprep.subr.bf16.mxu0 %v1468
      %1488 = vmatpush1.bf16.msra.mxu0 %v1465
      %1489 = vmatprep.subr.bf16.mxu0 0
      %1490 = vmatpush2.bf16.msra.mxu0 0
      %1491 = vmatprep.subr.bf16.mxu0 0
      %1492 = vmatpush2.bf16.msra.mxu0 0
      %1493 = vmatprep.subr.bf16.mxu0 0
      %1494 = vmatpush2.bf16.msra.mxu0 0
      %1495 = vmatprep.subr.bf16.mxu0 0
      %1496 = vmatpush2.bf16.msra.mxu0 0
      %1497 = vmatprep.subr.bf16.mxu0 0
      %1498 = vmatpush2.bf16.msra.mxu0 0
      %1499 = vmatprep.subr.bf16.mxu0 0
      %1500 = vmatpush2.bf16.msra.mxu0 0
      %1501 = vmatprep.subr.bf16.mxu0 0
      %1502 = vmatpush2.bf16.msra.mxu0 0
      %1503 = vmatprep.subr.bf16.mxu0 0
      %1504 = vmatpush2.bf16.msra.mxu0 0
      %1505 = vmatprep.mubr.bf16.mxu0 0
      %1506 = vmatmul.mubr.bf16.gmra.mxu0 %v1462
      %v1507 = vpop.f32.mrf.mxu0
      %v1508 = vadd.f32 0.0, %v1507
      %v1509 = vpop.f32.mrf.mxu0
      %v1510 = vadd.f32 0.0, %v1509
      %v1511 = vpop.f32.mrf.mxu0
      %v1512 = vpop.f32.mrf.mxu0
      %1513 = vdwg.mxu0
      %1514 = vmatprep.subr.bf16.mxu0 0
      %1515 = vmatpush1.bf16.msra.mxu0 0
      %1516 = vmatprep.subr.bf16.mxu0 0
      %1517 = vmatpush1.bf16.msra.mxu0 0
      %1518 = vmatprep.subr.bf16.mxu0 0
      %1519 = vmatpush1.bf16.msra.mxu0 0
      %1520 = vmatprep.subr.bf16.mxu0 0
      %1521 = vmatpush1.bf16.msra.mxu0 0
      %1522 = vmatprep.subr.bf16.mxu0 0
      %1523 = vmatpush1.bf16.msra.mxu0 0
      %1524 = vmatprep.subr.bf16.mxu0 0
      %1525 = vmatpush1.bf16.msra.mxu0 0
      %1526 = vmatprep.subr.bf16.mxu0 0
      %1527 = vmatpush1.bf16.msra.mxu0 0
      %1528 = vmatprep.subr.bf16.mxu0 0
      %1529 = vmatpush1.bf16.msra.mxu0 %v1471
      %1530 = vmatprep.subr.bf16.mxu0 0
      %1531 = vmatpush2.bf16.msra.mxu0 0
      %1532 = vmatprep.subr.bf16.mxu0 0
      %1533 = vmatpush2.bf16.msra.mxu0 0
      %1534 = vmatprep.subr.bf16.mxu0 0
      %1535 = vmatpush2.bf16.msra.mxu0 0
      %1536 = vmatprep.subr.bf16.mxu0 0
      %1537 = vmatpush2.bf16.msra.mxu0 0
      %1538 = vmatprep.subr.bf16.mxu0 0
      %1539 = vmatpush2.bf16.msra.mxu0 0
      %1540 = vmatprep.subr.bf16.mxu0 0
      %1541 = vmatpush2.bf16.msra.mxu0 0
      %1542 = vmatprep.subr.bf16.mxu0 0
      %1543 = vmatpush2.bf16.msra.mxu0 0
      %1544 = vmatprep.subr.bf16.mxu0 0
      %1545 = vmatpush2.bf16.msra.mxu0 0
      %1546 = vmatprep.mubr.bf16.mxu0 0
      %1547 = vmatmul.mubr.bf16.gmra.mxu0 %v1462
      %v1548 = vpop.f32.mrf.mxu0
      %v1549 = vadd.f32 0.0, %v1548
      %v1550 = vpop.f32.mrf.mxu0
      %v1551 = vpop.f32.mrf.mxu0
      %v1552 = vpop.f32.mrf.mxu0
      %1553 = vdwg.mxu0
      %v1554 = vadd.f32 %v1448, %v1508
      %v1555 = vadd.f32 %v1449, %v1510
      %v1556 = vadd.f32 %v1450, %v1549
      %s1557 = scalar_lea.vmem %s2, 24
      %v1558 = vld [vmem:[%s1557] sm:$0xf]
      %1559 = vrot.lane.b32.xlu0 %v394, 92
      %v1560 = vpop.permute.xlu0 %1559
      %1561 = vrot.lane.b32.xlu0 %v395, 92
      %v1562 = vpop.permute.xlu0 %1561
      %1563 = vrot.lane.b32.xlu0 %v396, 92
      %v1564 = vpop.permute.xlu0 %1563
      %vm1565 = vcmask 752640
      %v1566 = vsel %vm1565, %v1560, %v1562
      %v1567 = vsel %vm1565, %v1562, %v1564
      %v1569 = vsel %vm397, %v1558, 0
      %v1572 = vsel %vm401, %v1566, 0
      %v1575 = vsel %vm401, %v1567, 0
      %v1578 = vsel %vm401, %v1564, 0
      %1580 = vmatprep.subr.bf16.mxu0 0
      %1581 = vmatpush1.bf16.msra.mxu0 0
      %1582 = vmatprep.subr.bf16.mxu0 0
      %1583 = vmatpush1.bf16.msra.mxu0 0
      %1584 = vmatprep.subr.bf16.mxu0 0
      %1585 = vmatpush1.bf16.msra.mxu0 0
      %1586 = vmatprep.subr.bf16.mxu0 0
      %1587 = vmatpush1.bf16.msra.mxu0 0
      %1588 = vmatprep.subr.bf16.mxu0 0
      %1589 = vmatpush1.bf16.msra.mxu0 0
      %1590 = vmatprep.subr.bf16.mxu0 0
      %1591 = vmatpush1.bf16.msra.mxu0 0
      %1592 = vmatprep.subr.bf16.mxu0 0
      %1593 = vmatpush1.bf16.msra.mxu0 0
      %1594 = vmatprep.subr.bf16.mxu0 %v1575
      %1595 = vmatpush1.bf16.msra.mxu0 %v1572
      %1596 = vmatprep.subr.bf16.mxu0 0
      %1597 = vmatpush2.bf16.msra.mxu0 0
      %1598 = vmatprep.subr.bf16.mxu0 0
      %1599 = vmatpush2.bf16.msra.mxu0 0
      %1600 = vmatprep.subr.bf16.mxu0 0
      %1601 = vmatpush2.bf16.msra.mxu0 0
      %1602 = vmatprep.subr.bf16.mxu0 0
      %1603 = vmatpush2.bf16.msra.mxu0 0
      %1604 = vmatprep.subr.bf16.mxu0 0
      %1605 = vmatpush2.bf16.msra.mxu0 0
      %1606 = vmatprep.subr.bf16.mxu0 0
      %1607 = vmatpush2.bf16.msra.mxu0 0
      %1608 = vmatprep.subr.bf16.mxu0 0
      %1609 = vmatpush2.bf16.msra.mxu0 0
      %1610 = vmatprep.subr.bf16.mxu0 0
      %1611 = vmatpush2.bf16.msra.mxu0 0
      %1612 = vmatprep.mubr.bf16.mxu0 0
      %1613 = vmatmul.mubr.bf16.gmra.mxu0 %v1569
      %v1614 = vpop.f32.mrf.mxu0
      %v1615 = vadd.f32 0.0, %v1614
      %v1616 = vpop.f32.mrf.mxu0
      %v1617 = vadd.f32 0.0, %v1616
      %v1618 = vpop.f32.mrf.mxu0
      %v1619 = vpop.f32.mrf.mxu0
      %1620 = vdwg.mxu0
      %1621 = vmatprep.subr.bf16.mxu0 0
      %1622 = vmatpush1.bf16.msra.mxu0 0
      %1623 = vmatprep.subr.bf16.mxu0 0
      %1624 = vmatpush1.bf16.msra.mxu0 0
      %1625 = vmatprep.subr.bf16.mxu0 0
      %1626 = vmatpush1.bf16.msra.mxu0 0
      %1627 = vmatprep.subr.bf16.mxu0 0
      %1628 = vmatpush1.bf16.msra.mxu0 0
      %1629 = vmatprep.subr.bf16.mxu0 0
      %1630 = vmatpush1.bf16.msra.mxu0 0
      %1631 = vmatprep.subr.bf16.mxu0 0
      %1632 = vmatpush1.bf16.msra.mxu0 0
      %1633 = vmatprep.subr.bf16.mxu0 0
      %1634 = vmatpush1.bf16.msra.mxu0 0
      %1635 = vmatprep.subr.bf16.mxu0 0
      %1636 = vmatpush1.bf16.msra.mxu0 %v1578
      %1637 = vmatprep.subr.bf16.mxu0 0
      %1638 = vmatpush2.bf16.msra.mxu0 0
      %1639 = vmatprep.subr.bf16.mxu0 0
      %1640 = vmatpush2.bf16.msra.mxu0 0
      %1641 = vmatprep.subr.bf16.mxu0 0
      %1642 = vmatpush2.bf16.msra.mxu0 0
      %1643 = vmatprep.subr.bf16.mxu0 0
      %1644 = vmatpush2.bf16.msra.mxu0 0
      %1645 = vmatprep.subr.bf16.mxu0 0
      %1646 = vmatpush2.bf16.msra.mxu0 0
      %1647 = vmatprep.subr.bf16.mxu0 0
      %1648 = vmatpush2.bf16.msra.mxu0 0
      %1649 = vmatprep.subr.bf16.mxu0 0
      %1650 = vmatpush2.bf16.msra.mxu0 0
      %1651 = vmatprep.subr.bf16.mxu0 0
      %1652 = vmatpush2.bf16.msra.mxu0 0
      %1653 = vmatprep.mubr.bf16.mxu0 0
      %1654 = vmatmul.mubr.bf16.gmra.mxu0 %v1569
      %v1655 = vpop.f32.mrf.mxu0
      %v1656 = vadd.f32 0.0, %v1655
      %v1657 = vpop.f32.mrf.mxu0
      %v1658 = vpop.f32.mrf.mxu0
      %v1659 = vpop.f32.mrf.mxu0
      %1660 = vdwg.mxu0
      %v1661 = vadd.f32 %v1554, %v1615
      %v1662 = vadd.f32 %v1555, %v1617
      %v1663 = vadd.f32 %v1556, %v1656
      %s1664 = scalar_lea.vmem %s3, 24
      %v1665 = vld [vmem:[%s1664] sm:$0xf]
      %1666 = vrot.lane.b32.xlu0 %v286, 92
      %v1667 = vpop.permute.xlu0 %1666
      %1668 = vrot.lane.b32.xlu0 %v287, 92
      %v1669 = vpop.permute.xlu0 %1668
      %1670 = vrot.lane.b32.xlu0 %v288, 92
      %v1671 = vpop.permute.xlu0 %1670
      %v1672 = vsel %vm1565, %v1667, %v1669
      %v1673 = vsel %vm1565, %v1669, %v1671
      %v1675 = vsel %vm289, %v1665, 0
      %v1678 = vsel %vm293, %v1672, 0
      %v1681 = vsel %vm293, %v1673, 0
      %v1684 = vsel %vm293, %v1671, 0
      %1686 = vmatprep.subr.bf16.mxu0 0
      %1687 = vmatpush1.bf16.msra.mxu0 0
      %1688 = vmatprep.subr.bf16.mxu0 0
      %1689 = vmatpush1.bf16.msra.mxu0 0
      %1690 = vmatprep.subr.bf16.mxu0 0
      %1691 = vmatpush1.bf16.msra.mxu0 0
      %1692 = vmatprep.subr.bf16.mxu0 0
      %1693 = vmatpush1.bf16.msra.mxu0 0
      %1694 = vmatprep.subr.bf16.mxu0 0
      %1695 = vmatpush1.bf16.msra.mxu0 0
      %1696 = vmatprep.subr.bf16.mxu0 0
      %1697 = vmatpush1.bf16.msra.mxu0 0
      %1698 = vmatprep.subr.bf16.mxu0 0
      %1699 = vmatpush1.bf16.msra.mxu0 0
      %1700 = vmatprep.subr.bf16.mxu0 %v1681
      %1701 = vmatpush1.bf16.msra.mxu0 %v1678
      %1702 = vmatprep.subr.bf16.mxu0 0
      %1703 = vmatpush2.bf16.msra.mxu0 0
      %1704 = vmatprep.subr.bf16.mxu0 0
      %1705 = vmatpush2.bf16.msra.mxu0 0
      %1706 = vmatprep.subr.bf16.mxu0 0
      %1707 = vmatpush2.bf16.msra.mxu0 0
      %1708 = vmatprep.subr.bf16.mxu0 0
      %1709 = vmatpush2.bf16.msra.mxu0 0
      %1710 = vmatprep.subr.bf16.mxu0 0
      %1711 = vmatpush2.bf16.msra.mxu0 0
      %1712 = vmatprep.subr.bf16.mxu0 0
      %1713 = vmatpush2.bf16.msra.mxu0 0
      %1714 = vmatprep.subr.bf16.mxu0 0
      %1715 = vmatpush2.bf16.msra.mxu0 0
      %1716 = vmatprep.subr.bf16.mxu0 0
      %1717 = vmatpush2.bf16.msra.mxu0 0
      %1718 = vmatprep.mubr.bf16.mxu0 0
      %1719 = vmatmul.mubr.bf16.gmra.mxu0 %v1675
      %v1720 = vpop.f32.mrf.mxu0
      %v1721 = vadd.f32 0.0, %v1720
      %v1722 = vpop.f32.mrf.mxu0
      %v1723 = vadd.f32 0.0, %v1722
      %v1724 = vpop.f32.mrf.mxu0
      %v1725 = vpop.f32.mrf.mxu0
      %1726 = vdwg.mxu0
      %1727 = vmatprep.subr.bf16.mxu0 0
      %1728 = vmatpush1.bf16.msra.mxu0 0
      %1729 = vmatprep.subr.bf16.mxu0 0
      %1730 = vmatpush1.bf16.msra.mxu0 0
      %1731 = vmatprep.subr.bf16.mxu0 0
      %1732 = vmatpush1.bf16.msra.mxu0 0
      %1733 = vmatprep.subr.bf16.mxu0 0
      %1734 = vmatpush1.bf16.msra.mxu0 0
      %1735 = vmatprep.subr.bf16.mxu0 0
      %1736 = vmatpush1.bf16.msra.mxu0 0
      %1737 = vmatprep.subr.bf16.mxu0 0
      %1738 = vmatpush1.bf16.msra.mxu0 0
      %1739 = vmatprep.subr.bf16.mxu0 0
      %1740 = vmatpush1.bf16.msra.mxu0 0
      %1741 = vmatprep.subr.bf16.mxu0 0
      %1742 = vmatpush1.bf16.msra.mxu0 %v1684
      %1743 = vmatprep.subr.bf16.mxu0 0
      %1744 = vmatpush2.bf16.msra.mxu0 0
      %1745 = vmatprep.subr.bf16.mxu0 0
      %1746 = vmatpush2.bf16.msra.mxu0 0
      %1747 = vmatprep.subr.bf16.mxu0 0
      %1748 = vmatpush2.bf16.msra.mxu0 0
      %1749 = vmatprep.subr.bf16.mxu0 0
      %1750 = vmatpush2.bf16.msra.mxu0 0
      %1751 = vmatprep.subr.bf16.mxu0 0
      %1752 = vmatpush2.bf16.msra.mxu0 0
      %1753 = vmatprep.subr.bf16.mxu0 0
      %1754 = vmatpush2.bf16.msra.mxu0 0
      %1755 = vmatprep.subr.bf16.mxu0 0
      %1756 = vmatpush2.bf16.msra.mxu0 0
      %1757 = vmatprep.subr.bf16.mxu0 0
      %1758 = vmatpush2.bf16.msra.mxu0 0
      %1759 = vmatprep.mubr.bf16.mxu0 0
      %1760 = vmatmul.mubr.bf16.gmra.mxu0 %v1675
      %v1761 = vpop.f32.mrf.mxu0
      %v1762 = vadd.f32 0.0, %v1761
      %v1763 = vpop.f32.mrf.mxu0
      %v1764 = vpop.f32.mrf.mxu0
      %v1765 = vpop.f32.mrf.mxu0
      %1766 = vdwg.mxu0
      %v1767 = vadd.f32 %v1661, %v1721
      %v1768 = vadd.f32 %v1662, %v1723
      %v1769 = vadd.f32 %v1663, %v1762
      %s1770 = scalar_lea.vmem %s2, 28
      %v1771 = vld [vmem:[%s1770] sm:$0xf]
      %1772 = vrot.lane.b32.xlu0 %v394, 91
      %v1773 = vpop.permute.xlu0 %1772
      %1774 = vrot.lane.b32.xlu0 %v395, 91
      %v1775 = vpop.permute.xlu0 %1774
      %1776 = vrot.lane.b32.xlu0 %v396, 91
      %v1777 = vpop.permute.xlu0 %1776
      %vm1778 = vcmask 744448
      %v1779 = vsel %vm1778, %v1773, %v1775
      %v1780 = vsel %vm1778, %v1775, %v1777
      %v1782 = vsel %vm397, %v1771, 0
      %v1785 = vsel %vm401, %v1779, 0
      %v1788 = vsel %vm401, %v1780, 0
      %v1791 = vsel %vm401, %v1777, 0
      %1793 = vmatprep.subr.bf16.mxu0 0
      %1794 = vmatpush1.bf16.msra.mxu0 0
      %1795 = vmatprep.subr.bf16.mxu0 0
      %1796 = vmatpush1.bf16.msra.mxu0 0
      %1797 = vmatprep.subr.bf16.mxu0 0
      %1798 = vmatpush1.bf16.msra.mxu0 0
      %1799 = vmatprep.subr.bf16.mxu0 0
      %1800 = vmatpush1.bf16.msra.mxu0 0
      %1801 = vmatprep.subr.bf16.mxu0 0
      %1802 = vmatpush1.bf16.msra.mxu0 0
      %1803 = vmatprep.subr.bf16.mxu0 0
      %1804 = vmatpush1.bf16.msra.mxu0 0
      %1805 = vmatprep.subr.bf16.mxu0 0
      %1806 = vmatpush1.bf16.msra.mxu0 0
      %1807 = vmatprep.subr.bf16.mxu0 %v1788
      %1808 = vmatpush1.bf16.msra.mxu0 %v1785
      %1809 = vmatprep.subr.bf16.mxu0 0
      %1810 = vmatpush2.bf16.msra.mxu0 0
      %1811 = vmatprep.subr.bf16.mxu0 0
      %1812 = vmatpush2.bf16.msra.mxu0 0
      %1813 = vmatprep.subr.bf16.mxu0 0
      %1814 = vmatpush2.bf16.msra.mxu0 0
      %1815 = vmatprep.subr.bf16.mxu0 0
      %1816 = vmatpush2.bf16.msra.mxu0 0
      %1817 = vmatprep.subr.bf16.mxu0 0
      %1818 = vmatpush2.bf16.msra.mxu0 0
      %1819 = vmatprep.subr.bf16.mxu0 0
      %1820 = vmatpush2.bf16.msra.mxu0 0
      %1821 = vmatprep.subr.bf16.mxu0 0
      %1822 = vmatpush2.bf16.msra.mxu0 0
      %1823 = vmatprep.subr.bf16.mxu0 0
      %1824 = vmatpush2.bf16.msra.mxu0 0
      %1825 = vmatprep.mubr.bf16.mxu0 0
      %1826 = vmatmul.mubr.bf16.gmra.mxu0 %v1782
      %v1827 = vpop.f32.mrf.mxu0
      %v1828 = vadd.f32 0.0, %v1827
      %v1829 = vpop.f32.mrf.mxu0
      %v1830 = vadd.f32 0.0, %v1829
      %v1831 = vpop.f32.mrf.mxu0
      %v1832 = vpop.f32.mrf.mxu0
      %1833 = vdwg.mxu0
      %1834 = vmatprep.subr.bf16.mxu0 0
      %1835 = vmatpush1.bf16.msra.mxu0 0
      %1836 = vmatprep.subr.bf16.mxu0 0
      %1837 = vmatpush1.bf16.msra.mxu0 0
      %1838 = vmatprep.subr.bf16.mxu0 0
      %1839 = vmatpush1.bf16.msra.mxu0 0
      %1840 = vmatprep.subr.bf16.mxu0 0
      %1841 = vmatpush1.bf16.msra.mxu0 0
      %1842 = vmatprep.subr.bf16.mxu0 0
      %1843 = vmatpush1.bf16.msra.mxu0 0
      %1844 = vmatprep.subr.bf16.mxu0 0
      %1845 = vmatpush1.bf16.msra.mxu0 0
      %1846 = vmatprep.subr.bf16.mxu0 0
      %1847 = vmatpush1.bf16.msra.mxu0 0
      %1848 = vmatprep.subr.bf16.mxu0 0
      %1849 = vmatpush1.bf16.msra.mxu0 %v1791
      %1850 = vmatprep.subr.bf16.mxu0 0
      %1851 = vmatpush2.bf16.msra.mxu0 0
      %1852 = vmatprep.subr.bf16.mxu0 0
      %1853 = vmatpush2.bf16.msra.mxu0 0
      %1854 = vmatprep.subr.bf16.mxu0 0
      %1855 = vmatpush2.bf16.msra.mxu0 0
      %1856 = vmatprep.subr.bf16.mxu0 0
      %1857 = vmatpush2.bf16.msra.mxu0 0
      %1858 = vmatprep.subr.bf16.mxu0 0
      %1859 = vmatpush2.bf16.msra.mxu0 0
      %1860 = vmatprep.subr.bf16.mxu0 0
      %1861 = vmatpush2.bf16.msra.mxu0 0
      %1862 = vmatprep.subr.bf16.mxu0 0
      %1863 = vmatpush2.bf16.msra.mxu0 0
      %1864 = vmatprep.subr.bf16.mxu0 0
      %1865 = vmatpush2.bf16.msra.mxu0 0
      %1866 = vmatprep.mubr.bf16.mxu0 0
      %1867 = vmatmul.mubr.bf16.gmra.mxu0 %v1782
      %v1868 = vpop.f32.mrf.mxu0
      %v1869 = vadd.f32 0.0, %v1868
      %v1870 = vpop.f32.mrf.mxu0
      %v1871 = vpop.f32.mrf.mxu0
      %v1872 = vpop.f32.mrf.mxu0
      %1873 = vdwg.mxu0
      %v1874 = vadd.f32 %v1767, %v1828
      %v1875 = vadd.f32 %v1768, %v1830
      %v1876 = vadd.f32 %v1769, %v1869
      %s1877 = scalar_lea.vmem %s3, 28
      %v1878 = vld [vmem:[%s1877] sm:$0xf]
      %1879 = vrot.lane.b32.xlu0 %v286, 91
      %v1880 = vpop.permute.xlu0 %1879
      %1881 = vrot.lane.b32.xlu0 %v287, 91
      %v1882 = vpop.permute.xlu0 %1881
      %1883 = vrot.lane.b32.xlu0 %v288, 91
      %v1884 = vpop.permute.xlu0 %1883
      %v1885 = vsel %vm1778, %v1880, %v1882
      %v1886 = vsel %vm1778, %v1882, %v1884
      %v1888 = vsel %vm289, %v1878, 0
      %v1891 = vsel %vm293, %v1885, 0
      %v1894 = vsel %vm293, %v1886, 0
      %v1897 = vsel %vm293, %v1884, 0
      %1899 = vmatprep.subr.bf16.mxu0 0
      %1900 = vmatpush1.bf16.msra.mxu0 0
      %1901 = vmatprep.subr.bf16.mxu0 0
      %1902 = vmatpush1.bf16.msra.mxu0 0
      %1903 = vmatprep.subr.bf16.mxu0 0
      %1904 = vmatpush1.bf16.msra.mxu0 0
      %1905 = vmatprep.subr.bf16.mxu0 0
      %1906 = vmatpush1.bf16.msra.mxu0 0
      %1907 = vmatprep.subr.bf16.mxu0 0
      %1908 = vmatpush1.bf16.msra.mxu0 0
      %1909 = vmatprep.subr.bf16.mxu0 0
      %1910 = vmatpush1.bf16.msra.mxu0 0
      %1911 = vmatprep.subr.bf16.mxu0 0
      %1912 = vmatpush1.bf16.msra.mxu0 0
      %1913 = vmatprep.subr.bf16.mxu0 %v1894
      %1914 = vmatpush1.bf16.msra.mxu0 %v1891
      %1915 = vmatprep.subr.bf16.mxu0 0
      %1916 = vmatpush2.bf16.msra.mxu0 0
      %1917 = vmatprep.subr.bf16.mxu0 0
      %1918 = vmatpush2.bf16.msra.mxu0 0
      %1919 = vmatprep.subr.bf16.mxu0 0
      %1920 = vmatpush2.bf16.msra.mxu0 0
      %1921 = vmatprep.subr.bf16.mxu0 0
      %1922 = vmatpush2.bf16.msra.mxu0 0
      %1923 = vmatprep.subr.bf16.mxu0 0
      %1924 = vmatpush2.bf16.msra.mxu0 0
      %1925 = vmatprep.subr.bf16.mxu0 0
      %1926 = vmatpush2.bf16.msra.mxu0 0
      %1927 = vmatprep.subr.bf16.mxu0 0
      %1928 = vmatpush2.bf16.msra.mxu0 0
      %1929 = vmatprep.subr.bf16.mxu0 0
      %1930 = vmatpush2.bf16.msra.mxu0 0
      %1931 = vmatprep.mubr.bf16.mxu0 0
      %1932 = vmatmul.mubr.bf16.gmra.mxu0 %v1888
      %v1933 = vpop.f32.mrf.mxu0
      %v1934 = vadd.f32 0.0, %v1933
      %v1935 = vpop.f32.mrf.mxu0
      %v1936 = vadd.f32 0.0, %v1935
      %v1937 = vpop.f32.mrf.mxu0
      %v1938 = vpop.f32.mrf.mxu0
      %1939 = vdwg.mxu0
      %1940 = vmatprep.subr.bf16.mxu0 0
      %1941 = vmatpush1.bf16.msra.mxu0 0
      %1942 = vmatprep.subr.bf16.mxu0 0
      %1943 = vmatpush1.bf16.msra.mxu0 0
      %1944 = vmatprep.subr.bf16.mxu0 0
      %1945 = vmatpush1.bf16.msra.mxu0 0
      %1946 = vmatprep.subr.bf16.mxu0 0
      %1947 = vmatpush1.bf16.msra.mxu0 0
      %1948 = vmatprep.subr.bf16.mxu0 0
      %1949 = vmatpush1.bf16.msra.mxu0 0
      %1950 = vmatprep.subr.bf16.mxu0 0
      %1951 = vmatpush1.bf16.msra.mxu0 0
      %1952 = vmatprep.subr.bf16.mxu0 0
      %1953 = vmatpush1.bf16.msra.mxu0 0
      %1954 = vmatprep.subr.bf16.mxu0 0
      %1955 = vmatpush1.bf16.msra.mxu0 %v1897
      %1956 = vmatprep.subr.bf16.mxu0 0
      %1957 = vmatpush2.bf16.msra.mxu0 0
      %1958 = vmatprep.subr.bf16.mxu0 0
      %1959 = vmatpush2.bf16.msra.mxu0 0
      %1960 = vmatprep.subr.bf16.mxu0 0
      %1961 = vmatpush2.bf16.msra.mxu0 0
      %1962 = vmatprep.subr.bf16.mxu0 0
      %1963 = vmatpush2.bf16.msra.mxu0 0
      %1964 = vmatprep.subr.bf16.mxu0 0
      %1965 = vmatpush2.bf16.msra.mxu0 0
      %1966 = vmatprep.subr.bf16.mxu0 0
      %1967 = vmatpush2.bf16.msra.mxu0 0
      %1968 = vmatprep.subr.bf16.mxu0 0
      %1969 = vmatpush2.bf16.msra.mxu0 0
      %1970 = vmatprep.subr.bf16.mxu0 0
      %1971 = vmatpush2.bf16.msra.mxu0 0
      %1972 = vmatprep.mubr.bf16.mxu0 0
      %1973 = vmatmul.mubr.bf16.gmra.mxu0 %v1888
      %v1974 = vpop.f32.mrf.mxu0
      %v1975 = vadd.f32 0.0, %v1974
      %v1976 = vpop.f32.mrf.mxu0
      %v1977 = vpop.f32.mrf.mxu0
      %v1978 = vpop.f32.mrf.mxu0
      %1979 = vdwg.mxu0
      %v1980 = vadd.f32 %v1874, %v1934
      %v1981 = vadd.f32 %v1875, %v1936
      %v1982 = vadd.f32 %v1876, %v1975
      %s1983 = scalar_lea.vmem %s2, 32
      %v1984 = vld [vmem:[%s1983] sm:$0xf]
      %1985 = vrot.lane.b32.xlu0 %v394, 90
      %v1986 = vpop.permute.xlu0 %1985
      %1987 = vrot.lane.b32.xlu0 %v395, 90
      %v1988 = vpop.permute.xlu0 %1987
      %1989 = vrot.lane.b32.xlu0 %v396, 90
      %v1990 = vpop.permute.xlu0 %1989
      %vm1991 = vcmask 736256
      %v1992 = vsel %vm1991, %v1986, %v1988
      %v1993 = vsel %vm1991, %v1988, %v1990
      %v1995 = vsel %vm397, %v1984, 0
      %v1998 = vsel %vm401, %v1992, 0
      %v2001 = vsel %vm401, %v1993, 0
      %v2004 = vsel %vm401, %v1990, 0
      %2006 = vmatprep.subr.bf16.mxu0 0
      %2007 = vmatpush1.bf16.msra.mxu0 0
      %2008 = vmatprep.subr.bf16.mxu0 0
      %2009 = vmatpush1.bf16.msra.mxu0 0
      %2010 = vmatprep.subr.bf16.mxu0 0
      %2011 = vmatpush1.bf16.msra.mxu0 0
      %2012 = vmatprep.subr.bf16.mxu0 0
      %2013 = vmatpush1.bf16.msra.mxu0 0
      %2014 = vmatprep.subr.bf16.mxu0 0
      %2015 = vmatpush1.bf16.msra.mxu0 0
      %2016 = vmatprep.subr.bf16.mxu0 0
      %2017 = vmatpush1.bf16.msra.mxu0 0
      %2018 = vmatprep.subr.bf16.mxu0 0
      %2019 = vmatpush1.bf16.msra.mxu0 0
      %2020 = vmatprep.subr.bf16.mxu0 %v2001
      %2021 = vmatpush1.bf16.msra.mxu0 %v1998
      %2022 = vmatprep.subr.bf16.mxu0 0
      %2023 = vmatpush2.bf16.msra.mxu0 0
      %2024 = vmatprep.subr.bf16.mxu0 0
      %2025 = vmatpush2.bf16.msra.mxu0 0
      %2026 = vmatprep.subr.bf16.mxu0 0
      %2027 = vmatpush2.bf16.msra.mxu0 0
      %2028 = vmatprep.subr.bf16.mxu0 0
      %2029 = vmatpush2.bf16.msra.mxu0 0
      %2030 = vmatprep.subr.bf16.mxu0 0
      %2031 = vmatpush2.bf16.msra.mxu0 0
      %2032 = vmatprep.subr.bf16.mxu0 0
      %2033 = vmatpush2.bf16.msra.mxu0 0
      %2034 = vmatprep.subr.bf16.mxu0 0
      %2035 = vmatpush2.bf16.msra.mxu0 0
      %2036 = vmatprep.subr.bf16.mxu0 0
      %2037 = vmatpush2.bf16.msra.mxu0 0
      %2038 = vmatprep.mubr.bf16.mxu0 0
      %2039 = vmatmul.mubr.bf16.gmra.mxu0 %v1995
      %v2040 = vpop.f32.mrf.mxu0
      %v2041 = vadd.f32 0.0, %v2040
      %v2042 = vpop.f32.mrf.mxu0
      %v2043 = vadd.f32 0.0, %v2042
      %v2044 = vpop.f32.mrf.mxu0
      %v2045 = vpop.f32.mrf.mxu0
      %2046 = vdwg.mxu0
      %2047 = vmatprep.subr.bf16.mxu0 0
      %2048 = vmatpush1.bf16.msra.mxu0 0
      %2049 = vmatprep.subr.bf16.mxu0 0
      %2050 = vmatpush1.bf16.msra.mxu0 0
      %2051 = vmatprep.subr.bf16.mxu0 0
      %2052 = vmatpush1.bf16.msra.mxu0 0
      %2053 = vmatprep.subr.bf16.mxu0 0
      %2054 = vmatpush1.bf16.msra.mxu0 0
      %2055 = vmatprep.subr.bf16.mxu0 0
      %2056 = vmatpush1.bf16.msra.mxu0 0
      %2057 = vmatprep.subr.bf16.mxu0 0
      %2058 = vmatpush1.bf16.msra.mxu0 0
      %2059 = vmatprep.subr.bf16.mxu0 0
      %2060 = vmatpush1.bf16.msra.mxu0 0
      %2061 = vmatprep.subr.bf16.mxu0 0
      %2062 = vmatpush1.bf16.msra.mxu0 %v2004
      %2063 = vmatprep.subr.bf16.mxu0 0
      %2064 = vmatpush2.bf16.msra.mxu0 0
      %2065 = vmatprep.subr.bf16.mxu0 0
      %2066 = vmatpush2.bf16.msra.mxu0 0
      %2067 = vmatprep.subr.bf16.mxu0 0
      %2068 = vmatpush2.bf16.msra.mxu0 0
      %2069 = vmatprep.subr.bf16.mxu0 0
      %2070 = vmatpush2.bf16.msra.mxu0 0
      %2071 = vmatprep.subr.bf16.mxu0 0
      %2072 = vmatpush2.bf16.msra.mxu0 0
      %2073 = vmatprep.subr.bf16.mxu0 0
      %2074 = vmatpush2.bf16.msra.mxu0 0
      %2075 = vmatprep.subr.bf16.mxu0 0
      %2076 = vmatpush2.bf16.msra.mxu0 0
      %2077 = vmatprep.subr.bf16.mxu0 0
      %2078 = vmatpush2.bf16.msra.mxu0 0
      %2079 = vmatprep.mubr.bf16.mxu0 0
      %2080 = vmatmul.mubr.bf16.gmra.mxu0 %v1995
      %v2081 = vpop.f32.mrf.mxu0
      %v2082 = vadd.f32 0.0, %v2081
      %v2083 = vpop.f32.mrf.mxu0
      %v2084 = vpop.f32.mrf.mxu0
      %v2085 = vpop.f32.mrf.mxu0
      %2086 = vdwg.mxu0
      %v2087 = vadd.f32 %v1980, %v2041
      %v2088 = vadd.f32 %v1981, %v2043
      %v2089 = vadd.f32 %v1982, %v2082
      %s2090 = scalar_lea.vmem %s3, 32
      %v2091 = vld [vmem:[%s2090] sm:$0xf]
      %2092 = vrot.lane.b32.xlu0 %v286, 90
      %v2093 = vpop.permute.xlu0 %2092
      %2094 = vrot.lane.b32.xlu0 %v287, 90
      %v2095 = vpop.permute.xlu0 %2094
      %2096 = vrot.lane.b32.xlu0 %v288, 90
      %v2097 = vpop.permute.xlu0 %2096
      %v2098 = vsel %vm1991, %v2093, %v2095
      %v2099 = vsel %vm1991, %v2095, %v2097
      %v2101 = vsel %vm289, %v2091, 0
      %v2104 = vsel %vm293, %v2098, 0
      %v2107 = vsel %vm293, %v2099, 0
      %v2110 = vsel %vm293, %v2097, 0
      %2112 = vmatprep.subr.bf16.mxu0 0
      %2113 = vmatpush1.bf16.msra.mxu0 0
      %2114 = vmatprep.subr.bf16.mxu0 0
      %2115 = vmatpush1.bf16.msra.mxu0 0
      %2116 = vmatprep.subr.bf16.mxu0 0
      %2117 = vmatpush1.bf16.msra.mxu0 0
      %2118 = vmatprep.subr.bf16.mxu0 0
      %2119 = vmatpush1.bf16.msra.mxu0 0
      %2120 = vmatprep.subr.bf16.mxu0 0
      %2121 = vmatpush1.bf16.msra.mxu0 0
      %2122 = vmatprep.subr.bf16.mxu0 0
      %2123 = vmatpush1.bf16.msra.mxu0 0
      %2124 = vmatprep.subr.bf16.mxu0 0
      %2125 = vmatpush1.bf16.msra.mxu0 0
      %2126 = vmatprep.subr.bf16.mxu0 %v2107
      %2127 = vmatpush1.bf16.msra.mxu0 %v2104
      %2128 = vmatprep.subr.bf16.mxu0 0
      %2129 = vmatpush2.bf16.msra.mxu0 0
      %2130 = vmatprep.subr.bf16.mxu0 0
      %2131 = vmatpush2.bf16.msra.mxu0 0
      %2132 = vmatprep.subr.bf16.mxu0 0
      %2133 = vmatpush2.bf16.msra.mxu0 0
      %2134 = vmatprep.subr.bf16.mxu0 0
      %2135 = vmatpush2.bf16.msra.mxu0 0
      %2136 = vmatprep.subr.bf16.mxu0 0
      %2137 = vmatpush2.bf16.msra.mxu0 0
      %2138 = vmatprep.subr.bf16.mxu0 0
      %2139 = vmatpush2.bf16.msra.mxu0 0
      %2140 = vmatprep.subr.bf16.mxu0 0
      %2141 = vmatpush2.bf16.msra.mxu0 0
      %2142 = vmatprep.subr.bf16.mxu0 0
      %2143 = vmatpush2.bf16.msra.mxu0 0
      %2144 = vmatprep.mubr.bf16.mxu0 0
      %2145 = vmatmul.mubr.bf16.gmra.mxu0 %v2101
      %v2146 = vpop.f32.mrf.mxu0
      %v2147 = vadd.f32 0.0, %v2146
      %v2148 = vpop.f32.mrf.mxu0
      %v2149 = vadd.f32 0.0, %v2148
      %v2150 = vpop.f32.mrf.mxu0
      %v2151 = vpop.f32.mrf.mxu0
      %2152 = vdwg.mxu0
      %2153 = vmatprep.subr.bf16.mxu0 0
      %2154 = vmatpush1.bf16.msra.mxu0 0
      %2155 = vmatprep.subr.bf16.mxu0 0
      %2156 = vmatpush1.bf16.msra.mxu0 0
      %2157 = vmatprep.subr.bf16.mxu0 0
      %2158 = vmatpush1.bf16.msra.mxu0 0
      %2159 = vmatprep.subr.bf16.mxu0 0
      %2160 = vmatpush1.bf16.msra.mxu0 0
      %2161 = vmatprep.subr.bf16.mxu0 0
      %2162 = vmatpush1.bf16.msra.mxu0 0
      %2163 = vmatprep.subr.bf16.mxu0 0
      %2164 = vmatpush1.bf16.msra.mxu0 0
      %2165 = vmatprep.subr.bf16.mxu0 0
      %2166 = vmatpush1.bf16.msra.mxu0 0
      %2167 = vmatprep.subr.bf16.mxu0 0
      %2168 = vmatpush1.bf16.msra.mxu0 %v2110
      %2169 = vmatprep.subr.bf16.mxu0 0
      %2170 = vmatpush2.bf16.msra.mxu0 0
      %2171 = vmatprep.subr.bf16.mxu0 0
      %2172 = vmatpush2.bf16.msra.mxu0 0
      %2173 = vmatprep.subr.bf16.mxu0 0
      %2174 = vmatpush2.bf16.msra.mxu0 0
      %2175 = vmatprep.subr.bf16.mxu0 0
      %2176 = vmatpush2.bf16.msra.mxu0 0
      %2177 = vmatprep.subr.bf16.mxu0 0
      %2178 = vmatpush2.bf16.msra.mxu0 0
      %2179 = vmatprep.subr.bf16.mxu0 0
      %2180 = vmatpush2.bf16.msra.mxu0 0
      %2181 = vmatprep.subr.bf16.mxu0 0
      %2182 = vmatpush2.bf16.msra.mxu0 0
      %2183 = vmatprep.subr.bf16.mxu0 0
      %2184 = vmatpush2.bf16.msra.mxu0 0
      %2185 = vmatprep.mubr.bf16.mxu0 0
      %2186 = vmatmul.mubr.bf16.gmra.mxu0 %v2101
      %v2187 = vpop.f32.mrf.mxu0
      %v2188 = vadd.f32 0.0, %v2187
      %v2189 = vpop.f32.mrf.mxu0
      %v2190 = vpop.f32.mrf.mxu0
      %v2191 = vpop.f32.mrf.mxu0
      %2192 = vdwg.mxu0
      %v2193 = vadd.f32 %v2087, %v2147
      %v2194 = vadd.f32 %v2088, %v2149
      %v2195 = vadd.f32 %v2089, %v2188
      %v2196 = vld [vmem:[%s4] sm:$0xff]
      %2198 = vset.pattern.permute.xlu0 0
      %2199 = vperm.xlu0 %2198, %v2196
      %v2200 = vpop.permute.xlu0 %2199
      %v2202 = vmul.f32 %v2193, %v2200
      %v2203 = vmul.f32 %v2194, %v2200
      %v2204 = vmul.f32 %v2195, %v2200
      %v2205 = vld [vmem:[%s5] sm:$0xff]
      %2207 = vset.pattern.permute.xlu0 0
      %2208 = vperm.xlu0 %2207, %v2205
      %v2209 = vpop.permute.xlu0 %2208
      %v2211 = vadd.f32 %v2202, %v2209
      %v2212 = vadd.f32 %v2203, %v2209
      %v2213 = vadd.f32 %v2204, %v2209
      %v2214 = vmax.f32 %v2211, 0.0
      %v2215 = vmax.f32 %v2212, 0.0
      %v2216 = vmax.f32 %v2213, 0.0
      %2217 = vst [vmem:[%s271] sm:$0xff] %v2214
      %2218 = vst [vmem:[%s271 + $0x8] sm:$0xff] %v2215
      %vm2219 = vcmask 261120
      %2220 = vst.msk [vmem:[%s271 + $0x10] sm:$0xff] %vm2219, %v2216
      %p2221 = scmp.lt.s32.totalorder %s17, 1
      %s2222 = scalar_select %p2221, %s17, 1
      %s2223 = smul.addr %s2222, 3
      %s2224 = smul.addr %s2223, 8
      %s2225 = scalar_lea.vmem %s6, %s2224
      // Predicated region
      $region45: #{decoder_forward.6} parent=43 // pred_check
        %p2226 = pneg %p171
      $region46: #{decoder_forward.6} parent=43 // pred_check_branch
        %2228 = sbr.rel (%p2226) target = $region48
      $region47: #{decoder_forward.6} parent=43 // pred_region
        _
      $region48: #{decoder_forward.6} parent=43 // pred_fallthru
        _
    $region44: #{decoder_forward.6} parent=5 // pred_fallthru
      _
    %p2229 = scmp.le.s32.totalorder 2, %s12
    // Predicated region
    $region49: #{decoder_forward.6} parent=5 // pred_check
      %p2230 = pneg %p2229
    $region50: #{decoder_forward.6} parent=5 // pred_check_branch
      %2232 = sbr.rel (%p2230) target = $region52
    $region51: #{decoder_forward.6} parent=5 // pred_region
      %s2233 = ssub.s32 %s12, 2
      // Predicated region
      $region53: #{decoder_forward.6} parent=51 // pred_check
        %p2234 = pneg %p177
      $region54: #{decoder_forward.6} parent=51 // pred_check_branch
        %2236 = sbr.rel (%p2234) target = $region56
      $region55: #{decoder_forward.6} parent=51 // pred_region
        %p2237 = scmp.lt.s32.totalorder %s18, 1
        %s2238 = scalar_select %p2237, %s18, 1
        %s2239 = smul.addr %s2238, 3
        %s2240 = smul.addr %s2239, 8
        %s2241 = scalar_lea.vmem %s6, %s2240
      $region56: #{decoder_forward.6} parent=51 // pred_fallthru
        _
    $region52: #{decoder_forward.6} parent=5 // pred_fallthru
      _
  $region6: #{decoder_forward.6} parent=0 // loop_footer
    %s16 = sadd.s32 1, %s12
  $region7: #{decoder_forward.6} parent=0 // loop_footer_branch
    %11 = sbr.rel target = $region3
  $region8: #{decoder_forward.6} parent=0 // loop_exit
    _

// kernel: decoder_forward.7
$region0: #{decoder_forward.7}
  #allocation0 [shape = 'u32[]', space=smem, size = 0x4, offset = 0x4, fixed_abs, tag = 'smem constant byte address 0x4 - core index']
  #allocation1 [shape = 'u32[144,128]{1,0:T(1,128)}', space=vmem, size = 0x12000, scoped, tag = 'internal scratch']
  %s0 = inlined_call_operand.vmem [shape: bf16[2,8,1190], index: 0, kind: input, shape index: {}]
  %s1 = inlined_call_operand.vmem [shape: bf16[2,4,1190], index: 1, kind: input, shape index: {}]
  %s2 = inlined_call_operand.vmem [shape: bf16[9,4,8], index: 2, kind: input, shape index: {}]
  %s3 = inlined_call_operand.vmem [shape: bf16[9,4,4], index: 3, kind: input, shape index: {}]
  %s4 = inlined_call_operand.vmem [shape: f32[4,1], index: 4, kind: input, shape index: {}]
  %s5 = inlined_call_operand.vmem [shape: f32[4,1], index: 5, kind: input, shape index: {}]
  %s6 = inlined_call_operand.vmem [shape: f32[2,4,1088], index: 6, kind: output, shape index: {}]
  %s7 = sld [smem:[#allocation0]]
  $region57: #{decoder_forward.7} parent=0
    _
  %s9 = ssub.s32 1, %s7
  %s10 = scalar_select 0, %s9, %s7
  loop: start=0, step=1, limit=4
  $region2: #{decoder_forward.7} parent=0 // loop_pre_header
    _
  $region3: #{decoder_forward.7} parent=0 // loop_header
    %s12 = sphi 0, %s16
    %p13 = scmp.ge.s32.totalorder %s12, 4
    %s22 = sphi 0, %s24
    %s25 = sphi 0, %s22
    %s26 = sphi 0, %s25
    %s42 = sphi 0, %s26
    %s48 = sphi 0, %s50
    %s51 = sphi 0, %s48
    %s52 = sphi 0, %s51
    %s68 = sphi 0, %s52
    %s72 = sphi 0, %s72
    %s74 = sphi 0, %s72
    %s75 = sphi 0, %s74
    %s89 = sphi 0, %s75
    %s93 = sphi 0, %s93
    %s95 = sphi 0, %s93
    %s96 = sphi 0, %s95
    %s110 = sphi 0, %s96
    %s114 = sphi 0, %s114
    %s116 = sphi 0, %s114
    %s117 = sphi 0, %s116
    %s131 = sphi 0, %s117
    %s135 = sphi 0, %s135
    %s137 = sphi 0, %s135
    %s138 = sphi 0, %s137
    %s152 = sphi 0, %s138
    %s158 = sphi 0, %s160
    %s161 = sphi 0, %s158
    %s162 = sphi 0, %s161
    %s178 = sphi 0, %s162
  $region4: #{decoder_forward.7} parent=0 // loop_header_branch
    %15 = sbr.rel (%p13) target = $region8
  $region5: #{decoder_forward.7} parent=0 // loop_body
    %s17 = ssub.s32 %s12, 1
    %s18 = ssub.s32 %s12, 2
    %s19 = sadd.s32 %s12, 1
    %s20 = ssub.s32 %s12, %s19
    %p21 = scmp.eq.s32.totalorder %s20, 0
    %s23 = sadd.s32 %s22, 1
    %s24 = scalar_select %p21, %s22, %s23
    %p27 = pneg %p21
    %p28 = scmp.eq.s32.totalorder %s12, 1
    %p29 = por %p27, %p28
    %p30 = scmp.ne.s32.totalorder %s22, %s25
    %p31 = scmp.eq.s32.totalorder %s12, 0
    %p32 = por %p30, %p31
    %p33 = scmp.ne.s32.totalorder %s22, %s25
    %p34 = scmp.eq.s32.totalorder %s17, 1
    %p35 = por %p33, %p34
    %p36 = scmp.ne.s32.totalorder %s25, %s26
    %p37 = scmp.eq.s32.totalorder %s17, 0
    %p38 = por %p36, %p37
    %p39 = scmp.ne.s32.totalorder %s25, %s26
    %p40 = scmp.eq.s32.totalorder %s18, 1
    %p41 = por %p39, %p40
    %p43 = scmp.ne.s32.totalorder %s26, %s42
    %p44 = scmp.eq.s32.totalorder %s18, 0
    %p45 = por %p43, %p44
    %s46 = ssub.s32 %s12, %s19
    %p47 = scmp.eq.s32.totalorder %s46, 0
    %s49 = sadd.s32 %s48, 1
    %s50 = scalar_select %p47, %s48, %s49
    %p53 = pneg %p47
    %p54 = scmp.eq.s32.totalorder %s12, 1
    %p55 = por %p53, %p54
    %p56 = scmp.ne.s32.totalorder %s48, %s51
    %p57 = scmp.eq.s32.totalorder %s12, 0
    %p58 = por %p56, %p57
    %p59 = scmp.ne.s32.totalorder %s48, %s51
    %p60 = scmp.eq.s32.totalorder %s17, 1
    %p61 = por %p59, %p60
    %p62 = scmp.ne.s32.totalorder %s51, %s52
    %p63 = scmp.eq.s32.totalorder %s17, 0
    %p64 = por %p62, %p63
    %p65 = scmp.ne.s32.totalorder %s51, %s52
    %p66 = scmp.eq.s32.totalorder %s18, 1
    %p67 = por %p65, %p66
    %p69 = scmp.ne.s32.totalorder %s52, %s68
    %p70 = scmp.eq.s32.totalorder %s18, 0
    %p71 = por %p69, %p70
    %s73 = sadd.s32 %s72, 1
    %p76 = scmp.eq.s32.totalorder %s12, 1
    %p77 = scmp.ne.s32.totalorder %s72, %s74
    %p78 = scmp.eq.s32.totalorder %s12, 0
    %p79 = por %p77, %p78
    %p80 = scmp.ne.s32.totalorder %s72, %s74
    %p81 = scmp.eq.s32.totalorder %s17, 1
    %p82 = por %p80, %p81
    %p83 = scmp.ne.s32.totalorder %s74, %s75
    %p84 = scmp.eq.s32.totalorder %s17, 0
    %p85 = por %p83, %p84
    %p86 = scmp.ne.s32.totalorder %s74, %s75
    %p87 = scmp.eq.s32.totalorder %s18, 1
    %p88 = por %p86, %p87
    %p90 = scmp.ne.s32.totalorder %s75, %s89
    %p91 = scmp.eq.s32.totalorder %s18, 0
    %p92 = por %p90, %p91
    %s94 = sadd.s32 %s93, 1
    %p97 = scmp.eq.s32.totalorder %s12, 1
    %p98 = scmp.ne.s32.totalorder %s93, %s95
    %p99 = scmp.eq.s32.totalorder %s12, 0
    %p100 = por %p98, %p99
    %p101 = scmp.ne.s32.totalorder %s93, %s95
    %p102 = scmp.eq.s32.totalorder %s17, 1
    %p103 = por %p101, %p102
    %p104 = scmp.ne.s32.totalorder %s95, %s96
    %p105 = scmp.eq.s32.totalorder %s17, 0
    %p106 = por %p104, %p105
    %p107 = scmp.ne.s32.totalorder %s95, %s96
    %p108 = scmp.eq.s32.totalorder %s18, 1
    %p109 = por %p107, %p108
    %p111 = scmp.ne.s32.totalorder %s96, %s110
    %p112 = scmp.eq.s32.totalorder %s18, 0
    %p113 = por %p111, %p112
    %s115 = sadd.s32 %s114, 1
    %p118 = scmp.eq.s32.totalorder %s12, 1
    %p119 = scmp.ne.s32.totalorder %s114, %s116
    %p120 = scmp.eq.s32.totalorder %s12, 0
    %p121 = por %p119, %p120
    %p122 = scmp.ne.s32.totalorder %s114, %s116
    %p123 = scmp.eq.s32.totalorder %s17, 1
    %p124 = por %p122, %p123
    %p125 = scmp.ne.s32.totalorder %s116, %s117
    %p126 = scmp.eq.s32.totalorder %s17, 0
    %p127 = por %p125, %p126
    %p128 = scmp.ne.s32.totalorder %s116, %s117
    %p129 = scmp.eq.s32.totalorder %s18, 1
    %p130 = por %p128, %p129
    %p132 = scmp.ne.s32.totalorder %s117, %s131
    %p133 = scmp.eq.s32.totalorder %s18, 0
    %p134 = por %p132, %p133
    %s136 = sadd.s32 %s135, 1
    %p139 = scmp.eq.s32.totalorder %s12, 1
    %p140 = scmp.ne.s32.totalorder %s135, %s137
    %p141 = scmp.eq.s32.totalorder %s12, 0
    %p142 = por %p140, %p141
    %p143 = scmp.ne.s32.totalorder %s135, %s137
    %p144 = scmp.eq.s32.totalorder %s17, 1
    %p145 = por %p143, %p144
    %p146 = scmp.ne.s32.totalorder %s137, %s138
    %p147 = scmp.eq.s32.totalorder %s17, 0
    %p148 = por %p146, %p147
    %p149 = scmp.ne.s32.totalorder %s137, %s138
    %p150 = scmp.eq.s32.totalorder %s18, 1
    %p151 = por %p149, %p150
    %p153 = scmp.ne.s32.totalorder %s138, %s152
    %p154 = scmp.eq.s32.totalorder %s18, 0
    %p155 = por %p153, %p154
    %s156 = ssub.s32 %s12, %s19
    %p157 = scmp.eq.s32.totalorder %s156, 0
    %s159 = sadd.s32 %s158, 1
    %s160 = scalar_select %p157, %s158, %s159
    %p163 = pneg %p157
    %p164 = scmp.eq.s32.totalorder %s12, 1
    %p165 = por %p163, %p164
    %p166 = scmp.ne.s32.totalorder %s158, %s161
    %p167 = scmp.eq.s32.totalorder %s12, 0
    %p168 = por %p166, %p167
    %p169 = scmp.ne.s32.totalorder %s158, %s161
    %p170 = scmp.eq.s32.totalorder %s17, 1
    %p171 = por %p169, %p170
    %p172 = scmp.ne.s32.totalorder %s161, %s162
    %p173 = scmp.eq.s32.totalorder %s17, 0
    %p174 = por %p172, %p173
    %p175 = scmp.ne.s32.totalorder %s161, %s162
    %p176 = scmp.eq.s32.totalorder %s18, 1
    %p177 = por %p175, %p176
    %p179 = scmp.ne.s32.totalorder %s162, %s178
    %p180 = scmp.eq.s32.totalorder %s18, 0
    %p181 = por %p179, %p180
    %p182 = scmp.le.s32.totalorder 1, %s12
    %p183 = scmp.lt.s32.totalorder %s12, 3
    %p184 = pnand %p182, %p183
    %p185 = pneg %p184
    // Predicated region
    $region9: #{decoder_forward.7} parent=5 // pred_check
      _
    $region10: #{decoder_forward.7} parent=5 // pred_check_branch
      %187 = sbr.rel (%p184) target = $region12
    $region11: #{decoder_forward.7} parent=5 // pred_region
      %s188 = ssub.s32 %s12, 1
      // Predicated region
      $region13: #{decoder_forward.7} parent=11 // pred_check
        %p189 = pneg %p85
      $region14: #{decoder_forward.7} parent=11 // pred_check_branch
        %191 = sbr.rel (%p189) target = $region16
      $region15: #{decoder_forward.7} parent=11 // pred_region
        _
      $region16: #{decoder_forward.7} parent=11 // pred_fallthru
        _
      // Predicated region
      $region17: #{decoder_forward.7} parent=11 // pred_check
        %p192 = pneg %p106
      $region18: #{decoder_forward.7} parent=11 // pred_check_branch
        %194 = sbr.rel (%p192) target = $region20
      $region19: #{decoder_forward.7} parent=11 // pred_region
        _
      $region20: #{decoder_forward.7} parent=11 // pred_fallthru
        _
      // Predicated region
      $region21: #{decoder_forward.7} parent=11 // pred_check
        %p195 = pneg %p127
      $region22: #{decoder_forward.7} parent=11 // pred_check_branch
        %197 = sbr.rel (%p195) target = $region24
      $region23: #{decoder_forward.7} parent=11 // pred_region
        _
      $region24: #{decoder_forward.7} parent=11 // pred_fallthru
        _
      // Predicated region
      $region25: #{decoder_forward.7} parent=11 // pred_check
        %p198 = pneg %p148
      $region26: #{decoder_forward.7} parent=11 // pred_check_branch
        %200 = sbr.rel (%p198) target = $region28
      $region27: #{decoder_forward.7} parent=11 // pred_region
        _
      $region28: #{decoder_forward.7} parent=11 // pred_fallthru
        _
    $region12: #{decoder_forward.7} parent=5 // pred_fallthru
      _
    %p201 = scmp.lt.s32.totalorder %s12, 2
    // Predicated region
    $region29: #{decoder_forward.7} parent=5 // pred_check
      %p202 = pneg %p201
    $region30: #{decoder_forward.7} parent=5 // pred_check_branch
      %204 = sbr.rel (%p202) target = $region32
    $region31: #{decoder_forward.7} parent=5 // pred_region
      // Predicated region
      $region33: #{decoder_forward.7} parent=31 // pred_check
        %p205 = pneg %p32
      $region34: #{decoder_forward.7} parent=31 // pred_check_branch
        %207 = sbr.rel (%p205) target = $region36
      $region35: #{decoder_forward.7} parent=31 // pred_region
        %p208 = scmp.lt.s32.totalorder %s12, 1
        %s209 = scalar_select %p208, %s12, 1
        %s210 = smul.addr %s209, 10
        %s211 = smul.addr %s210, 4
        %s212 = scalar_lea.vmem %s0, %s211
      $region36: #{decoder_forward.7} parent=31 // pred_fallthru
        _
      // Predicated region
      $region37: #{decoder_forward.7} parent=31 // pred_check
        %p213 = pneg %p58
      $region38: #{decoder_forward.7} parent=31 // pred_check_branch
        %215 = sbr.rel (%p213) target = $region40
      $region39: #{decoder_forward.7} parent=31 // pred_region
        %p216 = scmp.lt.s32.totalorder %s12, 1
        %s217 = scalar_select %p216, %s12, 1
        %s218 = smul.addr %s217, 10
        %s219 = smul.addr %s218, 2
        %s220 = scalar_lea.vmem %s1, %s219
      $region40: #{decoder_forward.7} parent=31 // pred_fallthru
        _
    $region32: #{decoder_forward.7} parent=5 // pred_fallthru
      _
    %p221 = scmp.le.s32.totalorder 1, %s12
    %p222 = scmp.lt.s32.totalorder %s12, 3
    %p223 = pnand %p221, %p222
    %p224 = pneg %p223
    // Predicated region
    $region41: #{decoder_forward.7} parent=5 // pred_check
      _
    $region42: #{decoder_forward.7} parent=5 // pred_check_branch
      %226 = sbr.rel (%p223) target = $region44
    $region43: #{decoder_forward.7} parent=5 // pred_region
      %s227 = ssub.s32 %s12, 1
      %p228 = scmp.lt.s32.totalorder %s17, 1
      %s229 = scalar_select %p228, %s17, 1
      %s230 = smul.addr %s229, 10
      %s231 = smul.addr %s230, 4
      %s232 = scalar_lea.vmem %s0, %s231
      %p233 = pneg %p38
      %p234 = pneg %p35
      %p235 = scmp.lt.s32.totalorder %s17, 1
      %s236 = scalar_select %p235, %s17, 1
      %s237 = smul.addr %s236, 10
      %s238 = smul.addr %s237, 2
      %s239 = scalar_lea.vmem %s1, %s238
      %p240 = pneg %p64
      %p241 = pneg %p61
      %p242 = pneg %p85
      %p243 = pneg %p82
      %p244 = pneg %p106
      %p245 = pneg %p103
      %p246 = pneg %p127
      %p247 = pneg %p124
      %p248 = pneg %p148
      %p249 = pneg %p145
      %p250 = pneg %p174
      %p251 = pneg %p171
      %p252 = scmp.lt.s32.totalorder %s17, 1
      %s253 = scalar_select %p252, %s17, 1
      %s254 = smul.addr %s253, 9
      %s255 = smul.addr %s254, 4
      %s256 = scalar_lea.vmem %s6, %s255
      %p257 = scmp.lt.s32.totalorder %s17, 1
      %s258 = scalar_select %p257, %s17, 1
      %s259 = smul.addr %s258, 10
      %s260 = smul.addr %s259, 4
      %s261 = scalar_lea.vmem %s0, %s260
      %p262 = scmp.lt.s32.totalorder %s17, 1
      %s263 = scalar_select %p262, %s17, 1
      %s264 = smul.addr %s263, 10
      %s265 = smul.addr %s264, 2
      %s266 = scalar_lea.vmem %s1, %s265
      %p267 = scmp.lt.s32.totalorder %s17, 1
      %s268 = scalar_select %p267, %s17, 1
      %s269 = smul.addr %s268, 9
      %s270 = smul.addr %s269, 4
      %s271 = scalar_lea.vmem %s6, %s270
      %v273 = vld [vmem:[%s261] sm:$0xff]
      %v274 = vld [vmem:[%s261 + $0x8] sm:$0xff]
      %v275 = vld [vmem:[%s261 + $0x10] sm:$0xff]
      %v276 = vld [vmem:[%s261 + $0x18] sm:$0xff]
      %v277 = vld [vmem:[%s261 + $0x20] sm:$0xff]
      %v278 = vld [vmem:[%s266] sm:$0xff]
      %v279 = vld [vmem:[%s266 + $0x8] sm:$0xff]
      %v280 = vld [vmem:[%s266 + $0x10] sm:$0xf]
      %v281 = vld [vmem:[%s2] sm:$0x3]
      %v282 = vld [vmem:[%s3] sm:$0x3]
      %v286 = vcombine.high %v278, %v278
      %v288 = vunpack.c.l.s4 1983009808
      %v289 = vunpack.c.0.s8 %v288
      %v290 = vlaneseq
      %v291 = vshrl.u32 %v290, 7
      %v292 = vsub.s32 %v289, %v291
      %v293 = vrot.slane %v278, %v292
      %v295 = vunpack.c.l.s4 1983009808
      %v296 = vunpack.c.0.s8 %v295
      %v297 = vlaneseq
      %v298 = vshrl.u32 %v297, 7
      %v299 = vsub.s32 %v296, %v298
      %v300 = vrot.slane %v286, %v299
      %v301 = vcombine.high %v293, %v293
      %v302 = vcombine.high %v300, %v300
      %v303 = vcombine.high %v279, %v279
      %v305 = vunpack.c.l.s4 1983009808
      %v306 = vunpack.c.0.s8 %v305
      %v307 = vlaneseq
      %v308 = vshrl.u32 %v307, 7
      %v309 = vsub.s32 %v306, %v308
      %v310 = vrot.slane %v279, %v309
      %v312 = vunpack.c.l.s4 1983009808
      %v313 = vunpack.c.0.s8 %v312
      %v314 = vlaneseq
      %v315 = vshrl.u32 %v314, 7
      %v316 = vsub.s32 %v313, %v315
      %v317 = vrot.slane %v303, %v316
      %v318 = vcombine.high %v310, %v310
      %v319 = vcombine.high %v317, %v317
      %v321 = vunpack.c.l.s4 1983009808
      %v322 = vunpack.c.0.s8 %v321
      %v323 = vlaneseq
      %v324 = vshrl.u32 %v323, 7
      %v325 = vsub.s32 %v322, %v324
      %v326 = vrot.slane %v280, %v325
      %vm327 = vcmask 31744
      %v329 = vsel %vm327, %v282, 0
      %vm331 = vcmask 1041408
      %v333 = vsel %vm331, %v293, 0
      %v336 = vsel %vm331, %v301, 0
      %v339 = vsel %vm331, %v300, 0
      %v342 = vsel %vm331, %v302, 0
      %v345 = vsel %vm331, %v310, 0
      %v348 = vsel %vm331, %v318, 0
      %v351 = vsel %vm331, %v317, 0
      %v354 = vsel %vm331, %v319, 0
      %v357 = vsel %vm331, %v326, 0
      %359 = vmatprep.subr.bf16.mxu0 0
      %360 = vmatpush1.bf16.msra.mxu0 0
      %361 = vmatprep.subr.bf16.mxu0 0
      %362 = vmatpush1.bf16.msra.mxu0 0
      %363 = vmatprep.subr.bf16.mxu0 0
      %364 = vmatpush1.bf16.msra.mxu0 0
      %365 = vmatprep.subr.bf16.mxu0 0
      %366 = vmatpush1.bf16.msra.mxu0 0
      %367 = vmatprep.subr.bf16.mxu0 0
      %368 = vmatpush1.bf16.msra.mxu0 0
      %369 = vmatprep.subr.bf16.mxu0 0
      %370 = vmatpush1.bf16.msra.mxu0 0
      %371 = vmatprep.subr.bf16.mxu0 0
      %372 = vmatpush1.bf16.msra.mxu0 0
      %373 = vmatprep.subr.bf16.mxu0 %v336
      %374 = vmatpush1.bf16.msra.mxu0 %v333
      %375 = vmatprep.subr.bf16.mxu0 0
      %376 = vmatpush2.bf16.msra.mxu0 0
      %377 = vmatprep.subr.bf16.mxu0 0
      %378 = vmatpush2.bf16.msra.mxu0 0
      %379 = vmatprep.subr.bf16.mxu0 0
      %380 = vmatpush2.bf16.msra.mxu0 0
      %381 = vmatprep.subr.bf16.mxu0 0
      %382 = vmatpush2.bf16.msra.mxu0 0
      %383 = vmatprep.subr.bf16.mxu0 0
      %384 = vmatpush2.bf16.msra.mxu0 0
      %385 = vmatprep.subr.bf16.mxu0 0
      %386 = vmatpush2.bf16.msra.mxu0 0
      %387 = vmatprep.subr.bf16.mxu0 0
      %388 = vmatpush2.bf16.msra.mxu0 0
      %389 = vmatprep.subr.bf16.mxu0 0
      %390 = vmatpush2.bf16.msra.mxu0 0
      %391 = vmatprep.mubr.bf16.mxu0 0
      %392 = vmatmul.mubr.bf16.gmra.mxu0 %v329
      %v393 = vpop.f32.mrf.mxu0
      %v394 = vadd.f32 0.0, %v393
      %v395 = vpop.f32.mrf.mxu0
      %v396 = vadd.f32 0.0, %v395
      %v397 = vpop.f32.mrf.mxu0
      %v398 = vpop.f32.mrf.mxu0
      %399 = vdwg.mxu0
      %400 = vmatprep.subr.bf16.mxu0 0
      %401 = vmatpush1.bf16.msra.mxu0 0
      %402 = vmatprep.subr.bf16.mxu0 0
      %403 = vmatpush1.bf16.msra.mxu0 0
      %404 = vmatprep.subr.bf16.mxu0 0
      %405 = vmatpush1.bf16.msra.mxu0 0
      %406 = vmatprep.subr.bf16.mxu0 0
      %407 = vmatpush1.bf16.msra.mxu0 0
      %408 = vmatprep.subr.bf16.mxu0 0
      %409 = vmatpush1.bf16.msra.mxu0 0
      %410 = vmatprep.subr.bf16.mxu0 0
      %411 = vmatpush1.bf16.msra.mxu0 0
      %412 = vmatprep.subr.bf16.mxu0 0
      %413 = vmatpush1.bf16.msra.mxu0 0
      %414 = vmatprep.subr.bf16.mxu0 %v342
      %415 = vmatpush1.bf16.msra.mxu0 %v339
      %416 = vmatprep.subr.bf16.mxu0 0
      %417 = vmatpush2.bf16.msra.mxu0 0
      %418 = vmatprep.subr.bf16.mxu0 0
      %419 = vmatpush2.bf16.msra.mxu0 0
      %420 = vmatprep.subr.bf16.mxu0 0
      %421 = vmatpush2.bf16.msra.mxu0 0
      %422 = vmatprep.subr.bf16.mxu0 0
      %423 = vmatpush2.bf16.msra.mxu0 0
      %424 = vmatprep.subr.bf16.mxu0 0
      %425 = vmatpush2.bf16.msra.mxu0 0
      %426 = vmatprep.subr.bf16.mxu0 0
      %427 = vmatpush2.bf16.msra.mxu0 0
      %428 = vmatprep.subr.bf16.mxu0 0
      %429 = vmatpush2.bf16.msra.mxu0 0
      %430 = vmatprep.subr.bf16.mxu0 0
      %431 = vmatpush2.bf16.msra.mxu0 0
      %432 = vmatprep.mubr.bf16.mxu0 0
      %433 = vmatmul.mubr.bf16.gmra.mxu0 %v329
      %v434 = vpop.f32.mrf.mxu0
      %v435 = vadd.f32 0.0, %v434
      %v436 = vpop.f32.mrf.mxu0
      %v437 = vadd.f32 0.0, %v436
      %v438 = vpop.f32.mrf.mxu0
      %v439 = vpop.f32.mrf.mxu0
      %440 = vdwg.mxu0
      %441 = vmatprep.subr.bf16.mxu0 0
      %442 = vmatpush1.bf16.msra.mxu0 0
      %443 = vmatprep.subr.bf16.mxu0 0
      %444 = vmatpush1.bf16.msra.mxu0 0
      %445 = vmatprep.subr.bf16.mxu0 0
      %446 = vmatpush1.bf16.msra.mxu0 0
      %447 = vmatprep.subr.bf16.mxu0 0
      %448 = vmatpush1.bf16.msra.mxu0 0
      %449 = vmatprep.subr.bf16.mxu0 0
      %450 = vmatpush1.bf16.msra.mxu0 0
      %451 = vmatprep.subr.bf16.mxu0 0
      %452 = vmatpush1.bf16.msra.mxu0 0
      %453 = vmatprep.subr.bf16.mxu0 0
      %454 = vmatpush1.bf16.msra.mxu0 0
      %455 = vmatprep.subr.bf16.mxu0 %v348
      %456 = vmatpush1.bf16.msra.mxu0 %v345
      %457 = vmatprep.subr.bf16.mxu0 0
      %458 = vmatpush2.bf16.msra.mxu0 0
      %459 = vmatprep.subr.bf16.mxu0 0
      %460 = vmatpush2.bf16.msra.mxu0 0
      %461 = vmatprep.subr.bf16.mxu0 0
      %462 = vmatpush2.bf16.msra.mxu0 0
      %463 = vmatprep.subr.bf16.mxu0 0
      %464 = vmatpush2.bf16.msra.mxu0 0
      %465 = vmatprep.subr.bf16.mxu0 0
      %466 = vmatpush2.bf16.msra.mxu0 0
      %467 = vmatprep.subr.bf16.mxu0 0
      %468 = vmatpush2.bf16.msra.mxu0 0
      %469 = vmatprep.subr.bf16.mxu0 0
      %470 = vmatpush2.bf16.msra.mxu0 0
      %471 = vmatprep.subr.bf16.mxu0 0
      %472 = vmatpush2.bf16.msra.mxu0 0
      %473 = vmatprep.mubr.bf16.mxu0 0
      %474 = vmatmul.mubr.bf16.gmra.mxu0 %v329
      %v475 = vpop.f32.mrf.mxu0
      %v476 = vadd.f32 0.0, %v475
      %v477 = vpop.f32.mrf.mxu0
      %v478 = vadd.f32 0.0, %v477
      %v479 = vpop.f32.mrf.mxu0
      %v480 = vpop.f32.mrf.mxu0
      %481 = vdwg.mxu0
      %482 = vmatprep.subr.bf16.mxu0 0
      %483 = vmatpush1.bf16.msra.mxu0 0
      %484 = vmatprep.subr.bf16.mxu0 0
      %485 = vmatpush1.bf16.msra.mxu0 0
      %486 = vmatprep.subr.bf16.mxu0 0
      %487 = vmatpush1.bf16.msra.mxu0 0
      %488 = vmatprep.subr.bf16.mxu0 0
      %489 = vmatpush1.bf16.msra.mxu0 0
      %490 = vmatprep.subr.bf16.mxu0 0
      %491 = vmatpush1.bf16.msra.mxu0 0
      %492 = vmatprep.subr.bf16.mxu0 0
      %493 = vmatpush1.bf16.msra.mxu0 0
      %494 = vmatprep.subr.bf16.mxu0 0
      %495 = vmatpush1.bf16.msra.mxu0 0
      %496 = vmatprep.subr.bf16.mxu0 %v354
      %497 = vmatpush1.bf16.msra.mxu0 %v351
      %498 = vmatprep.subr.bf16.mxu0 0
      %499 = vmatpush2.bf16.msra.mxu0 0
      %500 = vmatprep.subr.bf16.mxu0 0
      %501 = vmatpush2.bf16.msra.mxu0 0
      %502 = vmatprep.subr.bf16.mxu0 0
      %503 = vmatpush2.bf16.msra.mxu0 0
      %504 = vmatprep.subr.bf16.mxu0 0
      %505 = vmatpush2.bf16.msra.mxu0 0
      %506 = vmatprep.subr.bf16.mxu0 0
      %507 = vmatpush2.bf16.msra.mxu0 0
      %508 = vmatprep.subr.bf16.mxu0 0
      %509 = vmatpush2.bf16.msra.mxu0 0
      %510 = vmatprep.subr.bf16.mxu0 0
      %511 = vmatpush2.bf16.msra.mxu0 0
      %512 = vmatprep.subr.bf16.mxu0 0
      %513 = vmatpush2.bf16.msra.mxu0 0
      %514 = vmatprep.mubr.bf16.mxu0 0
      %515 = vmatmul.mubr.bf16.gmra.mxu0 %v329
      %v516 = vpop.f32.mrf.mxu0
      %v517 = vadd.f32 0.0, %v516
      %v518 = vpop.f32.mrf.mxu0
      %v519 = vadd.f32 0.0, %v518
      %v520 = vpop.f32.mrf.mxu0
      %v521 = vpop.f32.mrf.mxu0
      %522 = vdwg.mxu0
      %523 = vmatprep.subr.bf16.mxu0 0
      %524 = vmatpush1.bf16.msra.mxu0 0
      %525 = vmatprep.subr.bf16.mxu0 0
      %526 = vmatpush1.bf16.msra.mxu0 0
      %527 = vmatprep.subr.bf16.mxu0 0
      %528 = vmatpush1.bf16.msra.mxu0 0
      %529 = vmatprep.subr.bf16.mxu0 0
      %530 = vmatpush1.bf16.msra.mxu0 0
      %531 = vmatprep.subr.bf16.mxu0 0
      %532 = vmatpush1.bf16.msra.mxu0 0
      %533 = vmatprep.subr.bf16.mxu0 0
      %534 = vmatpush1.bf16.msra.mxu0 0
      %535 = vmatprep.subr.bf16.mxu0 0
      %536 = vmatpush1.bf16.msra.mxu0 0
      %537 = vmatprep.subr.bf16.mxu0 0
      %538 = vmatpush1.bf16.msra.mxu0 %v357
      %539 = vmatprep.subr.bf16.mxu0 0
      %540 = vmatpush2.bf16.msra.mxu0 0
      %541 = vmatprep.subr.bf16.mxu0 0
      %542 = vmatpush2.bf16.msra.mxu0 0
      %543 = vmatprep.subr.bf16.mxu0 0
      %544 = vmatpush2.bf16.msra.mxu0 0
      %545 = vmatprep.subr.bf16.mxu0 0
      %546 = vmatpush2.bf16.msra.mxu0 0
      %547 = vmatprep.subr.bf16.mxu0 0
      %548 = vmatpush2.bf16.msra.mxu0 0
      %549 = vmatprep.subr.bf16.mxu0 0
      %550 = vmatpush2.bf16.msra.mxu0 0
      %551 = vmatprep.subr.bf16.mxu0 0
      %552 = vmatpush2.bf16.msra.mxu0 0
      %553 = vmatprep.subr.bf16.mxu0 0
      %554 = vmatpush2.bf16.msra.mxu0 0
      %555 = vmatprep.mubr.bf16.mxu0 0
      %556 = vmatmul.mubr.bf16.gmra.mxu0 %v329
      %v557 = vpop.f32.mrf.mxu0
      %v558 = vadd.f32 0.0, %v557
      %v559 = vpop.f32.mrf.mxu0
      %v560 = vpop.f32.mrf.mxu0
      %v561 = vpop.f32.mrf.mxu0
      %562 = vdwg.mxu0
      %v568 = vunpack.c.l.b16 %v273
      %v569 = vunpack.c.h.b16 %v273
      %v570 = vunpack.c.l.b16 %v274
      %v571 = vunpack.c.h.b16 %v274
      %v572 = vunpack.c.l.b16 %v275
      %v573 = vunpack.c.h.b16 %v275
      %v574 = vunpack.c.l.b16 %v276
      %v575 = vunpack.c.h.b16 %v276
      %v576 = vunpack.c.l.b16 %v277
      %v577 = vpack.c.b16 %v568, %v568
      %v578 = vpack.c.b16 %v569, %v569
      %v579 = vpack.c.b16 %v570, %v570
      %v580 = vpack.c.b16 %v571, %v571
      %v581 = vpack.c.b16 %v572, %v572
      %v582 = vpack.c.b16 %v573, %v573
      %v583 = vpack.c.b16 %v574, %v574
      %v584 = vpack.c.b16 %v575, %v575
      %v585 = vpack.c.b16 %v576, %v576
      %vm586 = vcmask 64512
      %v588 = vsel %vm586, %v281, 0
      %vm590 = vcmask 1043456
      %v592 = vsel %vm590, %v577, 0
      %v595 = vsel %vm590, %v578, 0
      %v598 = vsel %vm590, %v579, 0
      %v601 = vsel %vm590, %v580, 0
      %v604 = vsel %vm590, %v581, 0
      %v607 = vsel %vm590, %v582, 0
      %v610 = vsel %vm590, %v583, 0
      %v613 = vsel %vm590, %v584, 0
      %v616 = vsel %vm590, %v585, 0
      %618 = vmatprep.subr.bf16.mxu0 0
      %619 = vmatpush1.bf16.msra.mxu0 0
      %620 = vmatprep.subr.bf16.mxu0 0
      %621 = vmatpush1.bf16.msra.mxu0 0
      %622 = vmatprep.subr.bf16.mxu0 0
      %623 = vmatpush1.bf16.msra.mxu0 0
      %624 = vmatprep.subr.bf16.mxu0 0
      %625 = vmatpush1.bf16.msra.mxu0 0
      %626 = vmatprep.subr.bf16.mxu0 0
      %627 = vmatpush1.bf16.msra.mxu0 0
      %628 = vmatprep.subr.bf16.mxu0 0
      %629 = vmatpush1.bf16.msra.mxu0 0
      %630 = vmatprep.subr.bf16.mxu0 0
      %631 = vmatpush1.bf16.msra.mxu0 0
      %632 = vmatprep.subr.bf16.mxu0 %v595
      %633 = vmatpush1.bf16.msra.mxu0 %v592
      %634 = vmatprep.subr.bf16.mxu0 0
      %635 = vmatpush2.bf16.msra.mxu0 0
      %636 = vmatprep.subr.bf16.mxu0 0
      %637 = vmatpush2.bf16.msra.mxu0 0
      %638 = vmatprep.subr.bf16.mxu0 0
      %639 = vmatpush2.bf16.msra.mxu0 0
      %640 = vmatprep.subr.bf16.mxu0 0
      %641 = vmatpush2.bf16.msra.mxu0 0
      %642 = vmatprep.subr.bf16.mxu0 0
      %643 = vmatpush2.bf16.msra.mxu0 0
      %644 = vmatprep.subr.bf16.mxu0 0
      %645 = vmatpush2.bf16.msra.mxu0 0
      %646 = vmatprep.subr.bf16.mxu0 0
      %647 = vmatpush2.bf16.msra.mxu0 0
      %648 = vmatprep.subr.bf16.mxu0 0
      %649 = vmatpush2.bf16.msra.mxu0 0
      %650 = vmatprep.mubr.bf16.mxu0 0
      %651 = vmatmul.mubr.bf16.gmra.mxu0 %v588
      %v652 = vpop.f32.mrf.mxu0
      %v653 = vadd.f32 %v394, %v652
      %v654 = vpop.f32.mrf.mxu0
      %v655 = vadd.f32 %v396, %v654
      %v656 = vpop.f32.mrf.mxu0
      %v657 = vpop.f32.mrf.mxu0
      %658 = vdwg.mxu0
      %659 = vmatprep.subr.bf16.mxu0 0
      %660 = vmatpush1.bf16.msra.mxu0 0
      %661 = vmatprep.subr.bf16.mxu0 0
      %662 = vmatpush1.bf16.msra.mxu0 0
      %663 = vmatprep.subr.bf16.mxu0 0
      %664 = vmatpush1.bf16.msra.mxu0 0
      %665 = vmatprep.subr.bf16.mxu0 0
      %666 = vmatpush1.bf16.msra.mxu0 0
      %667 = vmatprep.subr.bf16.mxu0 0
      %668 = vmatpush1.bf16.msra.mxu0 0
      %669 = vmatprep.subr.bf16.mxu0 0
      %670 = vmatpush1.bf16.msra.mxu0 0
      %671 = vmatprep.subr.bf16.mxu0 0
      %672 = vmatpush1.bf16.msra.mxu0 0
      %673 = vmatprep.subr.bf16.mxu0 %v601
      %674 = vmatpush1.bf16.msra.mxu0 %v598
      %675 = vmatprep.subr.bf16.mxu0 0
      %676 = vmatpush2.bf16.msra.mxu0 0
      %677 = vmatprep.subr.bf16.mxu0 0
      %678 = vmatpush2.bf16.msra.mxu0 0
      %679 = vmatprep.subr.bf16.mxu0 0
      %680 = vmatpush2.bf16.msra.mxu0 0
      %681 = vmatprep.subr.bf16.mxu0 0
      %682 = vmatpush2.bf16.msra.mxu0 0
      %683 = vmatprep.subr.bf16.mxu0 0
      %684 = vmatpush2.bf16.msra.mxu0 0
      %685 = vmatprep.subr.bf16.mxu0 0
      %686 = vmatpush2.bf16.msra.mxu0 0
      %687 = vmatprep.subr.bf16.mxu0 0
      %688 = vmatpush2.bf16.msra.mxu0 0
      %689 = vmatprep.subr.bf16.mxu0 0
      %690 = vmatpush2.bf16.msra.mxu0 0
      %691 = vmatprep.mubr.bf16.mxu0 0
      %692 = vmatmul.mubr.bf16.gmra.mxu0 %v588
      %v693 = vpop.f32.mrf.mxu0
      %v694 = vadd.f32 %v435, %v693
      %v695 = vpop.f32.mrf.mxu0
      %v696 = vadd.f32 %v437, %v695
      %v697 = vpop.f32.mrf.mxu0
      %v698 = vpop.f32.mrf.mxu0
      %699 = vdwg.mxu0
      %700 = vmatprep.subr.bf16.mxu0 0
      %701 = vmatpush1.bf16.msra.mxu0 0
      %702 = vmatprep.subr.bf16.mxu0 0
      %703 = vmatpush1.bf16.msra.mxu0 0
      %704 = vmatprep.subr.bf16.mxu0 0
      %705 = vmatpush1.bf16.msra.mxu0 0
      %706 = vmatprep.subr.bf16.mxu0 0
      %707 = vmatpush1.bf16.msra.mxu0 0
      %708 = vmatprep.subr.bf16.mxu0 0
      %709 = vmatpush1.bf16.msra.mxu0 0
      %710 = vmatprep.subr.bf16.mxu0 0
      %711 = vmatpush1.bf16.msra.mxu0 0
      %712 = vmatprep.subr.bf16.mxu0 0
      %713 = vmatpush1.bf16.msra.mxu0 0
      %714 = vmatprep.subr.bf16.mxu0 %v607
      %715 = vmatpush1.bf16.msra.mxu0 %v604
      %716 = vmatprep.subr.bf16.mxu0 0
      %717 = vmatpush2.bf16.msra.mxu0 0
      %718 = vmatprep.subr.bf16.mxu0 0
      %719 = vmatpush2.bf16.msra.mxu0 0
      %720 = vmatprep.subr.bf16.mxu0 0
      %721 = vmatpush2.bf16.msra.mxu0 0
      %722 = vmatprep.subr.bf16.mxu0 0
      %723 = vmatpush2.bf16.msra.mxu0 0
      %724 = vmatprep.subr.bf16.mxu0 0
      %725 = vmatpush2.bf16.msra.mxu0 0
      %726 = vmatprep.subr.bf16.mxu0 0
      %727 = vmatpush2.bf16.msra.mxu0 0
      %728 = vmatprep.subr.bf16.mxu0 0
      %729 = vmatpush2.bf16.msra.mxu0 0
      %730 = vmatprep.subr.bf16.mxu0 0
      %731 = vmatpush2.bf16.msra.mxu0 0
      %732 = vmatprep.mubr.bf16.mxu0 0
      %733 = vmatmul.mubr.bf16.gmra.mxu0 %v588
      %v734 = vpop.f32.mrf.mxu0
      %v735 = vadd.f32 %v476, %v734
      %v736 = vpop.f32.mrf.mxu0
      %v737 = vadd.f32 %v478, %v736
      %v738 = vpop.f32.mrf.mxu0
      %v739 = vpop.f32.mrf.mxu0
      %740 = vdwg.mxu0
      %741 = vmatprep.subr.bf16.mxu0 0
      %742 = vmatpush1.bf16.msra.mxu0 0
      %743 = vmatprep.subr.bf16.mxu0 0
      %744 = vmatpush1.bf16.msra.mxu0 0
      %745 = vmatprep.subr.bf16.mxu0 0
      %746 = vmatpush1.bf16.msra.mxu0 0
      %747 = vmatprep.subr.bf16.mxu0 0
      %748 = vmatpush1.bf16.msra.mxu0 0
      %749 = vmatprep.subr.bf16.mxu0 0
      %750 = vmatpush1.bf16.msra.mxu0 0
      %751 = vmatprep.subr.bf16.mxu0 0
      %752 = vmatpush1.bf16.msra.mxu0 0
      %753 = vmatprep.subr.bf16.mxu0 0
      %754 = vmatpush1.bf16.msra.mxu0 0
      %755 = vmatprep.subr.bf16.mxu0 %v613
      %756 = vmatpush1.bf16.msra.mxu0 %v610
      %757 = vmatprep.subr.bf16.mxu0 0
      %758 = vmatpush2.bf16.msra.mxu0 0
      %759 = vmatprep.subr.bf16.mxu0 0
      %760 = vmatpush2.bf16.msra.mxu0 0
      %761 = vmatprep.subr.bf16.mxu0 0
      %762 = vmatpush2.bf16.msra.mxu0 0
      %763 = vmatprep.subr.bf16.mxu0 0
      %764 = vmatpush2.bf16.msra.mxu0 0
      %765 = vmatprep.subr.bf16.mxu0 0
      %766 = vmatpush2.bf16.msra.mxu0 0
      %767 = vmatprep.subr.bf16.mxu0 0
      %768 = vmatpush2.bf16.msra.mxu0 0
      %769 = vmatprep.subr.bf16.mxu0 0
      %770 = vmatpush2.bf16.msra.mxu0 0
      %771 = vmatprep.subr.bf16.mxu0 0
      %772 = vmatpush2.bf16.msra.mxu0 0
      %773 = vmatprep.mubr.bf16.mxu0 0
      %774 = vmatmul.mubr.bf16.gmra.mxu0 %v588
      %v775 = vpop.f32.mrf.mxu0
      %v776 = vadd.f32 %v517, %v775
      %v777 = vpop.f32.mrf.mxu0
      %v778 = vadd.f32 %v519, %v777
      %v779 = vpop.f32.mrf.mxu0
      %v780 = vpop.f32.mrf.mxu0
      %781 = vdwg.mxu0
      %782 = vmatprep.subr.bf16.mxu0 0
      %783 = vmatpush1.bf16.msra.mxu0 0
      %784 = vmatprep.subr.bf16.mxu0 0
      %785 = vmatpush1.bf16.msra.mxu0 0
      %786 = vmatprep.subr.bf16.mxu0 0
      %787 = vmatpush1.bf16.msra.mxu0 0
      %788 = vmatprep.subr.bf16.mxu0 0
      %789 = vmatpush1.bf16.msra.mxu0 0
      %790 = vmatprep.subr.bf16.mxu0 0
      %791 = vmatpush1.bf16.msra.mxu0 0
      %792 = vmatprep.subr.bf16.mxu0 0
      %793 = vmatpush1.bf16.msra.mxu0 0
      %794 = vmatprep.subr.bf16.mxu0 0
      %795 = vmatpush1.bf16.msra.mxu0 0
      %796 = vmatprep.subr.bf16.mxu0 0
      %797 = vmatpush1.bf16.msra.mxu0 %v616
      %798 = vmatprep.subr.bf16.mxu0 0
      %799 = vmatpush2.bf16.msra.mxu0 0
      %800 = vmatprep.subr.bf16.mxu0 0
      %801 = vmatpush2.bf16.msra.mxu0 0
      %802 = vmatprep.subr.bf16.mxu0 0
      %803 = vmatpush2.bf16.msra.mxu0 0
      %804 = vmatprep.subr.bf16.mxu0 0
      %805 = vmatpush2.bf16.msra.mxu0 0
      %806 = vmatprep.subr.bf16.mxu0 0
      %807 = vmatpush2.bf16.msra.mxu0 0
      %808 = vmatprep.subr.bf16.mxu0 0
      %809 = vmatpush2.bf16.msra.mxu0 0
      %810 = vmatprep.subr.bf16.mxu0 0
      %811 = vmatpush2.bf16.msra.mxu0 0
      %812 = vmatprep.subr.bf16.mxu0 0
      %813 = vmatpush2.bf16.msra.mxu0 0
      %814 = vmatprep.mubr.bf16.mxu0 0
      %815 = vmatmul.mubr.bf16.gmra.mxu0 %v588
      %v816 = vpop.f32.mrf.mxu0
      %v817 = vadd.f32 %v558, %v816
      %v818 = vpop.f32.mrf.mxu0
      %v819 = vpop.f32.mrf.mxu0
      %v820 = vpop.f32.mrf.mxu0
      %821 = vdwg.mxu0
      %s822 = scalar_lea.vmem %s2, 2
      %v823 = vld [vmem:[%s822] sm:$0x3]
      %824 = vrot.lane.b32.xlu0 %v577, 127
      %v825 = vpop.permute.xlu0 %824
      %826 = vrot.lane.b32.xlu0 %v578, 127
      %v827 = vpop.permute.xlu0 %826
      %828 = vrot.lane.b32.xlu0 %v579, 127
      %v829 = vpop.permute.xlu0 %828
      %830 = vrot.lane.b32.xlu0 %v580, 127
      %v831 = vpop.permute.xlu0 %830
      %832 = vrot.lane.b32.xlu0 %v581, 127
      %v833 = vpop.permute.xlu0 %832
      %834 = vrot.lane.b32.xlu0 %v582, 127
      %v835 = vpop.permute.xlu0 %834
      %836 = vrot.lane.b32.xlu0 %v583, 127
      %v837 = vpop.permute.xlu0 %836
      %838 = vrot.lane.b32.xlu0 %v584, 127
      %v839 = vpop.permute.xlu0 %838
      %840 = vrot.lane.b32.xlu0 %v585, 127
      %v841 = vpop.permute.xlu0 %840
      %vm842 = vcmask 1039360
      %v843 = vsel %vm842, %v825, %v827
      %v844 = vsel %vm842, %v827, %v829
      %v845 = vsel %vm842, %v829, %v831
      %v846 = vsel %vm842, %v831, %v833
      %v847 = vsel %vm842, %v833, %v835
      %v848 = vsel %vm842, %v835, %v837
      %v849 = vsel %vm842, %v837, %v839
      %v850 = vsel %vm842, %v839, %v841
      %v852 = vsel %vm586, %v823, 0
      %v855 = vsel %vm590, %v843, 0
      %v858 = vsel %vm590, %v844, 0
      %v861 = vsel %vm590, %v845, 0
      %v864 = vsel %vm590, %v846, 0
      %v867 = vsel %vm590, %v847, 0
      %v870 = vsel %vm590, %v848, 0
      %v873 = vsel %vm590, %v849, 0
      %v876 = vsel %vm590, %v850, 0
      %v879 = vsel %vm590, %v841, 0
      %881 = vmatprep.subr.bf16.mxu0 0
      %882 = vmatpush1.bf16.msra.mxu0 0
      %883 = vmatprep.subr.bf16.mxu0 0
      %884 = vmatpush1.bf16.msra.mxu0 0
      %885 = vmatprep.subr.bf16.mxu0 0
      %886 = vmatpush1.bf16.msra.mxu0 0
      %887 = vmatprep.subr.bf16.mxu0 0
      %888 = vmatpush1.bf16.msra.mxu0 0
      %889 = vmatprep.subr.bf16.mxu0 0
      %890 = vmatpush1.bf16.msra.mxu0 0
      %891 = vmatprep.subr.bf16.mxu0 0
      %892 = vmatpush1.bf16.msra.mxu0 0
      %893 = vmatprep.subr.bf16.mxu0 0
      %894 = vmatpush1.bf16.msra.mxu0 0
      %895 = vmatprep.subr.bf16.mxu0 %v858
      %896 = vmatpush1.bf16.msra.mxu0 %v855
      %897 = vmatprep.subr.bf16.mxu0 0
      %898 = vmatpush2.bf16.msra.mxu0 0
      %899 = vmatprep.subr.bf16.mxu0 0
      %900 = vmatpush2.bf16.msra.mxu0 0
      %901 = vmatprep.subr.bf16.mxu0 0
      %902 = vmatpush2.bf16.msra.mxu0 0
      %903 = vmatprep.subr.bf16.mxu0 0
      %904 = vmatpush2.bf16.msra.mxu0 0
      %905 = vmatprep.subr.bf16.mxu0 0
      %906 = vmatpush2.bf16.msra.mxu0 0
      %907 = vmatprep.subr.bf16.mxu0 0
      %908 = vmatpush2.bf16.msra.mxu0 0
      %909 = vmatprep.subr.bf16.mxu0 0
      %910 = vmatpush2.bf16.msra.mxu0 0
      %911 = vmatprep.subr.bf16.mxu0 0
      %912 = vmatpush2.bf16.msra.mxu0 0
      %913 = vmatprep.mubr.bf16.mxu0 0
      %914 = vmatmul.mubr.bf16.gmra.mxu0 %v852
      %v915 = vpop.f32.mrf.mxu0
      %v916 = vadd.f32 0.0, %v915
      %v917 = vpop.f32.mrf.mxu0
      %v918 = vadd.f32 0.0, %v917
      %v919 = vpop.f32.mrf.mxu0
      %v920 = vpop.f32.mrf.mxu0
      %921 = vdwg.mxu0
      %922 = vmatprep.subr.bf16.mxu0 0
      %923 = vmatpush1.bf16.msra.mxu0 0
      %924 = vmatprep.subr.bf16.mxu0 0
      %925 = vmatpush1.bf16.msra.mxu0 0
      %926 = vmatprep.subr.bf16.mxu0 0
      %927 = vmatpush1.bf16.msra.mxu0 0
      %928 = vmatprep.subr.bf16.mxu0 0
      %929 = vmatpush1.bf16.msra.mxu0 0
      %930 = vmatprep.subr.bf16.mxu0 0
      %931 = vmatpush1.bf16.msra.mxu0 0
      %932 = vmatprep.subr.bf16.mxu0 0
      %933 = vmatpush1.bf16.msra.mxu0 0
      %934 = vmatprep.subr.bf16.mxu0 0
      %935 = vmatpush1.bf16.msra.mxu0 0
      %936 = vmatprep.subr.bf16.mxu0 %v864
      %937 = vmatpush1.bf16.msra.mxu0 %v861
      %938 = vmatprep.subr.bf16.mxu0 0
      %939 = vmatpush2.bf16.msra.mxu0 0
      %940 = vmatprep.subr.bf16.mxu0 0
      %941 = vmatpush2.bf16.msra.mxu0 0
      %942 = vmatprep.subr.bf16.mxu0 0
      %943 = vmatpush2.bf16.msra.mxu0 0
      %944 = vmatprep.subr.bf16.mxu0 0
      %945 = vmatpush2.bf16.msra.mxu0 0
      %946 = vmatprep.subr.bf16.mxu0 0
      %947 = vmatpush2.bf16.msra.mxu0 0
      %948 = vmatprep.subr.bf16.mxu0 0
      %949 = vmatpush2.bf16.msra.mxu0 0
      %950 = vmatprep.subr.bf16.mxu0 0
      %951 = vmatpush2.bf16.msra.mxu0 0
      %952 = vmatprep.subr.bf16.mxu0 0
      %953 = vmatpush2.bf16.msra.mxu0 0
      %954 = vmatprep.mubr.bf16.mxu0 0
      %955 = vmatmul.mubr.bf16.gmra.mxu0 %v852
      %v956 = vpop.f32.mrf.mxu0
      %v957 = vadd.f32 0.0, %v956
      %v958 = vpop.f32.mrf.mxu0
      %v959 = vadd.f32 0.0, %v958
      %v960 = vpop.f32.mrf.mxu0
      %v961 = vpop.f32.mrf.mxu0
      %962 = vdwg.mxu0
      %963 = vmatprep.subr.bf16.mxu0 0
      %964 = vmatpush1.bf16.msra.mxu0 0
      %965 = vmatprep.subr.bf16.mxu0 0
      %966 = vmatpush1.bf16.msra.mxu0 0
      %967 = vmatprep.subr.bf16.mxu0 0
      %968 = vmatpush1.bf16.msra.mxu0 0
      %969 = vmatprep.subr.bf16.mxu0 0
      %970 = vmatpush1.bf16.msra.mxu0 0
      %971 = vmatprep.subr.bf16.mxu0 0
      %972 = vmatpush1.bf16.msra.mxu0 0
      %973 = vmatprep.subr.bf16.mxu0 0
      %974 = vmatpush1.bf16.msra.mxu0 0
      %975 = vmatprep.subr.bf16.mxu0 0
      %976 = vmatpush1.bf16.msra.mxu0 0
      %977 = vmatprep.subr.bf16.mxu0 %v870
      %978 = vmatpush1.bf16.msra.mxu0 %v867
      %979 = vmatprep.subr.bf16.mxu0 0
      %980 = vmatpush2.bf16.msra.mxu0 0
      %981 = vmatprep.subr.bf16.mxu0 0
      %982 = vmatpush2.bf16.msra.mxu0 0
      %983 = vmatprep.subr.bf16.mxu0 0
      %984 = vmatpush2.bf16.msra.mxu0 0
      %985 = vmatprep.subr.bf16.mxu0 0
      %986 = vmatpush2.bf16.msra.mxu0 0
      %987 = vmatprep.subr.bf16.mxu0 0
      %988 = vmatpush2.bf16.msra.mxu0 0
      %989 = vmatprep.subr.bf16.mxu0 0
      %990 = vmatpush2.bf16.msra.mxu0 0
      %991 = vmatprep.subr.bf16.mxu0 0
      %992 = vmatpush2.bf16.msra.mxu0 0
      %993 = vmatprep.subr.bf16.mxu0 0
      %994 = vmatpush2.bf16.msra.mxu0 0
      %995 = vmatprep.mubr.bf16.mxu0 0
      %996 = vmatmul.mubr.bf16.gmra.mxu0 %v852
      %v997 = vpop.f32.mrf.mxu0
      %v998 = vadd.f32 0.0, %v997
      %v999 = vpop.f32.mrf.mxu0
      %v1000 = vadd.f32 0.0, %v999
      %v1001 = vpop.f32.mrf.mxu0
      %v1002 = vpop.f32.mrf.mxu0
      %1003 = vdwg.mxu0
      %1004 = vmatprep.subr.bf16.mxu0 0
      %1005 = vmatpush1.bf16.msra.mxu0 0
      %1006 = vmatprep.subr.bf16.mxu0 0
      %1007 = vmatpush1.bf16.msra.mxu0 0
      %1008 = vmatprep.subr.bf16.mxu0 0
      %1009 = vmatpush1.bf16.msra.mxu0 0
      %1010 = vmatprep.subr.bf16.mxu0 0
      %1011 = vmatpush1.bf16.msra.mxu0 0
      %1012 = vmatprep.subr.bf16.mxu0 0
      %1013 = vmatpush1.bf16.msra.mxu0 0
      %1014 = vmatprep.subr.bf16.mxu0 0
      %1015 = vmatpush1.bf16.msra.mxu0 0
      %1016 = vmatprep.subr.bf16.mxu0 0
      %1017 = vmatpush1.bf16.msra.mxu0 0
      %1018 = vmatprep.subr.bf16.mxu0 %v876
      %1019 = vmatpush1.bf16.msra.mxu0 %v873
      %1020 = vmatprep.subr.bf16.mxu0 0
      %1021 = vmatpush2.bf16.msra.mxu0 0
      %1022 = vmatprep.subr.bf16.mxu0 0
      %1023 = vmatpush2.bf16.msra.mxu0 0
      %1024 = vmatprep.subr.bf16.mxu0 0
      %1025 = vmatpush2.bf16.msra.mxu0 0
      %1026 = vmatprep.subr.bf16.mxu0 0
      %1027 = vmatpush2.bf16.msra.mxu0 0
      %1028 = vmatprep.subr.bf16.mxu0 0
      %1029 = vmatpush2.bf16.msra.mxu0 0
      %1030 = vmatprep.subr.bf16.mxu0 0
      %1031 = vmatpush2.bf16.msra.mxu0 0
      %1032 = vmatprep.subr.bf16.mxu0 0
      %1033 = vmatpush2.bf16.msra.mxu0 0
      %1034 = vmatprep.subr.bf16.mxu0 0
      %1035 = vmatpush2.bf16.msra.mxu0 0
      %1036 = vmatprep.mubr.bf16.mxu0 0
      %1037 = vmatmul.mubr.bf16.gmra.mxu0 %v852
      %v1038 = vpop.f32.mrf.mxu0
      %v1039 = vadd.f32 0.0, %v1038
      %v1040 = vpop.f32.mrf.mxu0
      %v1041 = vadd.f32 0.0, %v1040
      %v1042 = vpop.f32.mrf.mxu0
      %v1043 = vpop.f32.mrf.mxu0
      %1044 = vdwg.mxu0
      %1045 = vmatprep.subr.bf16.mxu0 0
      %1046 = vmatpush1.bf16.msra.mxu0 0
      %1047 = vmatprep.subr.bf16.mxu0 0
      %1048 = vmatpush1.bf16.msra.mxu0 0
      %1049 = vmatprep.subr.bf16.mxu0 0
      %1050 = vmatpush1.bf16.msra.mxu0 0
      %1051 = vmatprep.subr.bf16.mxu0 0
      %1052 = vmatpush1.bf16.msra.mxu0 0
      %1053 = vmatprep.subr.bf16.mxu0 0
      %1054 = vmatpush1.bf16.msra.mxu0 0
      %1055 = vmatprep.subr.bf16.mxu0 0
      %1056 = vmatpush1.bf16.msra.mxu0 0
      %1057 = vmatprep.subr.bf16.mxu0 0
      %1058 = vmatpush1.bf16.msra.mxu0 0
      %1059 = vmatprep.subr.bf16.mxu0 0
      %1060 = vmatpush1.bf16.msra.mxu0 %v879
      %1061 = vmatprep.subr.bf16.mxu0 0
      %1062 = vmatpush2.bf16.msra.mxu0 0
      %1063 = vmatprep.subr.bf16.mxu0 0
      %1064 = vmatpush2.bf16.msra.mxu0 0
      %1065 = vmatprep.subr.bf16.mxu0 0
      %1066 = vmatpush2.bf16.msra.mxu0 0
      %1067 = vmatprep.subr.bf16.mxu0 0
      %1068 = vmatpush2.bf16.msra.mxu0 0
      %1069 = vmatprep.subr.bf16.mxu0 0
      %1070 = vmatpush2.bf16.msra.mxu0 0
      %1071 = vmatprep.subr.bf16.mxu0 0
      %1072 = vmatpush2.bf16.msra.mxu0 0
      %1073 = vmatprep.subr.bf16.mxu0 0
      %1074 = vmatpush2.bf16.msra.mxu0 0
      %1075 = vmatprep.subr.bf16.mxu0 0
      %1076 = vmatpush2.bf16.msra.mxu0 0
      %1077 = vmatprep.mubr.bf16.mxu0 0
      %1078 = vmatmul.mubr.bf16.gmra.mxu0 %v852
      %v1079 = vpop.f32.mrf.mxu0
      %v1080 = vadd.f32 0.0, %v1079
      %v1081 = vpop.f32.mrf.mxu0
      %v1082 = vpop.f32.mrf.mxu0
      %v1083 = vpop.f32.mrf.mxu0
      %1084 = vdwg.mxu0
      %v1085 = vadd.f32 %v653, %v916
      %v1086 = vadd.f32 %v655, %v918
      %v1087 = vadd.f32 %v694, %v957
      %v1088 = vadd.f32 %v696, %v959
      %v1089 = vadd.f32 %v735, %v998
      %v1090 = vadd.f32 %v737, %v1000
      %v1091 = vadd.f32 %v776, %v1039
      %v1092 = vadd.f32 %v778, %v1041
      %v1093 = vadd.f32 %v817, %v1080
      %s1094 = scalar_lea.vmem %s3, 2
      %v1095 = vld [vmem:[%s1094] sm:$0x3]
      %1096 = vrot.lane.b32.xlu0 %v293, 127
      %v1097 = vpop.permute.xlu0 %1096
      %1098 = vrot.lane.b32.xlu0 %v301, 127
      %v1099 = vpop.permute.xlu0 %1098
      %1100 = vrot.lane.b32.xlu0 %v300, 127
      %v1101 = vpop.permute.xlu0 %1100
      %1102 = vrot.lane.b32.xlu0 %v302, 127
      %v1103 = vpop.permute.xlu0 %1102
      %1104 = vrot.lane.b32.xlu0 %v310, 127
      %v1105 = vpop.permute.xlu0 %1104
      %1106 = vrot.lane.b32.xlu0 %v318, 127
      %v1107 = vpop.permute.xlu0 %1106
      %1108 = vrot.lane.b32.xlu0 %v317, 127
      %v1109 = vpop.permute.xlu0 %1108
      %1110 = vrot.lane.b32.xlu0 %v319, 127
      %v1111 = vpop.permute.xlu0 %1110
      %1112 = vrot.lane.b32.xlu0 %v326, 127
      %v1113 = vpop.permute.xlu0 %1112
      %v1114 = vsel %vm842, %v1097, %v1099
      %v1115 = vsel %vm842, %v1099, %v1101
      %v1116 = vsel %vm842, %v1101, %v1103
      %v1117 = vsel %vm842, %v1103, %v1105
      %v1118 = vsel %vm842, %v1105, %v1107
      %v1119 = vsel %vm842, %v1107, %v1109
      %v1120 = vsel %vm842, %v1109, %v1111
      %v1121 = vsel %vm842, %v1111, %v1113
      %v1123 = vsel %vm327, %v1095, 0
      %v1126 = vsel %vm331, %v1114, 0
      %v1129 = vsel %vm331, %v1115, 0
      %v1132 = vsel %vm331, %v1116, 0
      %v1135 = vsel %vm331, %v1117, 0
      %v1138 = vsel %vm331, %v1118, 0
      %v1141 = vsel %vm331, %v1119, 0
      %v1144 = vsel %vm331, %v1120, 0
      %v1147 = vsel %vm331, %v1121, 0
      %v1150 = vsel %vm331, %v1113, 0
      %1152 = vmatprep.subr.bf16.mxu0 0
      %1153 = vmatpush1.bf16.msra.mxu0 0
      %1154 = vmatprep.subr.bf16.mxu0 0
      %1155 = vmatpush1.bf16.msra.mxu0 0
      %1156 = vmatprep.subr.bf16.mxu0 0
      %1157 = vmatpush1.bf16.msra.mxu0 0
      %1158 = vmatprep.subr.bf16.mxu0 0
      %1159 = vmatpush1.bf16.msra.mxu0 0
      %1160 = vmatprep.subr.bf16.mxu0 0
      %1161 = vmatpush1.bf16.msra.mxu0 0
      %1162 = vmatprep.subr.bf16.mxu0 0
      %1163 = vmatpush1.bf16.msra.mxu0 0
      %1164 = vmatprep.subr.bf16.mxu0 0
      %1165 = vmatpush1.bf16.msra.mxu0 0
      %1166 = vmatprep.subr.bf16.mxu0 %v1129
      %1167 = vmatpush1.bf16.msra.mxu0 %v1126
      %1168 = vmatprep.subr.bf16.mxu0 0
      %1169 = vmatpush2.bf16.msra.mxu0 0
      %1170 = vmatprep.subr.bf16.mxu0 0
      %1171 = vmatpush2.bf16.msra.mxu0 0
      %1172 = vmatprep.subr.bf16.mxu0 0
      %1173 = vmatpush2.bf16.msra.mxu0 0
      %1174 = vmatprep.subr.bf16.mxu0 0
      %1175 = vmatpush2.bf16.msra.mxu0 0
      %1176 = vmatprep.subr.bf16.mxu0 0
      %1177 = vmatpush2.bf16.msra.mxu0 0
      %1178 = vmatprep.subr.bf16.mxu0 0
      %1179 = vmatpush2.bf16.msra.mxu0 0
      %1180 = vmatprep.subr.bf16.mxu0 0
      %1181 = vmatpush2.bf16.msra.mxu0 0
      %1182 = vmatprep.subr.bf16.mxu0 0
      %1183 = vmatpush2.bf16.msra.mxu0 0
      %1184 = vmatprep.mubr.bf16.mxu0 0
      %1185 = vmatmul.mubr.bf16.gmra.mxu0 %v1123
      %v1186 = vpop.f32.mrf.mxu0
      %v1187 = vadd.f32 0.0, %v1186
      %v1188 = vpop.f32.mrf.mxu0
      %v1189 = vadd.f32 0.0, %v1188
      %v1190 = vpop.f32.mrf.mxu0
      %v1191 = vpop.f32.mrf.mxu0
      %1192 = vdwg.mxu0
      %1193 = vmatprep.subr.bf16.mxu0 0
      %1194 = vmatpush1.bf16.msra.mxu0 0
      %1195 = vmatprep.subr.bf16.mxu0 0
      %1196 = vmatpush1.bf16.msra.mxu0 0
      %1197 = vmatprep.subr.bf16.mxu0 0
      %1198 = vmatpush1.bf16.msra.mxu0 0
      %1199 = vmatprep.subr.bf16.mxu0 0
      %1200 = vmatpush1.bf16.msra.mxu0 0
      %1201 = vmatprep.subr.bf16.mxu0 0
      %1202 = vmatpush1.bf16.msra.mxu0 0
      %1203 = vmatprep.subr.bf16.mxu0 0
      %1204 = vmatpush1.bf16.msra.mxu0 0
      %1205 = vmatprep.subr.bf16.mxu0 0
      %1206 = vmatpush1.bf16.msra.mxu0 0
      %1207 = vmatprep.subr.bf16.mxu0 %v1135
      %1208 = vmatpush1.bf16.msra.mxu0 %v1132
      %1209 = vmatprep.subr.bf16.mxu0 0
      %1210 = vmatpush2.bf16.msra.mxu0 0
      %1211 = vmatprep.subr.bf16.mxu0 0
      %1212 = vmatpush2.bf16.msra.mxu0 0
      %1213 = vmatprep.subr.bf16.mxu0 0
      %1214 = vmatpush2.bf16.msra.mxu0 0
      %1215 = vmatprep.subr.bf16.mxu0 0
      %1216 = vmatpush2.bf16.msra.mxu0 0
      %1217 = vmatprep.subr.bf16.mxu0 0
      %1218 = vmatpush2.bf16.msra.mxu0 0
      %1219 = vmatprep.subr.bf16.mxu0 0
      %1220 = vmatpush2.bf16.msra.mxu0 0
      %1221 = vmatprep.subr.bf16.mxu0 0
      %1222 = vmatpush2.bf16.msra.mxu0 0
      %1223 = vmatprep.subr.bf16.mxu0 0
      %1224 = vmatpush2.bf16.msra.mxu0 0
      %1225 = vmatprep.mubr.bf16.mxu0 0
      %1226 = vmatmul.mubr.bf16.gmra.mxu0 %v1123
      %v1227 = vpop.f32.mrf.mxu0
      %v1228 = vadd.f32 0.0, %v1227
      %v1229 = vpop.f32.mrf.mxu0
      %v1230 = vadd.f32 0.0, %v1229
      %v1231 = vpop.f32.mrf.mxu0
      %v1232 = vpop.f32.mrf.mxu0
      %1233 = vdwg.mxu0
      %1234 = vmatprep.subr.bf16.mxu0 0
      %1235 = vmatpush1.bf16.msra.mxu0 0
      %1236 = vmatprep.subr.bf16.mxu0 0
      %1237 = vmatpush1.bf16.msra.mxu0 0
      %1238 = vmatprep.subr.bf16.mxu0 0
      %1239 = vmatpush1.bf16.msra.mxu0 0
      %1240 = vmatprep.subr.bf16.mxu0 0
      %1241 = vmatpush1.bf16.msra.mxu0 0
      %1242 = vmatprep.subr.bf16.mxu0 0
      %1243 = vmatpush1.bf16.msra.mxu0 0
      %1244 = vmatprep.subr.bf16.mxu0 0
      %1245 = vmatpush1.bf16.msra.mxu0 0
      %1246 = vmatprep.subr.bf16.mxu0 0
      %1247 = vmatpush1.bf16.msra.mxu0 0
      %1248 = vmatprep.subr.bf16.mxu0 %v1141
      %1249 = vmatpush1.bf16.msra.mxu0 %v1138
      %1250 = vmatprep.subr.bf16.mxu0 0
      %1251 = vmatpush2.bf16.msra.mxu0 0
      %1252 = vmatprep.subr.bf16.mxu0 0
      %1253 = vmatpush2.bf16.msra.mxu0 0
      %1254 = vmatprep.subr.bf16.mxu0 0
      %1255 = vmatpush2.bf16.msra.mxu0 0
      %1256 = vmatprep.subr.bf16.mxu0 0
      %1257 = vmatpush2.bf16.msra.mxu0 0
      %1258 = vmatprep.subr.bf16.mxu0 0
      %1259 = vmatpush2.bf16.msra.mxu0 0
      %1260 = vmatprep.subr.bf16.mxu0 0
      %1261 = vmatpush2.bf16.msra.mxu0 0
      %1262 = vmatprep.subr.bf16.mxu0 0
      %1263 = vmatpush2.bf16.msra.mxu0 0
      %1264 = vmatprep.subr.bf16.mxu0 0
      %1265 = vmatpush2.bf16.msra.mxu0 0
      %1266 = vmatprep.mubr.bf16.mxu0 0
      %1267 = vmatmul.mubr.bf16.gmra.mxu0 %v1123
      %v1268 = vpop.f32.mrf.mxu0
      %v1269 = vadd.f32 0.0, %v1268
      %v1270 = vpop.f32.mrf.mxu0
      %v1271 = vadd.f32 0.0, %v1270
      %v1272 = vpop.f32.mrf.mxu0
      %v1273 = vpop.f32.mrf.mxu0
      %1274 = vdwg.mxu0
      %1275 = vmatprep.subr.bf16.mxu0 0
      %1276 = vmatpush1.bf16.msra.mxu0 0
      %1277 = vmatprep.subr.bf16.mxu0 0
      %1278 = vmatpush1.bf16.msra.mxu0 0
      %1279 = vmatprep.subr.bf16.mxu0 0
      %1280 = vmatpush1.bf16.msra.mxu0 0
      %1281 = vmatprep.subr.bf16.mxu0 0
      %1282 = vmatpush1.bf16.msra.mxu0 0
      %1283 = vmatprep.subr.bf16.mxu0 0
      %1284 = vmatpush1.bf16.msra.mxu0 0
      %1285 = vmatprep.subr.bf16.mxu0 0
      %1286 = vmatpush1.bf16.msra.mxu0 0
      %1287 = vmatprep.subr.bf16.mxu0 0
      %1288 = vmatpush1.bf16.msra.mxu0 0
      %1289 = vmatprep.subr.bf16.mxu0 %v1147
      %1290 = vmatpush1.bf16.msra.mxu0 %v1144
      %1291 = vmatprep.subr.bf16.mxu0 0
      %1292 = vmatpush2.bf16.msra.mxu0 0
      %1293 = vmatprep.subr.bf16.mxu0 0
      %1294 = vmatpush2.bf16.msra.mxu0 0
      %1295 = vmatprep.subr.bf16.mxu0 0
      %1296 = vmatpush2.bf16.msra.mxu0 0
      %1297 = vmatprep.subr.bf16.mxu0 0
      %1298 = vmatpush2.bf16.msra.mxu0 0
      %1299 = vmatprep.subr.bf16.mxu0 0
      %1300 = vmatpush2.bf16.msra.mxu0 0
      %1301 = vmatprep.subr.bf16.mxu0 0
      %1302 = vmatpush2.bf16.msra.mxu0 0
      %1303 = vmatprep.subr.bf16.mxu0 0
      %1304 = vmatpush2.bf16.msra.mxu0 0
      %1305 = vmatprep.subr.bf16.mxu0 0
      %1306 = vmatpush2.bf16.msra.mxu0 0
      %1307 = vmatprep.mubr.bf16.mxu0 0
      %1308 = vmatmul.mubr.bf16.gmra.mxu0 %v1123
      %v1309 = vpop.f32.mrf.mxu0
      %v1310 = vadd.f32 0.0, %v1309
      %v1311 = vpop.f32.mrf.mxu0
      %v1312 = vadd.f32 0.0, %v1311
      %v1313 = vpop.f32.mrf.mxu0
      %v1314 = vpop.f32.mrf.mxu0
      %1315 = vdwg.mxu0
      %1316 = vmatprep.subr.bf16.mxu0 0
      %1317 = vmatpush1.bf16.msra.mxu0 0
      %1318 = vmatprep.subr.bf16.mxu0 0
      %1319 = vmatpush1.bf16.msra.mxu0 0
      %1320 = vmatprep.subr.bf16.mxu0 0
      %1321 = vmatpush1.bf16.msra.mxu0 0
      %1322 = vmatprep.subr.bf16.mxu0 0
      %1323 = vmatpush1.bf16.msra.mxu0 0
      %1324 = vmatprep.subr.bf16.mxu0 0
      %1325 = vmatpush1.bf16.msra.mxu0 0
      %1326 = vmatprep.subr.bf16.mxu0 0
      %1327 = vmatpush1.bf16.msra.mxu0 0
      %1328 = vmatprep.subr.bf16.mxu0 0
      %1329 = vmatpush1.bf16.msra.mxu0 0
      %1330 = vmatprep.subr.bf16.mxu0 0
      %1331 = vmatpush1.bf16.msra.mxu0 %v1150
      %1332 = vmatprep.subr.bf16.mxu0 0
      %1333 = vmatpush2.bf16.msra.mxu0 0
      %1334 = vmatprep.subr.bf16.mxu0 0
      %1335 = vmatpush2.bf16.msra.mxu0 0
      %1336 = vmatprep.subr.bf16.mxu0 0
      %1337 = vmatpush2.bf16.msra.mxu0 0
      %1338 = vmatprep.subr.bf16.mxu0 0
      %1339 = vmatpush2.bf16.msra.mxu0 0
      %1340 = vmatprep.subr.bf16.mxu0 0
      %1341 = vmatpush2.bf16.msra.mxu0 0
      %1342 = vmatprep.subr.bf16.mxu0 0
      %1343 = vmatpush2.bf16.msra.mxu0 0
      %1344 = vmatprep.subr.bf16.mxu0 0
      %1345 = vmatpush2.bf16.msra.mxu0 0
      %1346 = vmatprep.subr.bf16.mxu0 0
      %1347 = vmatpush2.bf16.msra.mxu0 0
      %1348 = vmatprep.mubr.bf16.mxu0 0
      %1349 = vmatmul.mubr.bf16.gmra.mxu0 %v1123
      %v1350 = vpop.f32.mrf.mxu0
      %v1351 = vadd.f32 0.0, %v1350
      %v1352 = vpop.f32.mrf.mxu0
      %v1353 = vpop.f32.mrf.mxu0
      %v1354 = vpop.f32.mrf.mxu0
      %1355 = vdwg.mxu0
      %v1356 = vadd.f32 %v1085, %v1187
      %v1357 = vadd.f32 %v1086, %v1189
      %v1358 = vadd.f32 %v1087, %v1228
      %v1359 = vadd.f32 %v1088, %v1230
      %v1360 = vadd.f32 %v1089, %v1269
      %v1361 = vadd.f32 %v1090, %v1271
      %v1362 = vadd.f32 %v1091, %v1310
      %v1363 = vadd.f32 %v1092, %v1312
      %v1364 = vadd.f32 %v1093, %v1351
      %s1365 = scalar_lea.vmem %s2, 4
      %v1366 = vld [vmem:[%s1365] sm:$0x3]
      %1367 = vrot.lane.b32.xlu0 %v577, 126
      %v1368 = vpop.permute.xlu0 %1367
      %1369 = vrot.lane.b32.xlu0 %v578, 126
      %v1370 = vpop.permute.xlu0 %1369
      %1371 = vrot.lane.b32.xlu0 %v579, 126
      %v1372 = vpop.permute.xlu0 %1371
      %1373 = vrot.lane.b32.xlu0 %v580, 126
      %v1374 = vpop.permute.xlu0 %1373
      %1375 = vrot.lane.b32.xlu0 %v581, 126
      %v1376 = vpop.permute.xlu0 %1375
      %1377 = vrot.lane.b32.xlu0 %v582, 126
      %v1378 = vpop.permute.xlu0 %1377
      %1379 = vrot.lane.b32.xlu0 %v583, 126
      %v1380 = vpop.permute.xlu0 %1379
      %1381 = vrot.lane.b32.xlu0 %v584, 126
      %v1382 = vpop.permute.xlu0 %1381
      %1383 = vrot.lane.b32.xlu0 %v585, 126
      %v1384 = vpop.permute.xlu0 %1383
      %vm1385 = vcmask 1031168
      %v1386 = vsel %vm1385, %v1368, %v1370
      %v1387 = vsel %vm1385, %v1370, %v1372
      %v1388 = vsel %vm1385, %v1372, %v1374
      %v1389 = vsel %vm1385, %v1374, %v1376
      %v1390 = vsel %vm1385, %v1376, %v1378
      %v1391 = vsel %vm1385, %v1378, %v1380
      %v1392 = vsel %vm1385, %v1380, %v1382
      %v1393 = vsel %vm1385, %v1382, %v1384
      %v1395 = vsel %vm586, %v1366, 0
      %v1398 = vsel %vm590, %v1386, 0
      %v1401 = vsel %vm590, %v1387, 0
      %v1404 = vsel %vm590, %v1388, 0
      %v1407 = vsel %vm590, %v1389, 0
      %v1410 = vsel %vm590, %v1390, 0
      %v1413 = vsel %vm590, %v1391, 0
      %v1416 = vsel %vm590, %v1392, 0
      %v1419 = vsel %vm590, %v1393, 0
      %v1422 = vsel %vm590, %v1384, 0
      %1424 = vmatprep.subr.bf16.mxu0 0
      %1425 = vmatpush1.bf16.msra.mxu0 0
      %1426 = vmatprep.subr.bf16.mxu0 0
      %1427 = vmatpush1.bf16.msra.mxu0 0
      %1428 = vmatprep.subr.bf16.mxu0 0
      %1429 = vmatpush1.bf16.msra.mxu0 0
      %1430 = vmatprep.subr.bf16.mxu0 0
      %1431 = vmatpush1.bf16.msra.mxu0 0
      %1432 = vmatprep.subr.bf16.mxu0 0
      %1433 = vmatpush1.bf16.msra.mxu0 0
      %1434 = vmatprep.subr.bf16.mxu0 0
      %1435 = vmatpush1.bf16.msra.mxu0 0
      %1436 = vmatprep.subr.bf16.mxu0 0
      %1437 = vmatpush1.bf16.msra.mxu0 0
      %1438 = vmatprep.subr.bf16.mxu0 %v1401
      %1439 = vmatpush1.bf16.msra.mxu0 %v1398
      %1440 = vmatprep.subr.bf16.mxu0 0
      %1441 = vmatpush2.bf16.msra.mxu0 0
      %1442 = vmatprep.subr.bf16.mxu0 0
      %1443 = vmatpush2.bf16.msra.mxu0 0
      %1444 = vmatprep.subr.bf16.mxu0 0
      %1445 = vmatpush2.bf16.msra.mxu0 0
      %1446 = vmatprep.subr.bf16.mxu0 0
      %1447 = vmatpush2.bf16.msra.mxu0 0
      %1448 = vmatprep.subr.bf16.mxu0 0
      %1449 = vmatpush2.bf16.msra.mxu0 0
      %1450 = vmatprep.subr.bf16.mxu0 0
      %1451 = vmatpush2.bf16.msra.mxu0 0
      %1452 = vmatprep.subr.bf16.mxu0 0
      %1453 = vmatpush2.bf16.msra.mxu0 0
      %1454 = vmatprep.subr.bf16.mxu0 0
      %1455 = vmatpush2.bf16.msra.mxu0 0
      %1456 = vmatprep.mubr.bf16.mxu0 0
      %1457 = vmatmul.mubr.bf16.gmra.mxu0 %v1395
      %v1458 = vpop.f32.mrf.mxu0
      %v1459 = vadd.f32 0.0, %v1458
      %v1460 = vpop.f32.mrf.mxu0
      %v1461 = vadd.f32 0.0, %v1460
      %v1462 = vpop.f32.mrf.mxu0
      %v1463 = vpop.f32.mrf.mxu0
      %1464 = vdwg.mxu0
      %1465 = vmatprep.subr.bf16.mxu0 0
      %1466 = vmatpush1.bf16.msra.mxu0 0
      %1467 = vmatprep.subr.bf16.mxu0 0
      %1468 = vmatpush1.bf16.msra.mxu0 0
      %1469 = vmatprep.subr.bf16.mxu0 0
      %1470 = vmatpush1.bf16.msra.mxu0 0
      %1471 = vmatprep.subr.bf16.mxu0 0
      %1472 = vmatpush1.bf16.msra.mxu0 0
      %1473 = vmatprep.subr.bf16.mxu0 0
      %1474 = vmatpush1.bf16.msra.mxu0 0
      %1475 = vmatprep.subr.bf16.mxu0 0
      %1476 = vmatpush1.bf16.msra.mxu0 0
      %1477 = vmatprep.subr.bf16.mxu0 0
      %1478 = vmatpush1.bf16.msra.mxu0 0
      %1479 = vmatprep.subr.bf16.mxu0 %v1407
      %1480 = vmatpush1.bf16.msra.mxu0 %v1404
      %1481 = vmatprep.subr.bf16.mxu0 0
      %1482 = vmatpush2.bf16.msra.mxu0 0
      %1483 = vmatprep.subr.bf16.mxu0 0
      %1484 = vmatpush2.bf16.msra.mxu0 0
      %1485 = vmatprep.subr.bf16.mxu0 0
      %1486 = vmatpush2.bf16.msra.mxu0 0
      %1487 = vmatprep.subr.bf16.mxu0 0
      %1488 = vmatpush2.bf16.msra.mxu0 0
      %1489 = vmatprep.subr.bf16.mxu0 0
      %1490 = vmatpush2.bf16.msra.mxu0 0
      %1491 = vmatprep.subr.bf16.mxu0 0
      %1492 = vmatpush2.bf16.msra.mxu0 0
      %1493 = vmatprep.subr.bf16.mxu0 0
      %1494 = vmatpush2.bf16.msra.mxu0 0
      %1495 = vmatprep.subr.bf16.mxu0 0
      %1496 = vmatpush2.bf16.msra.mxu0 0
      %1497 = vmatprep.mubr.bf16.mxu0 0
      %1498 = vmatmul.mubr.bf16.gmra.mxu0 %v1395
      %v1499 = vpop.f32.mrf.mxu0
      %v1500 = vadd.f32 0.0, %v1499
      %v1501 = vpop.f32.mrf.mxu0
      %v1502 = vadd.f32 0.0, %v1501
      %v1503 = vpop.f32.mrf.mxu0
      %v1504 = vpop.f32.mrf.mxu0
      %1505 = vdwg.mxu0
      %1506 = vmatprep.subr.bf16.mxu0 0
      %1507 = vmatpush1.bf16.msra.mxu0 0
      %1508 = vmatprep.subr.bf16.mxu0 0
      %1509 = vmatpush1.bf16.msra.mxu0 0
      %1510 = vmatprep.subr.bf16.mxu0 0
      %1511 = vmatpush1.bf16.msra.mxu0 0
      %1512 = vmatprep.subr.bf16.mxu0 0
      %1513 = vmatpush1.bf16.msra.mxu0 0
      %1514 = vmatprep.subr.bf16.mxu0 0
      %1515 = vmatpush1.bf16.msra.mxu0 0
      %1516 = vmatprep.subr.bf16.mxu0 0
      %1517 = vmatpush1.bf16.msra.mxu0 0
      %1518 = vmatprep.subr.bf16.mxu0 0
      %1519 = vmatpush1.bf16.msra.mxu0 0
      %1520 = vmatprep.subr.bf16.mxu0 %v1413
      %1521 = vmatpush1.bf16.msra.mxu0 %v1410
      %1522 = vmatprep.subr.bf16.mxu0 0
      %1523 = vmatpush2.bf16.msra.mxu0 0
      %1524 = vmatprep.subr.bf16.mxu0 0
      %1525 = vmatpush2.bf16.msra.mxu0 0
      %1526 = vmatprep.subr.bf16.mxu0 0
      %1527 = vmatpush2.bf16.msra.mxu0 0
      %1528 = vmatprep.subr.bf16.mxu0 0
      %1529 = vmatpush2.bf16.msra.mxu0 0
      %1530 = vmatprep.subr.bf16.mxu0 0
      %1531 = vmatpush2.bf16.msra.mxu0 0
      %1532 = vmatprep.subr.bf16.mxu0 0
      %1533 = vmatpush2.bf16.msra.mxu0 0
      %1534 = vmatprep.subr.bf16.mxu0 0
      %1535 = vmatpush2.bf16.msra.mxu0 0
      %1536 = vmatprep.subr.bf16.mxu0 0
      %1537 = vmatpush2.bf16.msra.mxu0 0
      %1538 = vmatprep.mubr.bf16.mxu0 0
      %1539 = vmatmul.mubr.bf16.gmra.mxu0 %v1395
      %v1540 = vpop.f32.mrf.mxu0
      %v1541 = vadd.f32 0.0, %v1540
      %v1542 = vpop.f32.mrf.mxu0
      %v1543 = vadd.f32 0.0, %v1542
      %v1544 = vpop.f32.mrf.mxu0
      %v1545 = vpop.f32.mrf.mxu0
      %1546 = vdwg.mxu0
      %1547 = vmatprep.subr.bf16.mxu0 0
      %1548 = vmatpush1.bf16.msra.mxu0 0
      %1549 = vmatprep.subr.bf16.mxu0 0
      %1550 = vmatpush1.bf16.msra.mxu0 0
      %1551 = vmatprep.subr.bf16.mxu0 0
      %1552 = vmatpush1.bf16.msra.mxu0 0
      %1553 = vmatprep.subr.bf16.mxu0 0
      %1554 = vmatpush1.bf16.msra.mxu0 0
      %1555 = vmatprep.subr.bf16.mxu0 0
      %1556 = vmatpush1.bf16.msra.mxu0 0
      %1557 = vmatprep.subr.bf16.mxu0 0
      %1558 = vmatpush1.bf16.msra.mxu0 0
      %1559 = vmatprep.subr.bf16.mxu0 0
      %1560 = vmatpush1.bf16.msra.mxu0 0
      %1561 = vmatprep.subr.bf16.mxu0 %v1419
      %1562 = vmatpush1.bf16.msra.mxu0 %v1416
      %1563 = vmatprep.subr.bf16.mxu0 0
      %1564 = vmatpush2.bf16.msra.mxu0 0
      %1565 = vmatprep.subr.bf16.mxu0 0
      %1566 = vmatpush2.bf16.msra.mxu0 0
      %1567 = vmatprep.subr.bf16.mxu0 0
      %1568 = vmatpush2.bf16.msra.mxu0 0
      %1569 = vmatprep.subr.bf16.mxu0 0
      %1570 = vmatpush2.bf16.msra.mxu0 0
      %1571 = vmatprep.subr.bf16.mxu0 0
      %1572 = vmatpush2.bf16.msra.mxu0 0
      %1573 = vmatprep.subr.bf16.mxu0 0
      %1574 = vmatpush2.bf16.msra.mxu0 0
      %1575 = vmatprep.subr.bf16.mxu0 0
      %1576 = vmatpush2.bf16.msra.mxu0 0
      %1577 = vmatprep.subr.bf16.mxu0 0
      %1578 = vmatpush2.bf16.msra.mxu0 0
      %1579 = vmatprep.mubr.bf16.mxu0 0
      %1580 = vmatmul.mubr.bf16.gmra.mxu0 %v1395
      %v1581 = vpop.f32.mrf.mxu0
      %v1582 = vadd.f32 0.0, %v1581
      %v1583 = vpop.f32.mrf.mxu0
      %v1584 = vadd.f32 0.0, %v1583
      %v1585 = vpop.f32.mrf.mxu0
      %v1586 = vpop.f32.mrf.mxu0
      %1587 = vdwg.mxu0
      %1588 = vmatprep.subr.bf16.mxu0 0
      %1589 = vmatpush1.bf16.msra.mxu0 0
      %1590 = vmatprep.subr.bf16.mxu0 0
      %1591 = vmatpush1.bf16.msra.mxu0 0
      %1592 = vmatprep.subr.bf16.mxu0 0
      %1593 = vmatpush1.bf16.msra.mxu0 0
      %1594 = vmatprep.subr.bf16.mxu0 0
      %1595 = vmatpush1.bf16.msra.mxu0 0
      %1596 = vmatprep.subr.bf16.mxu0 0
      %1597 = vmatpush1.bf16.msra.mxu0 0
      %1598 = vmatprep.subr.bf16.mxu0 0
      %1599 = vmatpush1.bf16.msra.mxu0 0
      %1600 = vmatprep.subr.bf16.mxu0 0
      %1601 = vmatpush1.bf16.msra.mxu0 0
      %1602 = vmatprep.subr.bf16.mxu0 0
      %1603 = vmatpush1.bf16.msra.mxu0 %v1422
      %1604 = vmatprep.subr.bf16.mxu0 0
      %1605 = vmatpush2.bf16.msra.mxu0 0
      %1606 = vmatprep.subr.bf16.mxu0 0
      %1607 = vmatpush2.bf16.msra.mxu0 0
      %1608 = vmatprep.subr.bf16.mxu0 0
      %1609 = vmatpush2.bf16.msra.mxu0 0
      %1610 = vmatprep.subr.bf16.mxu0 0
      %1611 = vmatpush2.bf16.msra.mxu0 0
      %1612 = vmatprep.subr.bf16.mxu0 0
      %1613 = vmatpush2.bf16.msra.mxu0 0
      %1614 = vmatprep.subr.bf16.mxu0 0
      %1615 = vmatpush2.bf16.msra.mxu0 0
      %1616 = vmatprep.subr.bf16.mxu0 0
      %1617 = vmatpush2.bf16.msra.mxu0 0
      %1618 = vmatprep.subr.bf16.mxu0 0
      %1619 = vmatpush2.bf16.msra.mxu0 0
      %1620 = vmatprep.mubr.bf16.mxu0 0
      %1621 = vmatmul.mubr.bf16.gmra.mxu0 %v1395
      %v1622 = vpop.f32.mrf.mxu0
      %v1623 = vadd.f32 0.0, %v1622
      %v1624 = vpop.f32.mrf.mxu0
      %v1625 = vpop.f32.mrf.mxu0
      %v1626 = vpop.f32.mrf.mxu0
      %1627 = vdwg.mxu0
      %v1628 = vadd.f32 %v1356, %v1459
      %v1629 = vadd.f32 %v1357, %v1461
      %v1630 = vadd.f32 %v1358, %v1500
      %v1631 = vadd.f32 %v1359, %v1502
      %v1632 = vadd.f32 %v1360, %v1541
      %v1633 = vadd.f32 %v1361, %v1543
      %v1634 = vadd.f32 %v1362, %v1582
      %v1635 = vadd.f32 %v1363, %v1584
      %v1636 = vadd.f32 %v1364, %v1623
      %s1637 = scalar_lea.vmem %s3, 4
      %v1638 = vld [vmem:[%s1637] sm:$0x3]
      %1639 = vrot.lane.b32.xlu0 %v293, 126
      %v1640 = vpop.permute.xlu0 %1639
      %1641 = vrot.lane.b32.xlu0 %v301, 126
      %v1642 = vpop.permute.xlu0 %1641
      %1643 = vrot.lane.b32.xlu0 %v300, 126
      %v1644 = vpop.permute.xlu0 %1643
      %1645 = vrot.lane.b32.xlu0 %v302, 126
      %v1646 = vpop.permute.xlu0 %1645
      %1647 = vrot.lane.b32.xlu0 %v310, 126
      %v1648 = vpop.permute.xlu0 %1647
      %1649 = vrot.lane.b32.xlu0 %v318, 126
      %v1650 = vpop.permute.xlu0 %1649
      %1651 = vrot.lane.b32.xlu0 %v317, 126
      %v1652 = vpop.permute.xlu0 %1651
      %1653 = vrot.lane.b32.xlu0 %v319, 126
      %v1654 = vpop.permute.xlu0 %1653
      %1655 = vrot.lane.b32.xlu0 %v326, 126
      %v1656 = vpop.permute.xlu0 %1655
      %v1657 = vsel %vm1385, %v1640, %v1642
      %v1658 = vsel %vm1385, %v1642, %v1644
      %v1659 = vsel %vm1385, %v1644, %v1646
      %v1660 = vsel %vm1385, %v1646, %v1648
      %v1661 = vsel %vm1385, %v1648, %v1650
      %v1662 = vsel %vm1385, %v1650, %v1652
      %v1663 = vsel %vm1385, %v1652, %v1654
      %v1664 = vsel %vm1385, %v1654, %v1656
      %v1666 = vsel %vm327, %v1638, 0
      %v1669 = vsel %vm331, %v1657, 0
      %v1672 = vsel %vm331, %v1658, 0
      %v1675 = vsel %vm331, %v1659, 0
      %v1678 = vsel %vm331, %v1660, 0
      %v1681 = vsel %vm331, %v1661, 0
      %v1684 = vsel %vm331, %v1662, 0
      %v1687 = vsel %vm331, %v1663, 0
      %v1690 = vsel %vm331, %v1664, 0
      %v1693 = vsel %vm331, %v1656, 0
      %1695 = vmatprep.subr.bf16.mxu0 0
      %1696 = vmatpush1.bf16.msra.mxu0 0
      %1697 = vmatprep.subr.bf16.mxu0 0
      %1698 = vmatpush1.bf16.msra.mxu0 0
      %1699 = vmatprep.subr.bf16.mxu0 0
      %1700 = vmatpush1.bf16.msra.mxu0 0
      %1701 = vmatprep.subr.bf16.mxu0 0
      %1702 = vmatpush1.bf16.msra.mxu0 0
      %1703 = vmatprep.subr.bf16.mxu0 0
      %1704 = vmatpush1.bf16.msra.mxu0 0
      %1705 = vmatprep.subr.bf16.mxu0 0
      %1706 = vmatpush1.bf16.msra.mxu0 0
      %1707 = vmatprep.subr.bf16.mxu0 0
      %1708 = vmatpush1.bf16.msra.mxu0 0
      %1709 = vmatprep.subr.bf16.mxu0 %v1672
      %1710 = vmatpush1.bf16.msra.mxu0 %v1669
      %1711 = vmatprep.subr.bf16.mxu0 0
      %1712 = vmatpush2.bf16.msra.mxu0 0
      %1713 = vmatprep.subr.bf16.mxu0 0
      %1714 = vmatpush2.bf16.msra.mxu0 0
      %1715 = vmatprep.subr.bf16.mxu0 0
      %1716 = vmatpush2.bf16.msra.mxu0 0
      %1717 = vmatprep.subr.bf16.mxu0 0
      %1718 = vmatpush2.bf16.msra.mxu0 0
      %1719 = vmatprep.subr.bf16.mxu0 0
      %1720 = vmatpush2.bf16.msra.mxu0 0
      %1721 = vmatprep.subr.bf16.mxu0 0
      %1722 = vmatpush2.bf16.msra.mxu0 0
      %1723 = vmatprep.subr.bf16.mxu0 0
      %1724 = vmatpush2.bf16.msra.mxu0 0
      %1725 = vmatprep.subr.bf16.mxu0 0
      %1726 = vmatpush2.bf16.msra.mxu0 0
      %1727 = vmatprep.mubr.bf16.mxu0 0
      %1728 = vmatmul.mubr.bf16.gmra.mxu0 %v1666
      %v1729 = vpop.f32.mrf.mxu0
      %v1730 = vadd.f32 0.0, %v1729
      %v1731 = vpop.f32.mrf.mxu0
      %v1732 = vadd.f32 0.0, %v1731
      %v1733 = vpop.f32.mrf.mxu0
      %v1734 = vpop.f32.mrf.mxu0
      %1735 = vdwg.mxu0
      %1736 = vmatprep.subr.bf16.mxu0 0
      %1737 = vmatpush1.bf16.msra.mxu0 0
      %1738 = vmatprep.subr.bf16.mxu0 0
      %1739 = vmatpush1.bf16.msra.mxu0 0
      %1740 = vmatprep.subr.bf16.mxu0 0
      %1741 = vmatpush1.bf16.msra.mxu0 0
      %1742 = vmatprep.subr.bf16.mxu0 0
      %1743 = vmatpush1.bf16.msra.mxu0 0
      %1744 = vmatprep.subr.bf16.mxu0 0
      %1745 = vmatpush1.bf16.msra.mxu0 0
      %1746 = vmatprep.subr.bf16.mxu0 0
      %1747 = vmatpush1.bf16.msra.mxu0 0
      %1748 = vmatprep.subr.bf16.mxu0 0
      %1749 = vmatpush1.bf16.msra.mxu0 0
      %1750 = vmatprep.subr.bf16.mxu0 %v1678
      %1751 = vmatpush1.bf16.msra.mxu0 %v1675
      %1752 = vmatprep.subr.bf16.mxu0 0
      %1753 = vmatpush2.bf16.msra.mxu0 0
      %1754 = vmatprep.subr.bf16.mxu0 0
      %1755 = vmatpush2.bf16.msra.mxu0 0
      %1756 = vmatprep.subr.bf16.mxu0 0
      %1757 = vmatpush2.bf16.msra.mxu0 0
      %1758 = vmatprep.subr.bf16.mxu0 0
      %1759 = vmatpush2.bf16.msra.mxu0 0
      %1760 = vmatprep.subr.bf16.mxu0 0
      %1761 = vmatpush2.bf16.msra.mxu0 0
      %1762 = vmatprep.subr.bf16.mxu0 0
      %1763 = vmatpush2.bf16.msra.mxu0 0
      %1764 = vmatprep.subr.bf16.mxu0 0
      %1765 = vmatpush2.bf16.msra.mxu0 0
      %1766 = vmatprep.subr.bf16.mxu0 0
      %1767 = vmatpush2.bf16.msra.mxu0 0
      %1768 = vmatprep.mubr.bf16.mxu0 0
      %1769 = vmatmul.mubr.bf16.gmra.mxu0 %v1666
      %v1770 = vpop.f32.mrf.mxu0
      %v1771 = vadd.f32 0.0, %v1770
      %v1772 = vpop.f32.mrf.mxu0
      %v1773 = vadd.f32 0.0, %v1772
      %v1774 = vpop.f32.mrf.mxu0
      %v1775 = vpop.f32.mrf.mxu0
      %1776 = vdwg.mxu0
      %1777 = vmatprep.subr.bf16.mxu0 0
      %1778 = vmatpush1.bf16.msra.mxu0 0
      %1779 = vmatprep.subr.bf16.mxu0 0
      %1780 = vmatpush1.bf16.msra.mxu0 0
      %1781 = vmatprep.subr.bf16.mxu0 0
      %1782 = vmatpush1.bf16.msra.mxu0 0
      %1783 = vmatprep.subr.bf16.mxu0 0
      %1784 = vmatpush1.bf16.msra.mxu0 0
      %1785 = vmatprep.subr.bf16.mxu0 0
      %1786 = vmatpush1.bf16.msra.mxu0 0
      %1787 = vmatprep.subr.bf16.mxu0 0
      %1788 = vmatpush1.bf16.msra.mxu0 0
      %1789 = vmatprep.subr.bf16.mxu0 0
      %1790 = vmatpush1.bf16.msra.mxu0 0
      %1791 = vmatprep.subr.bf16.mxu0 %v1684
      %1792 = vmatpush1.bf16.msra.mxu0 %v1681
      %1793 = vmatprep.subr.bf16.mxu0 0
      %1794 = vmatpush2.bf16.msra.mxu0 0
      %1795 = vmatprep.subr.bf16.mxu0 0
      %1796 = vmatpush2.bf16.msra.mxu0 0
      %1797 = vmatprep.subr.bf16.mxu0 0
      %1798 = vmatpush2.bf16.msra.mxu0 0
      %1799 = vmatprep.subr.bf16.mxu0 0
      %1800 = vmatpush2.bf16.msra.mxu0 0
      %1801 = vmatprep.subr.bf16.mxu0 0
      %1802 = vmatpush2.bf16.msra.mxu0 0
      %1803 = vmatprep.subr.bf16.mxu0 0
      %1804 = vmatpush2.bf16.msra.mxu0 0
      %1805 = vmatprep.subr.bf16.mxu0 0
      %1806 = vmatpush2.bf16.msra.mxu0 0
      %1807 = vmatprep.subr.bf16.mxu0 0
      %1808 = vmatpush2.bf16.msra.mxu0 0
      %1809 = vmatprep.mubr.bf16.mxu0 0
      %1810 = vmatmul.mubr.bf16.gmra.mxu0 %v1666
      %v1811 = vpop.f32.mrf.mxu0
      %v1812 = vadd.f32 0.0, %v1811
      %v1813 = vpop.f32.mrf.mxu0
      %v1814 = vadd.f32 0.0, %v1813
      %v1815 = vpop.f32.mrf.mxu0
      %v1816 = vpop.f32.mrf.mxu0
      %1817 = vdwg.mxu0
      %1818 = vmatprep.subr.bf16.mxu0 0
      %1819 = vmatpush1.bf16.msra.mxu0 0
      %1820 = vmatprep.subr.bf16.mxu0 0
      %1821 = vmatpush1.bf16.msra.mxu0 0
      %1822 = vmatprep.subr.bf16.mxu0 0
      %1823 = vmatpush1.bf16.msra.mxu0 0
      %1824 = vmatprep.subr.bf16.mxu0 0
      %1825 = vmatpush1.bf16.msra.mxu0 0
      %1826 = vmatprep.subr.bf16.mxu0 0
      %1827 = vmatpush1.bf16.msra.mxu0 0
      %1828 = vmatprep.subr.bf16.mxu0 0
      %1829 = vmatpush1.bf16.msra.mxu0 0
      %1830 = vmatprep.subr.bf16.mxu0 0
      %1831 = vmatpush1.bf16.msra.mxu0 0
      %1832 = vmatprep.subr.bf16.mxu0 %v1690
      %1833 = vmatpush1.bf16.msra.mxu0 %v1687
      %1834 = vmatprep.subr.bf16.mxu0 0
      %1835 = vmatpush2.bf16.msra.mxu0 0
      %1836 = vmatprep.subr.bf16.mxu0 0
      %1837 = vmatpush2.bf16.msra.mxu0 0
      %1838 = vmatprep.subr.bf16.mxu0 0
      %1839 = vmatpush2.bf16.msra.mxu0 0
      %1840 = vmatprep.subr.bf16.mxu0 0
      %1841 = vmatpush2.bf16.msra.mxu0 0
      %1842 = vmatprep.subr.bf16.mxu0 0
      %1843 = vmatpush2.bf16.msra.mxu0 0
      %1844 = vmatprep.subr.bf16.mxu0 0
      %1845 = vmatpush2.bf16.msra.mxu0 0
      %1846 = vmatprep.subr.bf16.mxu0 0
      %1847 = vmatpush2.bf16.msra.mxu0 0
      %1848 = vmatprep.subr.bf16.mxu0 0
      %1849 = vmatpush2.bf16.msra.mxu0 0
      %1850 = vmatprep.mubr.bf16.mxu0 0
      %1851 = vmatmul.mubr.bf16.gmra.mxu0 %v1666
      %v1852 = vpop.f32.mrf.mxu0
      %v1853 = vadd.f32 0.0, %v1852
      %v1854 = vpop.f32.mrf.mxu0
      %v1855 = vadd.f32 0.0, %v1854
      %v1856 = vpop.f32.mrf.mxu0
      %v1857 = vpop.f32.mrf.mxu0
      %1858 = vdwg.mxu0
      %1859 = vmatprep.subr.bf16.mxu0 0
      %1860 = vmatpush1.bf16.msra.mxu0 0
      %1861 = vmatprep.subr.bf16.mxu0 0
      %1862 = vmatpush1.bf16.msra.mxu0 0
      %1863 = vmatprep.subr.bf16.mxu0 0
      %1864 = vmatpush1.bf16.msra.mxu0 0
      %1865 = vmatprep.subr.bf16.mxu0 0
      %1866 = vmatpush1.bf16.msra.mxu0 0
      %1867 = vmatprep.subr.bf16.mxu0 0
      %1868 = vmatpush1.bf16.msra.mxu0 0
      %1869 = vmatprep.subr.bf16.mxu0 0
      %1870 = vmatpush1.bf16.msra.mxu0 0
      %1871 = vmatprep.subr.bf16.mxu0 0
      %1872 = vmatpush1.bf16.msra.mxu0 0
      %1873 = vmatprep.subr.bf16.mxu0 0
      %1874 = vmatpush1.bf16.msra.mxu0 %v1693
      %1875 = vmatprep.subr.bf16.mxu0 0
      %1876 = vmatpush2.bf16.msra.mxu0 0
      %1877 = vmatprep.subr.bf16.mxu0 0
      %1878 = vmatpush2.bf16.msra.mxu0 0
      %1879 = vmatprep.subr.bf16.mxu0 0
      %1880 = vmatpush2.bf16.msra.mxu0 0
      %1881 = vmatprep.subr.bf16.mxu0 0
      %1882 = vmatpush2.bf16.msra.mxu0 0
      %1883 = vmatprep.subr.bf16.mxu0 0
      %1884 = vmatpush2.bf16.msra.mxu0 0
      %1885 = vmatprep.subr.bf16.mxu0 0
      %1886 = vmatpush2.bf16.msra.mxu0 0
      %1887 = vmatprep.subr.bf16.mxu0 0
      %1888 = vmatpush2.bf16.msra.mxu0 0
      %1889 = vmatprep.subr.bf16.mxu0 0
      %1890 = vmatpush2.bf16.msra.mxu0 0
      %1891 = vmatprep.mubr.bf16.mxu0 0
      %1892 = vmatmul.mubr.bf16.gmra.mxu0 %v1666
      %v1893 = vpop.f32.mrf.mxu0
      %v1894 = vadd.f32 0.0, %v1893
      %v1895 = vpop.f32.mrf.mxu0
      %v1896 = vpop.f32.mrf.mxu0
      %v1897 = vpop.f32.mrf.mxu0
      %1898 = vdwg.mxu0
      %v1899 = vadd.f32 %v1628, %v1730
      %v1900 = vadd.f32 %v1629, %v1732
      %v1901 = vadd.f32 %v1630, %v1771
      %v1902 = vadd.f32 %v1631, %v1773
      %v1903 = vadd.f32 %v1632, %v1812
      %v1904 = vadd.f32 %v1633, %v1814
      %v1905 = vadd.f32 %v1634, %v1853
      %v1906 = vadd.f32 %v1635, %v1855
      %v1907 = vadd.f32 %v1636, %v1894
      %s1908 = scalar_lea.vmem %s2, 6
      %v1909 = vld [vmem:[%s1908] sm:$0x3]
      %1910 = vrot.lane.b32.xlu0 %v577, 94
      %v1911 = vpop.permute.xlu0 %1910
      %1912 = vrot.lane.b32.xlu0 %v578, 94
      %v1913 = vpop.permute.xlu0 %1912
      %1914 = vrot.lane.b32.xlu0 %v579, 94
      %v1915 = vpop.permute.xlu0 %1914
      %1916 = vrot.lane.b32.xlu0 %v580, 94
      %v1917 = vpop.permute.xlu0 %1916
      %1918 = vrot.lane.b32.xlu0 %v581, 94
      %v1919 = vpop.permute.xlu0 %1918
      %1920 = vrot.lane.b32.xlu0 %v582, 94
      %v1921 = vpop.permute.xlu0 %1920
      %1922 = vrot.lane.b32.xlu0 %v583, 94
      %v1923 = vpop.permute.xlu0 %1922
      %1924 = vrot.lane.b32.xlu0 %v584, 94
      %v1925 = vpop.permute.xlu0 %1924
      %1926 = vrot.lane.b32.xlu0 %v585, 94
      %v1927 = vpop.permute.xlu0 %1926
      %vm1928 = vcmask 769024
      %v1929 = vsel %vm1928, %v1911, %v1913
      %v1930 = vsel %vm1928, %v1913, %v1915
      %v1931 = vsel %vm1928, %v1915, %v1917
      %v1932 = vsel %vm1928, %v1917, %v1919
      %v1933 = vsel %vm1928, %v1919, %v1921
      %v1934 = vsel %vm1928, %v1921, %v1923
      %v1935 = vsel %vm1928, %v1923, %v1925
      %v1936 = vsel %vm1928, %v1925, %v1927
      %v1938 = vsel %vm586, %v1909, 0
      %v1941 = vsel %vm590, %v1929, 0
      %v1944 = vsel %vm590, %v1930, 0
      %v1947 = vsel %vm590, %v1931, 0
      %v1950 = vsel %vm590, %v1932, 0
      %v1953 = vsel %vm590, %v1933, 0
      %v1956 = vsel %vm590, %v1934, 0
      %v1959 = vsel %vm590, %v1935, 0
      %v1962 = vsel %vm590, %v1936, 0
      %v1965 = vsel %vm590, %v1927, 0
      %1967 = vmatprep.subr.bf16.mxu0 0
      %1968 = vmatpush1.bf16.msra.mxu0 0
      %1969 = vmatprep.subr.bf16.mxu0 0
      %1970 = vmatpush1.bf16.msra.mxu0 0
      %1971 = vmatprep.subr.bf16.mxu0 0
      %1972 = vmatpush1.bf16.msra.mxu0 0
      %1973 = vmatprep.subr.bf16.mxu0 0
      %1974 = vmatpush1.bf16.msra.mxu0 0
      %1975 = vmatprep.subr.bf16.mxu0 0
      %1976 = vmatpush1.bf16.msra.mxu0 0
      %1977 = vmatprep.subr.bf16.mxu0 0
      %1978 = vmatpush1.bf16.msra.mxu0 0
      %1979 = vmatprep.subr.bf16.mxu0 0
      %1980 = vmatpush1.bf16.msra.mxu0 0
      %1981 = vmatprep.subr.bf16.mxu0 %v1944
      %1982 = vmatpush1.bf16.msra.mxu0 %v1941
      %1983 = vmatprep.subr.bf16.mxu0 0
      %1984 = vmatpush2.bf16.msra.mxu0 0
      %1985 = vmatprep.subr.bf16.mxu0 0
      %1986 = vmatpush2.bf16.msra.mxu0 0
      %1987 = vmatprep.subr.bf16.mxu0 0
      %1988 = vmatpush2.bf16.msra.mxu0 0
      %1989 = vmatprep.subr.bf16.mxu0 0
      %1990 = vmatpush2.bf16.msra.mxu0 0
      %1991 = vmatprep.subr.bf16.mxu0 0
      %1992 = vmatpush2.bf16.msra.mxu0 0
      %1993 = vmatprep.subr.bf16.mxu0 0
      %1994 = vmatpush2.bf16.msra.mxu0 0
      %1995 = vmatprep.subr.bf16.mxu0 0
      %1996 = vmatpush2.bf16.msra.mxu0 0
      %1997 = vmatprep.subr.bf16.mxu0 0
      %1998 = vmatpush2.bf16.msra.mxu0 0
      %1999 = vmatprep.mubr.bf16.mxu0 0
      %2000 = vmatmul.mubr.bf16.gmra.mxu0 %v1938
      %v2001 = vpop.f32.mrf.mxu0
      %v2002 = vadd.f32 0.0, %v2001
      %v2003 = vpop.f32.mrf.mxu0
      %v2004 = vadd.f32 0.0, %v2003
      %v2005 = vpop.f32.mrf.mxu0
      %v2006 = vpop.f32.mrf.mxu0
      %2007 = vdwg.mxu0
      %2008 = vmatprep.subr.bf16.mxu0 0
      %2009 = vmatpush1.bf16.msra.mxu0 0
      %2010 = vmatprep.subr.bf16.mxu0 0
      %2011 = vmatpush1.bf16.msra.mxu0 0
      %2012 = vmatprep.subr.bf16.mxu0 0
      %2013 = vmatpush1.bf16.msra.mxu0 0
      %2014 = vmatprep.subr.bf16.mxu0 0
      %2015 = vmatpush1.bf16.msra.mxu0 0
      %2016 = vmatprep.subr.bf16.mxu0 0
      %2017 = vmatpush1.bf16.msra.mxu0 0
      %2018 = vmatprep.subr.bf16.mxu0 0
      %2019 = vmatpush1.bf16.msra.mxu0 0
      %2020 = vmatprep.subr.bf16.mxu0 0
      %2021 = vmatpush1.bf16.msra.mxu0 0
      %2022 = vmatprep.subr.bf16.mxu0 %v1950
      %2023 = vmatpush1.bf16.msra.mxu0 %v1947
      %2024 = vmatprep.subr.bf16.mxu0 0
      %2025 = vmatpush2.bf16.msra.mxu0 0
      %2026 = vmatprep.subr.bf16.mxu0 0
      %2027 = vmatpush2.bf16.msra.mxu0 0
      %2028 = vmatprep.subr.bf16.mxu0 0
      %2029 = vmatpush2.bf16.msra.mxu0 0
      %2030 = vmatprep.subr.bf16.mxu0 0
      %2031 = vmatpush2.bf16.msra.mxu0 0
      %2032 = vmatprep.subr.bf16.mxu0 0
      %2033 = vmatpush2.bf16.msra.mxu0 0
      %2034 = vmatprep.subr.bf16.mxu0 0
      %2035 = vmatpush2.bf16.msra.mxu0 0
      %2036 = vmatprep.subr.bf16.mxu0 0
      %2037 = vmatpush2.bf16.msra.mxu0 0
      %2038 = vmatprep.subr.bf16.mxu0 0
      %2039 = vmatpush2.bf16.msra.mxu0 0
      %2040 = vmatprep.mubr.bf16.mxu0 0
      %2041 = vmatmul.mubr.bf16.gmra.mxu0 %v1938
      %v2042 = vpop.f32.mrf.mxu0
      %v2043 = vadd.f32 0.0, %v2042
      %v2044 = vpop.f32.mrf.mxu0
      %v2045 = vadd.f32 0.0, %v2044
      %v2046 = vpop.f32.mrf.mxu0
      %v2047 = vpop.f32.mrf.mxu0
      %2048 = vdwg.mxu0
      %2049 = vmatprep.subr.bf16.mxu0 0
      %2050 = vmatpush1.bf16.msra.mxu0 0
      %2051 = vmatprep.subr.bf16.mxu0 0
      %2052 = vmatpush1.bf16.msra.mxu0 0
      %2053 = vmatprep.subr.bf16.mxu0 0
      %2054 = vmatpush1.bf16.msra.mxu0 0
      %2055 = vmatprep.subr.bf16.mxu0 0
      %2056 = vmatpush1.bf16.msra.mxu0 0
      %2057 = vmatprep.subr.bf16.mxu0 0
      %2058 = vmatpush1.bf16.msra.mxu0 0
      %2059 = vmatprep.subr.bf16.mxu0 0
      %2060 = vmatpush1.bf16.msra.mxu0 0
      %2061 = vmatprep.subr.bf16.mxu0 0
      %2062 = vmatpush1.bf16.msra.mxu0 0
      %2063 = vmatprep.subr.bf16.mxu0 %v1956
      %2064 = vmatpush1.bf16.msra.mxu0 %v1953
      %2065 = vmatprep.subr.bf16.mxu0 0
      %2066 = vmatpush2.bf16.msra.mxu0 0
      %2067 = vmatprep.subr.bf16.mxu0 0
      %2068 = vmatpush2.bf16.msra.mxu0 0
      %2069 = vmatprep.subr.bf16.mxu0 0
      %2070 = vmatpush2.bf16.msra.mxu0 0
      %2071 = vmatprep.subr.bf16.mxu0 0
      %2072 = vmatpush2.bf16.msra.mxu0 0
      %2073 = vmatprep.subr.bf16.mxu0 0
      %2074 = vmatpush2.bf16.msra.mxu0 0
      %2075 = vmatprep.subr.bf16.mxu0 0
      %2076 = vmatpush2.bf16.msra.mxu0 0
      %2077 = vmatprep.subr.bf16.mxu0 0
      %2078 = vmatpush2.bf16.msra.mxu0 0
      %2079 = vmatprep.subr.bf16.mxu0 0
      %2080 = vmatpush2.bf16.msra.mxu0 0
      %2081 = vmatprep.mubr.bf16.mxu0 0
      %2082 = vmatmul.mubr.bf16.gmra.mxu0 %v1938
      %v2083 = vpop.f32.mrf.mxu0
      %v2084 = vadd.f32 0.0, %v2083
      %v2085 = vpop.f32.mrf.mxu0
      %v2086 = vadd.f32 0.0, %v2085
      %v2087 = vpop.f32.mrf.mxu0
      %v2088 = vpop.f32.mrf.mxu0
      %2089 = vdwg.mxu0
      %2090 = vmatprep.subr.bf16.mxu0 0
      %2091 = vmatpush1.bf16.msra.mxu0 0
      %2092 = vmatprep.subr.bf16.mxu0 0
      %2093 = vmatpush1.bf16.msra.mxu0 0
      %2094 = vmatprep.subr.bf16.mxu0 0
      %2095 = vmatpush1.bf16.msra.mxu0 0
      %2096 = vmatprep.subr.bf16.mxu0 0
      %2097 = vmatpush1.bf16.msra.mxu0 0
      %2098 = vmatprep.subr.bf16.mxu0 0
      %2099 = vmatpush1.bf16.msra.mxu0 0
      %2100 = vmatprep.subr.bf16.mxu0 0
      %2101 = vmatpush1.bf16.msra.mxu0 0
      %2102 = vmatprep.subr.bf16.mxu0 0
      %2103 = vmatpush1.bf16.msra.mxu0 0
      %2104 = vmatprep.subr.bf16.mxu0 %v1962
      %2105 = vmatpush1.bf16.msra.mxu0 %v1959
      %2106 = vmatprep.subr.bf16.mxu0 0
      %2107 = vmatpush2.bf16.msra.mxu0 0
      %2108 = vmatprep.subr.bf16.mxu0 0
      %2109 = vmatpush2.bf16.msra.mxu0 0
      %2110 = vmatprep.subr.bf16.mxu0 0
      %2111 = vmatpush2.bf16.msra.mxu0 0
      %2112 = vmatprep.subr.bf16.mxu0 0
      %2113 = vmatpush2.bf16.msra.mxu0 0
      %2114 = vmatprep.subr.bf16.mxu0 0
      %2115 = vmatpush2.bf16.msra.mxu0 0
      %2116 = vmatprep.subr.bf16.mxu0 0
      %2117 = vmatpush2.bf16.msra.mxu0 0
      %2118 = vmatprep.subr.bf16.mxu0 0
      %2119 = vmatpush2.bf16.msra.mxu0 0
      %2120 = vmatprep.subr.bf16.mxu0 0
      %2121 = vmatpush2.bf16.msra.mxu0 0
      %2122 = vmatprep.mubr.bf16.mxu0 0
      %2123 = vmatmul.mubr.bf16.gmra.mxu0 %v1938
      %v2124 = vpop.f32.mrf.mxu0
      %v2125 = vadd.f32 0.0, %v2124
      %v2126 = vpop.f32.mrf.mxu0
      %v2127 = vadd.f32 0.0, %v2126
      %v2128 = vpop.f32.mrf.mxu0
      %v2129 = vpop.f32.mrf.mxu0
      %2130 = vdwg.mxu0
      %2131 = vmatprep.subr.bf16.mxu0 0
      %2132 = vmatpush1.bf16.msra.mxu0 0
      %2133 = vmatprep.subr.bf16.mxu0 0
      %2134 = vmatpush1.bf16.msra.mxu0 0
      %2135 = vmatprep.subr.bf16.mxu0 0
      %2136 = vmatpush1.bf16.msra.mxu0 0
      %2137 = vmatprep.subr.bf16.mxu0 0
      %2138 = vmatpush1.bf16.msra.mxu0 0
      %2139 = vmatprep.subr.bf16.mxu0 0
      %2140 = vmatpush1.bf16.msra.mxu0 0
      %2141 = vmatprep.subr.bf16.mxu0 0
      %2142 = vmatpush1.bf16.msra.mxu0 0
      %2143 = vmatprep.subr.bf16.mxu0 0
      %2144 = vmatpush1.bf16.msra.mxu0 0
      %2145 = vmatprep.subr.bf16.mxu0 0
      %2146 = vmatpush1.bf16.msra.mxu0 %v1965
      %2147 = vmatprep.subr.bf16.mxu0 0
      %2148 = vmatpush2.bf16.msra.mxu0 0
      %2149 = vmatprep.subr.bf16.mxu0 0
      %2150 = vmatpush2.bf16.msra.mxu0 0
      %2151 = vmatprep.subr.bf16.mxu0 0
      %2152 = vmatpush2.bf16.msra.mxu0 0
      %2153 = vmatprep.subr.bf16.mxu0 0
      %2154 = vmatpush2.bf16.msra.mxu0 0
      %2155 = vmatprep.subr.bf16.mxu0 0
      %2156 = vmatpush2.bf16.msra.mxu0 0
      %2157 = vmatprep.subr.bf16.mxu0 0
      %2158 = vmatpush2.bf16.msra.mxu0 0
      %2159 = vmatprep.subr.bf16.mxu0 0
      %2160 = vmatpush2.bf16.msra.mxu0 0
      %2161 = vmatprep.subr.bf16.mxu0 0
      %2162 = vmatpush2.bf16.msra.mxu0 0
      %2163 = vmatprep.mubr.bf16.mxu0 0
      %2164 = vmatmul.mubr.bf16.gmra.mxu0 %v1938
      %v2165 = vpop.f32.mrf.mxu0
      %v2166 = vadd.f32 0.0, %v2165
      %v2167 = vpop.f32.mrf.mxu0
      %v2168 = vpop.f32.mrf.mxu0
      %v2169 = vpop.f32.mrf.mxu0
      %2170 = vdwg.mxu0
      %v2171 = vadd.f32 %v1899, %v2002
      %v2172 = vadd.f32 %v1900, %v2004
      %v2173 = vadd.f32 %v1901, %v2043
      %v2174 = vadd.f32 %v1902, %v2045
      %v2175 = vadd.f32 %v1903, %v2084
      %v2176 = vadd.f32 %v1904, %v2086
      %v2177 = vadd.f32 %v1905, %v2125
      %v2178 = vadd.f32 %v1906, %v2127
      %v2179 = vadd.f32 %v1907, %v2166
      %s2180 = scalar_lea.vmem %s3, 6
      %v2181 = vld [vmem:[%s2180] sm:$0x3]
      %2182 = vrot.lane.b32.xlu0 %v293, 94
      %v2183 = vpop.permute.xlu0 %2182
      %2184 = vrot.lane.b32.xlu0 %v301, 94
      %v2185 = vpop.permute.xlu0 %2184
      %2186 = vrot.lane.b32.xlu0 %v300, 94
      %v2187 = vpop.permute.xlu0 %2186
      %2188 = vrot.lane.b32.xlu0 %v302, 94
      %v2189 = vpop.permute.xlu0 %2188
      %2190 = vrot.lane.b32.xlu0 %v310, 94
      %v2191 = vpop.permute.xlu0 %2190
      %2192 = vrot.lane.b32.xlu0 %v318, 94
      %v2193 = vpop.permute.xlu0 %2192
      %2194 = vrot.lane.b32.xlu0 %v317, 94
      %v2195 = vpop.permute.xlu0 %2194
      %2196 = vrot.lane.b32.xlu0 %v319, 94
      %v2197 = vpop.permute.xlu0 %2196
      %2198 = vrot.lane.b32.xlu0 %v326, 94
      %v2199 = vpop.permute.xlu0 %2198
      %v2200 = vsel %vm1928, %v2183, %v2185
      %v2201 = vsel %vm1928, %v2185, %v2187
      %v2202 = vsel %vm1928, %v2187, %v2189
      %v2203 = vsel %vm1928, %v2189, %v2191
      %v2204 = vsel %vm1928, %v2191, %v2193
      %v2205 = vsel %vm1928, %v2193, %v2195
      %v2206 = vsel %vm1928, %v2195, %v2197
      %v2207 = vsel %vm1928, %v2197, %v2199
      %v2209 = vsel %vm327, %v2181, 0
      %v2212 = vsel %vm331, %v2200, 0
      %v2215 = vsel %vm331, %v2201, 0
      %v2218 = vsel %vm331, %v2202, 0
      %v2221 = vsel %vm331, %v2203, 0
      %v2224 = vsel %vm331, %v2204, 0
      %v2227 = vsel %vm331, %v2205, 0
      %v2230 = vsel %vm331, %v2206, 0
      %v2233 = vsel %vm331, %v2207, 0
      %v2236 = vsel %vm331, %v2199, 0
      %2238 = vmatprep.subr.bf16.mxu0 0
      %2239 = vmatpush1.bf16.msra.mxu0 0
      %2240 = vmatprep.subr.bf16.mxu0 0
      %2241 = vmatpush1.bf16.msra.mxu0 0
      %2242 = vmatprep.subr.bf16.mxu0 0
      %2243 = vmatpush1.bf16.msra.mxu0 0
      %2244 = vmatprep.subr.bf16.mxu0 0
      %2245 = vmatpush1.bf16.msra.mxu0 0
      %2246 = vmatprep.subr.bf16.mxu0 0
      %2247 = vmatpush1.bf16.msra.mxu0 0
      %2248 = vmatprep.subr.bf16.mxu0 0
      %2249 = vmatpush1.bf16.msra.mxu0 0
      %2250 = vmatprep.subr.bf16.mxu0 0
      %2251 = vmatpush1.bf16.msra.mxu0 0
      %2252 = vmatprep.subr.bf16.mxu0 %v2215
      %2253 = vmatpush1.bf16.msra.mxu0 %v2212
      %2254 = vmatprep.subr.bf16.mxu0 0
      %2255 = vmatpush2.bf16.msra.mxu0 0
      %2256 = vmatprep.subr.bf16.mxu0 0
      %2257 = vmatpush2.bf16.msra.mxu0 0
      %2258 = vmatprep.subr.bf16.mxu0 0
      %2259 = vmatpush2.bf16.msra.mxu0 0
      %2260 = vmatprep.subr.bf16.mxu0 0
      %2261 = vmatpush2.bf16.msra.mxu0 0
      %2262 = vmatprep.subr.bf16.mxu0 0
      %2263 = vmatpush2.bf16.msra.mxu0 0
      %2264 = vmatprep.subr.bf16.mxu0 0
      %2265 = vmatpush2.bf16.msra.mxu0 0
      %2266 = vmatprep.subr.bf16.mxu0 0
      %2267 = vmatpush2.bf16.msra.mxu0 0
      %2268 = vmatprep.subr.bf16.mxu0 0
      %2269 = vmatpush2.bf16.msra.mxu0 0
      %2270 = vmatprep.mubr.bf16.mxu0 0
      %2271 = vmatmul.mubr.bf16.gmra.mxu0 %v2209
      %v2272 = vpop.f32.mrf.mxu0
      %v2273 = vadd.f32 0.0, %v2272
      %v2274 = vpop.f32.mrf.mxu0
      %v2275 = vadd.f32 0.0, %v2274
      %v2276 = vpop.f32.mrf.mxu0
      %v2277 = vpop.f32.mrf.mxu0
      %2278 = vdwg.mxu0
      %2279 = vmatprep.subr.bf16.mxu0 0
      %2280 = vmatpush1.bf16.msra.mxu0 0
      %2281 = vmatprep.subr.bf16.mxu0 0
      %2282 = vmatpush1.bf16.msra.mxu0 0
      %2283 = vmatprep.subr.bf16.mxu0 0
      %2284 = vmatpush1.bf16.msra.mxu0 0
      %2285 = vmatprep.subr.bf16.mxu0 0
      %2286 = vmatpush1.bf16.msra.mxu0 0
      %2287 = vmatprep.subr.bf16.mxu0 0
      %2288 = vmatpush1.bf16.msra.mxu0 0
      %2289 = vmatprep.subr.bf16.mxu0 0
      %2290 = vmatpush1.bf16.msra.mxu0 0
      %2291 = vmatprep.subr.bf16.mxu0 0
      %2292 = vmatpush1.bf16.msra.mxu0 0
      %2293 = vmatprep.subr.bf16.mxu0 %v2221
      %2294 = vmatpush1.bf16.msra.mxu0 %v2218
      %2295 = vmatprep.subr.bf16.mxu0 0
      %2296 = vmatpush2.bf16.msra.mxu0 0
      %2297 = vmatprep.subr.bf16.mxu0 0
      %2298 = vmatpush2.bf16.msra.mxu0 0
      %2299 = vmatprep.subr.bf16.mxu0 0
      %2300 = vmatpush2.bf16.msra.mxu0 0
      %2301 = vmatprep.subr.bf16.mxu0 0
      %2302 = vmatpush2.bf16.msra.mxu0 0
      %2303 = vmatprep.subr.bf16.mxu0 0
      %2304 = vmatpush2.bf16.msra.mxu0 0
      %2305 = vmatprep.subr.bf16.mxu0 0
      %2306 = vmatpush2.bf16.msra.mxu0 0
      %2307 = vmatprep.subr.bf16.mxu0 0
      %2308 = vmatpush2.bf16.msra.mxu0 0
      %2309 = vmatprep.subr.bf16.mxu0 0
      %2310 = vmatpush2.bf16.msra.mxu0 0
      %2311 = vmatprep.mubr.bf16.mxu0 0
      %2312 = vmatmul.mubr.bf16.gmra.mxu0 %v2209
      %v2313 = vpop.f32.mrf.mxu0
      %v2314 = vadd.f32 0.0, %v2313
      %v2315 = vpop.f32.mrf.mxu0
      %v2316 = vadd.f32 0.0, %v2315
      %v2317 = vpop.f32.mrf.mxu0
      %v2318 = vpop.f32.mrf.mxu0
      %2319 = vdwg.mxu0
      %2320 = vmatprep.subr.bf16.mxu0 0
      %2321 = vmatpush1.bf16.msra.mxu0 0
      %2322 = vmatprep.subr.bf16.mxu0 0
      %2323 = vmatpush1.bf16.msra.mxu0 0
      %2324 = vmatprep.subr.bf16.mxu0 0
      %2325 = vmatpush1.bf16.msra.mxu0 0
      %2326 = vmatprep.subr.bf16.mxu0 0
      %2327 = vmatpush1.bf16.msra.mxu0 0
      %2328 = vmatprep.subr.bf16.mxu0 0
      %2329 = vmatpush1.bf16.msra.mxu0 0
      %2330 = vmatprep.subr.bf16.mxu0 0
      %2331 = vmatpush1.bf16.msra.mxu0 0
      %2332 = vmatprep.subr.bf16.mxu0 0
      %2333 = vmatpush1.bf16.msra.mxu0 0
      %2334 = vmatprep.subr.bf16.mxu0 %v2227
      %2335 = vmatpush1.bf16.msra.mxu0 %v2224
      %2336 = vmatprep.subr.bf16.mxu0 0
      %2337 = vmatpush2.bf16.msra.mxu0 0
      %2338 = vmatprep.subr.bf16.mxu0 0
      %2339 = vmatpush2.bf16.msra.mxu0 0
      %2340 = vmatprep.subr.bf16.mxu0 0
      %2341 = vmatpush2.bf16.msra.mxu0 0
      %2342 = vmatprep.subr.bf16.mxu0 0
      %2343 = vmatpush2.bf16.msra.mxu0 0
      %2344 = vmatprep.subr.bf16.mxu0 0
      %2345 = vmatpush2.bf16.msra.mxu0 0
      %2346 = vmatprep.subr.bf16.mxu0 0
      %2347 = vmatpush2.bf16.msra.mxu0 0
      %2348 = vmatprep.subr.bf16.mxu0 0
      %2349 = vmatpush2.bf16.msra.mxu0 0
      %2350 = vmatprep.subr.bf16.mxu0 0
      %2351 = vmatpush2.bf16.msra.mxu0 0
      %2352 = vmatprep.mubr.bf16.mxu0 0
      %2353 = vmatmul.mubr.bf16.gmra.mxu0 %v2209
      %v2354 = vpop.f32.mrf.mxu0
      %v2355 = vadd.f32 0.0, %v2354
      %v2356 = vpop.f32.mrf.mxu0
      %v2357 = vadd.f32 0.0, %v2356
      %v2358 = vpop.f32.mrf.mxu0
      %v2359 = vpop.f32.mrf.mxu0
      %2360 = vdwg.mxu0
      %2361 = vmatprep.subr.bf16.mxu0 0
      %2362 = vmatpush1.bf16.msra.mxu0 0
      %2363 = vmatprep.subr.bf16.mxu0 0
      %2364 = vmatpush1.bf16.msra.mxu0 0
      %2365 = vmatprep.subr.bf16.mxu0 0
      %2366 = vmatpush1.bf16.msra.mxu0 0
      %2367 = vmatprep.subr.bf16.mxu0 0
      %2368 = vmatpush1.bf16.msra.mxu0 0
      %2369 = vmatprep.subr.bf16.mxu0 0
      %2370 = vmatpush1.bf16.msra.mxu0 0
      %2371 = vmatprep.subr.bf16.mxu0 0
      %2372 = vmatpush1.bf16.msra.mxu0 0
      %2373 = vmatprep.subr.bf16.mxu0 0
      %2374 = vmatpush1.bf16.msra.mxu0 0
      %2375 = vmatprep.subr.bf16.mxu0 %v2233
      %2376 = vmatpush1.bf16.msra.mxu0 %v2230
      %2377 = vmatprep.subr.bf16.mxu0 0
      %2378 = vmatpush2.bf16.msra.mxu0 0
      %2379 = vmatprep.subr.bf16.mxu0 0
      %2380 = vmatpush2.bf16.msra.mxu0 0
      %2381 = vmatprep.subr.bf16.mxu0 0
      %2382 = vmatpush2.bf16.msra.mxu0 0
      %2383 = vmatprep.subr.bf16.mxu0 0
      %2384 = vmatpush2.bf16.msra.mxu0 0
      %2385 = vmatprep.subr.bf16.mxu0 0
      %2386 = vmatpush2.bf16.msra.mxu0 0
      %2387 = vmatprep.subr.bf16.mxu0 0
      %2388 = vmatpush2.bf16.msra.mxu0 0
      %2389 = vmatprep.subr.bf16.mxu0 0
      %2390 = vmatpush2.bf16.msra.mxu0 0
      %2391 = vmatprep.subr.bf16.mxu0 0
      %2392 = vmatpush2.bf16.msra.mxu0 0
      %2393 = vmatprep.mubr.bf16.mxu0 0
      %2394 = vmatmul.mubr.bf16.gmra.mxu0 %v2209
      %v2395 = vpop.f32.mrf.mxu0
      %v2396 = vadd.f32 0.0, %v2395
      %v2397 = vpop.f32.mrf.mxu0
      %v2398 = vadd.f32 0.0, %v2397
      %v2399 = vpop.f32.mrf.mxu0
      %v2400 = vpop.f32.mrf.mxu0
      %2401 = vdwg.mxu0
      %2402 = vmatprep.subr.bf16.mxu0 0
      %2403 = vmatpush1.bf16.msra.mxu0 0
      %2404 = vmatprep.subr.bf16.mxu0 0
      %2405 = vmatpush1.bf16.msra.mxu0 0
      %2406 = vmatprep.subr.bf16.mxu0 0
      %2407 = vmatpush1.bf16.msra.mxu0 0
      %2408 = vmatprep.subr.bf16.mxu0 0
      %2409 = vmatpush1.bf16.msra.mxu0 0
      %2410 = vmatprep.subr.bf16.mxu0 0
      %2411 = vmatpush1.bf16.msra.mxu0 0
      %2412 = vmatprep.subr.bf16.mxu0 0
      %2413 = vmatpush1.bf16.msra.mxu0 0
      %2414 = vmatprep.subr.bf16.mxu0 0
      %2415 = vmatpush1.bf16.msra.mxu0 0
      %2416 = vmatprep.subr.bf16.mxu0 0
      %2417 = vmatpush1.bf16.msra.mxu0 %v2236
      %2418 = vmatprep.subr.bf16.mxu0 0
      %2419 = vmatpush2.bf16.msra.mxu0 0
      %2420 = vmatprep.subr.bf16.mxu0 0
      %2421 = vmatpush2.bf16.msra.mxu0 0
      %2422 = vmatprep.subr.bf16.mxu0 0
      %2423 = vmatpush2.bf16.msra.mxu0 0
      %2424 = vmatprep.subr.bf16.mxu0 0
      %2425 = vmatpush2.bf16.msra.mxu0 0
      %2426 = vmatprep.subr.bf16.mxu0 0
      %2427 = vmatpush2.bf16.msra.mxu0 0
      %2428 = vmatprep.subr.bf16.mxu0 0
      %2429 = vmatpush2.bf16.msra.mxu0 0
      %2430 = vmatprep.subr.bf16.mxu0 0
      %2431 = vmatpush2.bf16.msra.mxu0 0
      %2432 = vmatprep.subr.bf16.mxu0 0
      %2433 = vmatpush2.bf16.msra.mxu0 0
      %2434 = vmatprep.mubr.bf16.mxu0 0
      %2435 = vmatmul.mubr.bf16.gmra.mxu0 %v2209
      %v2436 = vpop.f32.mrf.mxu0
      %v2437 = vadd.f32 0.0, %v2436
      %v2438 = vpop.f32.mrf.mxu0
      %v2439 = vpop.f32.mrf.mxu0
      %v2440 = vpop.f32.mrf.mxu0
      %2441 = vdwg.mxu0
      %v2442 = vadd.f32 %v2171, %v2273
      %v2443 = vadd.f32 %v2172, %v2275
      %v2444 = vadd.f32 %v2173, %v2314
      %v2445 = vadd.f32 %v2174, %v2316
      %v2446 = vadd.f32 %v2175, %v2355
      %v2447 = vadd.f32 %v2176, %v2357
      %v2448 = vadd.f32 %v2177, %v2396
      %v2449 = vadd.f32 %v2178, %v2398
      %v2450 = vadd.f32 %v2179, %v2437
      %s2451 = scalar_lea.vmem %s2, 8
      %v2452 = vld [vmem:[%s2451] sm:$0x3]
      %2453 = vrot.lane.b32.xlu0 %v577, 93
      %v2454 = vpop.permute.xlu0 %2453
      %2455 = vrot.lane.b32.xlu0 %v578, 93
      %v2456 = vpop.permute.xlu0 %2455
      %2457 = vrot.lane.b32.xlu0 %v579, 93
      %v2458 = vpop.permute.xlu0 %2457
      %2459 = vrot.lane.b32.xlu0 %v580, 93
      %v2460 = vpop.permute.xlu0 %2459
      %2461 = vrot.lane.b32.xlu0 %v581, 93
      %v2462 = vpop.permute.xlu0 %2461
      %2463 = vrot.lane.b32.xlu0 %v582, 93
      %v2464 = vpop.permute.xlu0 %2463
      %2465 = vrot.lane.b32.xlu0 %v583, 93
      %v2466 = vpop.permute.xlu0 %2465
      %2467 = vrot.lane.b32.xlu0 %v584, 93
      %v2468 = vpop.permute.xlu0 %2467
      %2469 = vrot.lane.b32.xlu0 %v585, 93
      %v2470 = vpop.permute.xlu0 %2469
      %vm2471 = vcmask 760832
      %v2472 = vsel %vm2471, %v2454, %v2456
      %v2473 = vsel %vm2471, %v2456, %v2458
      %v2474 = vsel %vm2471, %v2458, %v2460
      %v2475 = vsel %vm2471, %v2460, %v2462
      %v2476 = vsel %vm2471, %v2462, %v2464
      %v2477 = vsel %vm2471, %v2464, %v2466
      %v2478 = vsel %vm2471, %v2466, %v2468
      %v2479 = vsel %vm2471, %v2468, %v2470
      %v2481 = vsel %vm586, %v2452, 0
      %v2484 = vsel %vm590, %v2472, 0
      %v2487 = vsel %vm590, %v2473, 0
      %v2490 = vsel %vm590, %v2474, 0
      %v2493 = vsel %vm590, %v2475, 0
      %v2496 = vsel %vm590, %v2476, 0
      %v2499 = vsel %vm590, %v2477, 0
      %v2502 = vsel %vm590, %v2478, 0
      %v2505 = vsel %vm590, %v2479, 0
      %v2508 = vsel %vm590, %v2470, 0
      %2510 = vmatprep.subr.bf16.mxu0 0
      %2511 = vmatpush1.bf16.msra.mxu0 0
      %2512 = vmatprep.subr.bf16.mxu0 0
      %2513 = vmatpush1.bf16.msra.mxu0 0
      %2514 = vmatprep.subr.bf16.mxu0 0
      %2515 = vmatpush1.bf16.msra.mxu0 0
      %2516 = vmatprep.subr.bf16.mxu0 0
      %2517 = vmatpush1.bf16.msra.mxu0 0
      %2518 = vmatprep.subr.bf16.mxu0 0
      %2519 = vmatpush1.bf16.msra.mxu0 0
      %2520 = vmatprep.subr.bf16.mxu0 0
      %2521 = vmatpush1.bf16.msra.mxu0 0
      %2522 = vmatprep.subr.bf16.mxu0 0
      %2523 = vmatpush1.bf16.msra.mxu0 0
      %2524 = vmatprep.subr.bf16.mxu0 %v2487
      %2525 = vmatpush1.bf16.msra.mxu0 %v2484
      %2526 = vmatprep.subr.bf16.mxu0 0
      %2527 = vmatpush2.bf16.msra.mxu0 0
      %2528 = vmatprep.subr.bf16.mxu0 0
      %2529 = vmatpush2.bf16.msra.mxu0 0
      %2530 = vmatprep.subr.bf16.mxu0 0
      %2531 = vmatpush2.bf16.msra.mxu0 0
      %2532 = vmatprep.subr.bf16.mxu0 0
      %2533 = vmatpush2.bf16.msra.mxu0 0
      %2534 = vmatprep.subr.bf16.mxu0 0
      %2535 = vmatpush2.bf16.msra.mxu0 0
      %2536 = vmatprep.subr.bf16.mxu0 0
      %2537 = vmatpush2.bf16.msra.mxu0 0
      %2538 = vmatprep.subr.bf16.mxu0 0
      %2539 = vmatpush2.bf16.msra.mxu0 0
      %2540 = vmatprep.subr.bf16.mxu0 0
      %2541 = vmatpush2.bf16.msra.mxu0 0
      %2542 = vmatprep.mubr.bf16.mxu0 0
      %2543 = vmatmul.mubr.bf16.gmra.mxu0 %v2481
      %v2544 = vpop.f32.mrf.mxu0
      %v2545 = vadd.f32 0.0, %v2544
      %v2546 = vpop.f32.mrf.mxu0
      %v2547 = vadd.f32 0.0, %v2546
      %v2548 = vpop.f32.mrf.mxu0
      %v2549 = vpop.f32.mrf.mxu0
      %2550 = vdwg.mxu0
      %2551 = vmatprep.subr.bf16.mxu0 0
      %2552 = vmatpush1.bf16.msra.mxu0 0
      %2553 = vmatprep.subr.bf16.mxu0 0
      %2554 = vmatpush1.bf16.msra.mxu0 0
      %2555 = vmatprep.subr.bf16.mxu0 0
      %2556 = vmatpush1.bf16.msra.mxu0 0
      %2557 = vmatprep.subr.bf16.mxu0 0
      %2558 = vmatpush1.bf16.msra.mxu0 0
      %2559 = vmatprep.subr.bf16.mxu0 0
      %2560 = vmatpush1.bf16.msra.mxu0 0
      %2561 = vmatprep.subr.bf16.mxu0 0
      %2562 = vmatpush1.bf16.msra.mxu0 0
      %2563 = vmatprep.subr.bf16.mxu0 0
      %2564 = vmatpush1.bf16.msra.mxu0 0
      %2565 = vmatprep.subr.bf16.mxu0 %v2493
      %2566 = vmatpush1.bf16.msra.mxu0 %v2490
      %2567 = vmatprep.subr.bf16.mxu0 0
      %2568 = vmatpush2.bf16.msra.mxu0 0
      %2569 = vmatprep.subr.bf16.mxu0 0
      %2570 = vmatpush2.bf16.msra.mxu0 0
      %2571 = vmatprep.subr.bf16.mxu0 0
      %2572 = vmatpush2.bf16.msra.mxu0 0
      %2573 = vmatprep.subr.bf16.mxu0 0
      %2574 = vmatpush2.bf16.msra.mxu0 0
      %2575 = vmatprep.subr.bf16.mxu0 0
      %2576 = vmatpush2.bf16.msra.mxu0 0
      %2577 = vmatprep.subr.bf16.mxu0 0
      %2578 = vmatpush2.bf16.msra.mxu0 0
      %2579 = vmatprep.subr.bf16.mxu0 0
      %2580 = vmatpush2.bf16.msra.mxu0 0
      %2581 = vmatprep.subr.bf16.mxu0 0
      %2582 = vmatpush2.bf16.msra.mxu0 0
      %2583 = vmatprep.mubr.bf16.mxu0 0
      %2584 = vmatmul.mubr.bf16.gmra.mxu0 %v2481
      %v2585 = vpop.f32.mrf.mxu0
      %v2586 = vadd.f32 0.0, %v2585
      %v2587 = vpop.f32.mrf.mxu0
      %v2588 = vadd.f32 0.0, %v2587
      %v2589 = vpop.f32.mrf.mxu0
      %v2590 = vpop.f32.mrf.mxu0
      %2591 = vdwg.mxu0
      %2592 = vmatprep.subr.bf16.mxu0 0
      %2593 = vmatpush1.bf16.msra.mxu0 0
      %2594 = vmatprep.subr.bf16.mxu0 0
      %2595 = vmatpush1.bf16.msra.mxu0 0
      %2596 = vmatprep.subr.bf16.mxu0 0
      %2597 = vmatpush1.bf16.msra.mxu0 0
      %2598 = vmatprep.subr.bf16.mxu0 0
      %2599 = vmatpush1.bf16.msra.mxu0 0
      %2600 = vmatprep.subr.bf16.mxu0 0
      %2601 = vmatpush1.bf16.msra.mxu0 0
      %2602 = vmatprep.subr.bf16.mxu0 0
      %2603 = vmatpush1.bf16.msra.mxu0 0
      %2604 = vmatprep.subr.bf16.mxu0 0
      %2605 = vmatpush1.bf16.msra.mxu0 0
      %2606 = vmatprep.subr.bf16.mxu0 %v2499
      %2607 = vmatpush1.bf16.msra.mxu0 %v2496
      %2608 = vmatprep.subr.bf16.mxu0 0
      %2609 = vmatpush2.bf16.msra.mxu0 0
      %2610 = vmatprep.subr.bf16.mxu0 0
      %2611 = vmatpush2.bf16.msra.mxu0 0
      %2612 = vmatprep.subr.bf16.mxu0 0
      %2613 = vmatpush2.bf16.msra.mxu0 0
      %2614 = vmatprep.subr.bf16.mxu0 0
      %2615 = vmatpush2.bf16.msra.mxu0 0
      %2616 = vmatprep.subr.bf16.mxu0 0
      %2617 = vmatpush2.bf16.msra.mxu0 0
      %2618 = vmatprep.subr.bf16.mxu0 0
      %2619 = vmatpush2.bf16.msra.mxu0 0
      %2620 = vmatprep.subr.bf16.mxu0 0
      %2621 = vmatpush2.bf16.msra.mxu0 0
      %2622 = vmatprep.subr.bf16.mxu0 0
      %2623 = vmatpush2.bf16.msra.mxu0 0
      %2624 = vmatprep.mubr.bf16.mxu0 0
      %2625 = vmatmul.mubr.bf16.gmra.mxu0 %v2481
      %v2626 = vpop.f32.mrf.mxu0
      %v2627 = vadd.f32 0.0, %v2626
      %v2628 = vpop.f32.mrf.mxu0
      %v2629 = vadd.f32 0.0, %v2628
      %v2630 = vpop.f32.mrf.mxu0
      %v2631 = vpop.f32.mrf.mxu0
      %2632 = vdwg.mxu0
      %2633 = vmatprep.subr.bf16.mxu0 0
      %2634 = vmatpush1.bf16.msra.mxu0 0
      %2635 = vmatprep.subr.bf16.mxu0 0
      %2636 = vmatpush1.bf16.msra.mxu0 0
      %2637 = vmatprep.subr.bf16.mxu0 0
      %2638 = vmatpush1.bf16.msra.mxu0 0
      %2639 = vmatprep.subr.bf16.mxu0 0
      %2640 = vmatpush1.bf16.msra.mxu0 0
      %2641 = vmatprep.subr.bf16.mxu0 0
      %2642 = vmatpush1.bf16.msra.mxu0 0
      %2643 = vmatprep.subr.bf16.mxu0 0
      %2644 = vmatpush1.bf16.msra.mxu0 0
      %2645 = vmatprep.subr.bf16.mxu0 0
      %2646 = vmatpush1.bf16.msra.mxu0 0
      %2647 = vmatprep.subr.bf16.mxu0 %v2505
      %2648 = vmatpush1.bf16.msra.mxu0 %v2502
      %2649 = vmatprep.subr.bf16.mxu0 0
      %2650 = vmatpush2.bf16.msra.mxu0 0
      %2651 = vmatprep.subr.bf16.mxu0 0
      %2652 = vmatpush2.bf16.msra.mxu0 0
      %2653 = vmatprep.subr.bf16.mxu0 0
      %2654 = vmatpush2.bf16.msra.mxu0 0
      %2655 = vmatprep.subr.bf16.mxu0 0
      %2656 = vmatpush2.bf16.msra.mxu0 0
      %2657 = vmatprep.subr.bf16.mxu0 0
      %2658 = vmatpush2.bf16.msra.mxu0 0
      %2659 = vmatprep.subr.bf16.mxu0 0
      %2660 = vmatpush2.bf16.msra.mxu0 0
      %2661 = vmatprep.subr.bf16.mxu0 0
      %2662 = vmatpush2.bf16.msra.mxu0 0
      %2663 = vmatprep.subr.bf16.mxu0 0
      %2664 = vmatpush2.bf16.msra.mxu0 0
      %2665 = vmatprep.mubr.bf16.mxu0 0
      %2666 = vmatmul.mubr.bf16.gmra.mxu0 %v2481
      %v2667 = vpop.f32.mrf.mxu0
      %v2668 = vadd.f32 0.0, %v2667
      %v2669 = vpop.f32.mrf.mxu0
      %v2670 = vadd.f32 0.0, %v2669
      %v2671 = vpop.f32.mrf.mxu0
      %v2672 = vpop.f32.mrf.mxu0
      %2673 = vdwg.mxu0
      %2674 = vmatprep.subr.bf16.mxu0 0
      %2675 = vmatpush1.bf16.msra.mxu0 0
      %2676 = vmatprep.subr.bf16.mxu0 0
      %2677 = vmatpush1.bf16.msra.mxu0 0
      %2678 = vmatprep.subr.bf16.mxu0 0
      %2679 = vmatpush1.bf16.msra.mxu0 0
      %2680 = vmatprep.subr.bf16.mxu0 0
      %2681 = vmatpush1.bf16.msra.mxu0 0
      %2682 = vmatprep.subr.bf16.mxu0 0
      %2683 = vmatpush1.bf16.msra.mxu0 0
      %2684 = vmatprep.subr.bf16.mxu0 0
      %2685 = vmatpush1.bf16.msra.mxu0 0
      %2686 = vmatprep.subr.bf16.mxu0 0
      %2687 = vmatpush1.bf16.msra.mxu0 0
      %2688 = vmatprep.subr.bf16.mxu0 0
      %2689 = vmatpush1.bf16.msra.mxu0 %v2508
      %2690 = vmatprep.subr.bf16.mxu0 0
      %2691 = vmatpush2.bf16.msra.mxu0 0
      %2692 = vmatprep.subr.bf16.mxu0 0
      %2693 = vmatpush2.bf16.msra.mxu0 0
      %2694 = vmatprep.subr.bf16.mxu0 0
      %2695 = vmatpush2.bf16.msra.mxu0 0
      %2696 = vmatprep.subr.bf16.mxu0 0
      %2697 = vmatpush2.bf16.msra.mxu0 0
      %2698 = vmatprep.subr.bf16.mxu0 0
      %2699 = vmatpush2.bf16.msra.mxu0 0
      %2700 = vmatprep.subr.bf16.mxu0 0
      %2701 = vmatpush2.bf16.msra.mxu0 0
      %2702 = vmatprep.subr.bf16.mxu0 0
      %2703 = vmatpush2.bf16.msra.mxu0 0
      %2704 = vmatprep.subr.bf16.mxu0 0
      %2705 = vmatpush2.bf16.msra.mxu0 0
      %2706 = vmatprep.mubr.bf16.mxu0 0
      %2707 = vmatmul.mubr.bf16.gmra.mxu0 %v2481
      %v2708 = vpop.f32.mrf.mxu0
      %v2709 = vadd.f32 0.0, %v2708
      %v2710 = vpop.f32.mrf.mxu0
      %v2711 = vpop.f32.mrf.mxu0
      %v2712 = vpop.f32.mrf.mxu0
      %2713 = vdwg.mxu0
      %v2714 = vadd.f32 %v2442, %v2545
      %v2715 = vadd.f32 %v2443, %v2547
      %v2716 = vadd.f32 %v2444, %v2586
      %v2717 = vadd.f32 %v2445, %v2588
      %v2718 = vadd.f32 %v2446, %v2627
      %v2719 = vadd.f32 %v2447, %v2629
      %v2720 = vadd.f32 %v2448, %v2668
      %v2721 = vadd.f32 %v2449, %v2670
      %v2722 = vadd.f32 %v2450, %v2709
      %s2723 = scalar_lea.vmem %s3, 8
      %v2724 = vld [vmem:[%s2723] sm:$0x3]
      %2725 = vrot.lane.b32.xlu0 %v293, 93
      %v2726 = vpop.permute.xlu0 %2725
      %2727 = vrot.lane.b32.xlu0 %v301, 93
      %v2728 = vpop.permute.xlu0 %2727
      %2729 = vrot.lane.b32.xlu0 %v300, 93
      %v2730 = vpop.permute.xlu0 %2729
      %2731 = vrot.lane.b32.xlu0 %v302, 93
      %v2732 = vpop.permute.xlu0 %2731
      %2733 = vrot.lane.b32.xlu0 %v310, 93
      %v2734 = vpop.permute.xlu0 %2733
      %2735 = vrot.lane.b32.xlu0 %v318, 93
      %v2736 = vpop.permute.xlu0 %2735
      %2737 = vrot.lane.b32.xlu0 %v317, 93
      %v2738 = vpop.permute.xlu0 %2737
      %2739 = vrot.lane.b32.xlu0 %v319, 93
      %v2740 = vpop.permute.xlu0 %2739
      %2741 = vrot.lane.b32.xlu0 %v326, 93
      %v2742 = vpop.permute.xlu0 %2741
      %v2743 = vsel %vm2471, %v2726, %v2728
      %v2744 = vsel %vm2471, %v2728, %v2730
      %v2745 = vsel %vm2471, %v2730, %v2732
      %v2746 = vsel %vm2471, %v2732, %v2734
      %v2747 = vsel %vm2471, %v2734, %v2736
      %v2748 = vsel %vm2471, %v2736, %v2738
      %v2749 = vsel %vm2471, %v2738, %v2740
      %v2750 = vsel %vm2471, %v2740, %v2742
      %v2752 = vsel %vm327, %v2724, 0
      %v2755 = vsel %vm331, %v2743, 0
      %v2758 = vsel %vm331, %v2744, 0
      %v2761 = vsel %vm331, %v2745, 0
      %v2764 = vsel %vm331, %v2746, 0
      %v2767 = vsel %vm331, %v2747, 0
      %v2770 = vsel %vm331, %v2748, 0
      %v2773 = vsel %vm331, %v2749, 0
      %v2776 = vsel %vm331, %v2750, 0
      %v2779 = vsel %vm331, %v2742, 0
      %2781 = vmatprep.subr.bf16.mxu0 0
      %2782 = vmatpush1.bf16.msra.mxu0 0
      %2783 = vmatprep.subr.bf16.mxu0 0
      %2784 = vmatpush1.bf16.msra.mxu0 0
      %2785 = vmatprep.subr.bf16.mxu0 0
      %2786 = vmatpush1.bf16.msra.mxu0 0
      %2787 = vmatprep.subr.bf16.mxu0 0
      %2788 = vmatpush1.bf16.msra.mxu0 0
      %2789 = vmatprep.subr.bf16.mxu0 0
      %2790 = vmatpush1.bf16.msra.mxu0 0
      %2791 = vmatprep.subr.bf16.mxu0 0
      %2792 = vmatpush1.bf16.msra.mxu0 0
      %2793 = vmatprep.subr.bf16.mxu0 0
      %2794 = vmatpush1.bf16.msra.mxu0 0
      %2795 = vmatprep.subr.bf16.mxu0 %v2758
      %2796 = vmatpush1.bf16.msra.mxu0 %v2755
      %2797 = vmatprep.subr.bf16.mxu0 0
      %2798 = vmatpush2.bf16.msra.mxu0 0
      %2799 = vmatprep.subr.bf16.mxu0 0
      %2800 = vmatpush2.bf16.msra.mxu0 0
      %2801 = vmatprep.subr.bf16.mxu0 0
      %2802 = vmatpush2.bf16.msra.mxu0 0
      %2803 = vmatprep.subr.bf16.mxu0 0
      %2804 = vmatpush2.bf16.msra.mxu0 0
      %2805 = vmatprep.subr.bf16.mxu0 0
      %2806 = vmatpush2.bf16.msra.mxu0 0
      %2807 = vmatprep.subr.bf16.mxu0 0
      %2808 = vmatpush2.bf16.msra.mxu0 0
      %2809 = vmatprep.subr.bf16.mxu0 0
      %2810 = vmatpush2.bf16.msra.mxu0 0
      %2811 = vmatprep.subr.bf16.mxu0 0
      %2812 = vmatpush2.bf16.msra.mxu0 0
      %2813 = vmatprep.mubr.bf16.mxu0 0
      %2814 = vmatmul.mubr.bf16.gmra.mxu0 %v2752
      %v2815 = vpop.f32.mrf.mxu0
      %v2816 = vadd.f32 0.0, %v2815
      %v2817 = vpop.f32.mrf.mxu0
      %v2818 = vadd.f32 0.0, %v2817
      %v2819 = vpop.f32.mrf.mxu0
      %v2820 = vpop.f32.mrf.mxu0
      %2821 = vdwg.mxu0
      %2822 = vmatprep.subr.bf16.mxu0 0
      %2823 = vmatpush1.bf16.msra.mxu0 0
      %2824 = vmatprep.subr.bf16.mxu0 0
      %2825 = vmatpush1.bf16.msra.mxu0 0
      %2826 = vmatprep.subr.bf16.mxu0 0
      %2827 = vmatpush1.bf16.msra.mxu0 0
      %2828 = vmatprep.subr.bf16.mxu0 0
      %2829 = vmatpush1.bf16.msra.mxu0 0
      %2830 = vmatprep.subr.bf16.mxu0 0
      %2831 = vmatpush1.bf16.msra.mxu0 0
      %2832 = vmatprep.subr.bf16.mxu0 0
      %2833 = vmatpush1.bf16.msra.mxu0 0
      %2834 = vmatprep.subr.bf16.mxu0 0
      %2835 = vmatpush1.bf16.msra.mxu0 0
      %2836 = vmatprep.subr.bf16.mxu0 %v2764
      %2837 = vmatpush1.bf16.msra.mxu0 %v2761
      %2838 = vmatprep.subr.bf16.mxu0 0
      %2839 = vmatpush2.bf16.msra.mxu0 0
      %2840 = vmatprep.subr.bf16.mxu0 0
      %2841 = vmatpush2.bf16.msra.mxu0 0
      %2842 = vmatprep.subr.bf16.mxu0 0
      %2843 = vmatpush2.bf16.msra.mxu0 0
      %2844 = vmatprep.subr.bf16.mxu0 0
      %2845 = vmatpush2.bf16.msra.mxu0 0
      %2846 = vmatprep.subr.bf16.mxu0 0
      %2847 = vmatpush2.bf16.msra.mxu0 0
      %2848 = vmatprep.subr.bf16.mxu0 0
      %2849 = vmatpush2.bf16.msra.mxu0 0
      %2850 = vmatprep.subr.bf16.mxu0 0
      %2851 = vmatpush2.bf16.msra.mxu0 0
      %2852 = vmatprep.subr.bf16.mxu0 0
      %2853 = vmatpush2.bf16.msra.mxu0 0
      %2854 = vmatprep.mubr.bf16.mxu0 0
      %2855 = vmatmul.mubr.bf16.gmra.mxu0 %v2752
      %v2856 = vpop.f32.mrf.mxu0
      %v2857 = vadd.f32 0.0, %v2856
      %v2858 = vpop.f32.mrf.mxu0
      %v2859 = vadd.f32 0.0, %v2858
      %v2860 = vpop.f32.mrf.mxu0
      %v2861 = vpop.f32.mrf.mxu0
      %2862 = vdwg.mxu0
      %2863 = vmatprep.subr.bf16.mxu0 0
      %2864 = vmatpush1.bf16.msra.mxu0 0
      %2865 = vmatprep.subr.bf16.mxu0 0
      %2866 = vmatpush1.bf16.msra.mxu0 0
      %2867 = vmatprep.subr.bf16.mxu0 0
      %2868 = vmatpush1.bf16.msra.mxu0 0
      %2869 = vmatprep.subr.bf16.mxu0 0
      %2870 = vmatpush1.bf16.msra.mxu0 0
      %2871 = vmatprep.subr.bf16.mxu0 0
      %2872 = vmatpush1.bf16.msra.mxu0 0
      %2873 = vmatprep.subr.bf16.mxu0 0
      %2874 = vmatpush1.bf16.msra.mxu0 0
      %2875 = vmatprep.subr.bf16.mxu0 0
      %2876 = vmatpush1.bf16.msra.mxu0 0
      %2877 = vmatprep.subr.bf16.mxu0 %v2770
      %2878 = vmatpush1.bf16.msra.mxu0 %v2767
      %2879 = vmatprep.subr.bf16.mxu0 0
      %2880 = vmatpush2.bf16.msra.mxu0 0
      %2881 = vmatprep.subr.bf16.mxu0 0
      %2882 = vmatpush2.bf16.msra.mxu0 0
      %2883 = vmatprep.subr.bf16.mxu0 0
      %2884 = vmatpush2.bf16.msra.mxu0 0
      %2885 = vmatprep.subr.bf16.mxu0 0
      %2886 = vmatpush2.bf16.msra.mxu0 0
      %2887 = vmatprep.subr.bf16.mxu0 0
      %2888 = vmatpush2.bf16.msra.mxu0 0
      %2889 = vmatprep.subr.bf16.mxu0 0
      %2890 = vmatpush2.bf16.msra.mxu0 0
      %2891 = vmatprep.subr.bf16.mxu0 0
      %2892 = vmatpush2.bf16.msra.mxu0 0
      %2893 = vmatprep.subr.bf16.mxu0 0
      %2894 = vmatpush2.bf16.msra.mxu0 0
      %2895 = vmatprep.mubr.bf16.mxu0 0
      %2896 = vmatmul.mubr.bf16.gmra.mxu0 %v2752
      %v2897 = vpop.f32.mrf.mxu0
      %v2898 = vadd.f32 0.0, %v2897
      %v2899 = vpop.f32.mrf.mxu0
      %v2900 = vadd.f32 0.0, %v2899
      %v2901 = vpop.f32.mrf.mxu0
      %v2902 = vpop.f32.mrf.mxu0
      %2903 = vdwg.mxu0
      %2904 = vmatprep.subr.bf16.mxu0 0
      %2905 = vmatpush1.bf16.msra.mxu0 0
      %2906 = vmatprep.subr.bf16.mxu0 0
      %2907 = vmatpush1.bf16.msra.mxu0 0
      %2908 = vmatprep.subr.bf16.mxu0 0
      %2909 = vmatpush1.bf16.msra.mxu0 0
      %2910 = vmatprep.subr.bf16.mxu0 0
      %2911 = vmatpush1.bf16.msra.mxu0 0
      %2912 = vmatprep.subr.bf16.mxu0 0
      %2913 = vmatpush1.bf16.msra.mxu0 0
      %2914 = vmatprep.subr.bf16.mxu0 0
      %2915 = vmatpush1.bf16.msra.mxu0 0
      %2916 = vmatprep.subr.bf16.mxu0 0
      %2917 = vmatpush1.bf16.msra.mxu0 0
      %2918 = vmatprep.subr.bf16.mxu0 %v2776
      %2919 = vmatpush1.bf16.msra.mxu0 %v2773
      %2920 = vmatprep.subr.bf16.mxu0 0
      %2921 = vmatpush2.bf16.msra.mxu0 0
      %2922 = vmatprep.subr.bf16.mxu0 0
      %2923 = vmatpush2.bf16.msra.mxu0 0
      %2924 = vmatprep.subr.bf16.mxu0 0
      %2925 = vmatpush2.bf16.msra.mxu0 0
      %2926 = vmatprep.subr.bf16.mxu0 0
      %2927 = vmatpush2.bf16.msra.mxu0 0
      %2928 = vmatprep.subr.bf16.mxu0 0
      %2929 = vmatpush2.bf16.msra.mxu0 0
      %2930 = vmatprep.subr.bf16.mxu0 0
      %2931 = vmatpush2.bf16.msra.mxu0 0
      %2932 = vmatprep.subr.bf16.mxu0 0
      %2933 = vmatpush2.bf16.msra.mxu0 0
      %2934 = vmatprep.subr.bf16.mxu0 0
      %2935 = vmatpush2.bf16.msra.mxu0 0
      %2936 = vmatprep.mubr.bf16.mxu0 0
      %2937 = vmatmul.mubr.bf16.gmra.mxu0 %v2752
      %v2938 = vpop.f32.mrf.mxu0
      %v2939 = vadd.f32 0.0, %v2938
      %v2940 = vpop.f32.mrf.mxu0
      %v2941 = vadd.f32 0.0, %v2940
      %v2942 = vpop.f32.mrf.mxu0
      %v2943 = vpop.f32.mrf.mxu0
      %2944 = vdwg.mxu0
      %2945 = vmatprep.subr.bf16.mxu0 0
      %2946 = vmatpush1.bf16.msra.mxu0 0
      %2947 = vmatprep.subr.bf16.mxu0 0
      %2948 = vmatpush1.bf16.msra.mxu0 0
      %2949 = vmatprep.subr.bf16.mxu0 0
      %2950 = vmatpush1.bf16.msra.mxu0 0
      %2951 = vmatprep.subr.bf16.mxu0 0
      %2952 = vmatpush1.bf16.msra.mxu0 0
      %2953 = vmatprep.subr.bf16.mxu0 0
      %2954 = vmatpush1.bf16.msra.mxu0 0
      %2955 = vmatprep.subr.bf16.mxu0 0
      %2956 = vmatpush1.bf16.msra.mxu0 0
      %2957 = vmatprep.subr.bf16.mxu0 0
      %2958 = vmatpush1.bf16.msra.mxu0 0
      %2959 = vmatprep.subr.bf16.mxu0 0
      %2960 = vmatpush1.bf16.msra.mxu0 %v2779
      %2961 = vmatprep.subr.bf16.mxu0 0
      %2962 = vmatpush2.bf16.msra.mxu0 0
      %2963 = vmatprep.subr.bf16.mxu0 0
      %2964 = vmatpush2.bf16.msra.mxu0 0
      %2965 = vmatprep.subr.bf16.mxu0 0
      %2966 = vmatpush2.bf16.msra.mxu0 0
      %2967 = vmatprep.subr.bf16.mxu0 0
      %2968 = vmatpush2.bf16.msra.mxu0 0
      %2969 = vmatprep.subr.bf16.mxu0 0
      %2970 = vmatpush2.bf16.msra.mxu0 0
      %2971 = vmatprep.subr.bf16.mxu0 0
      %2972 = vmatpush2.bf16.msra.mxu0 0
      %2973 = vmatprep.subr.bf16.mxu0 0
      %2974 = vmatpush2.bf16.msra.mxu0 0
      %2975 = vmatprep.subr.bf16.mxu0 0
      %2976 = vmatpush2.bf16.msra.mxu0 0
      %2977 = vmatprep.mubr.bf16.mxu0 0
      %2978 = vmatmul.mubr.bf16.gmra.mxu0 %v2752
      %v2979 = vpop.f32.mrf.mxu0
      %v2980 = vadd.f32 0.0, %v2979
      %v2981 = vpop.f32.mrf.mxu0
      %v2982 = vpop.f32.mrf.mxu0
      %v2983 = vpop.f32.mrf.mxu0
      %2984 = vdwg.mxu0
      %v2985 = vadd.f32 %v2714, %v2816
      %v2986 = vadd.f32 %v2715, %v2818
      %v2987 = vadd.f32 %v2716, %v2857
      %v2988 = vadd.f32 %v2717, %v2859
      %v2989 = vadd.f32 %v2718, %v2898
      %v2990 = vadd.f32 %v2719, %v2900
      %v2991 = vadd.f32 %v2720, %v2939
      %v2992 = vadd.f32 %v2721, %v2941
      %v2993 = vadd.f32 %v2722, %v2980
      %s2994 = scalar_lea.vmem %s2, 10
      %v2995 = vld [vmem:[%s2994] sm:$0x3]
      %2996 = vrot.lane.b32.xlu0 %v577, 92
      %v2997 = vpop.permute.xlu0 %2996
      %2998 = vrot.lane.b32.xlu0 %v578, 92
      %v2999 = vpop.permute.xlu0 %2998
      %3000 = vrot.lane.b32.xlu0 %v579, 92
      %v3001 = vpop.permute.xlu0 %3000
      %3002 = vrot.lane.b32.xlu0 %v580, 92
      %v3003 = vpop.permute.xlu0 %3002
      %3004 = vrot.lane.b32.xlu0 %v581, 92
      %v3005 = vpop.permute.xlu0 %3004
      %3006 = vrot.lane.b32.xlu0 %v582, 92
      %v3007 = vpop.permute.xlu0 %3006
      %3008 = vrot.lane.b32.xlu0 %v583, 92
      %v3009 = vpop.permute.xlu0 %3008
      %3010 = vrot.lane.b32.xlu0 %v584, 92
      %v3011 = vpop.permute.xlu0 %3010
      %3012 = vrot.lane.b32.xlu0 %v585, 92
      %v3013 = vpop.permute.xlu0 %3012
      %vm3014 = vcmask 752640
      %v3015 = vsel %vm3014, %v2997, %v2999
      %v3016 = vsel %vm3014, %v2999, %v3001
      %v3017 = vsel %vm3014, %v3001, %v3003
      %v3018 = vsel %vm3014, %v3003, %v3005
      %v3019 = vsel %vm3014, %v3005, %v3007
      %v3020 = vsel %vm3014, %v3007, %v3009
      %v3021 = vsel %vm3014, %v3009, %v3011
      %v3022 = vsel %vm3014, %v3011, %v3013
      %v3024 = vsel %vm586, %v2995, 0
      %v3027 = vsel %vm590, %v3015, 0
      %v3030 = vsel %vm590, %v3016, 0
      %v3033 = vsel %vm590, %v3017, 0
      %v3036 = vsel %vm590, %v3018, 0
      %v3039 = vsel %vm590, %v3019, 0
      %v3042 = vsel %vm590, %v3020, 0
      %v3045 = vsel %vm590, %v3021, 0
      %v3048 = vsel %vm590, %v3022, 0
      %v3051 = vsel %vm590, %v3013, 0
      %3053 = vmatprep.subr.bf16.mxu0 0
      %3054 = vmatpush1.bf16.msra.mxu0 0
      %3055 = vmatprep.subr.bf16.mxu0 0
      %3056 = vmatpush1.bf16.msra.mxu0 0
      %3057 = vmatprep.subr.bf16.mxu0 0
      %3058 = vmatpush1.bf16.msra.mxu0 0
      %3059 = vmatprep.subr.bf16.mxu0 0
      %3060 = vmatpush1.bf16.msra.mxu0 0
      %3061 = vmatprep.subr.bf16.mxu0 0
      %3062 = vmatpush1.bf16.msra.mxu0 0
      %3063 = vmatprep.subr.bf16.mxu0 0
      %3064 = vmatpush1.bf16.msra.mxu0 0
      %3065 = vmatprep.subr.bf16.mxu0 0
      %3066 = vmatpush1.bf16.msra.mxu0 0
      %3067 = vmatprep.subr.bf16.mxu0 %v3030
      %3068 = vmatpush1.bf16.msra.mxu0 %v3027
      %3069 = vmatprep.subr.bf16.mxu0 0
      %3070 = vmatpush2.bf16.msra.mxu0 0
      %3071 = vmatprep.subr.bf16.mxu0 0
      %3072 = vmatpush2.bf16.msra.mxu0 0
      %3073 = vmatprep.subr.bf16.mxu0 0
      %3074 = vmatpush2.bf16.msra.mxu0 0
      %3075 = vmatprep.subr.bf16.mxu0 0
      %3076 = vmatpush2.bf16.msra.mxu0 0
      %3077 = vmatprep.subr.bf16.mxu0 0
      %3078 = vmatpush2.bf16.msra.mxu0 0
      %3079 = vmatprep.subr.bf16.mxu0 0
      %3080 = vmatpush2.bf16.msra.mxu0 0
      %3081 = vmatprep.subr.bf16.mxu0 0
      %3082 = vmatpush2.bf16.msra.mxu0 0
      %3083 = vmatprep.subr.bf16.mxu0 0
      %3084 = vmatpush2.bf16.msra.mxu0 0
      %3085 = vmatprep.mubr.bf16.mxu0 0
      %3086 = vmatmul.mubr.bf16.gmra.mxu0 %v3024
      %v3087 = vpop.f32.mrf.mxu0
      %v3088 = vadd.f32 0.0, %v3087
      %v3089 = vpop.f32.mrf.mxu0
      %v3090 = vadd.f32 0.0, %v3089
      %v3091 = vpop.f32.mrf.mxu0
      %v3092 = vpop.f32.mrf.mxu0
      %3093 = vdwg.mxu0
      %3094 = vmatprep.subr.bf16.mxu0 0
      %3095 = vmatpush1.bf16.msra.mxu0 0
      %3096 = vmatprep.subr.bf16.mxu0 0
      %3097 = vmatpush1.bf16.msra.mxu0 0
      %3098 = vmatprep.subr.bf16.mxu0 0
      %3099 = vmatpush1.bf16.msra.mxu0 0
      %3100 = vmatprep.subr.bf16.mxu0 0
      %3101 = vmatpush1.bf16.msra.mxu0 0
      %3102 = vmatprep.subr.bf16.mxu0 0
      %3103 = vmatpush1.bf16.msra.mxu0 0
      %3104 = vmatprep.subr.bf16.mxu0 0
      %3105 = vmatpush1.bf16.msra.mxu0 0
      %3106 = vmatprep.subr.bf16.mxu0 0
      %3107 = vmatpush1.bf16.msra.mxu0 0
      %3108 = vmatprep.subr.bf16.mxu0 %v3036
      %3109 = vmatpush1.bf16.msra.mxu0 %v3033
      %3110 = vmatprep.subr.bf16.mxu0 0
      %3111 = vmatpush2.bf16.msra.mxu0 0
      %3112 = vmatprep.subr.bf16.mxu0 0
      %3113 = vmatpush2.bf16.msra.mxu0 0
      %3114 = vmatprep.subr.bf16.mxu0 0
      %3115 = vmatpush2.bf16.msra.mxu0 0
      %3116 = vmatprep.subr.bf16.mxu0 0
      %3117 = vmatpush2.bf16.msra.mxu0 0
      %3118 = vmatprep.subr.bf16.mxu0 0
      %3119 = vmatpush2.bf16.msra.mxu0 0
      %3120 = vmatprep.subr.bf16.mxu0 0
      %3121 = vmatpush2.bf16.msra.mxu0 0
      %3122 = vmatprep.subr.bf16.mxu0 0
      %3123 = vmatpush2.bf16.msra.mxu0 0
      %3124 = vmatprep.subr.bf16.mxu0 0
      %3125 = vmatpush2.bf16.msra.mxu0 0
      %3126 = vmatprep.mubr.bf16.mxu0 0
      %3127 = vmatmul.mubr.bf16.gmra.mxu0 %v3024
      %v3128 = vpop.f32.mrf.mxu0
      %v3129 = vadd.f32 0.0, %v3128
      %v3130 = vpop.f32.mrf.mxu0
      %v3131 = vadd.f32 0.0, %v3130
      %v3132 = vpop.f32.mrf.mxu0
      %v3133 = vpop.f32.mrf.mxu0
      %3134 = vdwg.mxu0
      %3135 = vmatprep.subr.bf16.mxu0 0
      %3136 = vmatpush1.bf16.msra.mxu0 0
      %3137 = vmatprep.subr.bf16.mxu0 0
      %3138 = vmatpush1.bf16.msra.mxu0 0
      %3139 = vmatprep.subr.bf16.mxu0 0
      %3140 = vmatpush1.bf16.msra.mxu0 0
      %3141 = vmatprep.subr.bf16.mxu0 0
      %3142 = vmatpush1.bf16.msra.mxu0 0
      %3143 = vmatprep.subr.bf16.mxu0 0
      %3144 = vmatpush1.bf16.msra.mxu0 0
      %3145 = vmatprep.subr.bf16.mxu0 0
      %3146 = vmatpush1.bf16.msra.mxu0 0
      %3147 = vmatprep.subr.bf16.mxu0 0
      %3148 = vmatpush1.bf16.msra.mxu0 0
      %3149 = vmatprep.subr.bf16.mxu0 %v3042
      %3150 = vmatpush1.bf16.msra.mxu0 %v3039
      %3151 = vmatprep.subr.bf16.mxu0 0
      %3152 = vmatpush2.bf16.msra.mxu0 0
      %3153 = vmatprep.subr.bf16.mxu0 0
      %3154 = vmatpush2.bf16.msra.mxu0 0
      %3155 = vmatprep.subr.bf16.mxu0 0
      %3156 = vmatpush2.bf16.msra.mxu0 0
      %3157 = vmatprep.subr.bf16.mxu0 0
      %3158 = vmatpush2.bf16.msra.mxu0 0
      %3159 = vmatprep.subr.bf16.mxu0 0
      %3160 = vmatpush2.bf16.msra.mxu0 0
      %3161 = vmatprep.subr.bf16.mxu0 0
      %3162 = vmatpush2.bf16.msra.mxu0 0
      %3163 = vmatprep.subr.bf16.mxu0 0
      %3164 = vmatpush2.bf16.msra.mxu0 0
      %3165 = vmatprep.subr.bf16.mxu0 0
      %3166 = vmatpush2.bf16.msra.mxu0 0
      %3167 = vmatprep.mubr.bf16.mxu0 0
      %3168 = vmatmul.mubr.bf16.gmra.mxu0 %v3024
      %v3169 = vpop.f32.mrf.mxu0
      %v3170 = vadd.f32 0.0, %v3169
      %v3171 = vpop.f32.mrf.mxu0
      %v3172 = vadd.f32 0.0, %v3171
      %v3173 = vpop.f32.mrf.mxu0
      %v3174 = vpop.f32.mrf.mxu0
      %3175 = vdwg.mxu0
      %3176 = vmatprep.subr.bf16.mxu0 0
      %3177 = vmatpush1.bf16.msra.mxu0 0
      %3178 = vmatprep.subr.bf16.mxu0 0
      %3179 = vmatpush1.bf16.msra.mxu0 0
      %3180 = vmatprep.subr.bf16.mxu0 0
      %3181 = vmatpush1.bf16.msra.mxu0 0
      %3182 = vmatprep.subr.bf16.mxu0 0
      %3183 = vmatpush1.bf16.msra.mxu0 0
      %3184 = vmatprep.subr.bf16.mxu0 0
      %3185 = vmatpush1.bf16.msra.mxu0 0
      %3186 = vmatprep.subr.bf16.mxu0 0
      %3187 = vmatpush1.bf16.msra.mxu0 0
      %3188 = vmatprep.subr.bf16.mxu0 0
      %3189 = vmatpush1.bf16.msra.mxu0 0
      %3190 = vmatprep.subr.bf16.mxu0 %v3048
      %3191 = vmatpush1.bf16.msra.mxu0 %v3045
      %3192 = vmatprep.subr.bf16.mxu0 0
      %3193 = vmatpush2.bf16.msra.mxu0 0
      %3194 = vmatprep.subr.bf16.mxu0 0
      %3195 = vmatpush2.bf16.msra.mxu0 0
      %3196 = vmatprep.subr.bf16.mxu0 0
      %3197 = vmatpush2.bf16.msra.mxu0 0
      %3198 = vmatprep.subr.bf16.mxu0 0
      %3199 = vmatpush2.bf16.msra.mxu0 0
      %3200 = vmatprep.subr.bf16.mxu0 0
      %3201 = vmatpush2.bf16.msra.mxu0 0
      %3202 = vmatprep.subr.bf16.mxu0 0
      %3203 = vmatpush2.bf16.msra.mxu0 0
      %3204 = vmatprep.subr.bf16.mxu0 0
      %3205 = vmatpush2.bf16.msra.mxu0 0
      %3206 = vmatprep.subr.bf16.mxu0 0
      %3207 = vmatpush2.bf16.msra.mxu0 0
      %3208 = vmatprep.mubr.bf16.mxu0 0
      %3209 = vmatmul.mubr.bf16.gmra.mxu0 %v3024
      %v3210 = vpop.f32.mrf.mxu0
      %v3211 = vadd.f32 0.0, %v3210
      %v3212 = vpop.f32.mrf.mxu0
      %v3213 = vadd.f32 0.0, %v3212
      %v3214 = vpop.f32.mrf.mxu0
      %v3215 = vpop.f32.mrf.mxu0
      %3216 = vdwg.mxu0
      %3217 = vmatprep.subr.bf16.mxu0 0
      %3218 = vmatpush1.bf16.msra.mxu0 0
      %3219 = vmatprep.subr.bf16.mxu0 0
      %3220 = vmatpush1.bf16.msra.mxu0 0
      %3221 = vmatprep.subr.bf16.mxu0 0
      %3222 = vmatpush1.bf16.msra.mxu0 0
      %3223 = vmatprep.subr.bf16.mxu0 0
      %3224 = vmatpush1.bf16.msra.mxu0 0
      %3225 = vmatprep.subr.bf16.mxu0 0
      %3226 = vmatpush1.bf16.msra.mxu0 0
      %3227 = vmatprep.subr.bf16.mxu0 0
      %3228 = vmatpush1.bf16.msra.mxu0 0
      %3229 = vmatprep.subr.bf16.mxu0 0
      %3230 = vmatpush1.bf16.msra.mxu0 0
      %3231 = vmatprep.subr.bf16.mxu0 0
      %3232 = vmatpush1.bf16.msra.mxu0 %v3051
      %3233 = vmatprep.subr.bf16.mxu0 0
      %3234 = vmatpush2.bf16.msra.mxu0 0
      %3235 = vmatprep.subr.bf16.mxu0 0
      %3236 = vmatpush2.bf16.msra.mxu0 0
      %3237 = vmatprep.subr.bf16.mxu0 0
      %3238 = vmatpush2.bf16.msra.mxu0 0
      %3239 = vmatprep.subr.bf16.mxu0 0
      %3240 = vmatpush2.bf16.msra.mxu0 0
      %3241 = vmatprep.subr.bf16.mxu0 0
      %3242 = vmatpush2.bf16.msra.mxu0 0
      %3243 = vmatprep.subr.bf16.mxu0 0
      %3244 = vmatpush2.bf16.msra.mxu0 0
      %3245 = vmatprep.subr.bf16.mxu0 0
      %3246 = vmatpush2.bf16.msra.mxu0 0
      %3247 = vmatprep.subr.bf16.mxu0 0
      %3248 = vmatpush2.bf16.msra.mxu0 0
      %3249 = vmatprep.mubr.bf16.mxu0 0
      %3250 = vmatmul.mubr.bf16.gmra.mxu0 %v3024
      %v3251 = vpop.f32.mrf.mxu0
      %v3252 = vadd.f32 0.0, %v3251
      %v3253 = vpop.f32.mrf.mxu0
      %v3254 = vpop.f32.mrf.mxu0
      %v3255 = vpop.f32.mrf.mxu0
      %3256 = vdwg.mxu0
      %v3257 = vadd.f32 %v2985, %v3088
      %v3258 = vadd.f32 %v2986, %v3090
      %v3259 = vadd.f32 %v2987, %v3129
      %v3260 = vadd.f32 %v2988, %v3131
      %v3261 = vadd.f32 %v2989, %v3170
      %v3262 = vadd.f32 %v2990, %v3172
      %v3263 = vadd.f32 %v2991, %v3211
      %v3264 = vadd.f32 %v2992, %v3213
      %v3265 = vadd.f32 %v2993, %v3252
      %s3266 = scalar_lea.vmem %s3, 10
      %v3267 = vld [vmem:[%s3266] sm:$0x3]
      %3268 = vrot.lane.b32.xlu0 %v293, 92
      %v3269 = vpop.permute.xlu0 %3268
      %3270 = vrot.lane.b32.xlu0 %v301, 92
      %v3271 = vpop.permute.xlu0 %3270
      %3272 = vrot.lane.b32.xlu0 %v300, 92
      %v3273 = vpop.permute.xlu0 %3272
      %3274 = vrot.lane.b32.xlu0 %v302, 92
      %v3275 = vpop.permute.xlu0 %3274
      %3276 = vrot.lane.b32.xlu0 %v310, 92
      %v3277 = vpop.permute.xlu0 %3276
      %3278 = vrot.lane.b32.xlu0 %v318, 92
      %v3279 = vpop.permute.xlu0 %3278
      %3280 = vrot.lane.b32.xlu0 %v317, 92
      %v3281 = vpop.permute.xlu0 %3280
      %3282 = vrot.lane.b32.xlu0 %v319, 92
      %v3283 = vpop.permute.xlu0 %3282
      %3284 = vrot.lane.b32.xlu0 %v326, 92
      %v3285 = vpop.permute.xlu0 %3284
      %v3286 = vsel %vm3014, %v3269, %v3271
      %v3287 = vsel %vm3014, %v3271, %v3273
      %v3288 = vsel %vm3014, %v3273, %v3275
      %v3289 = vsel %vm3014, %v3275, %v3277
      %v3290 = vsel %vm3014, %v3277, %v3279
      %v3291 = vsel %vm3014, %v3279, %v3281
      %v3292 = vsel %vm3014, %v3281, %v3283
      %v3293 = vsel %vm3014, %v3283, %v3285
      %v3295 = vsel %vm327, %v3267, 0
      %v3298 = vsel %vm331, %v3286, 0
      %v3301 = vsel %vm331, %v3287, 0
      %v3304 = vsel %vm331, %v3288, 0
      %v3307 = vsel %vm331, %v3289, 0
      %v3310 = vsel %vm331, %v3290, 0
      %v3313 = vsel %vm331, %v3291, 0
      %v3316 = vsel %vm331, %v3292, 0
      %v3319 = vsel %vm331, %v3293, 0
      %v3322 = vsel %vm331, %v3285, 0
      %3324 = vmatprep.subr.bf16.mxu0 0
      %3325 = vmatpush1.bf16.msra.mxu0 0
      %3326 = vmatprep.subr.bf16.mxu0 0
      %3327 = vmatpush1.bf16.msra.mxu0 0
      %3328 = vmatprep.subr.bf16.mxu0 0
      %3329 = vmatpush1.bf16.msra.mxu0 0
      %3330 = vmatprep.subr.bf16.mxu0 0
      %3331 = vmatpush1.bf16.msra.mxu0 0
      %3332 = vmatprep.subr.bf16.mxu0 0
      %3333 = vmatpush1.bf16.msra.mxu0 0
      %3334 = vmatprep.subr.bf16.mxu0 0
      %3335 = vmatpush1.bf16.msra.mxu0 0
      %3336 = vmatprep.subr.bf16.mxu0 0
      %3337 = vmatpush1.bf16.msra.mxu0 0
      %3338 = vmatprep.subr.bf16.mxu0 %v3301
      %3339 = vmatpush1.bf16.msra.mxu0 %v3298
      %3340 = vmatprep.subr.bf16.mxu0 0
      %3341 = vmatpush2.bf16.msra.mxu0 0
      %3342 = vmatprep.subr.bf16.mxu0 0
      %3343 = vmatpush2.bf16.msra.mxu0 0
      %3344 = vmatprep.subr.bf16.mxu0 0
      %3345 = vmatpush2.bf16.msra.mxu0 0
      %3346 = vmatprep.subr.bf16.mxu0 0
      %3347 = vmatpush2.bf16.msra.mxu0 0
      %3348 = vmatprep.subr.bf16.mxu0 0
      %3349 = vmatpush2.bf16.msra.mxu0 0
      %3350 = vmatprep.subr.bf16.mxu0 0
      %3351 = vmatpush2.bf16.msra.mxu0 0
      %3352 = vmatprep.subr.bf16.mxu0 0
      %3353 = vmatpush2.bf16.msra.mxu0 0
      %3354 = vmatprep.subr.bf16.mxu0 0
      %3355 = vmatpush2.bf16.msra.mxu0 0
      %3356 = vmatprep.mubr.bf16.mxu0 0
      %3357 = vmatmul.mubr.bf16.gmra.mxu0 %v3295
      %v3358 = vpop.f32.mrf.mxu0
      %v3359 = vadd.f32 0.0, %v3358
      %v3360 = vpop.f32.mrf.mxu0
      %v3361 = vadd.f32 0.0, %v3360
      %v3362 = vpop.f32.mrf.mxu0
      %v3363 = vpop.f32.mrf.mxu0
      %3364 = vdwg.mxu0
      %3365 = vmatprep.subr.bf16.mxu0 0
      %3366 = vmatpush1.bf16.msra.mxu0 0
      %3367 = vmatprep.subr.bf16.mxu0 0
      %3368 = vmatpush1.bf16.msra.mxu0 0
      %3369 = vmatprep.subr.bf16.mxu0 0
      %3370 = vmatpush1.bf16.msra.mxu0 0
      %3371 = vmatprep.subr.bf16.mxu0 0
      %3372 = vmatpush1.bf16.msra.mxu0 0
      %3373 = vmatprep.subr.bf16.mxu0 0
      %3374 = vmatpush1.bf16.msra.mxu0 0
      %3375 = vmatprep.subr.bf16.mxu0 0
      %3376 = vmatpush1.bf16.msra.mxu0 0
      %3377 = vmatprep.subr.bf16.mxu0 0
      %3378 = vmatpush1.bf16.msra.mxu0 0
      %3379 = vmatprep.subr.bf16.mxu0 %v3307
      %3380 = vmatpush1.bf16.msra.mxu0 %v3304
      %3381 = vmatprep.subr.bf16.mxu0 0
      %3382 = vmatpush2.bf16.msra.mxu0 0
      %3383 = vmatprep.subr.bf16.mxu0 0
      %3384 = vmatpush2.bf16.msra.mxu0 0
      %3385 = vmatprep.subr.bf16.mxu0 0
      %3386 = vmatpush2.bf16.msra.mxu0 0
      %3387 = vmatprep.subr.bf16.mxu0 0
      %3388 = vmatpush2.bf16.msra.mxu0 0
      %3389 = vmatprep.subr.bf16.mxu0 0
      %3390 = vmatpush2.bf16.msra.mxu0 0
      %3391 = vmatprep.subr.bf16.mxu0 0
      %3392 = vmatpush2.bf16.msra.mxu0 0
      %3393 = vmatprep.subr.bf16.mxu0 0
      %3394 = vmatpush2.bf16.msra.mxu0 0
      %3395 = vmatprep.subr.bf16.mxu0 0
      %3396 = vmatpush2.bf16.msra.mxu0 0
      %3397 = vmatprep.mubr.bf16.mxu0 0
      %3398 = vmatmul.mubr.bf16.gmra.mxu0 %v3295
      %v3399 = vpop.f32.mrf.mxu0
      %v3400 = vadd.f32 0.0, %v3399
      %v3401 = vpop.f32.mrf.mxu0
      %v3402 = vadd.f32 0.0, %v3401
      %v3403 = vpop.f32.mrf.mxu0
      %v3404 = vpop.f32.mrf.mxu0
      %3405 = vdwg.mxu0
      %3406 = vmatprep.subr.bf16.mxu0 0
      %3407 = vmatpush1.bf16.msra.mxu0 0
      %3408 = vmatprep.subr.bf16.mxu0 0
      %3409 = vmatpush1.bf16.msra.mxu0 0
      %3410 = vmatprep.subr.bf16.mxu0 0
      %3411 = vmatpush1.bf16.msra.mxu0 0
      %3412 = vmatprep.subr.bf16.mxu0 0
      %3413 = vmatpush1.bf16.msra.mxu0 0
      %3414 = vmatprep.subr.bf16.mxu0 0
      %3415 = vmatpush1.bf16.msra.mxu0 0
      %3416 = vmatprep.subr.bf16.mxu0 0
      %3417 = vmatpush1.bf16.msra.mxu0 0
      %3418 = vmatprep.subr.bf16.mxu0 0
      %3419 = vmatpush1.bf16.msra.mxu0 0
      %3420 = vmatprep.subr.bf16.mxu0 %v3313
      %3421 = vmatpush1.bf16.msra.mxu0 %v3310
      %3422 = vmatprep.subr.bf16.mxu0 0
      %3423 = vmatpush2.bf16.msra.mxu0 0
      %3424 = vmatprep.subr.bf16.mxu0 0
      %3425 = vmatpush2.bf16.msra.mxu0 0
      %3426 = vmatprep.subr.bf16.mxu0 0
      %3427 = vmatpush2.bf16.msra.mxu0 0
      %3428 = vmatprep.subr.bf16.mxu0 0
      %3429 = vmatpush2.bf16.msra.mxu0 0
      %3430 = vmatprep.subr.bf16.mxu0 0
      %3431 = vmatpush2.bf16.msra.mxu0 0
      %3432 = vmatprep.subr.bf16.mxu0 0
      %3433 = vmatpush2.bf16.msra.mxu0 0
      %3434 = vmatprep.subr.bf16.mxu0 0
      %3435 = vmatpush2.bf16.msra.mxu0 0
      %3436 = vmatprep.subr.bf16.mxu0 0
      %3437 = vmatpush2.bf16.msra.mxu0 0
      %3438 = vmatprep.mubr.bf16.mxu0 0
      %3439 = vmatmul.mubr.bf16.gmra.mxu0 %v3295
      %v3440 = vpop.f32.mrf.mxu0
      %v3441 = vadd.f32 0.0, %v3440
      %v3442 = vpop.f32.mrf.mxu0
      %v3443 = vadd.f32 0.0, %v3442
      %v3444 = vpop.f32.mrf.mxu0
      %v3445 = vpop.f32.mrf.mxu0
      %3446 = vdwg.mxu0
      %3447 = vmatprep.subr.bf16.mxu0 0
      %3448 = vmatpush1.bf16.msra.mxu0 0
      %3449 = vmatprep.subr.bf16.mxu0 0
      %3450 = vmatpush1.bf16.msra.mxu0 0
      %3451 = vmatprep.subr.bf16.mxu0 0
      %3452 = vmatpush1.bf16.msra.mxu0 0
      %3453 = vmatprep.subr.bf16.mxu0 0
      %3454 = vmatpush1.bf16.msra.mxu0 0
      %3455 = vmatprep.subr.bf16.mxu0 0
      %3456 = vmatpush1.bf16.msra.mxu0 0
      %3457 = vmatprep.subr.bf16.mxu0 0
      %3458 = vmatpush1.bf16.msra.mxu0 0
      %3459 = vmatprep.subr.bf16.mxu0 0
      %3460 = vmatpush1.bf16.msra.mxu0 0
      %3461 = vmatprep.subr.bf16.mxu0 %v3319
      %3462 = vmatpush1.bf16.msra.mxu0 %v3316
      %3463 = vmatprep.subr.bf16.mxu0 0
      %3464 = vmatpush2.bf16.msra.mxu0 0
      %3465 = vmatprep.subr.bf16.mxu0 0
      %3466 = vmatpush2.bf16.msra.mxu0 0
      %3467 = vmatprep.subr.bf16.mxu0 0
      %3468 = vmatpush2.bf16.msra.mxu0 0
      %3469 = vmatprep.subr.bf16.mxu0 0
      %3470 = vmatpush2.bf16.msra.mxu0 0
      %3471 = vmatprep.subr.bf16.mxu0 0
      %3472 = vmatpush2.bf16.msra.mxu0 0
      %3473 = vmatprep.subr.bf16.mxu0 0
      %3474 = vmatpush2.bf16.msra.mxu0 0
      %3475 = vmatprep.subr.bf16.mxu0 0
      %3476 = vmatpush2.bf16.msra.mxu0 0
      %3477 = vmatprep.subr.bf16.mxu0 0
      %3478 = vmatpush2.bf16.msra.mxu0 0
      %3479 = vmatprep.mubr.bf16.mxu0 0
      %3480 = vmatmul.mubr.bf16.gmra.mxu0 %v3295
      %v3481 = vpop.f32.mrf.mxu0
      %v3482 = vadd.f32 0.0, %v3481
      %v3483 = vpop.f32.mrf.mxu0
      %v3484 = vadd.f32 0.0, %v3483
      %v3485 = vpop.f32.mrf.mxu0
      %v3486 = vpop.f32.mrf.mxu0
      %3487 = vdwg.mxu0
      %3488 = vmatprep.subr.bf16.mxu0 0
      %3489 = vmatpush1.bf16.msra.mxu0 0
      %3490 = vmatprep.subr.bf16.mxu0 0
      %3491 = vmatpush1.bf16.msra.mxu0 0
      %3492 = vmatprep.subr.bf16.mxu0 0
      %3493 = vmatpush1.bf16.msra.mxu0 0
      %3494 = vmatprep.subr.bf16.mxu0 0
      %3495 = vmatpush1.bf16.msra.mxu0 0
      %3496 = vmatprep.subr.bf16.mxu0 0
      %3497 = vmatpush1.bf16.msra.mxu0 0
      %3498 = vmatprep.subr.bf16.mxu0 0
      %3499 = vmatpush1.bf16.msra.mxu0 0
      %3500 = vmatprep.subr.bf16.mxu0 0
      %3501 = vmatpush1.bf16.msra.mxu0 0
      %3502 = vmatprep.subr.bf16.mxu0 0
      %3503 = vmatpush1.bf16.msra.mxu0 %v3322
      %3504 = vmatprep.subr.bf16.mxu0 0
      %3505 = vmatpush2.bf16.msra.mxu0 0
      %3506 = vmatprep.subr.bf16.mxu0 0
      %3507 = vmatpush2.bf16.msra.mxu0 0
      %3508 = vmatprep.subr.bf16.mxu0 0
      %3509 = vmatpush2.bf16.msra.mxu0 0
      %3510 = vmatprep.subr.bf16.mxu0 0
      %3511 = vmatpush2.bf16.msra.mxu0 0
      %3512 = vmatprep.subr.bf16.mxu0 0
      %3513 = vmatpush2.bf16.msra.mxu0 0
      %3514 = vmatprep.subr.bf16.mxu0 0
      %3515 = vmatpush2.bf16.msra.mxu0 0
      %3516 = vmatprep.subr.bf16.mxu0 0
      %3517 = vmatpush2.bf16.msra.mxu0 0
      %3518 = vmatprep.subr.bf16.mxu0 0
      %3519 = vmatpush2.bf16.msra.mxu0 0
      %3520 = vmatprep.mubr.bf16.mxu0 0
      %3521 = vmatmul.mubr.bf16.gmra.mxu0 %v3295
      %v3522 = vpop.f32.mrf.mxu0
      %v3523 = vadd.f32 0.0, %v3522
      %v3524 = vpop.f32.mrf.mxu0
      %v3525 = vpop.f32.mrf.mxu0
      %v3526 = vpop.f32.mrf.mxu0
      %3527 = vdwg.mxu0
      %v3528 = vadd.f32 %v3257, %v3359
      %v3529 = vadd.f32 %v3258, %v3361
      %v3530 = vadd.f32 %v3259, %v3400
      %v3531 = vadd.f32 %v3260, %v3402
      %v3532 = vadd.f32 %v3261, %v3441
      %v3533 = vadd.f32 %v3262, %v3443
      %v3534 = vadd.f32 %v3263, %v3482
      %v3535 = vadd.f32 %v3264, %v3484
      %v3536 = vadd.f32 %v3265, %v3523
      %s3537 = scalar_lea.vmem %s2, 12
      %v3538 = vld [vmem:[%s3537] sm:$0x3]
      %v3539 = vunpack.c.h.b16 %v277
      %v3540 = vpack.c.b16 %v3539, %v3539
      %3541 = vrot.lane.b32.xlu0 %v577, 60
      %v3542 = vpop.permute.xlu0 %3541
      %3543 = vrot.lane.b32.xlu0 %v578, 60
      %v3544 = vpop.permute.xlu0 %3543
      %3545 = vrot.lane.b32.xlu0 %v579, 60
      %v3546 = vpop.permute.xlu0 %3545
      %3547 = vrot.lane.b32.xlu0 %v580, 60
      %v3548 = vpop.permute.xlu0 %3547
      %3549 = vrot.lane.b32.xlu0 %v581, 60
      %v3550 = vpop.permute.xlu0 %3549
      %3551 = vrot.lane.b32.xlu0 %v582, 60
      %v3552 = vpop.permute.xlu0 %3551
      %3553 = vrot.lane.b32.xlu0 %v583, 60
      %v3554 = vpop.permute.xlu0 %3553
      %3555 = vrot.lane.b32.xlu0 %v584, 60
      %v3556 = vpop.permute.xlu0 %3555
      %3557 = vrot.lane.b32.xlu0 %v585, 60
      %v3558 = vpop.permute.xlu0 %3557
      %3559 = vrot.lane.b32.xlu0 %v3540, 60
      %v3560 = vpop.permute.xlu0 %3559
      %vm3561 = vcmask 490496
      %v3562 = vsel %vm3561, %v3542, %v3544
      %v3563 = vsel %vm3561, %v3544, %v3546
      %v3564 = vsel %vm3561, %v3546, %v3548
      %v3565 = vsel %vm3561, %v3548, %v3550
      %v3566 = vsel %vm3561, %v3550, %v3552
      %v3567 = vsel %vm3561, %v3552, %v3554
      %v3568 = vsel %vm3561, %v3554, %v3556
      %v3569 = vsel %vm3561, %v3556, %v3558
      %v3570 = vsel %vm3561, %v3558, %v3560
      %v3572 = vsel %vm586, %v3538, 0
      %v3575 = vsel %vm590, %v3562, 0
      %v3578 = vsel %vm590, %v3563, 0
      %v3581 = vsel %vm590, %v3564, 0
      %v3584 = vsel %vm590, %v3565, 0
      %v3587 = vsel %vm590, %v3566, 0
      %v3590 = vsel %vm590, %v3567, 0
      %v3593 = vsel %vm590, %v3568, 0
      %v3596 = vsel %vm590, %v3569, 0
      %v3599 = vsel %vm590, %v3570, 0
      %3601 = vmatprep.subr.bf16.mxu0 0
      %3602 = vmatpush1.bf16.msra.mxu0 0
      %3603 = vmatprep.subr.bf16.mxu0 0
      %3604 = vmatpush1.bf16.msra.mxu0 0
      %3605 = vmatprep.subr.bf16.mxu0 0
      %3606 = vmatpush1.bf16.msra.mxu0 0
      %3607 = vmatprep.subr.bf16.mxu0 0
      %3608 = vmatpush1.bf16.msra.mxu0 0
      %3609 = vmatprep.subr.bf16.mxu0 0
      %3610 = vmatpush1.bf16.msra.mxu0 0
      %3611 = vmatprep.subr.bf16.mxu0 0
      %3612 = vmatpush1.bf16.msra.mxu0 0
      %3613 = vmatprep.subr.bf16.mxu0 0
      %3614 = vmatpush1.bf16.msra.mxu0 0
      %3615 = vmatprep.subr.bf16.mxu0 %v3578
      %3616 = vmatpush1.bf16.msra.mxu0 %v3575
      %3617 = vmatprep.subr.bf16.mxu0 0
      %3618 = vmatpush2.bf16.msra.mxu0 0
      %3619 = vmatprep.subr.bf16.mxu0 0
      %3620 = vmatpush2.bf16.msra.mxu0 0
      %3621 = vmatprep.subr.bf16.mxu0 0
      %3622 = vmatpush2.bf16.msra.mxu0 0
      %3623 = vmatprep.subr.bf16.mxu0 0
      %3624 = vmatpush2.bf16.msra.mxu0 0
      %3625 = vmatprep.subr.bf16.mxu0 0
      %3626 = vmatpush2.bf16.msra.mxu0 0
      %3627 = vmatprep.subr.bf16.mxu0 0
      %3628 = vmatpush2.bf16.msra.mxu0 0
      %3629 = vmatprep.subr.bf16.mxu0 0
      %3630 = vmatpush2.bf16.msra.mxu0 0
      %3631 = vmatprep.subr.bf16.mxu0 0
      %3632 = vmatpush2.bf16.msra.mxu0 0
      %3633 = vmatprep.mubr.bf16.mxu0 0
      %3634 = vmatmul.mubr.bf16.gmra.mxu0 %v3572
      %v3635 = vpop.f32.mrf.mxu0
      %v3636 = vadd.f32 0.0, %v3635
      %v3637 = vpop.f32.mrf.mxu0
      %v3638 = vadd.f32 0.0, %v3637
      %v3639 = vpop.f32.mrf.mxu0
      %v3640 = vpop.f32.mrf.mxu0
      %3641 = vdwg.mxu0
      %3642 = vmatprep.subr.bf16.mxu0 0
      %3643 = vmatpush1.bf16.msra.mxu0 0
      %3644 = vmatprep.subr.bf16.mxu0 0
      %3645 = vmatpush1.bf16.msra.mxu0 0
      %3646 = vmatprep.subr.bf16.mxu0 0
      %3647 = vmatpush1.bf16.msra.mxu0 0
      %3648 = vmatprep.subr.bf16.mxu0 0
      %3649 = vmatpush1.bf16.msra.mxu0 0
      %3650 = vmatprep.subr.bf16.mxu0 0
      %3651 = vmatpush1.bf16.msra.mxu0 0
      %3652 = vmatprep.subr.bf16.mxu0 0
      %3653 = vmatpush1.bf16.msra.mxu0 0
      %3654 = vmatprep.subr.bf16.mxu0 0
      %3655 = vmatpush1.bf16.msra.mxu0 0
      %3656 = vmatprep.subr.bf16.mxu0 %v3584
      %3657 = vmatpush1.bf16.msra.mxu0 %v3581
      %3658 = vmatprep.subr.bf16.mxu0 0
      %3659 = vmatpush2.bf16.msra.mxu0 0
      %3660 = vmatprep.subr.bf16.mxu0 0
      %3661 = vmatpush2.bf16.msra.mxu0 0
      %3662 = vmatprep.subr.bf16.mxu0 0
      %3663 = vmatpush2.bf16.msra.mxu0 0
      %3664 = vmatprep.subr.bf16.mxu0 0
      %3665 = vmatpush2.bf16.msra.mxu0 0
      %3666 = vmatprep.subr.bf16.mxu0 0
      %3667 = vmatpush2.bf16.msra.mxu0 0
      %3668 = vmatprep.subr.bf16.mxu0 0
      %3669 = vmatpush2.bf16.msra.mxu0 0
      %3670 = vmatprep.subr.bf16.mxu0 0
      %3671 = vmatpush2.bf16.msra.mxu0 0
      %3672 = vmatprep.subr.bf16.mxu0 0
      %3673 = vmatpush2.bf16.msra.mxu0 0
      %3674 = vmatprep.mubr.bf16.mxu0 0
      %3675 = vmatmul.mubr.bf16.gmra.mxu0 %v3572
      %v3676 = vpop.f32.mrf.mxu0
      %v3677 = vadd.f32 0.0, %v3676
      %v3678 = vpop.f32.mrf.mxu0
      %v3679 = vadd.f32 0.0, %v3678
      %v3680 = vpop.f32.mrf.mxu0
      %v3681 = vpop.f32.mrf.mxu0
      %3682 = vdwg.mxu0
      %3683 = vmatprep.subr.bf16.mxu0 0
      %3684 = vmatpush1.bf16.msra.mxu0 0
      %3685 = vmatprep.subr.bf16.mxu0 0
      %3686 = vmatpush1.bf16.msra.mxu0 0
      %3687 = vmatprep.subr.bf16.mxu0 0
      %3688 = vmatpush1.bf16.msra.mxu0 0
      %3689 = vmatprep.subr.bf16.mxu0 0
      %3690 = vmatpush1.bf16.msra.mxu0 0
      %3691 = vmatprep.subr.bf16.mxu0 0
      %3692 = vmatpush1.bf16.msra.mxu0 0
      %3693 = vmatprep.subr.bf16.mxu0 0
      %3694 = vmatpush1.bf16.msra.mxu0 0
      %3695 = vmatprep.subr.bf16.mxu0 0
      %3696 = vmatpush1.bf16.msra.mxu0 0
      %3697 = vmatprep.subr.bf16.mxu0 %v3590
      %3698 = vmatpush1.bf16.msra.mxu0 %v3587
      %3699 = vmatprep.subr.bf16.mxu0 0
      %3700 = vmatpush2.bf16.msra.mxu0 0
      %3701 = vmatprep.subr.bf16.mxu0 0
      %3702 = vmatpush2.bf16.msra.mxu0 0
      %3703 = vmatprep.subr.bf16.mxu0 0
      %3704 = vmatpush2.bf16.msra.mxu0 0
      %3705 = vmatprep.subr.bf16.mxu0 0
      %3706 = vmatpush2.bf16.msra.mxu0 0
      %3707 = vmatprep.subr.bf16.mxu0 0
      %3708 = vmatpush2.bf16.msra.mxu0 0
      %3709 = vmatprep.subr.bf16.mxu0 0
      %3710 = vmatpush2.bf16.msra.mxu0 0
      %3711 = vmatprep.subr.bf16.mxu0 0
      %3712 = vmatpush2.bf16.msra.mxu0 0
      %3713 = vmatprep.subr.bf16.mxu0 0
      %3714 = vmatpush2.bf16.msra.mxu0 0
      %3715 = vmatprep.mubr.bf16.mxu0 0
      %3716 = vmatmul.mubr.bf16.gmra.mxu0 %v3572
      %v3717 = vpop.f32.mrf.mxu0
      %v3718 = vadd.f32 0.0, %v3717
      %v3719 = vpop.f32.mrf.mxu0
      %v3720 = vadd.f32 0.0, %v3719
      %v3721 = vpop.f32.mrf.mxu0
      %v3722 = vpop.f32.mrf.mxu0
      %3723 = vdwg.mxu0
      %3724 = vmatprep.subr.bf16.mxu0 0
      %3725 = vmatpush1.bf16.msra.mxu0 0
      %3726 = vmatprep.subr.bf16.mxu0 0
      %3727 = vmatpush1.bf16.msra.mxu0 0
      %3728 = vmatprep.subr.bf16.mxu0 0
      %3729 = vmatpush1.bf16.msra.mxu0 0
      %3730 = vmatprep.subr.bf16.mxu0 0
      %3731 = vmatpush1.bf16.msra.mxu0 0
      %3732 = vmatprep.subr.bf16.mxu0 0
      %3733 = vmatpush1.bf16.msra.mxu0 0
      %3734 = vmatprep.subr.bf16.mxu0 0
      %3735 = vmatpush1.bf16.msra.mxu0 0
      %3736 = vmatprep.subr.bf16.mxu0 0
      %3737 = vmatpush1.bf16.msra.mxu0 0
      %3738 = vmatprep.subr.bf16.mxu0 %v3596
      %3739 = vmatpush1.bf16.msra.mxu0 %v3593
      %3740 = vmatprep.subr.bf16.mxu0 0
      %3741 = vmatpush2.bf16.msra.mxu0 0
      %3742 = vmatprep.subr.bf16.mxu0 0
      %3743 = vmatpush2.bf16.msra.mxu0 0
      %3744 = vmatprep.subr.bf16.mxu0 0
      %3745 = vmatpush2.bf16.msra.mxu0 0
      %3746 = vmatprep.subr.bf16.mxu0 0
      %3747 = vmatpush2.bf16.msra.mxu0 0
      %3748 = vmatprep.subr.bf16.mxu0 0
      %3749 = vmatpush2.bf16.msra.mxu0 0
      %3750 = vmatprep.subr.bf16.mxu0 0
      %3751 = vmatpush2.bf16.msra.mxu0 0
      %3752 = vmatprep.subr.bf16.mxu0 0
      %3753 = vmatpush2.bf16.msra.mxu0 0
      %3754 = vmatprep.subr.bf16.mxu0 0
      %3755 = vmatpush2.bf16.msra.mxu0 0
      %3756 = vmatprep.mubr.bf16.mxu0 0
      %3757 = vmatmul.mubr.bf16.gmra.mxu0 %v3572
      %v3758 = vpop.f32.mrf.mxu0
      %v3759 = vadd.f32 0.0, %v3758
      %v3760 = vpop.f32.mrf.mxu0
      %v3761 = vadd.f32 0.0, %v3760
      %v3762 = vpop.f32.mrf.mxu0
      %v3763 = vpop.f32.mrf.mxu0
      %3764 = vdwg.mxu0
      %3765 = vmatprep.subr.bf16.mxu0 0
      %3766 = vmatpush1.bf16.msra.mxu0 0
      %3767 = vmatprep.subr.bf16.mxu0 0
      %3768 = vmatpush1.bf16.msra.mxu0 0
      %3769 = vmatprep.subr.bf16.mxu0 0
      %3770 = vmatpush1.bf16.msra.mxu0 0
      %3771 = vmatprep.subr.bf16.mxu0 0
      %3772 = vmatpush1.bf16.msra.mxu0 0
      %3773 = vmatprep.subr.bf16.mxu0 0
      %3774 = vmatpush1.bf16.msra.mxu0 0
      %3775 = vmatprep.subr.bf16.mxu0 0
      %3776 = vmatpush1.bf16.msra.mxu0 0
      %3777 = vmatprep.subr.bf16.mxu0 0
      %3778 = vmatpush1.bf16.msra.mxu0 0
      %3779 = vmatprep.subr.bf16.mxu0 0
      %3780 = vmatpush1.bf16.msra.mxu0 %v3599
      %3781 = vmatprep.subr.bf16.mxu0 0
      %3782 = vmatpush2.bf16.msra.mxu0 0
      %3783 = vmatprep.subr.bf16.mxu0 0
      %3784 = vmatpush2.bf16.msra.mxu0 0
      %3785 = vmatprep.subr.bf16.mxu0 0
      %3786 = vmatpush2.bf16.msra.mxu0 0
      %3787 = vmatprep.subr.bf16.mxu0 0
      %3788 = vmatpush2.bf16.msra.mxu0 0
      %3789 = vmatprep.subr.bf16.mxu0 0
      %3790 = vmatpush2.bf16.msra.mxu0 0
      %3791 = vmatprep.subr.bf16.mxu0 0
      %3792 = vmatpush2.bf16.msra.mxu0 0
      %3793 = vmatprep.subr.bf16.mxu0 0
      %3794 = vmatpush2.bf16.msra.mxu0 0
      %3795 = vmatprep.subr.bf16.mxu0 0
      %3796 = vmatpush2.bf16.msra.mxu0 0
      %3797 = vmatprep.mubr.bf16.mxu0 0
      %3798 = vmatmul.mubr.bf16.gmra.mxu0 %v3572
      %v3799 = vpop.f32.mrf.mxu0
      %v3800 = vadd.f32 0.0, %v3799
      %v3801 = vpop.f32.mrf.mxu0
      %v3802 = vpop.f32.mrf.mxu0
      %v3803 = vpop.f32.mrf.mxu0
      %3804 = vdwg.mxu0
      %v3805 = vadd.f32 %v3528, %v3636
      %v3806 = vadd.f32 %v3529, %v3638
      %v3807 = vadd.f32 %v3530, %v3677
      %v3808 = vadd.f32 %v3531, %v3679
      %v3809 = vadd.f32 %v3532, %v3718
      %v3810 = vadd.f32 %v3533, %v3720
      %v3811 = vadd.f32 %v3534, %v3759
      %v3812 = vadd.f32 %v3535, %v3761
      %v3813 = vadd.f32 %v3536, %v3800
      %s3814 = scalar_lea.vmem %s3, 12
      %v3815 = vld [vmem:[%s3814] sm:$0x3]
      %v3816 = vcombine.high %v326, %v326
      %3817 = vrot.lane.b32.xlu0 %v293, 60
      %v3818 = vpop.permute.xlu0 %3817
      %3819 = vrot.lane.b32.xlu0 %v301, 60
      %v3820 = vpop.permute.xlu0 %3819
      %3821 = vrot.lane.b32.xlu0 %v300, 60
      %v3822 = vpop.permute.xlu0 %3821
      %3823 = vrot.lane.b32.xlu0 %v302, 60
      %v3824 = vpop.permute.xlu0 %3823
      %3825 = vrot.lane.b32.xlu0 %v310, 60
      %v3826 = vpop.permute.xlu0 %3825
      %3827 = vrot.lane.b32.xlu0 %v318, 60
      %v3828 = vpop.permute.xlu0 %3827
      %3829 = vrot.lane.b32.xlu0 %v317, 60
      %v3830 = vpop.permute.xlu0 %3829
      %3831 = vrot.lane.b32.xlu0 %v319, 60
      %v3832 = vpop.permute.xlu0 %3831
      %3833 = vrot.lane.b32.xlu0 %v326, 60
      %v3834 = vpop.permute.xlu0 %3833
      %3835 = vrot.lane.b32.xlu0 %v3816, 60
      %v3836 = vpop.permute.xlu0 %3835
      %v3837 = vsel %vm3561, %v3818, %v3820
      %v3838 = vsel %vm3561, %v3820, %v3822
      %v3839 = vsel %vm3561, %v3822, %v3824
      %v3840 = vsel %vm3561, %v3824, %v3826
      %v3841 = vsel %vm3561, %v3826, %v3828
      %v3842 = vsel %vm3561, %v3828, %v3830
      %v3843 = vsel %vm3561, %v3830, %v3832
      %v3844 = vsel %vm3561, %v3832, %v3834
      %v3845 = vsel %vm3561, %v3834, %v3836
      %v3847 = vsel %vm327, %v3815, 0
      %v3850 = vsel %vm331, %v3837, 0
      %v3853 = vsel %vm331, %v3838, 0
      %v3856 = vsel %vm331, %v3839, 0
      %v3859 = vsel %vm331, %v3840, 0
      %v3862 = vsel %vm331, %v3841, 0
      %v3865 = vsel %vm331, %v3842, 0
      %v3868 = vsel %vm331, %v3843, 0
      %v3871 = vsel %vm331, %v3844, 0
      %v3874 = vsel %vm331, %v3845, 0
      %3876 = vmatprep.subr.bf16.mxu0 0
      %3877 = vmatpush1.bf16.msra.mxu0 0
      %3878 = vmatprep.subr.bf16.mxu0 0
      %3879 = vmatpush1.bf16.msra.mxu0 0
      %3880 = vmatprep.subr.bf16.mxu0 0
      %3881 = vmatpush1.bf16.msra.mxu0 0
      %3882 = vmatprep.subr.bf16.mxu0 0
      %3883 = vmatpush1.bf16.msra.mxu0 0
      %3884 = vmatprep.subr.bf16.mxu0 0
      %3885 = vmatpush1.bf16.msra.mxu0 0
      %3886 = vmatprep.subr.bf16.mxu0 0
      %3887 = vmatpush1.bf16.msra.mxu0 0
      %3888 = vmatprep.subr.bf16.mxu0 0
      %3889 = vmatpush1.bf16.msra.mxu0 0
      %3890 = vmatprep.subr.bf16.mxu0 %v3853
      %3891 = vmatpush1.bf16.msra.mxu0 %v3850
      %3892 = vmatprep.subr.bf16.mxu0 0
      %3893 = vmatpush2.bf16.msra.mxu0 0
      %3894 = vmatprep.subr.bf16.mxu0 0
      %3895 = vmatpush2.bf16.msra.mxu0 0
      %3896 = vmatprep.subr.bf16.mxu0 0
      %3897 = vmatpush2.bf16.msra.mxu0 0
      %3898 = vmatprep.subr.bf16.mxu0 0
      %3899 = vmatpush2.bf16.msra.mxu0 0
      %3900 = vmatprep.subr.bf16.mxu0 0
      %3901 = vmatpush2.bf16.msra.mxu0 0
      %3902 = vmatprep.subr.bf16.mxu0 0
      %3903 = vmatpush2.bf16.msra.mxu0 0
      %3904 = vmatprep.subr.bf16.mxu0 0
      %3905 = vmatpush2.bf16.msra.mxu0 0
      %3906 = vmatprep.subr.bf16.mxu0 0
      %3907 = vmatpush2.bf16.msra.mxu0 0
      %3908 = vmatprep.mubr.bf16.mxu0 0
      %3909 = vmatmul.mubr.bf16.gmra.mxu0 %v3847
      %v3910 = vpop.f32.mrf.mxu0
      %v3911 = vadd.f32 0.0, %v3910
      %v3912 = vpop.f32.mrf.mxu0
      %v3913 = vadd.f32 0.0, %v3912
      %v3914 = vpop.f32.mrf.mxu0
      %v3915 = vpop.f32.mrf.mxu0
      %3916 = vdwg.mxu0
      %3917 = vmatprep.subr.bf16.mxu0 0
      %3918 = vmatpush1.bf16.msra.mxu0 0
      %3919 = vmatprep.subr.bf16.mxu0 0
      %3920 = vmatpush1.bf16.msra.mxu0 0
      %3921 = vmatprep.subr.bf16.mxu0 0
      %3922 = vmatpush1.bf16.msra.mxu0 0
      %3923 = vmatprep.subr.bf16.mxu0 0
      %3924 = vmatpush1.bf16.msra.mxu0 0
      %3925 = vmatprep.subr.bf16.mxu0 0
      %3926 = vmatpush1.bf16.msra.mxu0 0
      %3927 = vmatprep.subr.bf16.mxu0 0
      %3928 = vmatpush1.bf16.msra.mxu0 0
      %3929 = vmatprep.subr.bf16.mxu0 0
      %3930 = vmatpush1.bf16.msra.mxu0 0
      %3931 = vmatprep.subr.bf16.mxu0 %v3859
      %3932 = vmatpush1.bf16.msra.mxu0 %v3856
      %3933 = vmatprep.subr.bf16.mxu0 0
      %3934 = vmatpush2.bf16.msra.mxu0 0
      %3935 = vmatprep.subr.bf16.mxu0 0
      %3936 = vmatpush2.bf16.msra.mxu0 0
      %3937 = vmatprep.subr.bf16.mxu0 0
      %3938 = vmatpush2.bf16.msra.mxu0 0
      %3939 = vmatprep.subr.bf16.mxu0 0
      %3940 = vmatpush2.bf16.msra.mxu0 0
      %3941 = vmatprep.subr.bf16.mxu0 0
      %3942 = vmatpush2.bf16.msra.mxu0 0
      %3943 = vmatprep.subr.bf16.mxu0 0
      %3944 = vmatpush2.bf16.msra.mxu0 0
      %3945 = vmatprep.subr.bf16.mxu0 0
      %3946 = vmatpush2.bf16.msra.mxu0 0
      %3947 = vmatprep.subr.bf16.mxu0 0
      %3948 = vmatpush2.bf16.msra.mxu0 0
      %3949 = vmatprep.mubr.bf16.mxu0 0
      %3950 = vmatmul.mubr.bf16.gmra.mxu0 %v3847
      %v3951 = vpop.f32.mrf.mxu0
      %v3952 = vadd.f32 0.0, %v3951
      %v3953 = vpop.f32.mrf.mxu0
      %v3954 = vadd.f32 0.0, %v3953
      %v3955 = vpop.f32.mrf.mxu0
      %v3956 = vpop.f32.mrf.mxu0
      %3957 = vdwg.mxu0
      %3958 = vmatprep.subr.bf16.mxu0 0
      %3959 = vmatpush1.bf16.msra.mxu0 0
      %3960 = vmatprep.subr.bf16.mxu0 0
      %3961 = vmatpush1.bf16.msra.mxu0 0
      %3962 = vmatprep.subr.bf16.mxu0 0
      %3963 = vmatpush1.bf16.msra.mxu0 0
      %3964 = vmatprep.subr.bf16.mxu0 0
      %3965 = vmatpush1.bf16.msra.mxu0 0
      %3966 = vmatprep.subr.bf16.mxu0 0
      %3967 = vmatpush1.bf16.msra.mxu0 0
      %3968 = vmatprep.subr.bf16.mxu0 0
      %3969 = vmatpush1.bf16.msra.mxu0 0
      %3970 = vmatprep.subr.bf16.mxu0 0
      %3971 = vmatpush1.bf16.msra.mxu0 0
      %3972 = vmatprep.subr.bf16.mxu0 %v3865
      %3973 = vmatpush1.bf16.msra.mxu0 %v3862
      %3974 = vmatprep.subr.bf16.mxu0 0
      %3975 = vmatpush2.bf16.msra.mxu0 0
      %3976 = vmatprep.subr.bf16.mxu0 0
      %3977 = vmatpush2.bf16.msra.mxu0 0
      %3978 = vmatprep.subr.bf16.mxu0 0
      %3979 = vmatpush2.bf16.msra.mxu0 0
      %3980 = vmatprep.subr.bf16.mxu0 0
      %3981 = vmatpush2.bf16.msra.mxu0 0
      %3982 = vmatprep.subr.bf16.mxu0 0
      %3983 = vmatpush2.bf16.msra.mxu0 0
      %3984 = vmatprep.subr.bf16.mxu0 0
      %3985 = vmatpush2.bf16.msra.mxu0 0
      %3986 = vmatprep.subr.bf16.mxu0 0
      %3987 = vmatpush2.bf16.msra.mxu0 0
      %3988 = vmatprep.subr.bf16.mxu0 0
      %3989 = vmatpush2.bf16.msra.mxu0 0
      %3990 = vmatprep.mubr.bf16.mxu0 0
      %3991 = vmatmul.mubr.bf16.gmra.mxu0 %v3847
      %v3992 = vpop.f32.mrf.mxu0
      %v3993 = vadd.f32 0.0, %v3992
      %v3994 = vpop.f32.mrf.mxu0
      %v3995 = vadd.f32 0.0, %v3994
      %v3996 = vpop.f32.mrf.mxu0
      %v3997 = vpop.f32.mrf.mxu0
      %3998 = vdwg.mxu0
      %3999 = vmatprep.subr.bf16.mxu0 0
      %4000 = vmatpush1.bf16.msra.mxu0 0
      %4001 = vmatprep.subr.bf16.mxu0 0
      %4002 = vmatpush1.bf16.msra.mxu0 0
      %4003 = vmatprep.subr.bf16.mxu0 0
      %4004 = vmatpush1.bf16.msra.mxu0 0
      %4005 = vmatprep.subr.bf16.mxu0 0
      %4006 = vmatpush1.bf16.msra.mxu0 0
      %4007 = vmatprep.subr.bf16.mxu0 0
      %4008 = vmatpush1.bf16.msra.mxu0 0
      %4009 = vmatprep.subr.bf16.mxu0 0
      %4010 = vmatpush1.bf16.msra.mxu0 0
      %4011 = vmatprep.subr.bf16.mxu0 0
      %4012 = vmatpush1.bf16.msra.mxu0 0
      %4013 = vmatprep.subr.bf16.mxu0 %v3871
      %4014 = vmatpush1.bf16.msra.mxu0 %v3868
      %4015 = vmatprep.subr.bf16.mxu0 0
      %4016 = vmatpush2.bf16.msra.mxu0 0
      %4017 = vmatprep.subr.bf16.mxu0 0
      %4018 = vmatpush2.bf16.msra.mxu0 0
      %4019 = vmatprep.subr.bf16.mxu0 0
      %4020 = vmatpush2.bf16.msra.mxu0 0
      %4021 = vmatprep.subr.bf16.mxu0 0
      %4022 = vmatpush2.bf16.msra.mxu0 0
      %4023 = vmatprep.subr.bf16.mxu0 0
      %4024 = vmatpush2.bf16.msra.mxu0 0
      %4025 = vmatprep.subr.bf16.mxu0 0
      %4026 = vmatpush2.bf16.msra.mxu0 0
      %4027 = vmatprep.subr.bf16.mxu0 0
      %4028 = vmatpush2.bf16.msra.mxu0 0
      %4029 = vmatprep.subr.bf16.mxu0 0
      %4030 = vmatpush2.bf16.msra.mxu0 0
      %4031 = vmatprep.mubr.bf16.mxu0 0
      %4032 = vmatmul.mubr.bf16.gmra.mxu0 %v3847
      %v4033 = vpop.f32.mrf.mxu0
      %v4034 = vadd.f32 0.0, %v4033
      %v4035 = vpop.f32.mrf.mxu0
      %v4036 = vadd.f32 0.0, %v4035
      %v4037 = vpop.f32.mrf.mxu0
      %v4038 = vpop.f32.mrf.mxu0
      %4039 = vdwg.mxu0
      %4040 = vmatprep.subr.bf16.mxu0 0
      %4041 = vmatpush1.bf16.msra.mxu0 0
      %4042 = vmatprep.subr.bf16.mxu0 0
      %4043 = vmatpush1.bf16.msra.mxu0 0
      %4044 = vmatprep.subr.bf16.mxu0 0
      %4045 = vmatpush1.bf16.msra.mxu0 0
      %4046 = vmatprep.subr.bf16.mxu0 0
      %4047 = vmatpush1.bf16.msra.mxu0 0
      %4048 = vmatprep.subr.bf16.mxu0 0
      %4049 = vmatpush1.bf16.msra.mxu0 0
      %4050 = vmatprep.subr.bf16.mxu0 0
      %4051 = vmatpush1.bf16.msra.mxu0 0
      %4052 = vmatprep.subr.bf16.mxu0 0
      %4053 = vmatpush1.bf16.msra.mxu0 0
      %4054 = vmatprep.subr.bf16.mxu0 0
      %4055 = vmatpush1.bf16.msra.mxu0 %v3874
      %4056 = vmatprep.subr.bf16.mxu0 0
      %4057 = vmatpush2.bf16.msra.mxu0 0
      %4058 = vmatprep.subr.bf16.mxu0 0
      %4059 = vmatpush2.bf16.msra.mxu0 0
      %4060 = vmatprep.subr.bf16.mxu0 0
      %4061 = vmatpush2.bf16.msra.mxu0 0
      %4062 = vmatprep.subr.bf16.mxu0 0
      %4063 = vmatpush2.bf16.msra.mxu0 0
      %4064 = vmatprep.subr.bf16.mxu0 0
      %4065 = vmatpush2.bf16.msra.mxu0 0
      %4066 = vmatprep.subr.bf16.mxu0 0
      %4067 = vmatpush2.bf16.msra.mxu0 0
      %4068 = vmatprep.subr.bf16.mxu0 0
      %4069 = vmatpush2.bf16.msra.mxu0 0
      %4070 = vmatprep.subr.bf16.mxu0 0
      %4071 = vmatpush2.bf16.msra.mxu0 0
      %4072 = vmatprep.mubr.bf16.mxu0 0
      %4073 = vmatmul.mubr.bf16.gmra.mxu0 %v3847
      %v4074 = vpop.f32.mrf.mxu0
      %v4075 = vadd.f32 0.0, %v4074
      %v4076 = vpop.f32.mrf.mxu0
      %v4077 = vpop.f32.mrf.mxu0
      %v4078 = vpop.f32.mrf.mxu0
      %4079 = vdwg.mxu0
      %v4080 = vadd.f32 %v3805, %v3911
      %v4081 = vadd.f32 %v3806, %v3913
      %v4082 = vadd.f32 %v3807, %v3952
      %v4083 = vadd.f32 %v3808, %v3954
      %v4084 = vadd.f32 %v3809, %v3993
      %v4085 = vadd.f32 %v3810, %v3995
      %v4086 = vadd.f32 %v3811, %v4034
      %v4087 = vadd.f32 %v3812, %v4036
      %v4088 = vadd.f32 %v3813, %v4075
      %s4089 = scalar_lea.vmem %s2, 14
      %v4090 = vld [vmem:[%s4089] sm:$0x3]
      %4091 = vrot.lane.b32.xlu0 %v577, 59
      %v4092 = vpop.permute.xlu0 %4091
      %4093 = vrot.lane.b32.xlu0 %v578, 59
      %v4094 = vpop.permute.xlu0 %4093
      %4095 = vrot.lane.b32.xlu0 %v579, 59
      %v4096 = vpop.permute.xlu0 %4095
      %4097 = vrot.lane.b32.xlu0 %v580, 59
      %v4098 = vpop.permute.xlu0 %4097
      %4099 = vrot.lane.b32.xlu0 %v581, 59
      %v4100 = vpop.permute.xlu0 %4099
      %4101 = vrot.lane.b32.xlu0 %v582, 59
      %v4102 = vpop.permute.xlu0 %4101
      %4103 = vrot.lane.b32.xlu0 %v583, 59
      %v4104 = vpop.permute.xlu0 %4103
      %4105 = vrot.lane.b32.xlu0 %v584, 59
      %v4106 = vpop.permute.xlu0 %4105
      %4107 = vrot.lane.b32.xlu0 %v585, 59
      %v4108 = vpop.permute.xlu0 %4107
      %4109 = vrot.lane.b32.xlu0 %v3540, 59
      %v4110 = vpop.permute.xlu0 %4109
      %vm4111 = vcmask 482304
      %v4112 = vsel %vm4111, %v4092, %v4094
      %v4113 = vsel %vm4111, %v4094, %v4096
      %v4114 = vsel %vm4111, %v4096, %v4098
      %v4115 = vsel %vm4111, %v4098, %v4100
      %v4116 = vsel %vm4111, %v4100, %v4102
      %v4117 = vsel %vm4111, %v4102, %v4104
      %v4118 = vsel %vm4111, %v4104, %v4106
      %v4119 = vsel %vm4111, %v4106, %v4108
      %v4120 = vsel %vm4111, %v4108, %v4110
      %v4122 = vsel %vm586, %v4090, 0
      %v4125 = vsel %vm590, %v4112, 0
      %v4128 = vsel %vm590, %v4113, 0
      %v4131 = vsel %vm590, %v4114, 0
      %v4134 = vsel %vm590, %v4115, 0
      %v4137 = vsel %vm590, %v4116, 0
      %v4140 = vsel %vm590, %v4117, 0
      %v4143 = vsel %vm590, %v4118, 0
      %v4146 = vsel %vm590, %v4119, 0
      %v4149 = vsel %vm590, %v4120, 0
      %4151 = vmatprep.subr.bf16.mxu0 0
      %4152 = vmatpush1.bf16.msra.mxu0 0
      %4153 = vmatprep.subr.bf16.mxu0 0
      %4154 = vmatpush1.bf16.msra.mxu0 0
      %4155 = vmatprep.subr.bf16.mxu0 0
      %4156 = vmatpush1.bf16.msra.mxu0 0
      %4157 = vmatprep.subr.bf16.mxu0 0
      %4158 = vmatpush1.bf16.msra.mxu0 0
      %4159 = vmatprep.subr.bf16.mxu0 0
      %4160 = vmatpush1.bf16.msra.mxu0 0
      %4161 = vmatprep.subr.bf16.mxu0 0
      %4162 = vmatpush1.bf16.msra.mxu0 0
      %4163 = vmatprep.subr.bf16.mxu0 0
      %4164 = vmatpush1.bf16.msra.mxu0 0
      %4165 = vmatprep.subr.bf16.mxu0 %v4128
      %4166 = vmatpush1.bf16.msra.mxu0 %v4125
      %4167 = vmatprep.subr.bf16.mxu0 0
      %4168 = vmatpush2.bf16.msra.mxu0 0
      %4169 = vmatprep.subr.bf16.mxu0 0
      %4170 = vmatpush2.bf16.msra.mxu0 0
      %4171 = vmatprep.subr.bf16.mxu0 0
      %4172 = vmatpush2.bf16.msra.mxu0 0
      %4173 = vmatprep.subr.bf16.mxu0 0
      %4174 = vmatpush2.bf16.msra.mxu0 0
      %4175 = vmatprep.subr.bf16.mxu0 0
      %4176 = vmatpush2.bf16.msra.mxu0 0
      %4177 = vmatprep.subr.bf16.mxu0 0
      %4178 = vmatpush2.bf16.msra.mxu0 0
      %4179 = vmatprep.subr.bf16.mxu0 0
      %4180 = vmatpush2.bf16.msra.mxu0 0
      %4181 = vmatprep.subr.bf16.mxu0 0
      %4182 = vmatpush2.bf16.msra.mxu0 0
      %4183 = vmatprep.mubr.bf16.mxu0 0
      %4184 = vmatmul.mubr.bf16.gmra.mxu0 %v4122
      %v4185 = vpop.f32.mrf.mxu0
      %v4186 = vadd.f32 0.0, %v4185
      %v4187 = vpop.f32.mrf.mxu0
      %v4188 = vadd.f32 0.0, %v4187
      %v4189 = vpop.f32.mrf.mxu0
      %v4190 = vpop.f32.mrf.mxu0
      %4191 = vdwg.mxu0
      %4192 = vmatprep.subr.bf16.mxu0 0
      %4193 = vmatpush1.bf16.msra.mxu0 0
      %4194 = vmatprep.subr.bf16.mxu0 0
      %4195 = vmatpush1.bf16.msra.mxu0 0
      %4196 = vmatprep.subr.bf16.mxu0 0
      %4197 = vmatpush1.bf16.msra.mxu0 0
      %4198 = vmatprep.subr.bf16.mxu0 0
      %4199 = vmatpush1.bf16.msra.mxu0 0
      %4200 = vmatprep.subr.bf16.mxu0 0
      %4201 = vmatpush1.bf16.msra.mxu0 0
      %4202 = vmatprep.subr.bf16.mxu0 0
      %4203 = vmatpush1.bf16.msra.mxu0 0
      %4204 = vmatprep.subr.bf16.mxu0 0
      %4205 = vmatpush1.bf16.msra.mxu0 0
      %4206 = vmatprep.subr.bf16.mxu0 %v4134
      %4207 = vmatpush1.bf16.msra.mxu0 %v4131
      %4208 = vmatprep.subr.bf16.mxu0 0
      %4209 = vmatpush2.bf16.msra.mxu0 0
      %4210 = vmatprep.subr.bf16.mxu0 0
      %4211 = vmatpush2.bf16.msra.mxu0 0
      %4212 = vmatprep.subr.bf16.mxu0 0
      %4213 = vmatpush2.bf16.msra.mxu0 0
      %4214 = vmatprep.subr.bf16.mxu0 0
      %4215 = vmatpush2.bf16.msra.mxu0 0
      %4216 = vmatprep.subr.bf16.mxu0 0
      %4217 = vmatpush2.bf16.msra.mxu0 0
      %4218 = vmatprep.subr.bf16.mxu0 0
      %4219 = vmatpush2.bf16.msra.mxu0 0
      %4220 = vmatprep.subr.bf16.mxu0 0
      %4221 = vmatpush2.bf16.msra.mxu0 0
      %4222 = vmatprep.subr.bf16.mxu0 0
      %4223 = vmatpush2.bf16.msra.mxu0 0
      %4224 = vmatprep.mubr.bf16.mxu0 0
      %4225 = vmatmul.mubr.bf16.gmra.mxu0 %v4122
      %v4226 = vpop.f32.mrf.mxu0
      %v4227 = vadd.f32 0.0, %v4226
      %v4228 = vpop.f32.mrf.mxu0
      %v4229 = vadd.f32 0.0, %v4228
      %v4230 = vpop.f32.mrf.mxu0
      %v4231 = vpop.f32.mrf.mxu0
      %4232 = vdwg.mxu0
      %4233 = vmatprep.subr.bf16.mxu0 0
      %4234 = vmatpush1.bf16.msra.mxu0 0
      %4235 = vmatprep.subr.bf16.mxu0 0
      %4236 = vmatpush1.bf16.msra.mxu0 0
      %4237 = vmatprep.subr.bf16.mxu0 0
      %4238 = vmatpush1.bf16.msra.mxu0 0
      %4239 = vmatprep.subr.bf16.mxu0 0
      %4240 = vmatpush1.bf16.msra.mxu0 0
      %4241 = vmatprep.subr.bf16.mxu0 0
      %4242 = vmatpush1.bf16.msra.mxu0 0
      %4243 = vmatprep.subr.bf16.mxu0 0
      %4244 = vmatpush1.bf16.msra.mxu0 0
      %4245 = vmatprep.subr.bf16.mxu0 0
      %4246 = vmatpush1.bf16.msra.mxu0 0
      %4247 = vmatprep.subr.bf16.mxu0 %v4140
      %4248 = vmatpush1.bf16.msra.mxu0 %v4137
      %4249 = vmatprep.subr.bf16.mxu0 0
      %4250 = vmatpush2.bf16.msra.mxu0 0
      %4251 = vmatprep.subr.bf16.mxu0 0
      %4252 = vmatpush2.bf16.msra.mxu0 0
      %4253 = vmatprep.subr.bf16.mxu0 0
      %4254 = vmatpush2.bf16.msra.mxu0 0
      %4255 = vmatprep.subr.bf16.mxu0 0
      %4256 = vmatpush2.bf16.msra.mxu0 0
      %4257 = vmatprep.subr.bf16.mxu0 0
      %4258 = vmatpush2.bf16.msra.mxu0 0
      %4259 = vmatprep.subr.bf16.mxu0 0
      %4260 = vmatpush2.bf16.msra.mxu0 0
      %4261 = vmatprep.subr.bf16.mxu0 0
      %4262 = vmatpush2.bf16.msra.mxu0 0
      %4263 = vmatprep.subr.bf16.mxu0 0
      %4264 = vmatpush2.bf16.msra.mxu0 0
      %4265 = vmatprep.mubr.bf16.mxu0 0
      %4266 = vmatmul.mubr.bf16.gmra.mxu0 %v4122
      %v4267 = vpop.f32.mrf.mxu0
      %v4268 = vadd.f32 0.0, %v4267
      %v4269 = vpop.f32.mrf.mxu0
      %v4270 = vadd.f32 0.0, %v4269
      %v4271 = vpop.f32.mrf.mxu0
      %v4272 = vpop.f32.mrf.mxu0
      %4273 = vdwg.mxu0
      %4274 = vmatprep.subr.bf16.mxu0 0
      %4275 = vmatpush1.bf16.msra.mxu0 0
      %4276 = vmatprep.subr.bf16.mxu0 0
      %4277 = vmatpush1.bf16.msra.mxu0 0
      %4278 = vmatprep.subr.bf16.mxu0 0
      %4279 = vmatpush1.bf16.msra.mxu0 0
      %4280 = vmatprep.subr.bf16.mxu0 0
      %4281 = vmatpush1.bf16.msra.mxu0 0
      %4282 = vmatprep.subr.bf16.mxu0 0
      %4283 = vmatpush1.bf16.msra.mxu0 0
      %4284 = vmatprep.subr.bf16.mxu0 0
      %4285 = vmatpush1.bf16.msra.mxu0 0
      %4286 = vmatprep.subr.bf16.mxu0 0
      %4287 = vmatpush1.bf16.msra.mxu0 0
      %4288 = vmatprep.subr.bf16.mxu0 %v4146
      %4289 = vmatpush1.bf16.msra.mxu0 %v4143
      %4290 = vmatprep.subr.bf16.mxu0 0
      %4291 = vmatpush2.bf16.msra.mxu0 0
      %4292 = vmatprep.subr.bf16.mxu0 0
      %4293 = vmatpush2.bf16.msra.mxu0 0
      %4294 = vmatprep.subr.bf16.mxu0 0
      %4295 = vmatpush2.bf16.msra.mxu0 0
      %4296 = vmatprep.subr.bf16.mxu0 0
      %4297 = vmatpush2.bf16.msra.mxu0 0
      %4298 = vmatprep.subr.bf16.mxu0 0
      %4299 = vmatpush2.bf16.msra.mxu0 0
      %4300 = vmatprep.subr.bf16.mxu0 0
      %4301 = vmatpush2.bf16.msra.mxu0 0
      %4302 = vmatprep.subr.bf16.mxu0 0
      %4303 = vmatpush2.bf16.msra.mxu0 0
      %4304 = vmatprep.subr.bf16.mxu0 0
      %4305 = vmatpush2.bf16.msra.mxu0 0
      %4306 = vmatprep.mubr.bf16.mxu0 0
      %4307 = vmatmul.mubr.bf16.gmra.mxu0 %v4122
      %v4308 = vpop.f32.mrf.mxu0
      %v4309 = vadd.f32 0.0, %v4308
      %v4310 = vpop.f32.mrf.mxu0
      %v4311 = vadd.f32 0.0, %v4310
      %v4312 = vpop.f32.mrf.mxu0
      %v4313 = vpop.f32.mrf.mxu0
      %4314 = vdwg.mxu0
      %4315 = vmatprep.subr.bf16.mxu0 0
      %4316 = vmatpush1.bf16.msra.mxu0 0
      %4317 = vmatprep.subr.bf16.mxu0 0
      %4318 = vmatpush1.bf16.msra.mxu0 0
      %4319 = vmatprep.subr.bf16.mxu0 0
      %4320 = vmatpush1.bf16.msra.mxu0 0
      %4321 = vmatprep.subr.bf16.mxu0 0
      %4322 = vmatpush1.bf16.msra.mxu0 0
      %4323 = vmatprep.subr.bf16.mxu0 0
      %4324 = vmatpush1.bf16.msra.mxu0 0
      %4325 = vmatprep.subr.bf16.mxu0 0
      %4326 = vmatpush1.bf16.msra.mxu0 0
      %4327 = vmatprep.subr.bf16.mxu0 0
      %4328 = vmatpush1.bf16.msra.mxu0 0
      %4329 = vmatprep.subr.bf16.mxu0 0
      %4330 = vmatpush1.bf16.msra.mxu0 %v4149
      %4331 = vmatprep.subr.bf16.mxu0 0
      %4332 = vmatpush2.bf16.msra.mxu0 0
      %4333 = vmatprep.subr.bf16.mxu0 0
      %4334 = vmatpush2.bf16.msra.mxu0 0
      %4335 = vmatprep.subr.bf16.mxu0 0
      %4336 = vmatpush2.bf16.msra.mxu0 0
      %4337 = vmatprep.subr.bf16.mxu0 0
      %4338 = vmatpush2.bf16.msra.mxu0 0
      %4339 = vmatprep.subr.bf16.mxu0 0
      %4340 = vmatpush2.bf16.msra.mxu0 0
      %4341 = vmatprep.subr.bf16.mxu0 0
      %4342 = vmatpush2.bf16.msra.mxu0 0
      %4343 = vmatprep.subr.bf16.mxu0 0
      %4344 = vmatpush2.bf16.msra.mxu0 0
      %4345 = vmatprep.subr.bf16.mxu0 0
      %4346 = vmatpush2.bf16.msra.mxu0 0
      %4347 = vmatprep.mubr.bf16.mxu0 0
      %4348 = vmatmul.mubr.bf16.gmra.mxu0 %v4122
      %v4349 = vpop.f32.mrf.mxu0
      %v4350 = vadd.f32 0.0, %v4349
      %v4351 = vpop.f32.mrf.mxu0
      %v4352 = vpop.f32.mrf.mxu0
      %v4353 = vpop.f32.mrf.mxu0
      %4354 = vdwg.mxu0
      %v4355 = vadd.f32 %v4080, %v4186
      %v4356 = vadd.f32 %v4081, %v4188
      %v4357 = vadd.f32 %v4082, %v4227
      %v4358 = vadd.f32 %v4083, %v4229
      %v4359 = vadd.f32 %v4084, %v4268
      %v4360 = vadd.f32 %v4085, %v4270
      %v4361 = vadd.f32 %v4086, %v4309
      %v4362 = vadd.f32 %v4087, %v4311
      %v4363 = vadd.f32 %v4088, %v4350
      %s4364 = scalar_lea.vmem %s3, 14
      %v4365 = vld [vmem:[%s4364] sm:$0x3]
      %4366 = vrot.lane.b32.xlu0 %v293, 59
      %v4367 = vpop.permute.xlu0 %4366
      %4368 = vrot.lane.b32.xlu0 %v301, 59
      %v4369 = vpop.permute.xlu0 %4368
      %4370 = vrot.lane.b32.xlu0 %v300, 59
      %v4371 = vpop.permute.xlu0 %4370
      %4372 = vrot.lane.b32.xlu0 %v302, 59
      %v4373 = vpop.permute.xlu0 %4372
      %4374 = vrot.lane.b32.xlu0 %v310, 59
      %v4375 = vpop.permute.xlu0 %4374
      %4376 = vrot.lane.b32.xlu0 %v318, 59
      %v4377 = vpop.permute.xlu0 %4376
      %4378 = vrot.lane.b32.xlu0 %v317, 59
      %v4379 = vpop.permute.xlu0 %4378
      %4380 = vrot.lane.b32.xlu0 %v319, 59
      %v4381 = vpop.permute.xlu0 %4380
      %4382 = vrot.lane.b32.xlu0 %v326, 59
      %v4383 = vpop.permute.xlu0 %4382
      %4384 = vrot.lane.b32.xlu0 %v3816, 59
      %v4385 = vpop.permute.xlu0 %4384
      %v4386 = vsel %vm4111, %v4367, %v4369
      %v4387 = vsel %vm4111, %v4369, %v4371
      %v4388 = vsel %vm4111, %v4371, %v4373
      %v4389 = vsel %vm4111, %v4373, %v4375
      %v4390 = vsel %vm4111, %v4375, %v4377
      %v4391 = vsel %vm4111, %v4377, %v4379
      %v4392 = vsel %vm4111, %v4379, %v4381
      %v4393 = vsel %vm4111, %v4381, %v4383
      %v4394 = vsel %vm4111, %v4383, %v4385
      %v4396 = vsel %vm327, %v4365, 0
      %v4399 = vsel %vm331, %v4386, 0
      %v4402 = vsel %vm331, %v4387, 0
      %v4405 = vsel %vm331, %v4388, 0
      %v4408 = vsel %vm331, %v4389, 0
      %v4411 = vsel %vm331, %v4390, 0
      %v4414 = vsel %vm331, %v4391, 0
      %v4417 = vsel %vm331, %v4392, 0
      %v4420 = vsel %vm331, %v4393, 0
      %v4423 = vsel %vm331, %v4394, 0
      %4425 = vmatprep.subr.bf16.mxu0 0
      %4426 = vmatpush1.bf16.msra.mxu0 0
      %4427 = vmatprep.subr.bf16.mxu0 0
      %4428 = vmatpush1.bf16.msra.mxu0 0
      %4429 = vmatprep.subr.bf16.mxu0 0
      %4430 = vmatpush1.bf16.msra.mxu0 0
      %4431 = vmatprep.subr.bf16.mxu0 0
      %4432 = vmatpush1.bf16.msra.mxu0 0
      %4433 = vmatprep.subr.bf16.mxu0 0
      %4434 = vmatpush1.bf16.msra.mxu0 0
      %4435 = vmatprep.subr.bf16.mxu0 0
      %4436 = vmatpush1.bf16.msra.mxu0 0
      %4437 = vmatprep.subr.bf16.mxu0 0
      %4438 = vmatpush1.bf16.msra.mxu0 0
      %4439 = vmatprep.subr.bf16.mxu0 %v4402
      %4440 = vmatpush1.bf16.msra.mxu0 %v4399
      %4441 = vmatprep.subr.bf16.mxu0 0
      %4442 = vmatpush2.bf16.msra.mxu0 0
      %4443 = vmatprep.subr.bf16.mxu0 0
      %4444 = vmatpush2.bf16.msra.mxu0 0
      %4445 = vmatprep.subr.bf16.mxu0 0
      %4446 = vmatpush2.bf16.msra.mxu0 0
      %4447 = vmatprep.subr.bf16.mxu0 0
      %4448 = vmatpush2.bf16.msra.mxu0 0
      %4449 = vmatprep.subr.bf16.mxu0 0
      %4450 = vmatpush2.bf16.msra.mxu0 0
      %4451 = vmatprep.subr.bf16.mxu0 0
      %4452 = vmatpush2.bf16.msra.mxu0 0
      %4453 = vmatprep.subr.bf16.mxu0 0
      %4454 = vmatpush2.bf16.msra.mxu0 0
      %4455 = vmatprep.subr.bf16.mxu0 0
      %4456 = vmatpush2.bf16.msra.mxu0 0
      %4457 = vmatprep.mubr.bf16.mxu0 0
      %4458 = vmatmul.mubr.bf16.gmra.mxu0 %v4396
      %v4459 = vpop.f32.mrf.mxu0
      %v4460 = vadd.f32 0.0, %v4459
      %v4461 = vpop.f32.mrf.mxu0
      %v4462 = vadd.f32 0.0, %v4461
      %v4463 = vpop.f32.mrf.mxu0
      %v4464 = vpop.f32.mrf.mxu0
      %4465 = vdwg.mxu0
      %4466 = vmatprep.subr.bf16.mxu0 0
      %4467 = vmatpush1.bf16.msra.mxu0 0
      %4468 = vmatprep.subr.bf16.mxu0 0
      %4469 = vmatpush1.bf16.msra.mxu0 0
      %4470 = vmatprep.subr.bf16.mxu0 0
      %4471 = vmatpush1.bf16.msra.mxu0 0
      %4472 = vmatprep.subr.bf16.mxu0 0
      %4473 = vmatpush1.bf16.msra.mxu0 0
      %4474 = vmatprep.subr.bf16.mxu0 0
      %4475 = vmatpush1.bf16.msra.mxu0 0
      %4476 = vmatprep.subr.bf16.mxu0 0
      %4477 = vmatpush1.bf16.msra.mxu0 0
      %4478 = vmatprep.subr.bf16.mxu0 0
      %4479 = vmatpush1.bf16.msra.mxu0 0
      %4480 = vmatprep.subr.bf16.mxu0 %v4408
      %4481 = vmatpush1.bf16.msra.mxu0 %v4405
      %4482 = vmatprep.subr.bf16.mxu0 0
      %4483 = vmatpush2.bf16.msra.mxu0 0
      %4484 = vmatprep.subr.bf16.mxu0 0
      %4485 = vmatpush2.bf16.msra.mxu0 0
      %4486 = vmatprep.subr.bf16.mxu0 0
      %4487 = vmatpush2.bf16.msra.mxu0 0
      %4488 = vmatprep.subr.bf16.mxu0 0
      %4489 = vmatpush2.bf16.msra.mxu0 0
      %4490 = vmatprep.subr.bf16.mxu0 0
      %4491 = vmatpush2.bf16.msra.mxu0 0
      %4492 = vmatprep.subr.bf16.mxu0 0
      %4493 = vmatpush2.bf16.msra.mxu0 0
      %4494 = vmatprep.subr.bf16.mxu0 0
      %4495 = vmatpush2.bf16.msra.mxu0 0
      %4496 = vmatprep.subr.bf16.mxu0 0
      %4497 = vmatpush2.bf16.msra.mxu0 0
      %4498 = vmatprep.mubr.bf16.mxu0 0
      %4499 = vmatmul.mubr.bf16.gmra.mxu0 %v4396
      %v4500 = vpop.f32.mrf.mxu0
      %v4501 = vadd.f32 0.0, %v4500
      %v4502 = vpop.f32.mrf.mxu0
      %v4503 = vadd.f32 0.0, %v4502
      %v4504 = vpop.f32.mrf.mxu0
      %v4505 = vpop.f32.mrf.mxu0
      %4506 = vdwg.mxu0
      %4507 = vmatprep.subr.bf16.mxu0 0
      %4508 = vmatpush1.bf16.msra.mxu0 0
      %4509 = vmatprep.subr.bf16.mxu0 0
      %4510 = vmatpush1.bf16.msra.mxu0 0
      %4511 = vmatprep.subr.bf16.mxu0 0
      %4512 = vmatpush1.bf16.msra.mxu0 0
      %4513 = vmatprep.subr.bf16.mxu0 0
      %4514 = vmatpush1.bf16.msra.mxu0 0
      %4515 = vmatprep.subr.bf16.mxu0 0
      %4516 = vmatpush1.bf16.msra.mxu0 0
      %4517 = vmatprep.subr.bf16.mxu0 0
      %4518 = vmatpush1.bf16.msra.mxu0 0
      %4519 = vmatprep.subr.bf16.mxu0 0
      %4520 = vmatpush1.bf16.msra.mxu0 0
      %4521 = vmatprep.subr.bf16.mxu0 %v4414
      %4522 = vmatpush1.bf16.msra.mxu0 %v4411
      %4523 = vmatprep.subr.bf16.mxu0 0
      %4524 = vmatpush2.bf16.msra.mxu0 0
      %4525 = vmatprep.subr.bf16.mxu0 0
      %4526 = vmatpush2.bf16.msra.mxu0 0
      %4527 = vmatprep.subr.bf16.mxu0 0
      %4528 = vmatpush2.bf16.msra.mxu0 0
      %4529 = vmatprep.subr.bf16.mxu0 0
      %4530 = vmatpush2.bf16.msra.mxu0 0
      %4531 = vmatprep.subr.bf16.mxu0 0
      %4532 = vmatpush2.bf16.msra.mxu0 0
      %4533 = vmatprep.subr.bf16.mxu0 0
      %4534 = vmatpush2.bf16.msra.mxu0 0
      %4535 = vmatprep.subr.bf16.mxu0 0
      %4536 = vmatpush2.bf16.msra.mxu0 0
      %4537 = vmatprep.subr.bf16.mxu0 0
      %4538 = vmatpush2.bf16.msra.mxu0 0
      %4539 = vmatprep.mubr.bf16.mxu0 0
      %4540 = vmatmul.mubr.bf16.gmra.mxu0 %v4396
      %v4541 = vpop.f32.mrf.mxu0
      %v4542 = vadd.f32 0.0, %v4541
      %v4543 = vpop.f32.mrf.mxu0
      %v4544 = vadd.f32 0.0, %v4543
      %v4545 = vpop.f32.mrf.mxu0
      %v4546 = vpop.f32.mrf.mxu0
      %4547 = vdwg.mxu0
      %4548 = vmatprep.subr.bf16.mxu0 0
      %4549 = vmatpush1.bf16.msra.mxu0 0
      %4550 = vmatprep.subr.bf16.mxu0 0
      %4551 = vmatpush1.bf16.msra.mxu0 0
      %4552 = vmatprep.subr.bf16.mxu0 0
      %4553 = vmatpush1.bf16.msra.mxu0 0
      %4554 = vmatprep.subr.bf16.mxu0 0
      %4555 = vmatpush1.bf16.msra.mxu0 0
      %4556 = vmatprep.subr.bf16.mxu0 0
      %4557 = vmatpush1.bf16.msra.mxu0 0
      %4558 = vmatprep.subr.bf16.mxu0 0
      %4559 = vmatpush1.bf16.msra.mxu0 0
      %4560 = vmatprep.subr.bf16.mxu0 0
      %4561 = vmatpush1.bf16.msra.mxu0 0
      %4562 = vmatprep.subr.bf16.mxu0 %v4420
      %4563 = vmatpush1.bf16.msra.mxu0 %v4417
      %4564 = vmatprep.subr.bf16.mxu0 0
      %4565 = vmatpush2.bf16.msra.mxu0 0
      %4566 = vmatprep.subr.bf16.mxu0 0
      %4567 = vmatpush2.bf16.msra.mxu0 0
      %4568 = vmatprep.subr.bf16.mxu0 0
      %4569 = vmatpush2.bf16.msra.mxu0 0
      %4570 = vmatprep.subr.bf16.mxu0 0
      %4571 = vmatpush2.bf16.msra.mxu0 0
      %4572 = vmatprep.subr.bf16.mxu0 0
      %4573 = vmatpush2.bf16.msra.mxu0 0
      %4574 = vmatprep.subr.bf16.mxu0 0
      %4575 = vmatpush2.bf16.msra.mxu0 0
      %4576 = vmatprep.subr.bf16.mxu0 0
      %4577 = vmatpush2.bf16.msra.mxu0 0
      %4578 = vmatprep.subr.bf16.mxu0 0
      %4579 = vmatpush2.bf16.msra.mxu0 0
      %4580 = vmatprep.mubr.bf16.mxu0 0
      %4581 = vmatmul.mubr.bf16.gmra.mxu0 %v4396
      %v4582 = vpop.f32.mrf.mxu0
      %v4583 = vadd.f32 0.0, %v4582
      %v4584 = vpop.f32.mrf.mxu0
      %v4585 = vadd.f32 0.0, %v4584
      %v4586 = vpop.f32.mrf.mxu0
      %v4587 = vpop.f32.mrf.mxu0
      %4588 = vdwg.mxu0
      %4589 = vmatprep.subr.bf16.mxu0 0
      %4590 = vmatpush1.bf16.msra.mxu0 0
      %4591 = vmatprep.subr.bf16.mxu0 0
      %4592 = vmatpush1.bf16.msra.mxu0 0
      %4593 = vmatprep.subr.bf16.mxu0 0
      %4594 = vmatpush1.bf16.msra.mxu0 0
      %4595 = vmatprep.subr.bf16.mxu0 0
      %4596 = vmatpush1.bf16.msra.mxu0 0
      %4597 = vmatprep.subr.bf16.mxu0 0
      %4598 = vmatpush1.bf16.msra.mxu0 0
      %4599 = vmatprep.subr.bf16.mxu0 0
      %4600 = vmatpush1.bf16.msra.mxu0 0
      %4601 = vmatprep.subr.bf16.mxu0 0
      %4602 = vmatpush1.bf16.msra.mxu0 0
      %4603 = vmatprep.subr.bf16.mxu0 0
      %4604 = vmatpush1.bf16.msra.mxu0 %v4423
      %4605 = vmatprep.subr.bf16.mxu0 0
      %4606 = vmatpush2.bf16.msra.mxu0 0
      %4607 = vmatprep.subr.bf16.mxu0 0
      %4608 = vmatpush2.bf16.msra.mxu0 0
      %4609 = vmatprep.subr.bf16.mxu0 0
      %4610 = vmatpush2.bf16.msra.mxu0 0
      %4611 = vmatprep.subr.bf16.mxu0 0
      %4612 = vmatpush2.bf16.msra.mxu0 0
      %4613 = vmatprep.subr.bf16.mxu0 0
      %4614 = vmatpush2.bf16.msra.mxu0 0
      %4615 = vmatprep.subr.bf16.mxu0 0
      %4616 = vmatpush2.bf16.msra.mxu0 0
      %4617 = vmatprep.subr.bf16.mxu0 0
      %4618 = vmatpush2.bf16.msra.mxu0 0
      %4619 = vmatprep.subr.bf16.mxu0 0
      %4620 = vmatpush2.bf16.msra.mxu0 0
      %4621 = vmatprep.mubr.bf16.mxu0 0
      %4622 = vmatmul.mubr.bf16.gmra.mxu0 %v4396
      %v4623 = vpop.f32.mrf.mxu0
      %v4624 = vadd.f32 0.0, %v4623
      %v4625 = vpop.f32.mrf.mxu0
      %v4626 = vpop.f32.mrf.mxu0
      %v4627 = vpop.f32.mrf.mxu0
      %4628 = vdwg.mxu0
      %v4629 = vadd.f32 %v4355, %v4460
      %v4630 = vadd.f32 %v4356, %v4462
      %v4631 = vadd.f32 %v4357, %v4501
      %v4632 = vadd.f32 %v4358, %v4503
      %v4633 = vadd.f32 %v4359, %v4542
      %v4634 = vadd.f32 %v4360, %v4544
      %v4635 = vadd.f32 %v4361, %v4583
      %v4636 = vadd.f32 %v4362, %v4585
      %v4637 = vadd.f32 %v4363, %v4624
      %s4638 = scalar_lea.vmem %s2, 16
      %v4639 = vld [vmem:[%s4638] sm:$0x3]
      %4640 = vrot.lane.b32.xlu0 %v577, 58
      %v4641 = vpop.permute.xlu0 %4640
      %4642 = vrot.lane.b32.xlu0 %v578, 58
      %v4643 = vpop.permute.xlu0 %4642
      %4644 = vrot.lane.b32.xlu0 %v579, 58
      %v4645 = vpop.permute.xlu0 %4644
      %4646 = vrot.lane.b32.xlu0 %v580, 58
      %v4647 = vpop.permute.xlu0 %4646
      %4648 = vrot.lane.b32.xlu0 %v581, 58
      %v4649 = vpop.permute.xlu0 %4648
      %4650 = vrot.lane.b32.xlu0 %v582, 58
      %v4651 = vpop.permute.xlu0 %4650
      %4652 = vrot.lane.b32.xlu0 %v583, 58
      %v4653 = vpop.permute.xlu0 %4652
      %4654 = vrot.lane.b32.xlu0 %v584, 58
      %v4655 = vpop.permute.xlu0 %4654
      %4656 = vrot.lane.b32.xlu0 %v585, 58
      %v4657 = vpop.permute.xlu0 %4656
      %4658 = vrot.lane.b32.xlu0 %v3540, 58
      %v4659 = vpop.permute.xlu0 %4658
      %vm4660 = vcmask 474112
      %v4661 = vsel %vm4660, %v4641, %v4643
      %v4662 = vsel %vm4660, %v4643, %v4645
      %v4663 = vsel %vm4660, %v4645, %v4647
      %v4664 = vsel %vm4660, %v4647, %v4649
      %v4665 = vsel %vm4660, %v4649, %v4651
      %v4666 = vsel %vm4660, %v4651, %v4653
      %v4667 = vsel %vm4660, %v4653, %v4655
      %v4668 = vsel %vm4660, %v4655, %v4657
      %v4669 = vsel %vm4660, %v4657, %v4659
      %v4671 = vsel %vm586, %v4639, 0
      %v4674 = vsel %vm590, %v4661, 0
      %v4677 = vsel %vm590, %v4662, 0
      %v4680 = vsel %vm590, %v4663, 0
      %v4683 = vsel %vm590, %v4664, 0
      %v4686 = vsel %vm590, %v4665, 0
      %v4689 = vsel %vm590, %v4666, 0
      %v4692 = vsel %vm590, %v4667, 0
      %v4695 = vsel %vm590, %v4668, 0
      %v4698 = vsel %vm590, %v4669, 0
      %4700 = vmatprep.subr.bf16.mxu0 0
      %4701 = vmatpush1.bf16.msra.mxu0 0
      %4702 = vmatprep.subr.bf16.mxu0 0
      %4703 = vmatpush1.bf16.msra.mxu0 0
      %4704 = vmatprep.subr.bf16.mxu0 0
      %4705 = vmatpush1.bf16.msra.mxu0 0
      %4706 = vmatprep.subr.bf16.mxu0 0
      %4707 = vmatpush1.bf16.msra.mxu0 0
      %4708 = vmatprep.subr.bf16.mxu0 0
      %4709 = vmatpush1.bf16.msra.mxu0 0
      %4710 = vmatprep.subr.bf16.mxu0 0
      %4711 = vmatpush1.bf16.msra.mxu0 0
      %4712 = vmatprep.subr.bf16.mxu0 0
      %4713 = vmatpush1.bf16.msra.mxu0 0
      %4714 = vmatprep.subr.bf16.mxu0 %v4677
      %4715 = vmatpush1.bf16.msra.mxu0 %v4674
      %4716 = vmatprep.subr.bf16.mxu0 0
      %4717 = vmatpush2.bf16.msra.mxu0 0
      %4718 = vmatprep.subr.bf16.mxu0 0
      %4719 = vmatpush2.bf16.msra.mxu0 0
      %4720 = vmatprep.subr.bf16.mxu0 0
      %4721 = vmatpush2.bf16.msra.mxu0 0
      %4722 = vmatprep.subr.bf16.mxu0 0
      %4723 = vmatpush2.bf16.msra.mxu0 0
      %4724 = vmatprep.subr.bf16.mxu0 0
      %4725 = vmatpush2.bf16.msra.mxu0 0
      %4726 = vmatprep.subr.bf16.mxu0 0
      %4727 = vmatpush2.bf16.msra.mxu0 0
      %4728 = vmatprep.subr.bf16.mxu0 0
      %4729 = vmatpush2.bf16.msra.mxu0 0
      %4730 = vmatprep.subr.bf16.mxu0 0
      %4731 = vmatpush2.bf16.msra.mxu0 0
      %4732 = vmatprep.mubr.bf16.mxu0 0
      %4733 = vmatmul.mubr.bf16.gmra.mxu0 %v4671
      %v4734 = vpop.f32.mrf.mxu0
      %v4735 = vadd.f32 0.0, %v4734
      %v4736 = vpop.f32.mrf.mxu0
      %v4737 = vadd.f32 0.0, %v4736
      %v4738 = vpop.f32.mrf.mxu0
      %v4739 = vpop.f32.mrf.mxu0
      %4740 = vdwg.mxu0
      %4741 = vmatprep.subr.bf16.mxu0 0
      %4742 = vmatpush1.bf16.msra.mxu0 0
      %4743 = vmatprep.subr.bf16.mxu0 0
      %4744 = vmatpush1.bf16.msra.mxu0 0
      %4745 = vmatprep.subr.bf16.mxu0 0
      %4746 = vmatpush1.bf16.msra.mxu0 0
      %4747 = vmatprep.subr.bf16.mxu0 0
      %4748 = vmatpush1.bf16.msra.mxu0 0
      %4749 = vmatprep.subr.bf16.mxu0 0
      %4750 = vmatpush1.bf16.msra.mxu0 0
      %4751 = vmatprep.subr.bf16.mxu0 0
      %4752 = vmatpush1.bf16.msra.mxu0 0
      %4753 = vmatprep.subr.bf16.mxu0 0
      %4754 = vmatpush1.bf16.msra.mxu0 0
      %4755 = vmatprep.subr.bf16.mxu0 %v4683
      %4756 = vmatpush1.bf16.msra.mxu0 %v4680
      %4757 = vmatprep.subr.bf16.mxu0 0
      %4758 = vmatpush2.bf16.msra.mxu0 0
      %4759 = vmatprep.subr.bf16.mxu0 0
      %4760 = vmatpush2.bf16.msra.mxu0 0
      %4761 = vmatprep.subr.bf16.mxu0 0
      %4762 = vmatpush2.bf16.msra.mxu0 0
      %4763 = vmatprep.subr.bf16.mxu0 0
      %4764 = vmatpush2.bf16.msra.mxu0 0
      %4765 = vmatprep.subr.bf16.mxu0 0
      %4766 = vmatpush2.bf16.msra.mxu0 0
      %4767 = vmatprep.subr.bf16.mxu0 0
      %4768 = vmatpush2.bf16.msra.mxu0 0
      %4769 = vmatprep.subr.bf16.mxu0 0
      %4770 = vmatpush2.bf16.msra.mxu0 0
      %4771 = vmatprep.subr.bf16.mxu0 0
      %4772 = vmatpush2.bf16.msra.mxu0 0
      %4773 = vmatprep.mubr.bf16.mxu0 0
      %4774 = vmatmul.mubr.bf16.gmra.mxu0 %v4671
      %v4775 = vpop.f32.mrf.mxu0
      %v4776 = vadd.f32 0.0, %v4775
      %v4777 = vpop.f32.mrf.mxu0
      %v4778 = vadd.f32 0.0, %v4777
      %v4779 = vpop.f32.mrf.mxu0
      %v4780 = vpop.f32.mrf.mxu0
      %4781 = vdwg.mxu0
      %4782 = vmatprep.subr.bf16.mxu0 0
      %4783 = vmatpush1.bf16.msra.mxu0 0
      %4784 = vmatprep.subr.bf16.mxu0 0
      %4785 = vmatpush1.bf16.msra.mxu0 0
      %4786 = vmatprep.subr.bf16.mxu0 0
      %4787 = vmatpush1.bf16.msra.mxu0 0
      %4788 = vmatprep.subr.bf16.mxu0 0
      %4789 = vmatpush1.bf16.msra.mxu0 0
      %4790 = vmatprep.subr.bf16.mxu0 0
      %4791 = vmatpush1.bf16.msra.mxu0 0
      %4792 = vmatprep.subr.bf16.mxu0 0
      %4793 = vmatpush1.bf16.msra.mxu0 0
      %4794 = vmatprep.subr.bf16.mxu0 0
      %4795 = vmatpush1.bf16.msra.mxu0 0
      %4796 = vmatprep.subr.bf16.mxu0 %v4689
      %4797 = vmatpush1.bf16.msra.mxu0 %v4686
      %4798 = vmatprep.subr.bf16.mxu0 0
      %4799 = vmatpush2.bf16.msra.mxu0 0
      %4800 = vmatprep.subr.bf16.mxu0 0
      %4801 = vmatpush2.bf16.msra.mxu0 0
      %4802 = vmatprep.subr.bf16.mxu0 0
      %4803 = vmatpush2.bf16.msra.mxu0 0
      %4804 = vmatprep.subr.bf16.mxu0 0
      %4805 = vmatpush2.bf16.msra.mxu0 0
      %4806 = vmatprep.subr.bf16.mxu0 0
      %4807 = vmatpush2.bf16.msra.mxu0 0
      %4808 = vmatprep.subr.bf16.mxu0 0
      %4809 = vmatpush2.bf16.msra.mxu0 0
      %4810 = vmatprep.subr.bf16.mxu0 0
      %4811 = vmatpush2.bf16.msra.mxu0 0
      %4812 = vmatprep.subr.bf16.mxu0 0
      %4813 = vmatpush2.bf16.msra.mxu0 0
      %4814 = vmatprep.mubr.bf16.mxu0 0
      %4815 = vmatmul.mubr.bf16.gmra.mxu0 %v4671
      %v4816 = vpop.f32.mrf.mxu0
      %v4817 = vadd.f32 0.0, %v4816
      %v4818 = vpop.f32.mrf.mxu0
      %v4819 = vadd.f32 0.0, %v4818
      %v4820 = vpop.f32.mrf.mxu0
      %v4821 = vpop.f32.mrf.mxu0
      %4822 = vdwg.mxu0
      %4823 = vmatprep.subr.bf16.mxu0 0
      %4824 = vmatpush1.bf16.msra.mxu0 0
      %4825 = vmatprep.subr.bf16.mxu0 0
      %4826 = vmatpush1.bf16.msra.mxu0 0
      %4827 = vmatprep.subr.bf16.mxu0 0
      %4828 = vmatpush1.bf16.msra.mxu0 0
      %4829 = vmatprep.subr.bf16.mxu0 0
      %4830 = vmatpush1.bf16.msra.mxu0 0
      %4831 = vmatprep.subr.bf16.mxu0 0
      %4832 = vmatpush1.bf16.msra.mxu0 0
      %4833 = vmatprep.subr.bf16.mxu0 0
      %4834 = vmatpush1.bf16.msra.mxu0 0
      %4835 = vmatprep.subr.bf16.mxu0 0
      %4836 = vmatpush1.bf16.msra.mxu0 0
      %4837 = vmatprep.subr.bf16.mxu0 %v4695
      %4838 = vmatpush1.bf16.msra.mxu0 %v4692
      %4839 = vmatprep.subr.bf16.mxu0 0
      %4840 = vmatpush2.bf16.msra.mxu0 0
      %4841 = vmatprep.subr.bf16.mxu0 0
      %4842 = vmatpush2.bf16.msra.mxu0 0
      %4843 = vmatprep.subr.bf16.mxu0 0
      %4844 = vmatpush2.bf16.msra.mxu0 0
      %4845 = vmatprep.subr.bf16.mxu0 0
      %4846 = vmatpush2.bf16.msra.mxu0 0
      %4847 = vmatprep.subr.bf16.mxu0 0
      %4848 = vmatpush2.bf16.msra.mxu0 0
      %4849 = vmatprep.subr.bf16.mxu0 0
      %4850 = vmatpush2.bf16.msra.mxu0 0
      %4851 = vmatprep.subr.bf16.mxu0 0
      %4852 = vmatpush2.bf16.msra.mxu0 0
      %4853 = vmatprep.subr.bf16.mxu0 0
      %4854 = vmatpush2.bf16.msra.mxu0 0
      %4855 = vmatprep.mubr.bf16.mxu0 0
      %4856 = vmatmul.mubr.bf16.gmra.mxu0 %v4671
      %v4857 = vpop.f32.mrf.mxu0
      %v4858 = vadd.f32 0.0, %v4857
      %v4859 = vpop.f32.mrf.mxu0
      %v4860 = vadd.f32 0.0, %v4859
      %v4861 = vpop.f32.mrf.mxu0
      %v4862 = vpop.f32.mrf.mxu0
      %4863 = vdwg.mxu0
      %4864 = vmatprep.subr.bf16.mxu0 0
      %4865 = vmatpush1.bf16.msra.mxu0 0
      %4866 = vmatprep.subr.bf16.mxu0 0
      %4867 = vmatpush1.bf16.msra.mxu0 0
      %4868 = vmatprep.subr.bf16.mxu0 0
      %4869 = vmatpush1.bf16.msra.mxu0 0
      %4870 = vmatprep.subr.bf16.mxu0 0
      %4871 = vmatpush1.bf16.msra.mxu0 0
      %4872 = vmatprep.subr.bf16.mxu0 0
      %4873 = vmatpush1.bf16.msra.mxu0 0
      %4874 = vmatprep.subr.bf16.mxu0 0
      %4875 = vmatpush1.bf16.msra.mxu0 0
      %4876 = vmatprep.subr.bf16.mxu0 0
      %4877 = vmatpush1.bf16.msra.mxu0 0
      %4878 = vmatprep.subr.bf16.mxu0 0
      %4879 = vmatpush1.bf16.msra.mxu0 %v4698
      %4880 = vmatprep.subr.bf16.mxu0 0
      %4881 = vmatpush2.bf16.msra.mxu0 0
      %4882 = vmatprep.subr.bf16.mxu0 0
      %4883 = vmatpush2.bf16.msra.mxu0 0
      %4884 = vmatprep.subr.bf16.mxu0 0
      %4885 = vmatpush2.bf16.msra.mxu0 0
      %4886 = vmatprep.subr.bf16.mxu0 0
      %4887 = vmatpush2.bf16.msra.mxu0 0
      %4888 = vmatprep.subr.bf16.mxu0 0
      %4889 = vmatpush2.bf16.msra.mxu0 0
      %4890 = vmatprep.subr.bf16.mxu0 0
      %4891 = vmatpush2.bf16.msra.mxu0 0
      %4892 = vmatprep.subr.bf16.mxu0 0
      %4893 = vmatpush2.bf16.msra.mxu0 0
      %4894 = vmatprep.subr.bf16.mxu0 0
      %4895 = vmatpush2.bf16.msra.mxu0 0
      %4896 = vmatprep.mubr.bf16.mxu0 0
      %4897 = vmatmul.mubr.bf16.gmra.mxu0 %v4671
      %v4898 = vpop.f32.mrf.mxu0
      %v4899 = vadd.f32 0.0, %v4898
      %v4900 = vpop.f32.mrf.mxu0
      %v4901 = vpop.f32.mrf.mxu0
      %v4902 = vpop.f32.mrf.mxu0
      %4903 = vdwg.mxu0
      %v4904 = vadd.f32 %v4629, %v4735
      %v4905 = vadd.f32 %v4630, %v4737
      %v4906 = vadd.f32 %v4631, %v4776
      %v4907 = vadd.f32 %v4632, %v4778
      %v4908 = vadd.f32 %v4633, %v4817
      %v4909 = vadd.f32 %v4634, %v4819
      %v4910 = vadd.f32 %v4635, %v4858
      %v4911 = vadd.f32 %v4636, %v4860
      %v4912 = vadd.f32 %v4637, %v4899
      %s4913 = scalar_lea.vmem %s3, 16
      %v4914 = vld [vmem:[%s4913] sm:$0x3]
      %4915 = vrot.lane.b32.xlu0 %v293, 58
      %v4916 = vpop.permute.xlu0 %4915
      %4917 = vrot.lane.b32.xlu0 %v301, 58
      %v4918 = vpop.permute.xlu0 %4917
      %4919 = vrot.lane.b32.xlu0 %v300, 58
      %v4920 = vpop.permute.xlu0 %4919
      %4921 = vrot.lane.b32.xlu0 %v302, 58
      %v4922 = vpop.permute.xlu0 %4921
      %4923 = vrot.lane.b32.xlu0 %v310, 58
      %v4924 = vpop.permute.xlu0 %4923
      %4925 = vrot.lane.b32.xlu0 %v318, 58
      %v4926 = vpop.permute.xlu0 %4925
      %4927 = vrot.lane.b32.xlu0 %v317, 58
      %v4928 = vpop.permute.xlu0 %4927
      %4929 = vrot.lane.b32.xlu0 %v319, 58
      %v4930 = vpop.permute.xlu0 %4929
      %4931 = vrot.lane.b32.xlu0 %v326, 58
      %v4932 = vpop.permute.xlu0 %4931
      %4933 = vrot.lane.b32.xlu0 %v3816, 58
      %v4934 = vpop.permute.xlu0 %4933
      %v4935 = vsel %vm4660, %v4916, %v4918
      %v4936 = vsel %vm4660, %v4918, %v4920
      %v4937 = vsel %vm4660, %v4920, %v4922
      %v4938 = vsel %vm4660, %v4922, %v4924
      %v4939 = vsel %vm4660, %v4924, %v4926
      %v4940 = vsel %vm4660, %v4926, %v4928
      %v4941 = vsel %vm4660, %v4928, %v4930
      %v4942 = vsel %vm4660, %v4930, %v4932
      %v4943 = vsel %vm4660, %v4932, %v4934
      %v4945 = vsel %vm327, %v4914, 0
      %v4948 = vsel %vm331, %v4935, 0
      %v4951 = vsel %vm331, %v4936, 0
      %v4954 = vsel %vm331, %v4937, 0
      %v4957 = vsel %vm331, %v4938, 0
      %v4960 = vsel %vm331, %v4939, 0
      %v4963 = vsel %vm331, %v4940, 0
      %v4966 = vsel %vm331, %v4941, 0
      %v4969 = vsel %vm331, %v4942, 0
      %v4972 = vsel %vm331, %v4943, 0
      %4974 = vmatprep.subr.bf16.mxu0 0
      %4975 = vmatpush1.bf16.msra.mxu0 0
      %4976 = vmatprep.subr.bf16.mxu0 0
      %4977 = vmatpush1.bf16.msra.mxu0 0
      %4978 = vmatprep.subr.bf16.mxu0 0
      %4979 = vmatpush1.bf16.msra.mxu0 0
      %4980 = vmatprep.subr.bf16.mxu0 0
      %4981 = vmatpush1.bf16.msra.mxu0 0
      %4982 = vmatprep.subr.bf16.mxu0 0
      %4983 = vmatpush1.bf16.msra.mxu0 0
      %4984 = vmatprep.subr.bf16.mxu0 0
      %4985 = vmatpush1.bf16.msra.mxu0 0
      %4986 = vmatprep.subr.bf16.mxu0 0
      %4987 = vmatpush1.bf16.msra.mxu0 0
      %4988 = vmatprep.subr.bf16.mxu0 %v4951
      %4989 = vmatpush1.bf16.msra.mxu0 %v4948
      %4990 = vmatprep.subr.bf16.mxu0 0
      %4991 = vmatpush2.bf16.msra.mxu0 0
      %4992 = vmatprep.subr.bf16.mxu0 0
      %4993 = vmatpush2.bf16.msra.mxu0 0
      %4994 = vmatprep.subr.bf16.mxu0 0
      %4995 = vmatpush2.bf16.msra.mxu0 0
      %4996 = vmatprep.subr.bf16.mxu0 0
      %4997 = vmatpush2.bf16.msra.mxu0 0
      %4998 = vmatprep.subr.bf16.mxu0 0
      %4999 = vmatpush2.bf16.msra.mxu0 0
      %5000 = vmatprep.subr.bf16.mxu0 0
      %5001 = vmatpush2.bf16.msra.mxu0 0
      %5002 = vmatprep.subr.bf16.mxu0 0
      %5003 = vmatpush2.bf16.msra.mxu0 0
      %5004 = vmatprep.subr.bf16.mxu0 0
      %5005 = vmatpush2.bf16.msra.mxu0 0
      %5006 = vmatprep.mubr.bf16.mxu0 0
      %5007 = vmatmul.mubr.bf16.gmra.mxu0 %v4945
      %v5008 = vpop.f32.mrf.mxu0
      %v5009 = vadd.f32 0.0, %v5008
      %v5010 = vpop.f32.mrf.mxu0
      %v5011 = vadd.f32 0.0, %v5010
      %v5012 = vpop.f32.mrf.mxu0
      %v5013 = vpop.f32.mrf.mxu0
      %5014 = vdwg.mxu0
      %5015 = vmatprep.subr.bf16.mxu0 0
      %5016 = vmatpush1.bf16.msra.mxu0 0
      %5017 = vmatprep.subr.bf16.mxu0 0
      %5018 = vmatpush1.bf16.msra.mxu0 0
      %5019 = vmatprep.subr.bf16.mxu0 0
      %5020 = vmatpush1.bf16.msra.mxu0 0
      %5021 = vmatprep.subr.bf16.mxu0 0
      %5022 = vmatpush1.bf16.msra.mxu0 0
      %5023 = vmatprep.subr.bf16.mxu0 0
      %5024 = vmatpush1.bf16.msra.mxu0 0
      %5025 = vmatprep.subr.bf16.mxu0 0
      %5026 = vmatpush1.bf16.msra.mxu0 0
      %5027 = vmatprep.subr.bf16.mxu0 0
      %5028 = vmatpush1.bf16.msra.mxu0 0
      %5029 = vmatprep.subr.bf16.mxu0 %v4957
      %5030 = vmatpush1.bf16.msra.mxu0 %v4954
      %5031 = vmatprep.subr.bf16.mxu0 0
      %5032 = vmatpush2.bf16.msra.mxu0 0
      %5033 = vmatprep.subr.bf16.mxu0 0
      %5034 = vmatpush2.bf16.msra.mxu0 0
      %5035 = vmatprep.subr.bf16.mxu0 0
      %5036 = vmatpush2.bf16.msra.mxu0 0
      %5037 = vmatprep.subr.bf16.mxu0 0
      %5038 = vmatpush2.bf16.msra.mxu0 0
      %5039 = vmatprep.subr.bf16.mxu0 0
      %5040 = vmatpush2.bf16.msra.mxu0 0
      %5041 = vmatprep.subr.bf16.mxu0 0
      %5042 = vmatpush2.bf16.msra.mxu0 0
      %5043 = vmatprep.subr.bf16.mxu0 0
      %5044 = vmatpush2.bf16.msra.mxu0 0
      %5045 = vmatprep.subr.bf16.mxu0 0
      %5046 = vmatpush2.bf16.msra.mxu0 0
      %5047 = vmatprep.mubr.bf16.mxu0 0
      %5048 = vmatmul.mubr.bf16.gmra.mxu0 %v4945
      %v5049 = vpop.f32.mrf.mxu0
      %v5050 = vadd.f32 0.0, %v5049
      %v5051 = vpop.f32.mrf.mxu0
      %v5052 = vadd.f32 0.0, %v5051
      %v5053 = vpop.f32.mrf.mxu0
      %v5054 = vpop.f32.mrf.mxu0
      %5055 = vdwg.mxu0
      %5056 = vmatprep.subr.bf16.mxu0 0
      %5057 = vmatpush1.bf16.msra.mxu0 0
      %5058 = vmatprep.subr.bf16.mxu0 0
      %5059 = vmatpush1.bf16.msra.mxu0 0
      %5060 = vmatprep.subr.bf16.mxu0 0
      %5061 = vmatpush1.bf16.msra.mxu0 0
      %5062 = vmatprep.subr.bf16.mxu0 0
      %5063 = vmatpush1.bf16.msra.mxu0 0
      %5064 = vmatprep.subr.bf16.mxu0 0
      %5065 = vmatpush1.bf16.msra.mxu0 0
      %5066 = vmatprep.subr.bf16.mxu0 0
      %5067 = vmatpush1.bf16.msra.mxu0 0
      %5068 = vmatprep.subr.bf16.mxu0 0
      %5069 = vmatpush1.bf16.msra.mxu0 0
      %5070 = vmatprep.subr.bf16.mxu0 %v4963
      %5071 = vmatpush1.bf16.msra.mxu0 %v4960
      %5072 = vmatprep.subr.bf16.mxu0 0
      %5073 = vmatpush2.bf16.msra.mxu0 0
      %5074 = vmatprep.subr.bf16.mxu0 0
      %5075 = vmatpush2.bf16.msra.mxu0 0
      %5076 = vmatprep.subr.bf16.mxu0 0
      %5077 = vmatpush2.bf16.msra.mxu0 0
      %5078 = vmatprep.subr.bf16.mxu0 0
      %5079 = vmatpush2.bf16.msra.mxu0 0
      %5080 = vmatprep.subr.bf16.mxu0 0
      %5081 = vmatpush2.bf16.msra.mxu0 0
      %5082 = vmatprep.subr.bf16.mxu0 0
      %5083 = vmatpush2.bf16.msra.mxu0 0
      %5084 = vmatprep.subr.bf16.mxu0 0
      %5085 = vmatpush2.bf16.msra.mxu0 0
      %5086 = vmatprep.subr.bf16.mxu0 0
      %5087 = vmatpush2.bf16.msra.mxu0 0
      %5088 = vmatprep.mubr.bf16.mxu0 0
      %5089 = vmatmul.mubr.bf16.gmra.mxu0 %v4945
      %v5090 = vpop.f32.mrf.mxu0
      %v5091 = vadd.f32 0.0, %v5090
      %v5092 = vpop.f32.mrf.mxu0
      %v5093 = vadd.f32 0.0, %v5092
      %v5094 = vpop.f32.mrf.mxu0
      %v5095 = vpop.f32.mrf.mxu0
      %5096 = vdwg.mxu0
      %5097 = vmatprep.subr.bf16.mxu0 0
      %5098 = vmatpush1.bf16.msra.mxu0 0
      %5099 = vmatprep.subr.bf16.mxu0 0
      %5100 = vmatpush1.bf16.msra.mxu0 0
      %5101 = vmatprep.subr.bf16.mxu0 0
      %5102 = vmatpush1.bf16.msra.mxu0 0
      %5103 = vmatprep.subr.bf16.mxu0 0
      %5104 = vmatpush1.bf16.msra.mxu0 0
      %5105 = vmatprep.subr.bf16.mxu0 0
      %5106 = vmatpush1.bf16.msra.mxu0 0
      %5107 = vmatprep.subr.bf16.mxu0 0
      %5108 = vmatpush1.bf16.msra.mxu0 0
      %5109 = vmatprep.subr.bf16.mxu0 0
      %5110 = vmatpush1.bf16.msra.mxu0 0
      %5111 = vmatprep.subr.bf16.mxu0 %v4969
      %5112 = vmatpush1.bf16.msra.mxu0 %v4966
      %5113 = vmatprep.subr.bf16.mxu0 0
      %5114 = vmatpush2.bf16.msra.mxu0 0
      %5115 = vmatprep.subr.bf16.mxu0 0
      %5116 = vmatpush2.bf16.msra.mxu0 0
      %5117 = vmatprep.subr.bf16.mxu0 0
      %5118 = vmatpush2.bf16.msra.mxu0 0
      %5119 = vmatprep.subr.bf16.mxu0 0
      %5120 = vmatpush2.bf16.msra.mxu0 0
      %5121 = vmatprep.subr.bf16.mxu0 0
      %5122 = vmatpush2.bf16.msra.mxu0 0
      %5123 = vmatprep.subr.bf16.mxu0 0
      %5124 = vmatpush2.bf16.msra.mxu0 0
      %5125 = vmatprep.subr.bf16.mxu0 0
      %5126 = vmatpush2.bf16.msra.mxu0 0
      %5127 = vmatprep.subr.bf16.mxu0 0
      %5128 = vmatpush2.bf16.msra.mxu0 0
      %5129 = vmatprep.mubr.bf16.mxu0 0
      %5130 = vmatmul.mubr.bf16.gmra.mxu0 %v4945
      %v5131 = vpop.f32.mrf.mxu0
      %v5132 = vadd.f32 0.0, %v5131
      %v5133 = vpop.f32.mrf.mxu0
      %v5134 = vadd.f32 0.0, %v5133
      %v5135 = vpop.f32.mrf.mxu0
      %v5136 = vpop.f32.mrf.mxu0
      %5137 = vdwg.mxu0
      %5138 = vmatprep.subr.bf16.mxu0 0
      %5139 = vmatpush1.bf16.msra.mxu0 0
      %5140 = vmatprep.subr.bf16.mxu0 0
      %5141 = vmatpush1.bf16.msra.mxu0 0
      %5142 = vmatprep.subr.bf16.mxu0 0
      %5143 = vmatpush1.bf16.msra.mxu0 0
      %5144 = vmatprep.subr.bf16.mxu0 0
      %5145 = vmatpush1.bf16.msra.mxu0 0
      %5146 = vmatprep.subr.bf16.mxu0 0
      %5147 = vmatpush1.bf16.msra.mxu0 0
      %5148 = vmatprep.subr.bf16.mxu0 0
      %5149 = vmatpush1.bf16.msra.mxu0 0
      %5150 = vmatprep.subr.bf16.mxu0 0
      %5151 = vmatpush1.bf16.msra.mxu0 0
      %5152 = vmatprep.subr.bf16.mxu0 0
      %5153 = vmatpush1.bf16.msra.mxu0 %v4972
      %5154 = vmatprep.subr.bf16.mxu0 0
      %5155 = vmatpush2.bf16.msra.mxu0 0
      %5156 = vmatprep.subr.bf16.mxu0 0
      %5157 = vmatpush2.bf16.msra.mxu0 0
      %5158 = vmatprep.subr.bf16.mxu0 0
      %5159 = vmatpush2.bf16.msra.mxu0 0
      %5160 = vmatprep.subr.bf16.mxu0 0
      %5161 = vmatpush2.bf16.msra.mxu0 0
      %5162 = vmatprep.subr.bf16.mxu0 0
      %5163 = vmatpush2.bf16.msra.mxu0 0
      %5164 = vmatprep.subr.bf16.mxu0 0
      %5165 = vmatpush2.bf16.msra.mxu0 0
      %5166 = vmatprep.subr.bf16.mxu0 0
      %5167 = vmatpush2.bf16.msra.mxu0 0
      %5168 = vmatprep.subr.bf16.mxu0 0
      %5169 = vmatpush2.bf16.msra.mxu0 0
      %5170 = vmatprep.mubr.bf16.mxu0 0
      %5171 = vmatmul.mubr.bf16.gmra.mxu0 %v4945
      %v5172 = vpop.f32.mrf.mxu0
      %v5173 = vadd.f32 0.0, %v5172
      %v5174 = vpop.f32.mrf.mxu0
      %v5175 = vpop.f32.mrf.mxu0
      %v5176 = vpop.f32.mrf.mxu0
      %5177 = vdwg.mxu0
      %v5178 = vadd.f32 %v4904, %v5009
      %v5179 = vadd.f32 %v4905, %v5011
      %v5180 = vadd.f32 %v4906, %v5050
      %v5181 = vadd.f32 %v4907, %v5052
      %v5182 = vadd.f32 %v4908, %v5091
      %v5183 = vadd.f32 %v4909, %v5093
      %v5184 = vadd.f32 %v4910, %v5132
      %v5185 = vadd.f32 %v4911, %v5134
      %v5186 = vadd.f32 %v4912, %v5173
      %v5187 = vld [vmem:[%s4] sm:$0xf]
      %5189 = vset.pattern.permute.xlu0 0
      %5190 = vperm.xlu0 %5189, %v5187
      %v5191 = vpop.permute.xlu0 %5190
      %v5193 = vmul.f32 %v5178, %v5191
      %v5194 = vmul.f32 %v5179, %v5191
      %v5195 = vmul.f32 %v5180, %v5191
      %v5196 = vmul.f32 %v5181, %v5191
      %v5197 = vmul.f32 %v5182, %v5191
      %v5198 = vmul.f32 %v5183, %v5191
      %v5199 = vmul.f32 %v5184, %v5191
      %v5200 = vmul.f32 %v5185, %v5191
      %v5201 = vmul.f32 %v5186, %v5191
      %v5202 = vld [vmem:[%s5] sm:$0xf]
      %5204 = vset.pattern.permute.xlu0 0
      %5205 = vperm.xlu0 %5204, %v5202
      %v5206 = vpop.permute.xlu0 %5205
      %v5208 = vadd.f32 %v5193, %v5206
      %v5209 = vadd.f32 %v5194, %v5206
      %v5210 = vadd.f32 %v5195, %v5206
      %v5211 = vadd.f32 %v5196, %v5206
      %v5212 = vadd.f32 %v5197, %v5206
      %v5213 = vadd.f32 %v5198, %v5206
      %v5214 = vadd.f32 %v5199, %v5206
      %v5215 = vadd.f32 %v5200, %v5206
      %v5216 = vadd.f32 %v5201, %v5206
      %v5225 = vcombine.low %v5208, %v5209
      %v5226 = vcombine.low %v5210, %v5211
      %v5227 = vcombine.low %v5212, %v5213
      %v5228 = vcombine.low %v5214, %v5215
      %5233 = vst [vmem:[%s271] sm:$0xff] %v5225
      %5234 = vst [vmem:[%s271 + $0x8] sm:$0xff] %v5226
      %5235 = vst [vmem:[%s271 + $0x10] sm:$0xff] %v5227
      %5236 = vst [vmem:[%s271 + $0x18] sm:$0xff] %v5228
      %vm5237 = vcmask 519168
      %5238 = vst.msk [vmem:[%s271 + $0x20] sm:$0xf] %vm5237, %v5216
      %p5239 = scmp.lt.s32.totalorder %s17, 1
      %s5240 = scalar_select %p5239, %s17, 1
      %s5241 = smul.addr %s5240, 9
      %s5242 = smul.addr %s5241, 4
      %s5243 = scalar_lea.vmem %s6, %s5242
      // Predicated region
      $region45: #{decoder_forward.7} parent=43 // pred_check
        %p5244 = pneg %p171
      $region46: #{decoder_forward.7} parent=43 // pred_check_branch
        %5246 = sbr.rel (%p5244) target = $region48
      $region47: #{decoder_forward.7} parent=43 // pred_region
        _
      $region48: #{decoder_forward.7} parent=43 // pred_fallthru
        _
    $region44: #{decoder_forward.7} parent=5 // pred_fallthru
      _
    %p5247 = scmp.le.s32.totalorder 2, %s12
    // Predicated region
    $region49: #{decoder_forward.7} parent=5 // pred_check
      %p5248 = pneg %p5247
    $region50: #{decoder_forward.7} parent=5 // pred_check_branch
      %5250 = sbr.rel (%p5248) target = $region52
    $region51: #{decoder_forward.7} parent=5 // pred_region
      %s5251 = ssub.s32 %s12, 2
      // Predicated region
      $region53: #{decoder_forward.7} parent=51 // pred_check
        %p5252 = pneg %p177
      $region54: #{decoder_forward.7} parent=51 // pred_check_branch
        %5254 = sbr.rel (%p5252) target = $region56
      $region55: #{decoder_forward.7} parent=51 // pred_region
        %p5255 = scmp.lt.s32.totalorder %s18, 1
        %s5256 = scalar_select %p5255, %s18, 1
        %s5257 = smul.addr %s5256, 9
        %s5258 = smul.addr %s5257, 4
        %s5259 = scalar_lea.vmem %s6, %s5258
      $region56: #{decoder_forward.7} parent=51 // pred_fallthru
        _
    $region52: #{decoder_forward.7} parent=5 // pred_fallthru
      _
  $region6: #{decoder_forward.7} parent=0 // loop_footer
    %s16 = sadd.s32 1, %s12
  $region7: #{decoder_forward.7} parent=0 // loop_footer_branch
    %11 = sbr.rel target = $region3
  $region8: #{decoder_forward.7} parent=0 // loop_exit
    _

</llo_original>
